<compile_context>
chip_gen: v6e
topology: v6e:2x2x1
jax: 0.10.0
libtpu: 0.0.40
codegen_flags: <defaults>
</compile_context>

<pallas_src>
import jax
import jax.numpy as jnp
from jax.experimental import pallas as pl
from jax.experimental.pallas import tpu as pltpu

C_IN, C1, C2, C3 = 2048, 1024, 512, 256


# ----------------------------- Pallas kernel -------------------------------- #
def cnnfc_kernel(x_ref, w1_ref, b1_ref, w2_ref, b2_ref, w3_ref, b3_ref, out_ref):
    p_idx = pl.program_id(1)
    tb, T, tp, C = x_ref.shape

    # conv1 = ReLU -> (1x1 conv with folded BN) -> ReLU, three times
    # (2048 -> 1024 -> 512 -> 256).  Bias-add/ReLU in f32; MXU inputs are bf16.
    h = jnp.maximum(x_ref[...], 0).reshape(tb * T * tp, C)            # bf16
    h = jnp.dot(h, w1_ref[...], preferred_element_type=jnp.float32) + b1_ref[...]
    h = jnp.maximum(h, 0.0).astype(jnp.bfloat16)
    h = jnp.dot(h, w2_ref[...], preferred_element_type=jnp.float32) + b2_ref[...]
    h = jnp.maximum(h, 0.0).astype(jnp.bfloat16)
    h = jnp.dot(h, w3_ref[...], preferred_element_type=jnp.float32) + b3_ref[...]
    h = jnp.maximum(h, 0.0)                                            # f32 (M, 256)

    # AdaptiveAvgPool2d((1,1)): spatial SUM accumulated over the p grid axis in
    # the resident output block; the 1/P scale is applied in the wrapper.
    partial = h.reshape(tb, T, tp, C3).sum(axis=2)                     # (tb, T, 256)

    @pl.when(p_idx == 0)
    def _():
        out_ref[...] = jnp.zeros_like(out_ref)

    out_ref[...] += partial


# ------------------------------ host wrapper -------------------------------- #
def _pick_tiles(B, T, P, target_rows=512):
    """Pick (tile_b, tile_p) so tile_b*T*tile_p ~ target_rows (MXU-filling M),
    tile_p is a sublane-friendly divisor of P (or the full extent), and the
    parallel batch grid axis keeps >= 2 steps when possible (v7x megacore)."""
    tile_p = P
    if T * P > target_rows:
        best = None
        for cand in range(8, P, 8):
            if P % cand == 0 and T * cand <= target_rows:
                best = cand
        if best is not None:
            tile_p = best
    tile_b = max(1, min(B, target_rows // max(1, T * tile_p)))
    while tile_b > 1 and (B % tile_b != 0 or B // tile_b < 2):
        tile_b -= 1
    return tile_b, tile_p


def cnnfc_forward(x, params, *, target_rows=512):
    B, T, P, C = x.shape
    (w1, b1), (w2, b2), (w3, b3), (we, be), (wa, ba) = params
    assert C == C_IN

    tile_b, tile_p = _pick_tiles(B, T, P, target_rows)
    assert B % tile_b == 0 and P % tile_p == 0

    # bf16 x stream + bf16 weights for the MXU; biases stay f32 (tiny).
    xb = x.astype(jnp.bfloat16)
    w1b = w1.astype(jnp.bfloat16)
    w2b = w2.astype(jnp.bfloat16)
    w3b = w3.astype(jnp.bfloat16)

    def const_spec(arr):
        nd = arr.ndim
        # Constant index_map -> never re-DMA'd; single buffer saves VMEM.
        return pl.BlockSpec(arr.shape, lambda b, p, _nd=nd: (0,) * _nd,
                            pipeline_mode=pl.Buffered(1))

    flops = 2 * B * T * P * (C_IN * C1 + C1 * C2 + C2 * C3)
    bytes_accessed = (xb.size * 2
                      + (w1b.size + w2b.size + w3b.size) * 2
                      + (b1.size + b2.size + b3.size) * 4
                      + B * T * C3 * 4)

    pooled_sum = pl.pallas_call(
        cnnfc_kernel,
        out_shape=jax.ShapeDtypeStruct((B, T, C3), jnp.float32),
        grid_spec=pltpu.PrefetchScalarGridSpec(
            num_scalar_prefetch=0,
            grid=(B // tile_b, P // tile_p),
            in_specs=[
                pl.BlockSpec((tile_b, T, tile_p, C), lambda b, p: (b, 0, p, 0)),
                const_spec(w1b), const_spec(b1),
                const_spec(w2b), const_spec(b2),
                const_spec(w3b), const_spec(b3),
            ],
            out_specs=pl.BlockSpec((tile_b, T, C3), lambda b, p: (b, 0, 0)),
        ),
        compiler_params=pltpu.CompilerParams(
            dimension_semantics=("parallel", "arbitrary"),
            vmem_limit_bytes=32 << 20),
        cost_estimate=pl.CostEstimate(
            flops=flops, transcendentals=0, bytes_accessed=bytes_accessed),
    )(xb, w1b, b1, w2b, b2, w3b, b3)

    # AdaptiveAvgPool scale, Dropout(p=0.5) eval-mode identity, then Head
    # (tiny (T*256)x(E+A) matmuls; done in the wrapper to keep the kernel's
    # output lane-dense and avoid a per-step cross-lane relayout).
    feat = (pooled_sum / float(P)).reshape(B, T * C3)
    ego = feat @ we + be
    actor = feat @ wa + ba
    return ego, actor


# ------------------------------- params / ref -------------------------------- #
def fold_bn(w, b, gamma, beta, mean, var, eps=1e-5):
    """Fold eval-mode BatchNorm into a (C_in, C_out) matmul weight + (1, C_out) bias."""
    scale = gamma / jnp.sqrt(var + eps)
    return w * scale[None, :], ((b - mean) * scale + beta)[None, :]


def make_params(key, num_seq, num_ego_class, num_actor_class):
    ks = jax.random.split(key, 5)

    def lin(k, cin, cout, s=0.02):
        return (jax.random.normal(k, (cin, cout), jnp.float32) * s,
                jax.random.normal(jax.random.fold_in(k, 1), (cout,), jnp.float32) * s)

    # conv1 (1x1 convs) with fresh eval-mode BN (gamma=1, beta=0, mean=0, var=1)
    def conv_bn(k, cin, cout):
        w, b = lin(k, cin, cout)
        gamma = jnp.ones((cout,), jnp.float32)
        beta = jnp.zeros((cout,), jnp.float32)
        mean = jnp.zeros((cout,), jnp.float32)
        var = jnp.ones((cout,), jnp.float32)
        return fold_bn(w, b, gamma, beta, mean, var)

    p1 = conv_bn(ks[0], C_IN, C1)
    p2 = conv_bn(ks[1], C1, C2)
    p3 = conv_bn(ks[2], C2, C3)

    d = num_seq * C3
    we, be = lin(ks[3], d, num_ego_class)
    wa, ba = lin(ks[4], d, num_actor_class)
    return p1, p2, p3, (we, be), (wa, ba)


def reference_forward(x, params):
    """Plain-JAX f32 reference for a numerical sanity check."""
    B, T, P, C = x.shape
    (w1, b1), (w2, b2), (w3, b3), (we, be), (wa, ba) = params
    h = jnp.maximum(x.reshape(B * T * P, C), 0.0)
    h = jnp.maximum(h @ w1 + b1, 0.0)
    h = jnp.maximum(h @ w2 + b2, 0.0)
    h = jnp.maximum(h @ w3 + b3, 0.0)
    feat = h.reshape(B, T, P, C3).mean(axis=2).reshape(B, T * C3)
    return feat @ we + be, feat @ wa + ba


if __name__ == "__main__":
    # Small, module-consistent shapes: batch=2, seq=3 frames of 2048-channel
    # res5-like features with 4x4 spatial extent (P = 16).
    B, T, H, W, C = 2, 3, 4, 4, 2048
    P = H * W
    num_ego_class, num_actor_class = 4, 8

    key = jax.random.PRNGKey(0)
    kx, kp = jax.random.split(key)
    x = jax.random.normal(kx, (B, T, P, C), jnp.float32)
    params = make_params(kp, T, num_ego_class, num_actor_class)

    ego, actor = cnnfc_forward(x, params)
    jax.block_until_ready((ego, actor))

    ego_ref, actor_ref = reference_forward(x, params)
    assert ego.shape == (B, num_ego_class) and actor.shape == (B, num_actor_class)
    assert jnp.allclose(ego, ego_ref, rtol=1e-2, atol=1e-2)
    assert jnp.allclose(actor, actor_ref, rtol=1e-2, atol=1e-2)

    print("KERNEL_OK")
</pallas_src>

<mosaic_0001>
module attributes {stable_mosaic.version = 11 : i64} {
  func.func @cnnfc_kernel(%arg0: i32, %arg1: i32, %arg2: memref<1x3x16x2048xbf16, #tpu.memory_space<vmem>>, %arg3: memref<2048x1024xbf16, #tpu.memory_space<vmem>>, %arg4: memref<1x1024xf32, #tpu.memory_space<vmem>>, %arg5: memref<1024x512xbf16, #tpu.memory_space<vmem>>, %arg6: memref<1x512xf32, #tpu.memory_space<vmem>>, %arg7: memref<512x256xbf16, #tpu.memory_space<vmem>>, %arg8: memref<1x256xf32, #tpu.memory_space<vmem>>, %arg9: memref<1x3x256xf32, #tpu.memory_space<vmem>>) attributes {dimension_semantics = [#tpu.dimension_semantics<parallel>, #tpu.dimension_semantics<arbitrary>], iteration_bounds = array<i64: 2, 1>, scalar_prefetch = 0 : i64, scratch_operands = 0 : i64, tpu.core_type = #tpu.core_type<tc>, window_params = [{transform_indices = @transform_0, window_bounds = array<i64: 1, 3, 16, 2048>}, {pipeline_mode = #tpu.pipeline_mode<synchronous>, transform_indices = @transform_1, window_bounds = array<i64: 2048, 1024>}, {pipeline_mode = #tpu.pipeline_mode<synchronous>, transform_indices = @transform_2, window_bounds = array<i64: 1, 1024>}, {pipeline_mode = #tpu.pipeline_mode<synchronous>, transform_indices = @transform_3, window_bounds = array<i64: 1024, 512>}, {pipeline_mode = #tpu.pipeline_mode<synchronous>, transform_indices = @transform_4, window_bounds = array<i64: 1, 512>}, {pipeline_mode = #tpu.pipeline_mode<synchronous>, transform_indices = @transform_5, window_bounds = array<i64: 512, 256>}, {pipeline_mode = #tpu.pipeline_mode<synchronous>, transform_indices = @transform_6, window_bounds = array<i64: 1, 256>}, {transform_indices = @transform_7, window_bounds = array<i64: 1, 3, 256>}]} {
    %c0 = arith.constant 0 : index
    %c0_0 = arith.constant 0 : index
    %c0_1 = arith.constant 0 : index
    %c0_2 = arith.constant 0 : index
    %0 = vector.load %arg2[%c0, %c0_0, %c0_1, %c0_2] : memref<1x3x16x2048xbf16, #tpu.memory_space<vmem>>, vector<1x3x16x2048xbf16>
    %cst = arith.constant 0.000000e+00 : bf16
    %1 = vector.broadcast %cst : bf16 to vector<1x3x16x2048xbf16>
    %2 = arith.maximumf %0, %1 : vector<1x3x16x2048xbf16>
    %3 = vector.shape_cast %2 : vector<1x3x16x2048xbf16> to vector<48x2048xbf16>
    %c0_3 = arith.constant 0 : index
    %c0_4 = arith.constant 0 : index
    %4 = vector.load %arg3[%c0_3, %c0_4] : memref<2048x1024xbf16, #tpu.memory_space<vmem>>, vector<2048x1024xbf16>
    %cst_5 = arith.constant dense<0.000000e+00> : vector<48x1024xf32>
    %5 = tpu.matmul %3, %4, %cst_5 {dimension_numbers = #tpu.dot_dimension_numbers<[1], [0], [0], [1], [0, 0, 1, 1], [], []>} : vector<48x2048xbf16>, vector<2048x1024xbf16>, vector<48x1024xf32> -> vector<48x1024xf32>
    %c0_6 = arith.constant 0 : index
    %c0_7 = arith.constant 0 : index
    %6 = vector.load %arg4[%c0_6, %c0_7] : memref<1x1024xf32, #tpu.memory_space<vmem>>, vector<1x1024xf32>
    %7 = vector.broadcast %6 : vector<1x1024xf32> to vector<48x1024xf32>
    %8 = arith.addf %5, %7 : vector<48x1024xf32>
    %cst_8 = arith.constant 0.000000e+00 : f32
    %9 = vector.broadcast %cst_8 : f32 to vector<48x1024xf32>
    %10 = arith.maximumf %8, %9 : vector<48x1024xf32>
    %11 = arith.truncf %10 : vector<48x1024xf32> to vector<48x1024xbf16>
    %c0_9 = arith.constant 0 : index
    %c0_10 = arith.constant 0 : index
    %12 = vector.load %arg5[%c0_9, %c0_10] : memref<1024x512xbf16, #tpu.memory_space<vmem>>, vector<1024x512xbf16>
    %cst_11 = arith.constant dense<0.000000e+00> : vector<48x512xf32>
    %13 = tpu.matmul %11, %12, %cst_11 {dimension_numbers = #tpu.dot_dimension_numbers<[1], [0], [0], [1], [0, 0, 1, 1], [], []>} : vector<48x1024xbf16>, vector<1024x512xbf16>, vector<48x512xf32> -> vector<48x512xf32>
    %c0_12 = arith.constant 0 : index
    %c0_13 = arith.constant 0 : index
    %14 = vector.load %arg6[%c0_12, %c0_13] : memref<1x512xf32, #tpu.memory_space<vmem>>, vector<1x512xf32>
    %15 = vector.broadcast %14 : vector<1x512xf32> to vector<48x512xf32>
    %16 = arith.addf %13, %15 : vector<48x512xf32>
    %cst_14 = arith.constant 0.000000e+00 : f32
    %17 = vector.broadcast %cst_14 : f32 to vector<48x512xf32>
    %18 = arith.maximumf %16, %17 : vector<48x512xf32>
    %19 = arith.truncf %18 : vector<48x512xf32> to vector<48x512xbf16>
    %c0_15 = arith.constant 0 : index
    %c0_16 = arith.constant 0 : index
    %20 = vector.load %arg7[%c0_15, %c0_16] : memref<512x256xbf16, #tpu.memory_space<vmem>>, vector<512x256xbf16>
    %cst_17 = arith.constant dense<0.000000e+00> : vector<48x256xf32>
    %21 = tpu.matmul %19, %20, %cst_17 {dimension_numbers = #tpu.dot_dimension_numbers<[1], [0], [0], [1], [0, 0, 1, 1], [], []>} : vector<48x512xbf16>, vector<512x256xbf16>, vector<48x256xf32> -> vector<48x256xf32>
    %c0_18 = arith.constant 0 : index
    %c0_19 = arith.constant 0 : index
    %22 = vector.load %arg8[%c0_18, %c0_19] : memref<1x256xf32, #tpu.memory_space<vmem>>, vector<1x256xf32>
    %23 = vector.broadcast %22 : vector<1x256xf32> to vector<48x256xf32>
    %24 = arith.addf %21, %23 : vector<48x256xf32>
    %cst_20 = arith.constant 0.000000e+00 : f32
    %25 = vector.broadcast %cst_20 : f32 to vector<48x256xf32>
    %26 = arith.maximumf %24, %25 : vector<48x256xf32>
    %27 = vector.shape_cast %26 : vector<48x256xf32> to vector<1x3x16x256xf32>
    %cst_21 = arith.constant dense<0.000000e+00> : vector<1x3x256xf32>
    %28 = vector.multi_reduction <add>, %27, %cst_21 [2] : vector<1x3x16x256xf32> to vector<1x3x256xf32>
    %c0_i32 = arith.constant 0 : i32
    %29 = arith.cmpi eq, %arg1, %c0_i32 : i32
    %30 = arith.extui %29 : i1 to i32
    %c0_i32_22 = arith.constant 0 : i32
    %31 = arith.cmpi ne, %30, %c0_i32_22 : i32
    scf.if %31 {
      %cst_29 = arith.constant 0.000000e+00 : f32
      %35 = vector.broadcast %cst_29 : f32 to vector<1x3x256xf32>
      %c0_30 = arith.constant 0 : index
      %c0_31 = arith.constant 0 : index
      %c0_32 = arith.constant 0 : index
      %36 = vector.load %arg9[%c0_30, %c0_31, %c0_32] : memref<1x3x256xf32, #tpu.memory_space<vmem>>, vector<1x3x256xf32>
      tpu.vector_store %arg9[%c0_30, %c0_31, %c0_32], %35 {strides = array<i32>} : memref<1x3x256xf32, #tpu.memory_space<vmem>>, vector<1x3x256xf32>,
    } else {
    }
    %c0_23 = arith.constant 0 : index
    %c0_24 = arith.constant 0 : index
    %c0_25 = arith.constant 0 : index
    %32 = vector.load %arg9[%c0_23, %c0_24, %c0_25] : memref<1x3x256xf32, #tpu.memory_space<vmem>>, vector<1x3x256xf32>
    %33 = arith.addf %32, %28 : vector<1x3x256xf32>
    %c0_26 = arith.constant 0 : index
    %c0_27 = arith.constant 0 : index
    %c0_28 = arith.constant 0 : index
    %34 = vector.load %arg9[%c0_26, %c0_27, %c0_28] : memref<1x3x256xf32, #tpu.memory_space<vmem>>, vector<1x3x256xf32>
    tpu.vector_store %arg9[%c0_26, %c0_27, %c0_28], %33 {strides = array<i32>} : memref<1x3x256xf32, #tpu.memory_space<vmem>>, vector<1x3x256xf32>,
    return
  }
  func.func @transform_0(%arg0: i32, %arg1: i32) -> (i32, i32, i32, i32) {
    %c0_i32 = arith.constant 0 : i32
    %c0_i32_0 = arith.constant 0 : i32
    %c0_i32_1 = arith.constant 0 : i32
    return %arg0, %c0_i32, %arg1, %c0_i32_0 : i32, i32, i32, i32
  }
  func.func @transform_1(%arg0: i32, %arg1: i32) -> (i32, i32) {
    %c0_i32 = arith.constant 0 : i32
    %c0_i32_0 = arith.constant 0 : i32
    %c0_i32_1 = arith.constant 0 : i32
    return %c0_i32, %c0_i32_0 : i32, i32
  }
  func.func @transform_2(%arg0: i32, %arg1: i32) -> (i32, i32) {
    %c0_i32 = arith.constant 0 : i32
    %c0_i32_0 = arith.constant 0 : i32
    %c0_i32_1 = arith.constant 0 : i32
    return %c0_i32, %c0_i32_0 : i32, i32
  }
  func.func @transform_3(%arg0: i32, %arg1: i32) -> (i32, i32) {
    %c0_i32 = arith.constant 0 : i32
    %c0_i32_0 = arith.constant 0 : i32
    %c0_i32_1 = arith.constant 0 : i32
    return %c0_i32, %c0_i32_0 : i32, i32
  }
  func.func @transform_4(%arg0: i32, %arg1: i32) -> (i32, i32) {
    %c0_i32 = arith.constant 0 : i32
    %c0_i32_0 = arith.constant 0 : i32
    %c0_i32_1 = arith.constant 0 : i32
    return %c0_i32, %c0_i32_0 : i32, i32
  }
  func.func @transform_5(%arg0: i32, %arg1: i32) -> (i32, i32) {
    %c0_i32 = arith.constant 0 : i32
    %c0_i32_0 = arith.constant 0 : i32
    %c0_i32_1 = arith.constant 0 : i32
    return %c0_i32, %c0_i32_0 : i32, i32
  }
  func.func @transform_6(%arg0: i32, %arg1: i32) -> (i32, i32) {
    %c0_i32 = arith.constant 0 : i32
    %c0_i32_0 = arith.constant 0 : i32
    %c0_i32_1 = arith.constant 0 : i32
    return %c0_i32, %c0_i32_0 : i32, i32
  }
  func.func @transform_7(%arg0: i32, %arg1: i32) -> (i32, i32, i32) {
    %c0_i32 = arith.constant 0 : i32
    %c0_i32_0 = arith.constant 0 : i32
    %c0_i32_1 = arith.constant 0 : i32
    return %arg0, %c0_i32, %c0_i32_0 : i32, i32, i32
  }
}

</mosaic_0001>

<llo_original>
// kernel: tpu_custom_call.1
$region0: #{tpu_custom_call.1}
  #allocation0 [shape = 'u32[]', space=smem, size = 0x4, offset = 0x4, fixed_abs, tag = 'smem constant byte address 0x4 - core index']
  #allocation1 [shape = 'u32[144,128]{1,0:T(1,128)}', space=vmem, size = 0x12000, scoped, tag = 'internal scratch']
  %s0 = inlined_call_operand.hbm [shape: bf16[2,3,16,2048], index: 0, kind: input, shape index: {}]
  %s1 = inlined_call_operand.hbm [shape: bf16[2048,1024], index: 1, kind: input, shape index: {}]
  %s2 = inlined_call_operand.hbm [shape: f32[1,1024], index: 2, kind: input, shape index: {}]
  %s3 = inlined_call_operand.hbm [shape: bf16[1024,512], index: 3, kind: input, shape index: {}]
  %s4 = inlined_call_operand.hbm [shape: f32[1,512], index: 4, kind: input, shape index: {}]
  %s5 = inlined_call_operand.hbm [shape: bf16[512,256], index: 5, kind: input, shape index: {}]
  %s6 = inlined_call_operand.hbm [shape: f32[1,256], index: 6, kind: input, shape index: {}]
  %s7 = inlined_call_operand.vmem [shape: f32[2,3,256], index: 7, kind: output, shape index: {}]
  %s8 = sld [smem:[#allocation0]]
  $region93: #{tpu_custom_call.1} parent=0
    _
  %s10 = ssub.s32 1, %s8
  %s11 = scalar_select 0, %s10, %s8
  $region1: #{tpu_custom_call.1} parent=0
    #allocation2 [shape = 'u8[393216]{0}', space=vmem, size = 0x60000, scoped, tag = 'input window, operand 0']
    #allocation3 [shape = 's32[2]{0}', space=sflag, size = 0x8, scoped, tag = 'scoped memory for tpu_custom_call.1']
    #allocation4 [shape = 'u8[4194304]{0}', space=vmem, size = 0x400000, scoped, tag = 'input window, operand 1, single buffered']
    #allocation5 [shape = 's32[1]{0}', space=sflag, size = 0x4, scoped, tag = 'scoped memory for tpu_custom_call.1']
    #allocation6 [shape = 'u8[4096]{0}', space=vmem, size = 0x1000, scoped, tag = 'input window, operand 2, single buffered']
    #allocation7 [shape = 'u8[1048576]{0}', space=vmem, size = 0x100000, scoped, tag = 'input window, operand 3, single buffered']
    #allocation8 [shape = 's32[1]{0}', space=sflag, size = 0x4, scoped, tag = 'scoped memory for tpu_custom_call.1']
    #allocation9 [shape = 'u8[2048]{0}', space=vmem, size = 0x800, scoped, tag = 'input window, operand 4, single buffered']
    #allocation10 [shape = 'u8[262144]{0}', space=vmem, size = 0x40000, scoped, tag = 'input window, operand 5, single buffered']
    #allocation11 [shape = 's32[1]{0}', space=sflag, size = 0x4, scoped, tag = 'scoped memory for tpu_custom_call.1']
    #allocation12 [shape = 'u8[1024]{0}', space=vmem, size = 0x400, scoped, tag = 'input window, operand 6, single buffered']
    %12 = vsyncpa [#allocation3], 0
    %s13 = scalar_lea.sflag [#allocation3], 1
    %14 = vsyncpa %s13, 0
    %15 = vsyncpa [#allocation5], 0
    %16 = vsyncpa [#allocation8], 0
    %17 = vsyncpa [#allocation11], 0
    loop: start=0, step=1, limit=4
    $region2: #{tpu_custom_call.1} parent=1 // loop_pre_header
      _
    $region3: #{tpu_custom_call.1} parent=1 // loop_header
      %s19 = sphi 0, %s23
      %p20 = scmp.ge.s32.totalorder %s19, 4
      %s26 = sphi 0, %s38
      %s27 = sphi 0, %s34
      %s28 = sphi 0, %s26
      %s29 = sphi 0, %s27
      %s30 = sphi 0, %s28
      %s31 = sphi 0, %s29
      %s43 = sphi 0, %s45
      %s46 = sphi 0, %s43
      %s47 = sphi 0, %s46
      %s63 = sphi 0, %s47
      %s67 = sphi 0, %s67
      %s69 = sphi 0, %s67
      %s70 = sphi 0, %s69
      %s84 = sphi 0, %s70
      %s88 = sphi 0, %s88
      %s90 = sphi 0, %s88
      %s91 = sphi 0, %s90
      %s105 = sphi 0, %s91
      %s109 = sphi 0, %s109
      %s111 = sphi 0, %s109
      %s112 = sphi 0, %s111
      %s126 = sphi 0, %s112
      %s130 = sphi 0, %s130
      %s132 = sphi 0, %s130
      %s133 = sphi 0, %s132
      %s147 = sphi 0, %s133
      %s151 = sphi 0, %s151
      %s153 = sphi 0, %s151
      %s154 = sphi 0, %s153
      %s168 = sphi 0, %s154
      %s172 = sphi 0, %s172
      %s174 = sphi 0, %s172
      %s175 = sphi 0, %s174
      %s189 = sphi 0, %s175
      %s195 = sphi 0, %s197
      %s198 = sphi 0, %s195
      %s199 = sphi 0, %s198
      %s215 = sphi 0, %s199
    $region4: #{tpu_custom_call.1} parent=1 // loop_header_branch
      %22 = sbr.rel (%p20) target = $region8
    $region5: #{tpu_custom_call.1} parent=1 // loop_body
      %s24 = ssub.s32 %s19, 1
      %s25 = ssub.s32 %s19, 2
      %s32 = sadd.s32 1, %s27
      %p33 = scmp.ge.s32.totalorder %s32, 1
      %s34 = scalar_select %p33, 0, %s32
      %s35 = sadd.s32 1, %s26
      %s36 = scalar_select %p33, %s35, %s26
      %p37 = scmp.ge.s32.totalorder %s36, 2
      %s38 = scalar_select %p37, 0, %s36
      %s39 = ssub.s32 %s26, %s38
      %s40 = ssub.s32 %s27, %s34
      %s41 = sor.u32 %s39, %s40
      %p42 = scmp.eq.s32.totalorder %s41, 0
      %s44 = sadd.s32 %s43, 1
      %s45 = scalar_select %p42, %s43, %s44
      %p48 = pneg %p42
      %p49 = scmp.eq.s32.totalorder %s19, 1
      %p50 = por %p48, %p49
      %p51 = scmp.ne.s32.totalorder %s43, %s46
      %p52 = scmp.eq.s32.totalorder %s19, 0
      %p53 = por %p51, %p52
      %p54 = scmp.ne.s32.totalorder %s43, %s46
      %p55 = scmp.eq.s32.totalorder %s24, 1
      %p56 = por %p54, %p55
      %p57 = scmp.ne.s32.totalorder %s46, %s47
      %p58 = scmp.eq.s32.totalorder %s24, 0
      %p59 = por %p57, %p58
      %p60 = scmp.ne.s32.totalorder %s46, %s47
      %p61 = scmp.eq.s32.totalorder %s25, 1
      %p62 = por %p60, %p61
      %p64 = scmp.ne.s32.totalorder %s47, %s63
      %p65 = scmp.eq.s32.totalorder %s25, 0
      %p66 = por %p64, %p65
      %s68 = sadd.s32 %s67, 1
      %p71 = scmp.eq.s32.totalorder %s19, 1
      %p72 = scmp.ne.s32.totalorder %s67, %s69
      %p73 = scmp.eq.s32.totalorder %s19, 0
      %p74 = por %p72, %p73
      %p75 = scmp.ne.s32.totalorder %s67, %s69
      %p76 = scmp.eq.s32.totalorder %s24, 1
      %p77 = por %p75, %p76
      %p78 = scmp.ne.s32.totalorder %s69, %s70
      %p79 = scmp.eq.s32.totalorder %s24, 0
      %p80 = por %p78, %p79
      %p81 = scmp.ne.s32.totalorder %s69, %s70
      %p82 = scmp.eq.s32.totalorder %s25, 1
      %p83 = por %p81, %p82
      %p85 = scmp.ne.s32.totalorder %s70, %s84
      %p86 = scmp.eq.s32.totalorder %s25, 0
      %p87 = por %p85, %p86
      %s89 = sadd.s32 %s88, 1
      %p92 = scmp.eq.s32.totalorder %s19, 1
      %p93 = scmp.ne.s32.totalorder %s88, %s90
      %p94 = scmp.eq.s32.totalorder %s19, 0
      %p95 = por %p93, %p94
      %p96 = scmp.ne.s32.totalorder %s88, %s90
      %p97 = scmp.eq.s32.totalorder %s24, 1
      %p98 = por %p96, %p97
      %p99 = scmp.ne.s32.totalorder %s90, %s91
      %p100 = scmp.eq.s32.totalorder %s24, 0
      %p101 = por %p99, %p100
      %p102 = scmp.ne.s32.totalorder %s90, %s91
      %p103 = scmp.eq.s32.totalorder %s25, 1
      %p104 = por %p102, %p103
      %p106 = scmp.ne.s32.totalorder %s91, %s105
      %p107 = scmp.eq.s32.totalorder %s25, 0
      %p108 = por %p106, %p107
      %s110 = sadd.s32 %s109, 1
      %p113 = scmp.eq.s32.totalorder %s19, 1
      %p114 = scmp.ne.s32.totalorder %s109, %s111
      %p115 = scmp.eq.s32.totalorder %s19, 0
      %p116 = por %p114, %p115
      %p117 = scmp.ne.s32.totalorder %s109, %s111
      %p118 = scmp.eq.s32.totalorder %s24, 1
      %p119 = por %p117, %p118
      %p120 = scmp.ne.s32.totalorder %s111, %s112
      %p121 = scmp.eq.s32.totalorder %s24, 0
      %p122 = por %p120, %p121
      %p123 = scmp.ne.s32.totalorder %s111, %s112
      %p124 = scmp.eq.s32.totalorder %s25, 1
      %p125 = por %p123, %p124
      %p127 = scmp.ne.s32.totalorder %s112, %s126
      %p128 = scmp.eq.s32.totalorder %s25, 0
      %p129 = por %p127, %p128
      %s131 = sadd.s32 %s130, 1
      %p134 = scmp.eq.s32.totalorder %s19, 1
      %p135 = scmp.ne.s32.totalorder %s130, %s132
      %p136 = scmp.eq.s32.totalorder %s19, 0
      %p137 = por %p135, %p136
      %p138 = scmp.ne.s32.totalorder %s130, %s132
      %p139 = scmp.eq.s32.totalorder %s24, 1
      %p140 = por %p138, %p139
      %p141 = scmp.ne.s32.totalorder %s132, %s133
      %p142 = scmp.eq.s32.totalorder %s24, 0
      %p143 = por %p141, %p142
      %p144 = scmp.ne.s32.totalorder %s132, %s133
      %p145 = scmp.eq.s32.totalorder %s25, 1
      %p146 = por %p144, %p145
      %p148 = scmp.ne.s32.totalorder %s133, %s147
      %p149 = scmp.eq.s32.totalorder %s25, 0
      %p150 = por %p148, %p149
      %s152 = sadd.s32 %s151, 1
      %p155 = scmp.eq.s32.totalorder %s19, 1
      %p156 = scmp.ne.s32.totalorder %s151, %s153
      %p157 = scmp.eq.s32.totalorder %s19, 0
      %p158 = por %p156, %p157
      %p159 = scmp.ne.s32.totalorder %s151, %s153
      %p160 = scmp.eq.s32.totalorder %s24, 1
      %p161 = por %p159, %p160
      %p162 = scmp.ne.s32.totalorder %s153, %s154
      %p163 = scmp.eq.s32.totalorder %s24, 0
      %p164 = por %p162, %p163
      %p165 = scmp.ne.s32.totalorder %s153, %s154
      %p166 = scmp.eq.s32.totalorder %s25, 1
      %p167 = por %p165, %p166
      %p169 = scmp.ne.s32.totalorder %s154, %s168
      %p170 = scmp.eq.s32.totalorder %s25, 0
      %p171 = por %p169, %p170
      %s173 = sadd.s32 %s172, 1
      %p176 = scmp.eq.s32.totalorder %s19, 1
      %p177 = scmp.ne.s32.totalorder %s172, %s174
      %p178 = scmp.eq.s32.totalorder %s19, 0
      %p179 = por %p177, %p178
      %p180 = scmp.ne.s32.totalorder %s172, %s174
      %p181 = scmp.eq.s32.totalorder %s24, 1
      %p182 = por %p180, %p181
      %p183 = scmp.ne.s32.totalorder %s174, %s175
      %p184 = scmp.eq.s32.totalorder %s24, 0
      %p185 = por %p183, %p184
      %p186 = scmp.ne.s32.totalorder %s174, %s175
      %p187 = scmp.eq.s32.totalorder %s25, 1
      %p188 = por %p186, %p187
      %p190 = scmp.ne.s32.totalorder %s175, %s189
      %p191 = scmp.eq.s32.totalorder %s25, 0
      %p192 = por %p190, %p191
      %s193 = ssub.s32 %s26, %s38
      %p194 = scmp.eq.s32.totalorder %s193, 0
      %s196 = sadd.s32 %s195, 1
      %s197 = scalar_select %p194, %s195, %s196
      %p200 = pneg %p194
      %p201 = scmp.eq.s32.totalorder %s19, 1
      %p202 = por %p200, %p201
      %p203 = scmp.ne.s32.totalorder %s195, %s198
      %p204 = scmp.eq.s32.totalorder %s19, 0
      %p205 = por %p203, %p204
      %p206 = scmp.ne.s32.totalorder %s195, %s198
      %p207 = scmp.eq.s32.totalorder %s24, 1
      %p208 = por %p206, %p207
      %p209 = scmp.ne.s32.totalorder %s198, %s199
      %p210 = scmp.eq.s32.totalorder %s24, 0
      %p211 = por %p209, %p210
      %p212 = scmp.ne.s32.totalorder %s198, %s199
      %p213 = scmp.eq.s32.totalorder %s25, 1
      %p214 = por %p212, %p213
      %p216 = scmp.ne.s32.totalorder %s199, %s215
      %p217 = scmp.eq.s32.totalorder %s25, 0
      %p218 = por %p216, %p217
      %p219 = scmp.le.s32.totalorder 1, %s19
      %p220 = scmp.lt.s32.totalorder %s19, 3
      %p221 = pnand %p219, %p220
      %p222 = pneg %p221
      // Predicated region
      $region9: #{tpu_custom_call.1} parent=5 // pred_check
        _
      $region10: #{tpu_custom_call.1} parent=5 // pred_check_branch
        %224 = sbr.rel (%p221) target = $region12
      $region11: #{tpu_custom_call.1} parent=5 // pred_region
        %s225 = ssub.s32 %s19, 1
        // Predicated region
        $region13: #{tpu_custom_call.1} parent=11 // pred_check
          %p226 = pneg %p80
        $region14: #{tpu_custom_call.1} parent=11 // pred_check_branch
          %228 = sbr.rel (%p226) target = $region16
        $region15: #{tpu_custom_call.1} parent=11 // pred_region
          %s230 = ssub.s32 131072, 131072
          %231 = vsyncadd [#allocation5], %s230
          %s232 = sshll.u32 [#allocation4], 4
          %s233 = int_to_ptr.vmem [resolvable:$true] %s232
          %238 = dma.hbm_to_vmem [thread:$0]  %s1, 131072, %s233, [#allocation5], 512, 512, 32
        $region16: #{tpu_custom_call.1} parent=11 // pred_fallthru
          _
        // Predicated region
        $region17: #{tpu_custom_call.1} parent=11 // pred_check
          %p239 = pneg %p101
        $region18: #{tpu_custom_call.1} parent=11 // pred_check_branch
          %241 = sbr.rel (%p239) target = $region20
        $region19: #{tpu_custom_call.1} parent=11 // pred_region
          %s243 = ssub.s32 128, 128
          %244 = vsyncadd [#allocation5], %s243
          %s246 = sshll.u32 [#allocation6], 4
          %s247 = int_to_ptr.vmem [resolvable:$true] %s246
          %249 = dma.hbm_to_vmem [thread:$0]  %s2, 128, %s247, [#allocation5]
        $region20: #{tpu_custom_call.1} parent=11 // pred_fallthru
          _
        // Predicated region
        $region21: #{tpu_custom_call.1} parent=11 // pred_check
          %p250 = pneg %p122
        $region22: #{tpu_custom_call.1} parent=11 // pred_check_branch
          %252 = sbr.rel (%p250) target = $region24
        $region23: #{tpu_custom_call.1} parent=11 // pred_region
          %s254 = ssub.s32 32768, 32768
          %255 = vsyncadd [#allocation8], %s254
          %s256 = sshll.u32 [#allocation7], 4
          %s257 = int_to_ptr.vmem [resolvable:$true] %s256
          %262 = dma.hbm_to_vmem [thread:$0]  %s3, 32768, %s257, [#allocation8], 256, 256, 16
        $region24: #{tpu_custom_call.1} parent=11 // pred_fallthru
          _
        // Predicated region
        $region25: #{tpu_custom_call.1} parent=11 // pred_check
          %p263 = pneg %p143
        $region26: #{tpu_custom_call.1} parent=11 // pred_check_branch
          %265 = sbr.rel (%p263) target = $region28
        $region27: #{tpu_custom_call.1} parent=11 // pred_region
          %s267 = ssub.s32 64, 64
          %268 = vsyncadd [#allocation8], %s267
          %s270 = sshll.u32 [#allocation9], 4
          %s271 = int_to_ptr.vmem [resolvable:$true] %s270
          %273 = dma.hbm_to_vmem [thread:$0]  %s4, 64, %s271, [#allocation8]
        $region28: #{tpu_custom_call.1} parent=11 // pred_fallthru
          _
        // Predicated region
        $region29: #{tpu_custom_call.1} parent=11 // pred_check
          %p274 = pneg %p164
        $region30: #{tpu_custom_call.1} parent=11 // pred_check_branch
          %276 = sbr.rel (%p274) target = $region32
        $region31: #{tpu_custom_call.1} parent=11 // pred_region
          %s278 = ssub.s32 8192, 8192
          %279 = vsyncadd [#allocation11], %s278
          %s280 = sshll.u32 [#allocation10], 4
          %s281 = int_to_ptr.vmem [resolvable:$true] %s280
          %286 = dma.hbm_to_vmem [thread:$0]  %s5, 8192, %s281, [#allocation11], 128, 128, 8
        $region32: #{tpu_custom_call.1} parent=11 // pred_fallthru
          _
        // Predicated region
        $region33: #{tpu_custom_call.1} parent=11 // pred_check
          %p287 = pneg %p185
        $region34: #{tpu_custom_call.1} parent=11 // pred_check_branch
          %289 = sbr.rel (%p287) target = $region36
        $region35: #{tpu_custom_call.1} parent=11 // pred_region
          %s291 = ssub.s32 32, 32
          %292 = vsyncadd [#allocation11], %s291
          %s294 = sshll.u32 [#allocation12], 4
          %s295 = int_to_ptr.vmem [resolvable:$true] %s294
          %297 = dma.hbm_to_vmem [thread:$0]  %s6, 32, %s295, [#allocation11]
        $region36: #{tpu_custom_call.1} parent=11 // pred_fallthru
          _
      $region12: #{tpu_custom_call.1} parent=5 // pred_fallthru
        _
      %p298 = scmp.lt.s32.totalorder %s19, 2
      // Predicated region
      $region37: #{tpu_custom_call.1} parent=5 // pred_check
        %p299 = pneg %p298
      $region38: #{tpu_custom_call.1} parent=5 // pred_check_branch
        %301 = sbr.rel (%p299) target = $region40
      $region39: #{tpu_custom_call.1} parent=5 // pred_region
        // Predicated region
        $region41: #{tpu_custom_call.1} parent=39 // pred_check
          %p302 = pneg %p53
        $region42: #{tpu_custom_call.1} parent=39 // pred_check_branch
          %304 = sbr.rel (%p302) target = $region44
        $region43: #{tpu_custom_call.1} parent=39 // pred_region
          %s305 = sand.u32 %s43, 1
          %s306 = scalar_lea.sflag [#allocation3], %s305
          %s307 = sand.u32 %s43, 1
          %s308 = smul.addr %s307, 384
          %s309 = scalar_lea.vmem [#allocation2], %s308
          %s310 = smul.u32 2, %s27
          %s312 = ssub.s32 6144, 6144
          %313 = vsyncadd %s306, %s312
          %s314 = smul.addr %s310, 16
          %s315 = smul.addr %s26, 96
          %s316 = sadd.s32 %s314, %s315
          %s317 = smul.addr %s316, 64
          %s318 = scalar_lea.hbm %s0, %s317
          %s319 = sshll.u32 %s309, 4
          %s320 = int_to_ptr.vmem [resolvable:$true] %s319
          %325 = dma.hbm_to_vmem [thread:$0]  %s318, 6144, %s320, %s306, 1024, 1024, 64
        $region44: #{tpu_custom_call.1} parent=39 // pred_fallthru
          _
      $region40: #{tpu_custom_call.1} parent=5 // pred_fallthru
        _
      %p326 = scmp.le.s32.totalorder 1, %s19
      %p327 = scmp.lt.s32.totalorder %s19, 3
      %p328 = pnand %p326, %p327
      %p329 = pneg %p328
      // Predicated region
      $region45: #{tpu_custom_call.1} parent=5 // pred_check
        _
      $region46: #{tpu_custom_call.1} parent=5 // pred_check_branch
        %331 = sbr.rel (%p328) target = $region48
      $region47: #{tpu_custom_call.1} parent=5 // pred_region
        %s332 = ssub.s32 %s19, 1
        %s333 = sand.u32 %s46, 1
        %s334 = scalar_lea.sflag [#allocation3], %s333
        %s335 = sand.u32 %s46, 1
        %s336 = smul.addr %s335, 384
        %s337 = scalar_lea.vmem [#allocation2], %s336
        // Predicated region
        $region49: #{tpu_custom_call.1} parent=47 // pred_check
          %p338 = pneg %p59
        $region50: #{tpu_custom_call.1} parent=47 // pred_check_branch
          %340 = sbr.rel (%p338) target = $region52
        $region51: #{tpu_custom_call.1} parent=47 // pred_region
          %341 = dma.done %s334, 6144
        $region52: #{tpu_custom_call.1} parent=47 // pred_fallthru
          _
        // Predicated region
        $region53: #{tpu_custom_call.1} parent=47 // pred_check
          %p342 = pneg %p80
        $region54: #{tpu_custom_call.1} parent=47 // pred_check_branch
          %344 = sbr.rel (%p342) target = $region56
        $region55: #{tpu_custom_call.1} parent=47 // pred_region
          %345 = dma.done [#allocation5], 131072
        $region56: #{tpu_custom_call.1} parent=47 // pred_fallthru
          _
        // Predicated region
        $region57: #{tpu_custom_call.1} parent=47 // pred_check
          %p346 = pneg %p101
        $region58: #{tpu_custom_call.1} parent=47 // pred_check_branch
          %348 = sbr.rel (%p346) target = $region60
        $region59: #{tpu_custom_call.1} parent=47 // pred_region
          %349 = dma.done [#allocation5], 128
        $region60: #{tpu_custom_call.1} parent=47 // pred_fallthru
          _
        // Predicated region
        $region61: #{tpu_custom_call.1} parent=47 // pred_check
          %p350 = pneg %p122
        $region62: #{tpu_custom_call.1} parent=47 // pred_check_branch
          %352 = sbr.rel (%p350) target = $region64
        $region63: #{tpu_custom_call.1} parent=47 // pred_region
          %353 = dma.done [#allocation8], 32768
        $region64: #{tpu_custom_call.1} parent=47 // pred_fallthru
          _
        // Predicated region
        $region65: #{tpu_custom_call.1} parent=47 // pred_check
          %p354 = pneg %p143
        $region66: #{tpu_custom_call.1} parent=47 // pred_check_branch
          %356 = sbr.rel (%p354) target = $region68
        $region67: #{tpu_custom_call.1} parent=47 // pred_region
          %357 = dma.done [#allocation8], 64
        $region68: #{tpu_custom_call.1} parent=47 // pred_fallthru
          _
        // Predicated region
        $region69: #{tpu_custom_call.1} parent=47 // pred_check
          %p358 = pneg %p164
        $region70: #{tpu_custom_call.1} parent=47 // pred_check_branch
          %360 = sbr.rel (%p358) target = $region72
        $region71: #{tpu_custom_call.1} parent=47 // pred_region
          %361 = dma.done [#allocation11], 8192
        $region72: #{tpu_custom_call.1} parent=47 // pred_fallthru
          _
        // Predicated region
        $region73: #{tpu_custom_call.1} parent=47 // pred_check
          %p362 = pneg %p185
        $region74: #{tpu_custom_call.1} parent=47 // pred_check_branch
          %364 = sbr.rel (%p362) target = $region76
        $region75: #{tpu_custom_call.1} parent=47 // pred_region
          %365 = dma.done [#allocation11], 32
        $region76: #{tpu_custom_call.1} parent=47 // pred_fallthru
          _
        %s366 = sand.u32 %s46, 1
        %s367 = scalar_lea.sflag [#allocation3], %s366
        %s368 = sand.u32 %s46, 1
        %s369 = smul.addr %s368, 384
        %s370 = scalar_lea.vmem [#allocation2], %s369
        %p371 = pneg %p59
        %p372 = pneg %p56
        %p373 = pneg %p80
        %p374 = pneg %p77
        %p375 = pneg %p101
        %p376 = pneg %p98
        %p377 = pneg %p122
        %p378 = pneg %p119
        %p379 = pneg %p143
        %p380 = pneg %p140
        %p381 = pneg %p164
        %p382 = pneg %p161
        %p383 = pneg %p185
        %p384 = pneg %p182
        %p385 = pneg %p211
        %p386 = pneg %p208
        %p387 = scmp.lt.s32.totalorder %s28, 1
        %s388 = scalar_select %p387, %s28, 1
        %s389 = smul.addr %s388, 2
        %s390 = smul.addr %s389, 4
        %s391 = scalar_lea.vmem %s7, %s390
        %s392 = smul.u32 2, %s29
        %p393 = scmp.lt.s32.totalorder %s28, 1
        %s394 = scalar_select %p393, %s28, 1
        %s395 = smul.addr %s394, 2
        %s396 = smul.addr %s395, 4
        %s397 = scalar_lea.vmem %s7, %s396
        %v399 = vld [vmem:[%s337] sm:$0xff]
        %v400 = vld [vmem:[%s337 + $0x8] sm:$0xff]
        %v401 = vld [vmem:[%s337 + $0x10] sm:$0xff]
        %v402 = vld [vmem:[%s337 + $0x18] sm:$0xff]
        %v403 = vld [vmem:[%s337 + $0x20] sm:$0xff]
        %v404 = vld [vmem:[%s337 + $0x28] sm:$0xff]
        %v405 = vld [vmem:[%s337 + $0x30] sm:$0xff]
        %v406 = vld [vmem:[%s337 + $0x38] sm:$0xff]
        %v407 = vld [vmem:[%s337 + $0x40] sm:$0xff]
        %v408 = vld [vmem:[%s337 + $0x48] sm:$0xff]
        %v409 = vld [vmem:[%s337 + $0x50] sm:$0xff]
        %v410 = vld [vmem:[%s337 + $0x58] sm:$0xff]
        %v411 = vld [vmem:[%s337 + $0x60] sm:$0xff]
        %v412 = vld [vmem:[%s337 + $0x68] sm:$0xff]
        %v413 = vld [vmem:[%s337 + $0x70] sm:$0xff]
        %v414 = vld [vmem:[%s337 + $0x78] sm:$0xff]
        %v415 = vld [vmem:[%s337 + $0x80] sm:$0xff]
        %v416 = vld [vmem:[%s337 + $0x88] sm:$0xff]
        %v417 = vld [vmem:[%s337 + $0x90] sm:$0xff]
        %v418 = vld [vmem:[%s337 + $0x98] sm:$0xff]
        %v419 = vld [vmem:[%s337 + $0xa0] sm:$0xff]
        %v420 = vld [vmem:[%s337 + $0xa8] sm:$0xff]
        %v421 = vld [vmem:[%s337 + $0xb0] sm:$0xff]
        %v422 = vld [vmem:[%s337 + $0xb8] sm:$0xff]
        %v423 = vld [vmem:[%s337 + $0xc0] sm:$0xff]
        %v424 = vld [vmem:[%s337 + $0xc8] sm:$0xff]
        %v425 = vld [vmem:[%s337 + $0xd0] sm:$0xff]
        %v426 = vld [vmem:[%s337 + $0xd8] sm:$0xff]
        %v427 = vld [vmem:[%s337 + $0xe0] sm:$0xff]
        %v428 = vld [vmem:[%s337 + $0xe8] sm:$0xff]
        %v429 = vld [vmem:[%s337 + $0xf0] sm:$0xff]
        %v430 = vld [vmem:[%s337 + $0xf8] sm:$0xff]
        %v431 = vld [vmem:[%s337 + $0x100] sm:$0xff]
        %v432 = vld [vmem:[%s337 + $0x108] sm:$0xff]
        %v433 = vld [vmem:[%s337 + $0x110] sm:$0xff]
        %v434 = vld [vmem:[%s337 + $0x118] sm:$0xff]
        %v435 = vld [vmem:[%s337 + $0x120] sm:$0xff]
        %v436 = vld [vmem:[%s337 + $0x128] sm:$0xff]
        %v437 = vld [vmem:[%s337 + $0x130] sm:$0xff]
        %v438 = vld [vmem:[%s337 + $0x138] sm:$0xff]
        %v439 = vld [vmem:[%s337 + $0x140] sm:$0xff]
        %v440 = vld [vmem:[%s337 + $0x148] sm:$0xff]
        %v441 = vld [vmem:[%s337 + $0x150] sm:$0xff]
        %v442 = vld [vmem:[%s337 + $0x158] sm:$0xff]
        %v443 = vld [vmem:[%s337 + $0x160] sm:$0xff]
        %v444 = vld [vmem:[%s337 + $0x168] sm:$0xff]
        %v445 = vld [vmem:[%s337 + $0x170] sm:$0xff]
        %v446 = vld [vmem:[%s337 + $0x178] sm:$0xff]
        %v447 = vmax.bf16 %v399, 0
        %v448 = vmax.bf16 %v400, 0
        %v449 = vmax.bf16 %v401, 0
        %v450 = vmax.bf16 %v402, 0
        %v451 = vmax.bf16 %v403, 0
        %v452 = vmax.bf16 %v404, 0
        %v453 = vmax.bf16 %v405, 0
        %v454 = vmax.bf16 %v406, 0
        %v455 = vmax.bf16 %v407, 0
        %v456 = vmax.bf16 %v408, 0
        %v457 = vmax.bf16 %v409, 0
        %v458 = vmax.bf16 %v410, 0
        %v459 = vmax.bf16 %v411, 0
        %v460 = vmax.bf16 %v412, 0
        %v461 = vmax.bf16 %v413, 0
        %v462 = vmax.bf16 %v414, 0
        %v463 = vmax.bf16 %v415, 0
        %v464 = vmax.bf16 %v416, 0
        %v465 = vmax.bf16 %v417, 0
        %v466 = vmax.bf16 %v418, 0
        %v467 = vmax.bf16 %v419, 0
        %v468 = vmax.bf16 %v420, 0
        %v469 = vmax.bf16 %v421, 0
        %v470 = vmax.bf16 %v422, 0
        %v471 = vmax.bf16 %v423, 0
        %v472 = vmax.bf16 %v424, 0
        %v473 = vmax.bf16 %v425, 0
        %v474 = vmax.bf16 %v426, 0
        %v475 = vmax.bf16 %v427, 0
        %v476 = vmax.bf16 %v428, 0
        %v477 = vmax.bf16 %v429, 0
        %v478 = vmax.bf16 %v430, 0
        %v479 = vmax.bf16 %v431, 0
        %v480 = vmax.bf16 %v432, 0
        %v481 = vmax.bf16 %v433, 0
        %v482 = vmax.bf16 %v434, 0
        %v483 = vmax.bf16 %v435, 0
        %v484 = vmax.bf16 %v436, 0
        %v485 = vmax.bf16 %v437, 0
        %v486 = vmax.bf16 %v438, 0
        %v487 = vmax.bf16 %v439, 0
        %v488 = vmax.bf16 %v440, 0
        %v489 = vmax.bf16 %v441, 0
        %v490 = vmax.bf16 %v442, 0
        %v491 = vmax.bf16 %v443, 0
        %v492 = vmax.bf16 %v444, 0
        %v493 = vmax.bf16 %v445, 0
        %v494 = vmax.bf16 %v446, 0
        %v495 = vld [vmem:[#allocation4] sm:$0xff]
        %v496 = vld [vmem:[#allocation4 + $0x8] sm:$0xff]
        %v497 = vld [vmem:[#allocation4 + $0x10] sm:$0xff]
        %v498 = vld [vmem:[#allocation4 + $0x18] sm:$0xff]
        %v499 = vld [vmem:[#allocation4 + $0x20] sm:$0xff]
        %v500 = vld [vmem:[#allocation4 + $0x28] sm:$0xff]
        %v501 = vld [vmem:[#allocation4 + $0x30] sm:$0xff]
        %v502 = vld [vmem:[#allocation4 + $0x38] sm:$0xff]
        %v503 = vld [vmem:[#allocation4 + $0x40] sm:$0xff]
        %v504 = vld [vmem:[#allocation4 + $0x48] sm:$0xff]
        %v505 = vld [vmem:[#allocation4 + $0x50] sm:$0xff]
        %v506 = vld [vmem:[#allocation4 + $0x58] sm:$0xff]
        %v507 = vld [vmem:[#allocation4 + $0x60] sm:$0xff]
        %v508 = vld [vmem:[#allocation4 + $0x68] sm:$0xff]
        %v509 = vld [vmem:[#allocation4 + $0x70] sm:$0xff]
        %v510 = vld [vmem:[#allocation4 + $0x78] sm:$0xff]
        %v511 = vld [vmem:[#allocation4 + $0x80] sm:$0xff]
        %v512 = vld [vmem:[#allocation4 + $0x88] sm:$0xff]
        %v513 = vld [vmem:[#allocation4 + $0x90] sm:$0xff]
        %v514 = vld [vmem:[#allocation4 + $0x98] sm:$0xff]
        %v515 = vld [vmem:[#allocation4 + $0xa0] sm:$0xff]
        %v516 = vld [vmem:[#allocation4 + $0xa8] sm:$0xff]
        %v517 = vld [vmem:[#allocation4 + $0xb0] sm:$0xff]
        %v518 = vld [vmem:[#allocation4 + $0xb8] sm:$0xff]
        %v519 = vld [vmem:[#allocation4 + $0xc0] sm:$0xff]
        %v520 = vld [vmem:[#allocation4 + $0xc8] sm:$0xff]
        %v521 = vld [vmem:[#allocation4 + $0xd0] sm:$0xff]
        %v522 = vld [vmem:[#allocation4 + $0xd8] sm:$0xff]
        %v523 = vld [vmem:[#allocation4 + $0xe0] sm:$0xff]
        %v524 = vld [vmem:[#allocation4 + $0xe8] sm:$0xff]
        %v525 = vld [vmem:[#allocation4 + $0xf0] sm:$0xff]
        %v526 = vld [vmem:[#allocation4 + $0xf8] sm:$0xff]
        %v527 = vld [vmem:[#allocation4 + $0x100] sm:$0xff]
        %v528 = vld [vmem:[#allocation4 + $0x108] sm:$0xff]
        %v529 = vld [vmem:[#allocation4 + $0x110] sm:$0xff]
        %v530 = vld [vmem:[#allocation4 + $0x118] sm:$0xff]
        %v531 = vld [vmem:[#allocation4 + $0x120] sm:$0xff]
        %v532 = vld [vmem:[#allocation4 + $0x128] sm:$0xff]
        %v533 = vld [vmem:[#allocation4 + $0x130] sm:$0xff]
        %v534 = vld [vmem:[#allocation4 + $0x138] sm:$0xff]
        %v535 = vld [vmem:[#allocation4 + $0x140] sm:$0xff]
        %v536 = vld [vmem:[#allocation4 + $0x148] sm:$0xff]
        %v537 = vld [vmem:[#allocation4 + $0x150] sm:$0xff]
        %v538 = vld [vmem:[#allocation4 + $0x158] sm:$0xff]
        %v539 = vld [vmem:[#allocation4 + $0x160] sm:$0xff]
        %v540 = vld [vmem:[#allocation4 + $0x168] sm:$0xff]
        %v541 = vld [vmem:[#allocation4 + $0x170] sm:$0xff]
        %v542 = vld [vmem:[#allocation4 + $0x178] sm:$0xff]
        %v543 = vld [vmem:[#allocation4 + $0x180] sm:$0xff]
        %v544 = vld [vmem:[#allocation4 + $0x188] sm:$0xff]
        %v545 = vld [vmem:[#allocation4 + $0x190] sm:$0xff]
        %v546 = vld [vmem:[#allocation4 + $0x198] sm:$0xff]
        %v547 = vld [vmem:[#allocation4 + $0x1a0] sm:$0xff]
        %v548 = vld [vmem:[#allocation4 + $0x1a8] sm:$0xff]
        %v549 = vld [vmem:[#allocation4 + $0x1b0] sm:$0xff]
        %v550 = vld [vmem:[#allocation4 + $0x1b8] sm:$0xff]
        %v551 = vld [vmem:[#allocation4 + $0x1c0] sm:$0xff]
        %v552 = vld [vmem:[#allocation4 + $0x1c8] sm:$0xff]
        %v553 = vld [vmem:[#allocation4 + $0x1d0] sm:$0xff]
        %v554 = vld [vmem:[#allocation4 + $0x1d8] sm:$0xff]
        %v555 = vld [vmem:[#allocation4 + $0x1e0] sm:$0xff]
        %v556 = vld [vmem:[#allocation4 + $0x1e8] sm:$0xff]
        %v557 = vld [vmem:[#allocation4 + $0x1f0] sm:$0xff]
        %v558 = vld [vmem:[#allocation4 + $0x1f8] sm:$0xff]
        %v559 = vld [vmem:[#allocation4 + $0x200] sm:$0xff]
        %v560 = vld [vmem:[#allocation4 + $0x208] sm:$0xff]
        %v561 = vld [vmem:[#allocation4 + $0x210] sm:$0xff]
        %v562 = vld [vmem:[#allocation4 + $0x218] sm:$0xff]
        %v563 = vld [vmem:[#allocation4 + $0x220] sm:$0xff]
        %v564 = vld [vmem:[#allocation4 + $0x228] sm:$0xff]
        %v565 = vld [vmem:[#allocation4 + $0x230] sm:$0xff]
        %v566 = vld [vmem:[#allocation4 + $0x238] sm:$0xff]
        %v567 = vld [vmem:[#allocation4 + $0x240] sm:$0xff]
        %v568 = vld [vmem:[#allocation4 + $0x248] sm:$0xff]
        %v569 = vld [vmem:[#allocation4 + $0x250] sm:$0xff]
        %v570 = vld [vmem:[#allocation4 + $0x258] sm:$0xff]
        %v571 = vld [vmem:[#allocation4 + $0x260] sm:$0xff]
        %v572 = vld [vmem:[#allocation4 + $0x268] sm:$0xff]
        %v573 = vld [vmem:[#allocation4 + $0x270] sm:$0xff]
        %v574 = vld [vmem:[#allocation4 + $0x278] sm:$0xff]
        %v575 = vld [vmem:[#allocation4 + $0x280] sm:$0xff]
        %v576 = vld [vmem:[#allocation4 + $0x288] sm:$0xff]
        %v577 = vld [vmem:[#allocation4 + $0x290] sm:$0xff]
        %v578 = vld [vmem:[#allocation4 + $0x298] sm:$0xff]
        %v579 = vld [vmem:[#allocation4 + $0x2a0] sm:$0xff]
        %v580 = vld [vmem:[#allocation4 + $0x2a8] sm:$0xff]
        %v581 = vld [vmem:[#allocation4 + $0x2b0] sm:$0xff]
        %v582 = vld [vmem:[#allocation4 + $0x2b8] sm:$0xff]
        %v583 = vld [vmem:[#allocation4 + $0x2c0] sm:$0xff]
        %v584 = vld [vmem:[#allocation4 + $0x2c8] sm:$0xff]
        %v585 = vld [vmem:[#allocation4 + $0x2d0] sm:$0xff]
        %v586 = vld [vmem:[#allocation4 + $0x2d8] sm:$0xff]
        %v587 = vld [vmem:[#allocation4 + $0x2e0] sm:$0xff]
        %v588 = vld [vmem:[#allocation4 + $0x2e8] sm:$0xff]
        %v589 = vld [vmem:[#allocation4 + $0x2f0] sm:$0xff]
        %v590 = vld [vmem:[#allocation4 + $0x2f8] sm:$0xff]
        %v591 = vld [vmem:[#allocation4 + $0x300] sm:$0xff]
        %v592 = vld [vmem:[#allocation4 + $0x308] sm:$0xff]
        %v593 = vld [vmem:[#allocation4 + $0x310] sm:$0xff]
        %v594 = vld [vmem:[#allocation4 + $0x318] sm:$0xff]
        %v595 = vld [vmem:[#allocation4 + $0x320] sm:$0xff]
        %v596 = vld [vmem:[#allocation4 + $0x328] sm:$0xff]
        %v597 = vld [vmem:[#allocation4 + $0x330] sm:$0xff]
        %v598 = vld [vmem:[#allocation4 + $0x338] sm:$0xff]
        %v599 = vld [vmem:[#allocation4 + $0x340] sm:$0xff]
        %v600 = vld [vmem:[#allocation4 + $0x348] sm:$0xff]
        %v601 = vld [vmem:[#allocation4 + $0x350] sm:$0xff]
        %v602 = vld [vmem:[#allocation4 + $0x358] sm:$0xff]
        %v603 = vld [vmem:[#allocation4 + $0x360] sm:$0xff]
        %v604 = vld [vmem:[#allocation4 + $0x368] sm:$0xff]
        %v605 = vld [vmem:[#allocation4 + $0x370] sm:$0xff]
        %v606 = vld [vmem:[#allocation4 + $0x378] sm:$0xff]
        %v607 = vld [vmem:[#allocation4 + $0x380] sm:$0xff]
        %v608 = vld [vmem:[#allocation4 + $0x388] sm:$0xff]
        %v609 = vld [vmem:[#allocation4 + $0x390] sm:$0xff]
        %v610 = vld [vmem:[#allocation4 + $0x398] sm:$0xff]
        %v611 = vld [vmem:[#allocation4 + $0x3a0] sm:$0xff]
        %v612 = vld [vmem:[#allocation4 + $0x3a8] sm:$0xff]
        %v613 = vld [vmem:[#allocation4 + $0x3b0] sm:$0xff]
        %v614 = vld [vmem:[#allocation4 + $0x3b8] sm:$0xff]
        %v615 = vld [vmem:[#allocation4 + $0x3c0] sm:$0xff]
        %v616 = vld [vmem:[#allocation4 + $0x3c8] sm:$0xff]
        %v617 = vld [vmem:[#allocation4 + $0x3d0] sm:$0xff]
        %v618 = vld [vmem:[#allocation4 + $0x3d8] sm:$0xff]
        %v619 = vld [vmem:[#allocation4 + $0x3e0] sm:$0xff]
        %v620 = vld [vmem:[#allocation4 + $0x3e8] sm:$0xff]
        %v621 = vld [vmem:[#allocation4 + $0x3f0] sm:$0xff]
        %v622 = vld [vmem:[#allocation4 + $0x3f8] sm:$0xff]
        %v623 = vld [vmem:[#allocation4 + $0x400] sm:$0xff]
        %v624 = vld [vmem:[#allocation4 + $0x408] sm:$0xff]
        %v625 = vld [vmem:[#allocation4 + $0x410] sm:$0xff]
        %v626 = vld [vmem:[#allocation4 + $0x418] sm:$0xff]
        %v627 = vld [vmem:[#allocation4 + $0x420] sm:$0xff]
        %v628 = vld [vmem:[#allocation4 + $0x428] sm:$0xff]
        %v629 = vld [vmem:[#allocation4 + $0x430] sm:$0xff]
        %v630 = vld [vmem:[#allocation4 + $0x438] sm:$0xff]
        %v631 = vld [vmem:[#allocation4 + $0x440] sm:$0xff]
        %v632 = vld [vmem:[#allocation4 + $0x448] sm:$0xff]
        %v633 = vld [vmem:[#allocation4 + $0x450] sm:$0xff]
        %v634 = vld [vmem:[#allocation4 + $0x458] sm:$0xff]
        %v635 = vld [vmem:[#allocation4 + $0x460] sm:$0xff]
        %v636 = vld [vmem:[#allocation4 + $0x468] sm:$0xff]
        %v637 = vld [vmem:[#allocation4 + $0x470] sm:$0xff]
        %v638 = vld [vmem:[#allocation4 + $0x478] sm:$0xff]
        %v639 = vld [vmem:[#allocation4 + $0x480] sm:$0xff]
        %v640 = vld [vmem:[#allocation4 + $0x488] sm:$0xff]
        %v641 = vld [vmem:[#allocation4 + $0x490] sm:$0xff]
        %v642 = vld [vmem:[#allocation4 + $0x498] sm:$0xff]
        %v643 = vld [vmem:[#allocation4 + $0x4a0] sm:$0xff]
        %v644 = vld [vmem:[#allocation4 + $0x4a8] sm:$0xff]
        %v645 = vld [vmem:[#allocation4 + $0x4b0] sm:$0xff]
        %v646 = vld [vmem:[#allocation4 + $0x4b8] sm:$0xff]
        %v647 = vld [vmem:[#allocation4 + $0x4c0] sm:$0xff]
        %v648 = vld [vmem:[#allocation4 + $0x4c8] sm:$0xff]
        %v649 = vld [vmem:[#allocation4 + $0x4d0] sm:$0xff]
        %v650 = vld [vmem:[#allocation4 + $0x4d8] sm:$0xff]
        %v651 = vld [vmem:[#allocation4 + $0x4e0] sm:$0xff]
        %v652 = vld [vmem:[#allocation4 + $0x4e8] sm:$0xff]
        %v653 = vld [vmem:[#allocation4 + $0x4f0] sm:$0xff]
        %v654 = vld [vmem:[#allocation4 + $0x4f8] sm:$0xff]
        %v655 = vld [vmem:[#allocation4 + $0x500] sm:$0xff]
        %v656 = vld [vmem:[#allocation4 + $0x508] sm:$0xff]
        %v657 = vld [vmem:[#allocation4 + $0x510] sm:$0xff]
        %v658 = vld [vmem:[#allocation4 + $0x518] sm:$0xff]
        %v659 = vld [vmem:[#allocation4 + $0x520] sm:$0xff]
        %v660 = vld [vmem:[#allocation4 + $0x528] sm:$0xff]
        %v661 = vld [vmem:[#allocation4 + $0x530] sm:$0xff]
        %v662 = vld [vmem:[#allocation4 + $0x538] sm:$0xff]
        %v663 = vld [vmem:[#allocation4 + $0x540] sm:$0xff]
        %v664 = vld [vmem:[#allocation4 + $0x548] sm:$0xff]
        %v665 = vld [vmem:[#allocation4 + $0x550] sm:$0xff]
        %v666 = vld [vmem:[#allocation4 + $0x558] sm:$0xff]
        %v667 = vld [vmem:[#allocation4 + $0x560] sm:$0xff]
        %v668 = vld [vmem:[#allocation4 + $0x568] sm:$0xff]
        %v669 = vld [vmem:[#allocation4 + $0x570] sm:$0xff]
        %v670 = vld [vmem:[#allocation4 + $0x578] sm:$0xff]
        %v671 = vld [vmem:[#allocation4 + $0x580] sm:$0xff]
        %v672 = vld [vmem:[#allocation4 + $0x588] sm:$0xff]
        %v673 = vld [vmem:[#allocation4 + $0x590] sm:$0xff]
        %v674 = vld [vmem:[#allocation4 + $0x598] sm:$0xff]
        %v675 = vld [vmem:[#allocation4 + $0x5a0] sm:$0xff]
        %v676 = vld [vmem:[#allocation4 + $0x5a8] sm:$0xff]
        %v677 = vld [vmem:[#allocation4 + $0x5b0] sm:$0xff]
        %v678 = vld [vmem:[#allocation4 + $0x5b8] sm:$0xff]
        %v679 = vld [vmem:[#allocation4 + $0x5c0] sm:$0xff]
        %v680 = vld [vmem:[#allocation4 + $0x5c8] sm:$0xff]
        %v681 = vld [vmem:[#allocation4 + $0x5d0] sm:$0xff]
        %v682 = vld [vmem:[#allocation4 + $0x5d8] sm:$0xff]
        %v683 = vld [vmem:[#allocation4 + $0x5e0] sm:$0xff]
        %v684 = vld [vmem:[#allocation4 + $0x5e8] sm:$0xff]
        %v685 = vld [vmem:[#allocation4 + $0x5f0] sm:$0xff]
        %v686 = vld [vmem:[#allocation4 + $0x5f8] sm:$0xff]
        %v687 = vld [vmem:[#allocation4 + $0x600] sm:$0xff]
        %v688 = vld [vmem:[#allocation4 + $0x608] sm:$0xff]
        %v689 = vld [vmem:[#allocation4 + $0x610] sm:$0xff]
        %v690 = vld [vmem:[#allocation4 + $0x618] sm:$0xff]
        %v691 = vld [vmem:[#allocation4 + $0x620] sm:$0xff]
        %v692 = vld [vmem:[#allocation4 + $0x628] sm:$0xff]
        %v693 = vld [vmem:[#allocation4 + $0x630] sm:$0xff]
        %v694 = vld [vmem:[#allocation4 + $0x638] sm:$0xff]
        %v695 = vld [vmem:[#allocation4 + $0x640] sm:$0xff]
        %v696 = vld [vmem:[#allocation4 + $0x648] sm:$0xff]
        %v697 = vld [vmem:[#allocation4 + $0x650] sm:$0xff]
        %v698 = vld [vmem:[#allocation4 + $0x658] sm:$0xff]
        %v699 = vld [vmem:[#allocation4 + $0x660] sm:$0xff]
        %v700 = vld [vmem:[#allocation4 + $0x668] sm:$0xff]
        %v701 = vld [vmem:[#allocation4 + $0x670] sm:$0xff]
        %v702 = vld [vmem:[#allocation4 + $0x678] sm:$0xff]
        %v703 = vld [vmem:[#allocation4 + $0x680] sm:$0xff]
        %v704 = vld [vmem:[#allocation4 + $0x688] sm:$0xff]
        %v705 = vld [vmem:[#allocation4 + $0x690] sm:$0xff]
        %v706 = vld [vmem:[#allocation4 + $0x698] sm:$0xff]
        %v707 = vld [vmem:[#allocation4 + $0x6a0] sm:$0xff]
        %v708 = vld [vmem:[#allocation4 + $0x6a8] sm:$0xff]
        %v709 = vld [vmem:[#allocation4 + $0x6b0] sm:$0xff]
        %v710 = vld [vmem:[#allocation4 + $0x6b8] sm:$0xff]
        %v711 = vld [vmem:[#allocation4 + $0x6c0] sm:$0xff]
        %v712 = vld [vmem:[#allocation4 + $0x6c8] sm:$0xff]
        %v713 = vld [vmem:[#allocation4 + $0x6d0] sm:$0xff]
        %v714 = vld [vmem:[#allocation4 + $0x6d8] sm:$0xff]
        %v715 = vld [vmem:[#allocation4 + $0x6e0] sm:$0xff]
        %v716 = vld [vmem:[#allocation4 + $0x6e8] sm:$0xff]
        %v717 = vld [vmem:[#allocation4 + $0x6f0] sm:$0xff]
        %v718 = vld [vmem:[#allocation4 + $0x6f8] sm:$0xff]
        %v719 = vld [vmem:[#allocation4 + $0x700] sm:$0xff]
        %v720 = vld [vmem:[#allocation4 + $0x708] sm:$0xff]
        %v721 = vld [vmem:[#allocation4 + $0x710] sm:$0xff]
        %v722 = vld [vmem:[#allocation4 + $0x718] sm:$0xff]
        %v723 = vld [vmem:[#allocation4 + $0x720] sm:$0xff]
        %v724 = vld [vmem:[#allocation4 + $0x728] sm:$0xff]
        %v725 = vld [vmem:[#allocation4 + $0x730] sm:$0xff]
        %v726 = vld [vmem:[#allocation4 + $0x738] sm:$0xff]
        %v727 = vld [vmem:[#allocation4 + $0x740] sm:$0xff]
        %v728 = vld [vmem:[#allocation4 + $0x748] sm:$0xff]
        %v729 = vld [vmem:[#allocation4 + $0x750] sm:$0xff]
        %v730 = vld [vmem:[#allocation4 + $0x758] sm:$0xff]
        %v731 = vld [vmem:[#allocation4 + $0x760] sm:$0xff]
        %v732 = vld [vmem:[#allocation4 + $0x768] sm:$0xff]
        %v733 = vld [vmem:[#allocation4 + $0x770] sm:$0xff]
        %v734 = vld [vmem:[#allocation4 + $0x778] sm:$0xff]
        %v735 = vld [vmem:[#allocation4 + $0x780] sm:$0xff]
        %v736 = vld [vmem:[#allocation4 + $0x788] sm:$0xff]
        %v737 = vld [vmem:[#allocation4 + $0x790] sm:$0xff]
        %v738 = vld [vmem:[#allocation4 + $0x798] sm:$0xff]
        %v739 = vld [vmem:[#allocation4 + $0x7a0] sm:$0xff]
        %v740 = vld [vmem:[#allocation4 + $0x7a8] sm:$0xff]
        %v741 = vld [vmem:[#allocation4 + $0x7b0] sm:$0xff]
        %v742 = vld [vmem:[#allocation4 + $0x7b8] sm:$0xff]
        %v743 = vld [vmem:[#allocation4 + $0x7c0] sm:$0xff]
        %v744 = vld [vmem:[#allocation4 + $0x7c8] sm:$0xff]
        %v745 = vld [vmem:[#allocation4 + $0x7d0] sm:$0xff]
        %v746 = vld [vmem:[#allocation4 + $0x7d8] sm:$0xff]
        %v747 = vld [vmem:[#allocation4 + $0x7e0] sm:$0xff]
        %v748 = vld [vmem:[#allocation4 + $0x7e8] sm:$0xff]
        %v749 = vld [vmem:[#allocation4 + $0x7f0] sm:$0xff]
        %v750 = vld [vmem:[#allocation4 + $0x7f8] sm:$0xff]
        %v751 = vld [vmem:[#allocation4 + $0x800] sm:$0xff]
        %v752 = vld [vmem:[#allocation4 + $0x808] sm:$0xff]
        %v753 = vld [vmem:[#allocation4 + $0x810] sm:$0xff]
        %v754 = vld [vmem:[#allocation4 + $0x818] sm:$0xff]
        %v755 = vld [vmem:[#allocation4 + $0x820] sm:$0xff]
        %v756 = vld [vmem:[#allocation4 + $0x828] sm:$0xff]
        %v757 = vld [vmem:[#allocation4 + $0x830] sm:$0xff]
        %v758 = vld [vmem:[#allocation4 + $0x838] sm:$0xff]
        %v759 = vld [vmem:[#allocation4 + $0x840] sm:$0xff]
        %v760 = vld [vmem:[#allocation4 + $0x848] sm:$0xff]
        %v761 = vld [vmem:[#allocation4 + $0x850] sm:$0xff]
        %v762 = vld [vmem:[#allocation4 + $0x858] sm:$0xff]
        %v763 = vld [vmem:[#allocation4 + $0x860] sm:$0xff]
        %v764 = vld [vmem:[#allocation4 + $0x868] sm:$0xff]
        %v765 = vld [vmem:[#allocation4 + $0x870] sm:$0xff]
        %v766 = vld [vmem:[#allocation4 + $0x878] sm:$0xff]
        %v767 = vld [vmem:[#allocation4 + $0x880] sm:$0xff]
        %v768 = vld [vmem:[#allocation4 + $0x888] sm:$0xff]
        %v769 = vld [vmem:[#allocation4 + $0x890] sm:$0xff]
        %v770 = vld [vmem:[#allocation4 + $0x898] sm:$0xff]
        %v771 = vld [vmem:[#allocation4 + $0x8a0] sm:$0xff]
        %v772 = vld [vmem:[#allocation4 + $0x8a8] sm:$0xff]
        %v773 = vld [vmem:[#allocation4 + $0x8b0] sm:$0xff]
        %v774 = vld [vmem:[#allocation4 + $0x8b8] sm:$0xff]
        %v775 = vld [vmem:[#allocation4 + $0x8c0] sm:$0xff]
        %v776 = vld [vmem:[#allocation4 + $0x8c8] sm:$0xff]
        %v777 = vld [vmem:[#allocation4 + $0x8d0] sm:$0xff]
        %v778 = vld [vmem:[#allocation4 + $0x8d8] sm:$0xff]
        %v779 = vld [vmem:[#allocation4 + $0x8e0] sm:$0xff]
        %v780 = vld [vmem:[#allocation4 + $0x8e8] sm:$0xff]
        %v781 = vld [vmem:[#allocation4 + $0x8f0] sm:$0xff]
        %v782 = vld [vmem:[#allocation4 + $0x8f8] sm:$0xff]
        %v783 = vld [vmem:[#allocation4 + $0x900] sm:$0xff]
        %v784 = vld [vmem:[#allocation4 + $0x908] sm:$0xff]
        %v785 = vld [vmem:[#allocation4 + $0x910] sm:$0xff]
        %v786 = vld [vmem:[#allocation4 + $0x918] sm:$0xff]
        %v787 = vld [vmem:[#allocation4 + $0x920] sm:$0xff]
        %v788 = vld [vmem:[#allocation4 + $0x928] sm:$0xff]
        %v789 = vld [vmem:[#allocation4 + $0x930] sm:$0xff]
        %v790 = vld [vmem:[#allocation4 + $0x938] sm:$0xff]
        %v791 = vld [vmem:[#allocation4 + $0x940] sm:$0xff]
        %v792 = vld [vmem:[#allocation4 + $0x948] sm:$0xff]
        %v793 = vld [vmem:[#allocation4 + $0x950] sm:$0xff]
        %v794 = vld [vmem:[#allocation4 + $0x958] sm:$0xff]
        %v795 = vld [vmem:[#allocation4 + $0x960] sm:$0xff]
        %v796 = vld [vmem:[#allocation4 + $0x968] sm:$0xff]
        %v797 = vld [vmem:[#allocation4 + $0x970] sm:$0xff]
        %v798 = vld [vmem:[#allocation4 + $0x978] sm:$0xff]
        %v799 = vld [vmem:[#allocation4 + $0x980] sm:$0xff]
        %v800 = vld [vmem:[#allocation4 + $0x988] sm:$0xff]
        %v801 = vld [vmem:[#allocation4 + $0x990] sm:$0xff]
        %v802 = vld [vmem:[#allocation4 + $0x998] sm:$0xff]
        %v803 = vld [vmem:[#allocation4 + $0x9a0] sm:$0xff]
        %v804 = vld [vmem:[#allocation4 + $0x9a8] sm:$0xff]
        %v805 = vld [vmem:[#allocation4 + $0x9b0] sm:$0xff]
        %v806 = vld [vmem:[#allocation4 + $0x9b8] sm:$0xff]
        %v807 = vld [vmem:[#allocation4 + $0x9c0] sm:$0xff]
        %v808 = vld [vmem:[#allocation4 + $0x9c8] sm:$0xff]
        %v809 = vld [vmem:[#allocation4 + $0x9d0] sm:$0xff]
        %v810 = vld [vmem:[#allocation4 + $0x9d8] sm:$0xff]
        %v811 = vld [vmem:[#allocation4 + $0x9e0] sm:$0xff]
        %v812 = vld [vmem:[#allocation4 + $0x9e8] sm:$0xff]
        %v813 = vld [vmem:[#allocation4 + $0x9f0] sm:$0xff]
        %v814 = vld [vmem:[#allocation4 + $0x9f8] sm:$0xff]
        %v815 = vld [vmem:[#allocation4 + $0xa00] sm:$0xff]
        %v816 = vld [vmem:[#allocation4 + $0xa08] sm:$0xff]
        %v817 = vld [vmem:[#allocation4 + $0xa10] sm:$0xff]
        %v818 = vld [vmem:[#allocation4 + $0xa18] sm:$0xff]
        %v819 = vld [vmem:[#allocation4 + $0xa20] sm:$0xff]
        %v820 = vld [vmem:[#allocation4 + $0xa28] sm:$0xff]
        %v821 = vld [vmem:[#allocation4 + $0xa30] sm:$0xff]
        %v822 = vld [vmem:[#allocation4 + $0xa38] sm:$0xff]
        %v823 = vld [vmem:[#allocation4 + $0xa40] sm:$0xff]
        %v824 = vld [vmem:[#allocation4 + $0xa48] sm:$0xff]
        %v825 = vld [vmem:[#allocation4 + $0xa50] sm:$0xff]
        %v826 = vld [vmem:[#allocation4 + $0xa58] sm:$0xff]
        %v827 = vld [vmem:[#allocation4 + $0xa60] sm:$0xff]
        %v828 = vld [vmem:[#allocation4 + $0xa68] sm:$0xff]
        %v829 = vld [vmem:[#allocation4 + $0xa70] sm:$0xff]
        %v830 = vld [vmem:[#allocation4 + $0xa78] sm:$0xff]
        %v831 = vld [vmem:[#allocation4 + $0xa80] sm:$0xff]
        %v832 = vld [vmem:[#allocation4 + $0xa88] sm:$0xff]
        %v833 = vld [vmem:[#allocation4 + $0xa90] sm:$0xff]
        %v834 = vld [vmem:[#allocation4 + $0xa98] sm:$0xff]
        %v835 = vld [vmem:[#allocation4 + $0xaa0] sm:$0xff]
        %v836 = vld [vmem:[#allocation4 + $0xaa8] sm:$0xff]
        %v837 = vld [vmem:[#allocation4 + $0xab0] sm:$0xff]
        %v838 = vld [vmem:[#allocation4 + $0xab8] sm:$0xff]
        %v839 = vld [vmem:[#allocation4 + $0xac0] sm:$0xff]
        %v840 = vld [vmem:[#allocation4 + $0xac8] sm:$0xff]
        %v841 = vld [vmem:[#allocation4 + $0xad0] sm:$0xff]
        %v842 = vld [vmem:[#allocation4 + $0xad8] sm:$0xff]
        %v843 = vld [vmem:[#allocation4 + $0xae0] sm:$0xff]
        %v844 = vld [vmem:[#allocation4 + $0xae8] sm:$0xff]
        %v845 = vld [vmem:[#allocation4 + $0xaf0] sm:$0xff]
        %v846 = vld [vmem:[#allocation4 + $0xaf8] sm:$0xff]
        %v847 = vld [vmem:[#allocation4 + $0xb00] sm:$0xff]
        %v848 = vld [vmem:[#allocation4 + $0xb08] sm:$0xff]
        %v849 = vld [vmem:[#allocation4 + $0xb10] sm:$0xff]
        %v850 = vld [vmem:[#allocation4 + $0xb18] sm:$0xff]
        %v851 = vld [vmem:[#allocation4 + $0xb20] sm:$0xff]
        %v852 = vld [vmem:[#allocation4 + $0xb28] sm:$0xff]
        %v853 = vld [vmem:[#allocation4 + $0xb30] sm:$0xff]
        %v854 = vld [vmem:[#allocation4 + $0xb38] sm:$0xff]
        %v855 = vld [vmem:[#allocation4 + $0xb40] sm:$0xff]
        %v856 = vld [vmem:[#allocation4 + $0xb48] sm:$0xff]
        %v857 = vld [vmem:[#allocation4 + $0xb50] sm:$0xff]
        %v858 = vld [vmem:[#allocation4 + $0xb58] sm:$0xff]
        %v859 = vld [vmem:[#allocation4 + $0xb60] sm:$0xff]
        %v860 = vld [vmem:[#allocation4 + $0xb68] sm:$0xff]
        %v861 = vld [vmem:[#allocation4 + $0xb70] sm:$0xff]
        %v862 = vld [vmem:[#allocation4 + $0xb78] sm:$0xff]
        %v863 = vld [vmem:[#allocation4 + $0xb80] sm:$0xff]
        %v864 = vld [vmem:[#allocation4 + $0xb88] sm:$0xff]
        %v865 = vld [vmem:[#allocation4 + $0xb90] sm:$0xff]
        %v866 = vld [vmem:[#allocation4 + $0xb98] sm:$0xff]
        %v867 = vld [vmem:[#allocation4 + $0xba0] sm:$0xff]
        %v868 = vld [vmem:[#allocation4 + $0xba8] sm:$0xff]
        %v869 = vld [vmem:[#allocation4 + $0xbb0] sm:$0xff]
        %v870 = vld [vmem:[#allocation4 + $0xbb8] sm:$0xff]
        %v871 = vld [vmem:[#allocation4 + $0xbc0] sm:$0xff]
        %v872 = vld [vmem:[#allocation4 + $0xbc8] sm:$0xff]
        %v873 = vld [vmem:[#allocation4 + $0xbd0] sm:$0xff]
        %v874 = vld [vmem:[#allocation4 + $0xbd8] sm:$0xff]
        %v875 = vld [vmem:[#allocation4 + $0xbe0] sm:$0xff]
        %v876 = vld [vmem:[#allocation4 + $0xbe8] sm:$0xff]
        %v877 = vld [vmem:[#allocation4 + $0xbf0] sm:$0xff]
        %v878 = vld [vmem:[#allocation4 + $0xbf8] sm:$0xff]
        %v879 = vld [vmem:[#allocation4 + $0xc00] sm:$0xff]
        %v880 = vld [vmem:[#allocation4 + $0xc08] sm:$0xff]
        %v881 = vld [vmem:[#allocation4 + $0xc10] sm:$0xff]
        %v882 = vld [vmem:[#allocation4 + $0xc18] sm:$0xff]
        %v883 = vld [vmem:[#allocation4 + $0xc20] sm:$0xff]
        %v884 = vld [vmem:[#allocation4 + $0xc28] sm:$0xff]
        %v885 = vld [vmem:[#allocation4 + $0xc30] sm:$0xff]
        %v886 = vld [vmem:[#allocation4 + $0xc38] sm:$0xff]
        %v887 = vld [vmem:[#allocation4 + $0xc40] sm:$0xff]
        %v888 = vld [vmem:[#allocation4 + $0xc48] sm:$0xff]
        %v889 = vld [vmem:[#allocation4 + $0xc50] sm:$0xff]
        %v890 = vld [vmem:[#allocation4 + $0xc58] sm:$0xff]
        %v891 = vld [vmem:[#allocation4 + $0xc60] sm:$0xff]
        %v892 = vld [vmem:[#allocation4 + $0xc68] sm:$0xff]
        %v893 = vld [vmem:[#allocation4 + $0xc70] sm:$0xff]
        %v894 = vld [vmem:[#allocation4 + $0xc78] sm:$0xff]
        %v895 = vld [vmem:[#allocation4 + $0xc80] sm:$0xff]
        %v896 = vld [vmem:[#allocation4 + $0xc88] sm:$0xff]
        %v897 = vld [vmem:[#allocation4 + $0xc90] sm:$0xff]
        %v898 = vld [vmem:[#allocation4 + $0xc98] sm:$0xff]
        %v899 = vld [vmem:[#allocation4 + $0xca0] sm:$0xff]
        %v900 = vld [vmem:[#allocation4 + $0xca8] sm:$0xff]
        %v901 = vld [vmem:[#allocation4 + $0xcb0] sm:$0xff]
        %v902 = vld [vmem:[#allocation4 + $0xcb8] sm:$0xff]
        %v903 = vld [vmem:[#allocation4 + $0xcc0] sm:$0xff]
        %v904 = vld [vmem:[#allocation4 + $0xcc8] sm:$0xff]
        %v905 = vld [vmem:[#allocation4 + $0xcd0] sm:$0xff]
        %v906 = vld [vmem:[#allocation4 + $0xcd8] sm:$0xff]
        %v907 = vld [vmem:[#allocation4 + $0xce0] sm:$0xff]
        %v908 = vld [vmem:[#allocation4 + $0xce8] sm:$0xff]
        %v909 = vld [vmem:[#allocation4 + $0xcf0] sm:$0xff]
        %v910 = vld [vmem:[#allocation4 + $0xcf8] sm:$0xff]
        %v911 = vld [vmem:[#allocation4 + $0xd00] sm:$0xff]
        %v912 = vld [vmem:[#allocation4 + $0xd08] sm:$0xff]
        %v913 = vld [vmem:[#allocation4 + $0xd10] sm:$0xff]
        %v914 = vld [vmem:[#allocation4 + $0xd18] sm:$0xff]
        %v915 = vld [vmem:[#allocation4 + $0xd20] sm:$0xff]
        %v916 = vld [vmem:[#allocation4 + $0xd28] sm:$0xff]
        %v917 = vld [vmem:[#allocation4 + $0xd30] sm:$0xff]
        %v918 = vld [vmem:[#allocation4 + $0xd38] sm:$0xff]
        %v919 = vld [vmem:[#allocation4 + $0xd40] sm:$0xff]
        %v920 = vld [vmem:[#allocation4 + $0xd48] sm:$0xff]
        %v921 = vld [vmem:[#allocation4 + $0xd50] sm:$0xff]
        %v922 = vld [vmem:[#allocation4 + $0xd58] sm:$0xff]
        %v923 = vld [vmem:[#allocation4 + $0xd60] sm:$0xff]
        %v924 = vld [vmem:[#allocation4 + $0xd68] sm:$0xff]
        %v925 = vld [vmem:[#allocation4 + $0xd70] sm:$0xff]
        %v926 = vld [vmem:[#allocation4 + $0xd78] sm:$0xff]
        %v927 = vld [vmem:[#allocation4 + $0xd80] sm:$0xff]
        %v928 = vld [vmem:[#allocation4 + $0xd88] sm:$0xff]
        %v929 = vld [vmem:[#allocation4 + $0xd90] sm:$0xff]
        %v930 = vld [vmem:[#allocation4 + $0xd98] sm:$0xff]
        %v931 = vld [vmem:[#allocation4 + $0xda0] sm:$0xff]
        %v932 = vld [vmem:[#allocation4 + $0xda8] sm:$0xff]
        %v933 = vld [vmem:[#allocation4 + $0xdb0] sm:$0xff]
        %v934 = vld [vmem:[#allocation4 + $0xdb8] sm:$0xff]
        %v935 = vld [vmem:[#allocation4 + $0xdc0] sm:$0xff]
        %v936 = vld [vmem:[#allocation4 + $0xdc8] sm:$0xff]
        %v937 = vld [vmem:[#allocation4 + $0xdd0] sm:$0xff]
        %v938 = vld [vmem:[#allocation4 + $0xdd8] sm:$0xff]
        %v939 = vld [vmem:[#allocation4 + $0xde0] sm:$0xff]
        %v940 = vld [vmem:[#allocation4 + $0xde8] sm:$0xff]
        %v941 = vld [vmem:[#allocation4 + $0xdf0] sm:$0xff]
        %v942 = vld [vmem:[#allocation4 + $0xdf8] sm:$0xff]
        %v943 = vld [vmem:[#allocation4 + $0xe00] sm:$0xff]
        %v944 = vld [vmem:[#allocation4 + $0xe08] sm:$0xff]
        %v945 = vld [vmem:[#allocation4 + $0xe10] sm:$0xff]
        %v946 = vld [vmem:[#allocation4 + $0xe18] sm:$0xff]
        %v947 = vld [vmem:[#allocation4 + $0xe20] sm:$0xff]
        %v948 = vld [vmem:[#allocation4 + $0xe28] sm:$0xff]
        %v949 = vld [vmem:[#allocation4 + $0xe30] sm:$0xff]
        %v950 = vld [vmem:[#allocation4 + $0xe38] sm:$0xff]
        %v951 = vld [vmem:[#allocation4 + $0xe40] sm:$0xff]
        %v952 = vld [vmem:[#allocation4 + $0xe48] sm:$0xff]
        %v953 = vld [vmem:[#allocation4 + $0xe50] sm:$0xff]
        %v954 = vld [vmem:[#allocation4 + $0xe58] sm:$0xff]
        %v955 = vld [vmem:[#allocation4 + $0xe60] sm:$0xff]
        %v956 = vld [vmem:[#allocation4 + $0xe68] sm:$0xff]
        %v957 = vld [vmem:[#allocation4 + $0xe70] sm:$0xff]
        %v958 = vld [vmem:[#allocation4 + $0xe78] sm:$0xff]
        %v959 = vld [vmem:[#allocation4 + $0xe80] sm:$0xff]
        %v960 = vld [vmem:[#allocation4 + $0xe88] sm:$0xff]
        %v961 = vld [vmem:[#allocation4 + $0xe90] sm:$0xff]
        %v962 = vld [vmem:[#allocation4 + $0xe98] sm:$0xff]
        %v963 = vld [vmem:[#allocation4 + $0xea0] sm:$0xff]
        %v964 = vld [vmem:[#allocation4 + $0xea8] sm:$0xff]
        %v965 = vld [vmem:[#allocation4 + $0xeb0] sm:$0xff]
        %v966 = vld [vmem:[#allocation4 + $0xeb8] sm:$0xff]
        %v967 = vld [vmem:[#allocation4 + $0xec0] sm:$0xff]
        %v968 = vld [vmem:[#allocation4 + $0xec8] sm:$0xff]
        %v969 = vld [vmem:[#allocation4 + $0xed0] sm:$0xff]
        %v970 = vld [vmem:[#allocation4 + $0xed8] sm:$0xff]
        %v971 = vld [vmem:[#allocation4 + $0xee0] sm:$0xff]
        %v972 = vld [vmem:[#allocation4 + $0xee8] sm:$0xff]
        %v973 = vld [vmem:[#allocation4 + $0xef0] sm:$0xff]
        %v974 = vld [vmem:[#allocation4 + $0xef8] sm:$0xff]
        %v975 = vld [vmem:[#allocation4 + $0xf00] sm:$0xff]
        %v976 = vld [vmem:[#allocation4 + $0xf08] sm:$0xff]
        %v977 = vld [vmem:[#allocation4 + $0xf10] sm:$0xff]
        %v978 = vld [vmem:[#allocation4 + $0xf18] sm:$0xff]
        %v979 = vld [vmem:[#allocation4 + $0xf20] sm:$0xff]
        %v980 = vld [vmem:[#allocation4 + $0xf28] sm:$0xff]
        %v981 = vld [vmem:[#allocation4 + $0xf30] sm:$0xff]
        %v982 = vld [vmem:[#allocation4 + $0xf38] sm:$0xff]
        %v983 = vld [vmem:[#allocation4 + $0xf40] sm:$0xff]
        %v984 = vld [vmem:[#allocation4 + $0xf48] sm:$0xff]
        %v985 = vld [vmem:[#allocation4 + $0xf50] sm:$0xff]
        %v986 = vld [vmem:[#allocation4 + $0xf58] sm:$0xff]
        %v987 = vld [vmem:[#allocation4 + $0xf60] sm:$0xff]
        %v988 = vld [vmem:[#allocation4 + $0xf68] sm:$0xff]
        %v989 = vld [vmem:[#allocation4 + $0xf70] sm:$0xff]
        %v990 = vld [vmem:[#allocation4 + $0xf78] sm:$0xff]
        %v991 = vld [vmem:[#allocation4 + $0xf80] sm:$0xff]
        %v992 = vld [vmem:[#allocation4 + $0xf88] sm:$0xff]
        %v993 = vld [vmem:[#allocation4 + $0xf90] sm:$0xff]
        %v994 = vld [vmem:[#allocation4 + $0xf98] sm:$0xff]
        %v995 = vld [vmem:[#allocation4 + $0xfa0] sm:$0xff]
        %v996 = vld [vmem:[#allocation4 + $0xfa8] sm:$0xff]
        %v997 = vld [vmem:[#allocation4 + $0xfb0] sm:$0xff]
        %v998 = vld [vmem:[#allocation4 + $0xfb8] sm:$0xff]
        %v999 = vld [vmem:[#allocation4 + $0xfc0] sm:$0xff]
        %v1000 = vld [vmem:[#allocation4 + $0xfc8] sm:$0xff]
        %v1001 = vld [vmem:[#allocation4 + $0xfd0] sm:$0xff]
        %v1002 = vld [vmem:[#allocation4 + $0xfd8] sm:$0xff]
        %v1003 = vld [vmem:[#allocation4 + $0xfe0] sm:$0xff]
        %v1004 = vld [vmem:[#allocation4 + $0xfe8] sm:$0xff]
        %v1005 = vld [vmem:[#allocation4 + $0xff0] sm:$0xff]
        %v1006 = vld [vmem:[#allocation4 + $0xff8] sm:$0xff]
        %v1007 = vld [vmem:[#allocation4 + $0x1000] sm:$0xff]
        %v1008 = vld [vmem:[#allocation4 + $0x1008] sm:$0xff]
        %v1009 = vld [vmem:[#allocation4 + $0x1010] sm:$0xff]
        %v1010 = vld [vmem:[#allocation4 + $0x1018] sm:$0xff]
        %v1011 = vld [vmem:[#allocation4 + $0x1020] sm:$0xff]
        %v1012 = vld [vmem:[#allocation4 + $0x1028] sm:$0xff]
        %v1013 = vld [vmem:[#allocation4 + $0x1030] sm:$0xff]
        %v1014 = vld [vmem:[#allocation4 + $0x1038] sm:$0xff]
        %v1015 = vld [vmem:[#allocation4 + $0x1040] sm:$0xff]
        %v1016 = vld [vmem:[#allocation4 + $0x1048] sm:$0xff]
        %v1017 = vld [vmem:[#allocation4 + $0x1050] sm:$0xff]
        %v1018 = vld [vmem:[#allocation4 + $0x1058] sm:$0xff]
        %v1019 = vld [vmem:[#allocation4 + $0x1060] sm:$0xff]
        %v1020 = vld [vmem:[#allocation4 + $0x1068] sm:$0xff]
        %v1021 = vld [vmem:[#allocation4 + $0x1070] sm:$0xff]
        %v1022 = vld [vmem:[#allocation4 + $0x1078] sm:$0xff]
        %v1023 = vld [vmem:[#allocation4 + $0x1080] sm:$0xff]
        %v1024 = vld [vmem:[#allocation4 + $0x1088] sm:$0xff]
        %v1025 = vld [vmem:[#allocation4 + $0x1090] sm:$0xff]
        %v1026 = vld [vmem:[#allocation4 + $0x1098] sm:$0xff]
        %v1027 = vld [vmem:[#allocation4 + $0x10a0] sm:$0xff]
        %v1028 = vld [vmem:[#allocation4 + $0x10a8] sm:$0xff]
        %v1029 = vld [vmem:[#allocation4 + $0x10b0] sm:$0xff]
        %v1030 = vld [vmem:[#allocation4 + $0x10b8] sm:$0xff]
        %v1031 = vld [vmem:[#allocation4 + $0x10c0] sm:$0xff]
        %v1032 = vld [vmem:[#allocation4 + $0x10c8] sm:$0xff]
        %v1033 = vld [vmem:[#allocation4 + $0x10d0] sm:$0xff]
        %v1034 = vld [vmem:[#allocation4 + $0x10d8] sm:$0xff]
        %v1035 = vld [vmem:[#allocation4 + $0x10e0] sm:$0xff]
        %v1036 = vld [vmem:[#allocation4 + $0x10e8] sm:$0xff]
        %v1037 = vld [vmem:[#allocation4 + $0x10f0] sm:$0xff]
        %v1038 = vld [vmem:[#allocation4 + $0x10f8] sm:$0xff]
        %v1039 = vld [vmem:[#allocation4 + $0x1100] sm:$0xff]
        %v1040 = vld [vmem:[#allocation4 + $0x1108] sm:$0xff]
        %v1041 = vld [vmem:[#allocation4 + $0x1110] sm:$0xff]
        %v1042 = vld [vmem:[#allocation4 + $0x1118] sm:$0xff]
        %v1043 = vld [vmem:[#allocation4 + $0x1120] sm:$0xff]
        %v1044 = vld [vmem:[#allocation4 + $0x1128] sm:$0xff]
        %v1045 = vld [vmem:[#allocation4 + $0x1130] sm:$0xff]
        %v1046 = vld [vmem:[#allocation4 + $0x1138] sm:$0xff]
        %v1047 = vld [vmem:[#allocation4 + $0x1140] sm:$0xff]
        %v1048 = vld [vmem:[#allocation4 + $0x1148] sm:$0xff]
        %v1049 = vld [vmem:[#allocation4 + $0x1150] sm:$0xff]
        %v1050 = vld [vmem:[#allocation4 + $0x1158] sm:$0xff]
        %v1051 = vld [vmem:[#allocation4 + $0x1160] sm:$0xff]
        %v1052 = vld [vmem:[#allocation4 + $0x1168] sm:$0xff]
        %v1053 = vld [vmem:[#allocation4 + $0x1170] sm:$0xff]
        %v1054 = vld [vmem:[#allocation4 + $0x1178] sm:$0xff]
        %v1055 = vld [vmem:[#allocation4 + $0x1180] sm:$0xff]
        %v1056 = vld [vmem:[#allocation4 + $0x1188] sm:$0xff]
        %v1057 = vld [vmem:[#allocation4 + $0x1190] sm:$0xff]
        %v1058 = vld [vmem:[#allocation4 + $0x1198] sm:$0xff]
        %v1059 = vld [vmem:[#allocation4 + $0x11a0] sm:$0xff]
        %v1060 = vld [vmem:[#allocation4 + $0x11a8] sm:$0xff]
        %v1061 = vld [vmem:[#allocation4 + $0x11b0] sm:$0xff]
        %v1062 = vld [vmem:[#allocation4 + $0x11b8] sm:$0xff]
        %v1063 = vld [vmem:[#allocation4 + $0x11c0] sm:$0xff]
        %v1064 = vld [vmem:[#allocation4 + $0x11c8] sm:$0xff]
        %v1065 = vld [vmem:[#allocation4 + $0x11d0] sm:$0xff]
        %v1066 = vld [vmem:[#allocation4 + $0x11d8] sm:$0xff]
        %v1067 = vld [vmem:[#allocation4 + $0x11e0] sm:$0xff]
        %v1068 = vld [vmem:[#allocation4 + $0x11e8] sm:$0xff]
        %v1069 = vld [vmem:[#allocation4 + $0x11f0] sm:$0xff]
        %v1070 = vld [vmem:[#allocation4 + $0x11f8] sm:$0xff]
        %v1071 = vld [vmem:[#allocation4 + $0x1200] sm:$0xff]
        %v1072 = vld [vmem:[#allocation4 + $0x1208] sm:$0xff]
        %v1073 = vld [vmem:[#allocation4 + $0x1210] sm:$0xff]
        %v1074 = vld [vmem:[#allocation4 + $0x1218] sm:$0xff]
        %v1075 = vld [vmem:[#allocation4 + $0x1220] sm:$0xff]
        %v1076 = vld [vmem:[#allocation4 + $0x1228] sm:$0xff]
        %v1077 = vld [vmem:[#allocation4 + $0x1230] sm:$0xff]
        %v1078 = vld [vmem:[#allocation4 + $0x1238] sm:$0xff]
        %v1079 = vld [vmem:[#allocation4 + $0x1240] sm:$0xff]
        %v1080 = vld [vmem:[#allocation4 + $0x1248] sm:$0xff]
        %v1081 = vld [vmem:[#allocation4 + $0x1250] sm:$0xff]
        %v1082 = vld [vmem:[#allocation4 + $0x1258] sm:$0xff]
        %v1083 = vld [vmem:[#allocation4 + $0x1260] sm:$0xff]
        %v1084 = vld [vmem:[#allocation4 + $0x1268] sm:$0xff]
        %v1085 = vld [vmem:[#allocation4 + $0x1270] sm:$0xff]
        %v1086 = vld [vmem:[#allocation4 + $0x1278] sm:$0xff]
        %v1087 = vld [vmem:[#allocation4 + $0x1280] sm:$0xff]
        %v1088 = vld [vmem:[#allocation4 + $0x1288] sm:$0xff]
        %v1089 = vld [vmem:[#allocation4 + $0x1290] sm:$0xff]
        %v1090 = vld [vmem:[#allocation4 + $0x1298] sm:$0xff]
        %v1091 = vld [vmem:[#allocation4 + $0x12a0] sm:$0xff]
        %v1092 = vld [vmem:[#allocation4 + $0x12a8] sm:$0xff]
        %v1093 = vld [vmem:[#allocation4 + $0x12b0] sm:$0xff]
        %v1094 = vld [vmem:[#allocation4 + $0x12b8] sm:$0xff]
        %v1095 = vld [vmem:[#allocation4 + $0x12c0] sm:$0xff]
        %v1096 = vld [vmem:[#allocation4 + $0x12c8] sm:$0xff]
        %v1097 = vld [vmem:[#allocation4 + $0x12d0] sm:$0xff]
        %v1098 = vld [vmem:[#allocation4 + $0x12d8] sm:$0xff]
        %v1099 = vld [vmem:[#allocation4 + $0x12e0] sm:$0xff]
        %v1100 = vld [vmem:[#allocation4 + $0x12e8] sm:$0xff]
        %v1101 = vld [vmem:[#allocation4 + $0x12f0] sm:$0xff]
        %v1102 = vld [vmem:[#allocation4 + $0x12f8] sm:$0xff]
        %v1103 = vld [vmem:[#allocation4 + $0x1300] sm:$0xff]
        %v1104 = vld [vmem:[#allocation4 + $0x1308] sm:$0xff]
        %v1105 = vld [vmem:[#allocation4 + $0x1310] sm:$0xff]
        %v1106 = vld [vmem:[#allocation4 + $0x1318] sm:$0xff]
        %v1107 = vld [vmem:[#allocation4 + $0x1320] sm:$0xff]
        %v1108 = vld [vmem:[#allocation4 + $0x1328] sm:$0xff]
        %v1109 = vld [vmem:[#allocation4 + $0x1330] sm:$0xff]
        %v1110 = vld [vmem:[#allocation4 + $0x1338] sm:$0xff]
        %v1111 = vld [vmem:[#allocation4 + $0x1340] sm:$0xff]
        %v1112 = vld [vmem:[#allocation4 + $0x1348] sm:$0xff]
        %v1113 = vld [vmem:[#allocation4 + $0x1350] sm:$0xff]
        %v1114 = vld [vmem:[#allocation4 + $0x1358] sm:$0xff]
        %v1115 = vld [vmem:[#allocation4 + $0x1360] sm:$0xff]
        %v1116 = vld [vmem:[#allocation4 + $0x1368] sm:$0xff]
        %v1117 = vld [vmem:[#allocation4 + $0x1370] sm:$0xff]
        %v1118 = vld [vmem:[#allocation4 + $0x1378] sm:$0xff]
        %v1119 = vld [vmem:[#allocation4 + $0x1380] sm:$0xff]
        %v1120 = vld [vmem:[#allocation4 + $0x1388] sm:$0xff]
        %v1121 = vld [vmem:[#allocation4 + $0x1390] sm:$0xff]
        %v1122 = vld [vmem:[#allocation4 + $0x1398] sm:$0xff]
        %v1123 = vld [vmem:[#allocation4 + $0x13a0] sm:$0xff]
        %v1124 = vld [vmem:[#allocation4 + $0x13a8] sm:$0xff]
        %v1125 = vld [vmem:[#allocation4 + $0x13b0] sm:$0xff]
        %v1126 = vld [vmem:[#allocation4 + $0x13b8] sm:$0xff]
        %v1127 = vld [vmem:[#allocation4 + $0x13c0] sm:$0xff]
        %v1128 = vld [vmem:[#allocation4 + $0x13c8] sm:$0xff]
        %v1129 = vld [vmem:[#allocation4 + $0x13d0] sm:$0xff]
        %v1130 = vld [vmem:[#allocation4 + $0x13d8] sm:$0xff]
        %v1131 = vld [vmem:[#allocation4 + $0x13e0] sm:$0xff]
        %v1132 = vld [vmem:[#allocation4 + $0x13e8] sm:$0xff]
        %v1133 = vld [vmem:[#allocation4 + $0x13f0] sm:$0xff]
        %v1134 = vld [vmem:[#allocation4 + $0x13f8] sm:$0xff]
        %v1135 = vld [vmem:[#allocation4 + $0x1400] sm:$0xff]
        %v1136 = vld [vmem:[#allocation4 + $0x1408] sm:$0xff]
        %v1137 = vld [vmem:[#allocation4 + $0x1410] sm:$0xff]
        %v1138 = vld [vmem:[#allocation4 + $0x1418] sm:$0xff]
        %v1139 = vld [vmem:[#allocation4 + $0x1420] sm:$0xff]
        %v1140 = vld [vmem:[#allocation4 + $0x1428] sm:$0xff]
        %v1141 = vld [vmem:[#allocation4 + $0x1430] sm:$0xff]
        %v1142 = vld [vmem:[#allocation4 + $0x1438] sm:$0xff]
        %v1143 = vld [vmem:[#allocation4 + $0x1440] sm:$0xff]
        %v1144 = vld [vmem:[#allocation4 + $0x1448] sm:$0xff]
        %v1145 = vld [vmem:[#allocation4 + $0x1450] sm:$0xff]
        %v1146 = vld [vmem:[#allocation4 + $0x1458] sm:$0xff]
        %v1147 = vld [vmem:[#allocation4 + $0x1460] sm:$0xff]
        %v1148 = vld [vmem:[#allocation4 + $0x1468] sm:$0xff]
        %v1149 = vld [vmem:[#allocation4 + $0x1470] sm:$0xff]
        %v1150 = vld [vmem:[#allocation4 + $0x1478] sm:$0xff]
        %v1151 = vld [vmem:[#allocation4 + $0x1480] sm:$0xff]
        %v1152 = vld [vmem:[#allocation4 + $0x1488] sm:$0xff]
        %v1153 = vld [vmem:[#allocation4 + $0x1490] sm:$0xff]
        %v1154 = vld [vmem:[#allocation4 + $0x1498] sm:$0xff]
        %v1155 = vld [vmem:[#allocation4 + $0x14a0] sm:$0xff]
        %v1156 = vld [vmem:[#allocation4 + $0x14a8] sm:$0xff]
        %v1157 = vld [vmem:[#allocation4 + $0x14b0] sm:$0xff]
        %v1158 = vld [vmem:[#allocation4 + $0x14b8] sm:$0xff]
        %v1159 = vld [vmem:[#allocation4 + $0x14c0] sm:$0xff]
        %v1160 = vld [vmem:[#allocation4 + $0x14c8] sm:$0xff]
        %v1161 = vld [vmem:[#allocation4 + $0x14d0] sm:$0xff]
        %v1162 = vld [vmem:[#allocation4 + $0x14d8] sm:$0xff]
        %v1163 = vld [vmem:[#allocation4 + $0x14e0] sm:$0xff]
        %v1164 = vld [vmem:[#allocation4 + $0x14e8] sm:$0xff]
        %v1165 = vld [vmem:[#allocation4 + $0x14f0] sm:$0xff]
        %v1166 = vld [vmem:[#allocation4 + $0x14f8] sm:$0xff]
        %v1167 = vld [vmem:[#allocation4 + $0x1500] sm:$0xff]
        %v1168 = vld [vmem:[#allocation4 + $0x1508] sm:$0xff]
        %v1169 = vld [vmem:[#allocation4 + $0x1510] sm:$0xff]
        %v1170 = vld [vmem:[#allocation4 + $0x1518] sm:$0xff]
        %v1171 = vld [vmem:[#allocation4 + $0x1520] sm:$0xff]
        %v1172 = vld [vmem:[#allocation4 + $0x1528] sm:$0xff]
        %v1173 = vld [vmem:[#allocation4 + $0x1530] sm:$0xff]
        %v1174 = vld [vmem:[#allocation4 + $0x1538] sm:$0xff]
        %v1175 = vld [vmem:[#allocation4 + $0x1540] sm:$0xff]
        %v1176 = vld [vmem:[#allocation4 + $0x1548] sm:$0xff]
        %v1177 = vld [vmem:[#allocation4 + $0x1550] sm:$0xff]
        %v1178 = vld [vmem:[#allocation4 + $0x1558] sm:$0xff]
        %v1179 = vld [vmem:[#allocation4 + $0x1560] sm:$0xff]
        %v1180 = vld [vmem:[#allocation4 + $0x1568] sm:$0xff]
        %v1181 = vld [vmem:[#allocation4 + $0x1570] sm:$0xff]
        %v1182 = vld [vmem:[#allocation4 + $0x1578] sm:$0xff]
        %v1183 = vld [vmem:[#allocation4 + $0x1580] sm:$0xff]
        %v1184 = vld [vmem:[#allocation4 + $0x1588] sm:$0xff]
        %v1185 = vld [vmem:[#allocation4 + $0x1590] sm:$0xff]
        %v1186 = vld [vmem:[#allocation4 + $0x1598] sm:$0xff]
        %v1187 = vld [vmem:[#allocation4 + $0x15a0] sm:$0xff]
        %v1188 = vld [vmem:[#allocation4 + $0x15a8] sm:$0xff]
        %v1189 = vld [vmem:[#allocation4 + $0x15b0] sm:$0xff]
        %v1190 = vld [vmem:[#allocation4 + $0x15b8] sm:$0xff]
        %v1191 = vld [vmem:[#allocation4 + $0x15c0] sm:$0xff]
        %v1192 = vld [vmem:[#allocation4 + $0x15c8] sm:$0xff]
        %v1193 = vld [vmem:[#allocation4 + $0x15d0] sm:$0xff]
        %v1194 = vld [vmem:[#allocation4 + $0x15d8] sm:$0xff]
        %v1195 = vld [vmem:[#allocation4 + $0x15e0] sm:$0xff]
        %v1196 = vld [vmem:[#allocation4 + $0x15e8] sm:$0xff]
        %v1197 = vld [vmem:[#allocation4 + $0x15f0] sm:$0xff]
        %v1198 = vld [vmem:[#allocation4 + $0x15f8] sm:$0xff]
        %v1199 = vld [vmem:[#allocation4 + $0x1600] sm:$0xff]
        %v1200 = vld [vmem:[#allocation4 + $0x1608] sm:$0xff]
        %v1201 = vld [vmem:[#allocation4 + $0x1610] sm:$0xff]
        %v1202 = vld [vmem:[#allocation4 + $0x1618] sm:$0xff]
        %v1203 = vld [vmem:[#allocation4 + $0x1620] sm:$0xff]
        %v1204 = vld [vmem:[#allocation4 + $0x1628] sm:$0xff]
        %v1205 = vld [vmem:[#allocation4 + $0x1630] sm:$0xff]
        %v1206 = vld [vmem:[#allocation4 + $0x1638] sm:$0xff]
        %v1207 = vld [vmem:[#allocation4 + $0x1640] sm:$0xff]
        %v1208 = vld [vmem:[#allocation4 + $0x1648] sm:$0xff]
        %v1209 = vld [vmem:[#allocation4 + $0x1650] sm:$0xff]
        %v1210 = vld [vmem:[#allocation4 + $0x1658] sm:$0xff]
        %v1211 = vld [vmem:[#allocation4 + $0x1660] sm:$0xff]
        %v1212 = vld [vmem:[#allocation4 + $0x1668] sm:$0xff]
        %v1213 = vld [vmem:[#allocation4 + $0x1670] sm:$0xff]
        %v1214 = vld [vmem:[#allocation4 + $0x1678] sm:$0xff]
        %v1215 = vld [vmem:[#allocation4 + $0x1680] sm:$0xff]
        %v1216 = vld [vmem:[#allocation4 + $0x1688] sm:$0xff]
        %v1217 = vld [vmem:[#allocation4 + $0x1690] sm:$0xff]
        %v1218 = vld [vmem:[#allocation4 + $0x1698] sm:$0xff]
        %v1219 = vld [vmem:[#allocation4 + $0x16a0] sm:$0xff]
        %v1220 = vld [vmem:[#allocation4 + $0x16a8] sm:$0xff]
        %v1221 = vld [vmem:[#allocation4 + $0x16b0] sm:$0xff]
        %v1222 = vld [vmem:[#allocation4 + $0x16b8] sm:$0xff]
        %v1223 = vld [vmem:[#allocation4 + $0x16c0] sm:$0xff]
        %v1224 = vld [vmem:[#allocation4 + $0x16c8] sm:$0xff]
        %v1225 = vld [vmem:[#allocation4 + $0x16d0] sm:$0xff]
        %v1226 = vld [vmem:[#allocation4 + $0x16d8] sm:$0xff]
        %v1227 = vld [vmem:[#allocation4 + $0x16e0] sm:$0xff]
        %v1228 = vld [vmem:[#allocation4 + $0x16e8] sm:$0xff]
        %v1229 = vld [vmem:[#allocation4 + $0x16f0] sm:$0xff]
        %v1230 = vld [vmem:[#allocation4 + $0x16f8] sm:$0xff]
        %v1231 = vld [vmem:[#allocation4 + $0x1700] sm:$0xff]
        %v1232 = vld [vmem:[#allocation4 + $0x1708] sm:$0xff]
        %v1233 = vld [vmem:[#allocation4 + $0x1710] sm:$0xff]
        %v1234 = vld [vmem:[#allocation4 + $0x1718] sm:$0xff]
        %v1235 = vld [vmem:[#allocation4 + $0x1720] sm:$0xff]
        %v1236 = vld [vmem:[#allocation4 + $0x1728] sm:$0xff]
        %v1237 = vld [vmem:[#allocation4 + $0x1730] sm:$0xff]
        %v1238 = vld [vmem:[#allocation4 + $0x1738] sm:$0xff]
        %v1239 = vld [vmem:[#allocation4 + $0x1740] sm:$0xff]
        %v1240 = vld [vmem:[#allocation4 + $0x1748] sm:$0xff]
        %v1241 = vld [vmem:[#allocation4 + $0x1750] sm:$0xff]
        %v1242 = vld [vmem:[#allocation4 + $0x1758] sm:$0xff]
        %v1243 = vld [vmem:[#allocation4 + $0x1760] sm:$0xff]
        %v1244 = vld [vmem:[#allocation4 + $0x1768] sm:$0xff]
        %v1245 = vld [vmem:[#allocation4 + $0x1770] sm:$0xff]
        %v1246 = vld [vmem:[#allocation4 + $0x1778] sm:$0xff]
        %v1247 = vld [vmem:[#allocation4 + $0x1780] sm:$0xff]
        %v1248 = vld [vmem:[#allocation4 + $0x1788] sm:$0xff]
        %v1249 = vld [vmem:[#allocation4 + $0x1790] sm:$0xff]
        %v1250 = vld [vmem:[#allocation4 + $0x1798] sm:$0xff]
        %v1251 = vld [vmem:[#allocation4 + $0x17a0] sm:$0xff]
        %v1252 = vld [vmem:[#allocation4 + $0x17a8] sm:$0xff]
        %v1253 = vld [vmem:[#allocation4 + $0x17b0] sm:$0xff]
        %v1254 = vld [vmem:[#allocation4 + $0x17b8] sm:$0xff]
        %v1255 = vld [vmem:[#allocation4 + $0x17c0] sm:$0xff]
        %v1256 = vld [vmem:[#allocation4 + $0x17c8] sm:$0xff]
        %v1257 = vld [vmem:[#allocation4 + $0x17d0] sm:$0xff]
        %v1258 = vld [vmem:[#allocation4 + $0x17d8] sm:$0xff]
        %v1259 = vld [vmem:[#allocation4 + $0x17e0] sm:$0xff]
        %v1260 = vld [vmem:[#allocation4 + $0x17e8] sm:$0xff]
        %v1261 = vld [vmem:[#allocation4 + $0x17f0] sm:$0xff]
        %v1262 = vld [vmem:[#allocation4 + $0x17f8] sm:$0xff]
        %v1263 = vld [vmem:[#allocation4 + $0x1800] sm:$0xff]
        %v1264 = vld [vmem:[#allocation4 + $0x1808] sm:$0xff]
        %v1265 = vld [vmem:[#allocation4 + $0x1810] sm:$0xff]
        %v1266 = vld [vmem:[#allocation4 + $0x1818] sm:$0xff]
        %v1267 = vld [vmem:[#allocation4 + $0x1820] sm:$0xff]
        %v1268 = vld [vmem:[#allocation4 + $0x1828] sm:$0xff]
        %v1269 = vld [vmem:[#allocation4 + $0x1830] sm:$0xff]
        %v1270 = vld [vmem:[#allocation4 + $0x1838] sm:$0xff]
        %v1271 = vld [vmem:[#allocation4 + $0x1840] sm:$0xff]
        %v1272 = vld [vmem:[#allocation4 + $0x1848] sm:$0xff]
        %v1273 = vld [vmem:[#allocation4 + $0x1850] sm:$0xff]
        %v1274 = vld [vmem:[#allocation4 + $0x1858] sm:$0xff]
        %v1275 = vld [vmem:[#allocation4 + $0x1860] sm:$0xff]
        %v1276 = vld [vmem:[#allocation4 + $0x1868] sm:$0xff]
        %v1277 = vld [vmem:[#allocation4 + $0x1870] sm:$0xff]
        %v1278 = vld [vmem:[#allocation4 + $0x1878] sm:$0xff]
        %v1279 = vld [vmem:[#allocation4 + $0x1880] sm:$0xff]
        %v1280 = vld [vmem:[#allocation4 + $0x1888] sm:$0xff]
        %v1281 = vld [vmem:[#allocation4 + $0x1890] sm:$0xff]
        %v1282 = vld [vmem:[#allocation4 + $0x1898] sm:$0xff]
        %v1283 = vld [vmem:[#allocation4 + $0x18a0] sm:$0xff]
        %v1284 = vld [vmem:[#allocation4 + $0x18a8] sm:$0xff]
        %v1285 = vld [vmem:[#allocation4 + $0x18b0] sm:$0xff]
        %v1286 = vld [vmem:[#allocation4 + $0x18b8] sm:$0xff]
        %v1287 = vld [vmem:[#allocation4 + $0x18c0] sm:$0xff]
        %v1288 = vld [vmem:[#allocation4 + $0x18c8] sm:$0xff]
        %v1289 = vld [vmem:[#allocation4 + $0x18d0] sm:$0xff]
        %v1290 = vld [vmem:[#allocation4 + $0x18d8] sm:$0xff]
        %v1291 = vld [vmem:[#allocation4 + $0x18e0] sm:$0xff]
        %v1292 = vld [vmem:[#allocation4 + $0x18e8] sm:$0xff]
        %v1293 = vld [vmem:[#allocation4 + $0x18f0] sm:$0xff]
        %v1294 = vld [vmem:[#allocation4 + $0x18f8] sm:$0xff]
        %v1295 = vld [vmem:[#allocation4 + $0x1900] sm:$0xff]
        %v1296 = vld [vmem:[#allocation4 + $0x1908] sm:$0xff]
        %v1297 = vld [vmem:[#allocation4 + $0x1910] sm:$0xff]
        %v1298 = vld [vmem:[#allocation4 + $0x1918] sm:$0xff]
        %v1299 = vld [vmem:[#allocation4 + $0x1920] sm:$0xff]
        %v1300 = vld [vmem:[#allocation4 + $0x1928] sm:$0xff]
        %v1301 = vld [vmem:[#allocation4 + $0x1930] sm:$0xff]
        %v1302 = vld [vmem:[#allocation4 + $0x1938] sm:$0xff]
        %v1303 = vld [vmem:[#allocation4 + $0x1940] sm:$0xff]
        %v1304 = vld [vmem:[#allocation4 + $0x1948] sm:$0xff]
        %v1305 = vld [vmem:[#allocation4 + $0x1950] sm:$0xff]
        %v1306 = vld [vmem:[#allocation4 + $0x1958] sm:$0xff]
        %v1307 = vld [vmem:[#allocation4 + $0x1960] sm:$0xff]
        %v1308 = vld [vmem:[#allocation4 + $0x1968] sm:$0xff]
        %v1309 = vld [vmem:[#allocation4 + $0x1970] sm:$0xff]
        %v1310 = vld [vmem:[#allocation4 + $0x1978] sm:$0xff]
        %v1311 = vld [vmem:[#allocation4 + $0x1980] sm:$0xff]
        %v1312 = vld [vmem:[#allocation4 + $0x1988] sm:$0xff]
        %v1313 = vld [vmem:[#allocation4 + $0x1990] sm:$0xff]
        %v1314 = vld [vmem:[#allocation4 + $0x1998] sm:$0xff]
        %v1315 = vld [vmem:[#allocation4 + $0x19a0] sm:$0xff]
        %v1316 = vld [vmem:[#allocation4 + $0x19a8] sm:$0xff]
        %v1317 = vld [vmem:[#allocation4 + $0x19b0] sm:$0xff]
        %v1318 = vld [vmem:[#allocation4 + $0x19b8] sm:$0xff]
        %v1319 = vld [vmem:[#allocation4 + $0x19c0] sm:$0xff]
        %v1320 = vld [vmem:[#allocation4 + $0x19c8] sm:$0xff]
        %v1321 = vld [vmem:[#allocation4 + $0x19d0] sm:$0xff]
        %v1322 = vld [vmem:[#allocation4 + $0x19d8] sm:$0xff]
        %v1323 = vld [vmem:[#allocation4 + $0x19e0] sm:$0xff]
        %v1324 = vld [vmem:[#allocation4 + $0x19e8] sm:$0xff]
        %v1325 = vld [vmem:[#allocation4 + $0x19f0] sm:$0xff]
        %v1326 = vld [vmem:[#allocation4 + $0x19f8] sm:$0xff]
        %v1327 = vld [vmem:[#allocation4 + $0x1a00] sm:$0xff]
        %v1328 = vld [vmem:[#allocation4 + $0x1a08] sm:$0xff]
        %v1329 = vld [vmem:[#allocation4 + $0x1a10] sm:$0xff]
        %v1330 = vld [vmem:[#allocation4 + $0x1a18] sm:$0xff]
        %v1331 = vld [vmem:[#allocation4 + $0x1a20] sm:$0xff]
        %v1332 = vld [vmem:[#allocation4 + $0x1a28] sm:$0xff]
        %v1333 = vld [vmem:[#allocation4 + $0x1a30] sm:$0xff]
        %v1334 = vld [vmem:[#allocation4 + $0x1a38] sm:$0xff]
        %v1335 = vld [vmem:[#allocation4 + $0x1a40] sm:$0xff]
        %v1336 = vld [vmem:[#allocation4 + $0x1a48] sm:$0xff]
        %v1337 = vld [vmem:[#allocation4 + $0x1a50] sm:$0xff]
        %v1338 = vld [vmem:[#allocation4 + $0x1a58] sm:$0xff]
        %v1339 = vld [vmem:[#allocation4 + $0x1a60] sm:$0xff]
        %v1340 = vld [vmem:[#allocation4 + $0x1a68] sm:$0xff]
        %v1341 = vld [vmem:[#allocation4 + $0x1a70] sm:$0xff]
        %v1342 = vld [vmem:[#allocation4 + $0x1a78] sm:$0xff]
        %v1343 = vld [vmem:[#allocation4 + $0x1a80] sm:$0xff]
        %v1344 = vld [vmem:[#allocation4 + $0x1a88] sm:$0xff]
        %v1345 = vld [vmem:[#allocation4 + $0x1a90] sm:$0xff]
        %v1346 = vld [vmem:[#allocation4 + $0x1a98] sm:$0xff]
        %v1347 = vld [vmem:[#allocation4 + $0x1aa0] sm:$0xff]
        %v1348 = vld [vmem:[#allocation4 + $0x1aa8] sm:$0xff]
        %v1349 = vld [vmem:[#allocation4 + $0x1ab0] sm:$0xff]
        %v1350 = vld [vmem:[#allocation4 + $0x1ab8] sm:$0xff]
        %v1351 = vld [vmem:[#allocation4 + $0x1ac0] sm:$0xff]
        %v1352 = vld [vmem:[#allocation4 + $0x1ac8] sm:$0xff]
        %v1353 = vld [vmem:[#allocation4 + $0x1ad0] sm:$0xff]
        %v1354 = vld [vmem:[#allocation4 + $0x1ad8] sm:$0xff]
        %v1355 = vld [vmem:[#allocation4 + $0x1ae0] sm:$0xff]
        %v1356 = vld [vmem:[#allocation4 + $0x1ae8] sm:$0xff]
        %v1357 = vld [vmem:[#allocation4 + $0x1af0] sm:$0xff]
        %v1358 = vld [vmem:[#allocation4 + $0x1af8] sm:$0xff]
        %v1359 = vld [vmem:[#allocation4 + $0x1b00] sm:$0xff]
        %v1360 = vld [vmem:[#allocation4 + $0x1b08] sm:$0xff]
        %v1361 = vld [vmem:[#allocation4 + $0x1b10] sm:$0xff]
        %v1362 = vld [vmem:[#allocation4 + $0x1b18] sm:$0xff]
        %v1363 = vld [vmem:[#allocation4 + $0x1b20] sm:$0xff]
        %v1364 = vld [vmem:[#allocation4 + $0x1b28] sm:$0xff]
        %v1365 = vld [vmem:[#allocation4 + $0x1b30] sm:$0xff]
        %v1366 = vld [vmem:[#allocation4 + $0x1b38] sm:$0xff]
        %v1367 = vld [vmem:[#allocation4 + $0x1b40] sm:$0xff]
        %v1368 = vld [vmem:[#allocation4 + $0x1b48] sm:$0xff]
        %v1369 = vld [vmem:[#allocation4 + $0x1b50] sm:$0xff]
        %v1370 = vld [vmem:[#allocation4 + $0x1b58] sm:$0xff]
        %v1371 = vld [vmem:[#allocation4 + $0x1b60] sm:$0xff]
        %v1372 = vld [vmem:[#allocation4 + $0x1b68] sm:$0xff]
        %v1373 = vld [vmem:[#allocation4 + $0x1b70] sm:$0xff]
        %v1374 = vld [vmem:[#allocation4 + $0x1b78] sm:$0xff]
        %v1375 = vld [vmem:[#allocation4 + $0x1b80] sm:$0xff]
        %v1376 = vld [vmem:[#allocation4 + $0x1b88] sm:$0xff]
        %v1377 = vld [vmem:[#allocation4 + $0x1b90] sm:$0xff]
        %v1378 = vld [vmem:[#allocation4 + $0x1b98] sm:$0xff]
        %v1379 = vld [vmem:[#allocation4 + $0x1ba0] sm:$0xff]
        %v1380 = vld [vmem:[#allocation4 + $0x1ba8] sm:$0xff]
        %v1381 = vld [vmem:[#allocation4 + $0x1bb0] sm:$0xff]
        %v1382 = vld [vmem:[#allocation4 + $0x1bb8] sm:$0xff]
        %v1383 = vld [vmem:[#allocation4 + $0x1bc0] sm:$0xff]
        %v1384 = vld [vmem:[#allocation4 + $0x1bc8] sm:$0xff]
        %v1385 = vld [vmem:[#allocation4 + $0x1bd0] sm:$0xff]
        %v1386 = vld [vmem:[#allocation4 + $0x1bd8] sm:$0xff]
        %v1387 = vld [vmem:[#allocation4 + $0x1be0] sm:$0xff]
        %v1388 = vld [vmem:[#allocation4 + $0x1be8] sm:$0xff]
        %v1389 = vld [vmem:[#allocation4 + $0x1bf0] sm:$0xff]
        %v1390 = vld [vmem:[#allocation4 + $0x1bf8] sm:$0xff]
        %v1391 = vld [vmem:[#allocation4 + $0x1c00] sm:$0xff]
        %v1392 = vld [vmem:[#allocation4 + $0x1c08] sm:$0xff]
        %v1393 = vld [vmem:[#allocation4 + $0x1c10] sm:$0xff]
        %v1394 = vld [vmem:[#allocation4 + $0x1c18] sm:$0xff]
        %v1395 = vld [vmem:[#allocation4 + $0x1c20] sm:$0xff]
        %v1396 = vld [vmem:[#allocation4 + $0x1c28] sm:$0xff]
        %v1397 = vld [vmem:[#allocation4 + $0x1c30] sm:$0xff]
        %v1398 = vld [vmem:[#allocation4 + $0x1c38] sm:$0xff]
        %v1399 = vld [vmem:[#allocation4 + $0x1c40] sm:$0xff]
        %v1400 = vld [vmem:[#allocation4 + $0x1c48] sm:$0xff]
        %v1401 = vld [vmem:[#allocation4 + $0x1c50] sm:$0xff]
        %v1402 = vld [vmem:[#allocation4 + $0x1c58] sm:$0xff]
        %v1403 = vld [vmem:[#allocation4 + $0x1c60] sm:$0xff]
        %v1404 = vld [vmem:[#allocation4 + $0x1c68] sm:$0xff]
        %v1405 = vld [vmem:[#allocation4 + $0x1c70] sm:$0xff]
        %v1406 = vld [vmem:[#allocation4 + $0x1c78] sm:$0xff]
        %v1407 = vld [vmem:[#allocation4 + $0x1c80] sm:$0xff]
        %v1408 = vld [vmem:[#allocation4 + $0x1c88] sm:$0xff]
        %v1409 = vld [vmem:[#allocation4 + $0x1c90] sm:$0xff]
        %v1410 = vld [vmem:[#allocation4 + $0x1c98] sm:$0xff]
        %v1411 = vld [vmem:[#allocation4 + $0x1ca0] sm:$0xff]
        %v1412 = vld [vmem:[#allocation4 + $0x1ca8] sm:$0xff]
        %v1413 = vld [vmem:[#allocation4 + $0x1cb0] sm:$0xff]
        %v1414 = vld [vmem:[#allocation4 + $0x1cb8] sm:$0xff]
        %v1415 = vld [vmem:[#allocation4 + $0x1cc0] sm:$0xff]
        %v1416 = vld [vmem:[#allocation4 + $0x1cc8] sm:$0xff]
        %v1417 = vld [vmem:[#allocation4 + $0x1cd0] sm:$0xff]
        %v1418 = vld [vmem:[#allocation4 + $0x1cd8] sm:$0xff]
        %v1419 = vld [vmem:[#allocation4 + $0x1ce0] sm:$0xff]
        %v1420 = vld [vmem:[#allocation4 + $0x1ce8] sm:$0xff]
        %v1421 = vld [vmem:[#allocation4 + $0x1cf0] sm:$0xff]
        %v1422 = vld [vmem:[#allocation4 + $0x1cf8] sm:$0xff]
        %v1423 = vld [vmem:[#allocation4 + $0x1d00] sm:$0xff]
        %v1424 = vld [vmem:[#allocation4 + $0x1d08] sm:$0xff]
        %v1425 = vld [vmem:[#allocation4 + $0x1d10] sm:$0xff]
        %v1426 = vld [vmem:[#allocation4 + $0x1d18] sm:$0xff]
        %v1427 = vld [vmem:[#allocation4 + $0x1d20] sm:$0xff]
        %v1428 = vld [vmem:[#allocation4 + $0x1d28] sm:$0xff]
        %v1429 = vld [vmem:[#allocation4 + $0x1d30] sm:$0xff]
        %v1430 = vld [vmem:[#allocation4 + $0x1d38] sm:$0xff]
        %v1431 = vld [vmem:[#allocation4 + $0x1d40] sm:$0xff]
        %v1432 = vld [vmem:[#allocation4 + $0x1d48] sm:$0xff]
        %v1433 = vld [vmem:[#allocation4 + $0x1d50] sm:$0xff]
        %v1434 = vld [vmem:[#allocation4 + $0x1d58] sm:$0xff]
        %v1435 = vld [vmem:[#allocation4 + $0x1d60] sm:$0xff]
        %v1436 = vld [vmem:[#allocation4 + $0x1d68] sm:$0xff]
        %v1437 = vld [vmem:[#allocation4 + $0x1d70] sm:$0xff]
        %v1438 = vld [vmem:[#allocation4 + $0x1d78] sm:$0xff]
        %v1439 = vld [vmem:[#allocation4 + $0x1d80] sm:$0xff]
        %v1440 = vld [vmem:[#allocation4 + $0x1d88] sm:$0xff]
        %v1441 = vld [vmem:[#allocation4 + $0x1d90] sm:$0xff]
        %v1442 = vld [vmem:[#allocation4 + $0x1d98] sm:$0xff]
        %v1443 = vld [vmem:[#allocation4 + $0x1da0] sm:$0xff]
        %v1444 = vld [vmem:[#allocation4 + $0x1da8] sm:$0xff]
        %v1445 = vld [vmem:[#allocation4 + $0x1db0] sm:$0xff]
        %v1446 = vld [vmem:[#allocation4 + $0x1db8] sm:$0xff]
        %v1447 = vld [vmem:[#allocation4 + $0x1dc0] sm:$0xff]
        %v1448 = vld [vmem:[#allocation4 + $0x1dc8] sm:$0xff]
        %v1449 = vld [vmem:[#allocation4 + $0x1dd0] sm:$0xff]
        %v1450 = vld [vmem:[#allocation4 + $0x1dd8] sm:$0xff]
        %v1451 = vld [vmem:[#allocation4 + $0x1de0] sm:$0xff]
        %v1452 = vld [vmem:[#allocation4 + $0x1de8] sm:$0xff]
        %v1453 = vld [vmem:[#allocation4 + $0x1df0] sm:$0xff]
        %v1454 = vld [vmem:[#allocation4 + $0x1df8] sm:$0xff]
        %v1455 = vld [vmem:[#allocation4 + $0x1e00] sm:$0xff]
        %v1456 = vld [vmem:[#allocation4 + $0x1e08] sm:$0xff]
        %v1457 = vld [vmem:[#allocation4 + $0x1e10] sm:$0xff]
        %v1458 = vld [vmem:[#allocation4 + $0x1e18] sm:$0xff]
        %v1459 = vld [vmem:[#allocation4 + $0x1e20] sm:$0xff]
        %v1460 = vld [vmem:[#allocation4 + $0x1e28] sm:$0xff]
        %v1461 = vld [vmem:[#allocation4 + $0x1e30] sm:$0xff]
        %v1462 = vld [vmem:[#allocation4 + $0x1e38] sm:$0xff]
        %v1463 = vld [vmem:[#allocation4 + $0x1e40] sm:$0xff]
        %v1464 = vld [vmem:[#allocation4 + $0x1e48] sm:$0xff]
        %v1465 = vld [vmem:[#allocation4 + $0x1e50] sm:$0xff]
        %v1466 = vld [vmem:[#allocation4 + $0x1e58] sm:$0xff]
        %v1467 = vld [vmem:[#allocation4 + $0x1e60] sm:$0xff]
        %v1468 = vld [vmem:[#allocation4 + $0x1e68] sm:$0xff]
        %v1469 = vld [vmem:[#allocation4 + $0x1e70] sm:$0xff]
        %v1470 = vld [vmem:[#allocation4 + $0x1e78] sm:$0xff]
        %v1471 = vld [vmem:[#allocation4 + $0x1e80] sm:$0xff]
        %v1472 = vld [vmem:[#allocation4 + $0x1e88] sm:$0xff]
        %v1473 = vld [vmem:[#allocation4 + $0x1e90] sm:$0xff]
        %v1474 = vld [vmem:[#allocation4 + $0x1e98] sm:$0xff]
        %v1475 = vld [vmem:[#allocation4 + $0x1ea0] sm:$0xff]
        %v1476 = vld [vmem:[#allocation4 + $0x1ea8] sm:$0xff]
        %v1477 = vld [vmem:[#allocation4 + $0x1eb0] sm:$0xff]
        %v1478 = vld [vmem:[#allocation4 + $0x1eb8] sm:$0xff]
        %v1479 = vld [vmem:[#allocation4 + $0x1ec0] sm:$0xff]
        %v1480 = vld [vmem:[#allocation4 + $0x1ec8] sm:$0xff]
        %v1481 = vld [vmem:[#allocation4 + $0x1ed0] sm:$0xff]
        %v1482 = vld [vmem:[#allocation4 + $0x1ed8] sm:$0xff]
        %v1483 = vld [vmem:[#allocation4 + $0x1ee0] sm:$0xff]
        %v1484 = vld [vmem:[#allocation4 + $0x1ee8] sm:$0xff]
        %v1485 = vld [vmem:[#allocation4 + $0x1ef0] sm:$0xff]
        %v1486 = vld [vmem:[#allocation4 + $0x1ef8] sm:$0xff]
        %v1487 = vld [vmem:[#allocation4 + $0x1f00] sm:$0xff]
        %v1488 = vld [vmem:[#allocation4 + $0x1f08] sm:$0xff]
        %v1489 = vld [vmem:[#allocation4 + $0x1f10] sm:$0xff]
        %v1490 = vld [vmem:[#allocation4 + $0x1f18] sm:$0xff]
        %v1491 = vld [vmem:[#allocation4 + $0x1f20] sm:$0xff]
        %v1492 = vld [vmem:[#allocation4 + $0x1f28] sm:$0xff]
        %v1493 = vld [vmem:[#allocation4 + $0x1f30] sm:$0xff]
        %v1494 = vld [vmem:[#allocation4 + $0x1f38] sm:$0xff]
        %v1495 = vld [vmem:[#allocation4 + $0x1f40] sm:$0xff]
        %v1496 = vld [vmem:[#allocation4 + $0x1f48] sm:$0xff]
        %v1497 = vld [vmem:[#allocation4 + $0x1f50] sm:$0xff]
        %v1498 = vld [vmem:[#allocation4 + $0x1f58] sm:$0xff]
        %v1499 = vld [vmem:[#allocation4 + $0x1f60] sm:$0xff]
        %v1500 = vld [vmem:[#allocation4 + $0x1f68] sm:$0xff]
        %v1501 = vld [vmem:[#allocation4 + $0x1f70] sm:$0xff]
        %v1502 = vld [vmem:[#allocation4 + $0x1f78] sm:$0xff]
        %v1503 = vld [vmem:[#allocation4 + $0x1f80] sm:$0xff]
        %v1504 = vld [vmem:[#allocation4 + $0x1f88] sm:$0xff]
        %v1505 = vld [vmem:[#allocation4 + $0x1f90] sm:$0xff]
        %v1506 = vld [vmem:[#allocation4 + $0x1f98] sm:$0xff]
        %v1507 = vld [vmem:[#allocation4 + $0x1fa0] sm:$0xff]
        %v1508 = vld [vmem:[#allocation4 + $0x1fa8] sm:$0xff]
        %v1509 = vld [vmem:[#allocation4 + $0x1fb0] sm:$0xff]
        %v1510 = vld [vmem:[#allocation4 + $0x1fb8] sm:$0xff]
        %v1511 = vld [vmem:[#allocation4 + $0x1fc0] sm:$0xff]
        %v1512 = vld [vmem:[#allocation4 + $0x1fc8] sm:$0xff]
        %v1513 = vld [vmem:[#allocation4 + $0x1fd0] sm:$0xff]
        %v1514 = vld [vmem:[#allocation4 + $0x1fd8] sm:$0xff]
        %v1515 = vld [vmem:[#allocation4 + $0x1fe0] sm:$0xff]
        %v1516 = vld [vmem:[#allocation4 + $0x1fe8] sm:$0xff]
        %v1517 = vld [vmem:[#allocation4 + $0x1ff0] sm:$0xff]
        %v1518 = vld [vmem:[#allocation4 + $0x1ff8] sm:$0xff]
        %v1519 = vld [vmem:[#allocation6] sm:$0xff]
        %v1521 = vlaneseq
        %v1522 = vshrl.u32 %v1521, 7
        %v1523 = vsub.s32 0, %v1522
        %v1524 = vrot.slane %v1519, %v1523
        %v1525 = vlaneseq
        %v1526 = vshrl.u32 %v1525, 7
        %v1527 = vsub.s32 1, %v1526
        %v1528 = vrot.slane %v1519, %v1527
        %v1529 = vlaneseq
        %v1530 = vshrl.u32 %v1529, 7
        %v1531 = vsub.s32 2, %v1530
        %v1532 = vrot.slane %v1519, %v1531
        %v1533 = vlaneseq
        %v1534 = vshrl.u32 %v1533, 7
        %v1535 = vsub.s32 3, %v1534
        %v1536 = vrot.slane %v1519, %v1535
        %v1537 = vlaneseq
        %v1538 = vshrl.u32 %v1537, 7
        %v1539 = vsub.s32 4, %v1538
        %v1540 = vrot.slane %v1519, %v1539
        %v1541 = vlaneseq
        %v1542 = vshrl.u32 %v1541, 7
        %v1543 = vsub.s32 5, %v1542
        %v1544 = vrot.slane %v1519, %v1543
        %v1545 = vlaneseq
        %v1546 = vshrl.u32 %v1545, 7
        %v1547 = vsub.s32 6, %v1546
        %v1548 = vrot.slane %v1519, %v1547
        %v1549 = vlaneseq
        %v1550 = vshrl.u32 %v1549, 7
        %v1551 = vsub.s32 7, %v1550
        %v1552 = vrot.slane %v1519, %v1551
        %v1609 = vunpack.c.l.b16 %v447
        %v1610 = vunpack.c.h.b16 %v447
        %v1611 = vunpack.c.l.b16 %v448
        %v1612 = vunpack.c.h.b16 %v448
        %v1613 = vunpack.c.l.b16 %v449
        %v1614 = vunpack.c.h.b16 %v449
        %v1615 = vunpack.c.l.b16 %v450
        %v1616 = vunpack.c.h.b16 %v450
        %v1617 = vunpack.c.l.b16 %v451
        %v1618 = vunpack.c.h.b16 %v451
        %v1619 = vunpack.c.l.b16 %v452
        %v1620 = vunpack.c.h.b16 %v452
        %v1621 = vunpack.c.l.b16 %v453
        %v1622 = vunpack.c.h.b16 %v453
        %v1623 = vunpack.c.l.b16 %v454
        %v1624 = vunpack.c.h.b16 %v454
        %v1625 = vunpack.c.l.b16 %v455
        %v1626 = vunpack.c.h.b16 %v455
        %v1627 = vunpack.c.l.b16 %v456
        %v1628 = vunpack.c.h.b16 %v456
        %v1629 = vunpack.c.l.b16 %v457
        %v1630 = vunpack.c.h.b16 %v457
        %v1631 = vunpack.c.l.b16 %v458
        %v1632 = vunpack.c.h.b16 %v458
        %v1633 = vunpack.c.l.b16 %v459
        %v1634 = vunpack.c.h.b16 %v459
        %v1635 = vunpack.c.l.b16 %v460
        %v1636 = vunpack.c.h.b16 %v460
        %v1637 = vunpack.c.l.b16 %v461
        %v1638 = vunpack.c.h.b16 %v461
        %v1639 = vunpack.c.l.b16 %v462
        %v1640 = vunpack.c.h.b16 %v462
        %v1641 = vunpack.c.l.b16 %v463
        %v1642 = vunpack.c.h.b16 %v463
        %v1643 = vunpack.c.l.b16 %v464
        %v1644 = vunpack.c.h.b16 %v464
        %v1645 = vunpack.c.l.b16 %v465
        %v1646 = vunpack.c.h.b16 %v465
        %v1647 = vunpack.c.l.b16 %v466
        %v1648 = vunpack.c.h.b16 %v466
        %v1649 = vunpack.c.l.b16 %v467
        %v1650 = vunpack.c.h.b16 %v467
        %v1651 = vunpack.c.l.b16 %v468
        %v1652 = vunpack.c.h.b16 %v468
        %v1653 = vunpack.c.l.b16 %v469
        %v1654 = vunpack.c.h.b16 %v469
        %v1655 = vunpack.c.l.b16 %v470
        %v1656 = vunpack.c.h.b16 %v470
        %v1657 = vunpack.c.l.b16 %v471
        %v1658 = vunpack.c.h.b16 %v471
        %v1659 = vunpack.c.l.b16 %v472
        %v1660 = vunpack.c.h.b16 %v472
        %v1661 = vunpack.c.l.b16 %v473
        %v1662 = vunpack.c.h.b16 %v473
        %v1663 = vunpack.c.l.b16 %v474
        %v1664 = vunpack.c.h.b16 %v474
        %v1665 = vunpack.c.l.b16 %v475
        %v1666 = vunpack.c.h.b16 %v475
        %v1667 = vunpack.c.l.b16 %v476
        %v1668 = vunpack.c.h.b16 %v476
        %v1669 = vunpack.c.l.b16 %v477
        %v1670 = vunpack.c.h.b16 %v477
        %v1671 = vunpack.c.l.b16 %v478
        %v1672 = vunpack.c.h.b16 %v478
        %v1673 = vunpack.c.l.b16 %v479
        %v1674 = vunpack.c.h.b16 %v479
        %v1675 = vunpack.c.l.b16 %v480
        %v1676 = vunpack.c.h.b16 %v480
        %v1677 = vunpack.c.l.b16 %v481
        %v1678 = vunpack.c.h.b16 %v481
        %v1679 = vunpack.c.l.b16 %v482
        %v1680 = vunpack.c.h.b16 %v482
        %v1681 = vunpack.c.l.b16 %v483
        %v1682 = vunpack.c.h.b16 %v483
        %v1683 = vunpack.c.l.b16 %v484
        %v1684 = vunpack.c.h.b16 %v484
        %v1685 = vunpack.c.l.b16 %v485
        %v1686 = vunpack.c.h.b16 %v485
        %v1687 = vunpack.c.l.b16 %v486
        %v1688 = vunpack.c.h.b16 %v486
        %v1689 = vunpack.c.l.b16 %v487
        %v1690 = vunpack.c.h.b16 %v487
        %v1691 = vunpack.c.l.b16 %v488
        %v1692 = vunpack.c.h.b16 %v488
        %v1693 = vunpack.c.l.b16 %v489
        %v1694 = vunpack.c.h.b16 %v489
        %v1695 = vunpack.c.l.b16 %v490
        %v1696 = vunpack.c.h.b16 %v490
        %v1697 = vunpack.c.l.b16 %v491
        %v1698 = vunpack.c.h.b16 %v491
        %v1699 = vunpack.c.l.b16 %v492
        %v1700 = vunpack.c.h.b16 %v492
        %v1701 = vunpack.c.l.b16 %v493
        %v1702 = vunpack.c.h.b16 %v493
        %v1703 = vunpack.c.l.b16 %v494
        %v1704 = vunpack.c.h.b16 %v494
        %v1705 = vpack.c.b16 %v1625, %v1609
        %v1706 = vpack.c.b16 %v1626, %v1610
        %v1707 = vpack.c.b16 %v1627, %v1611
        %v1708 = vpack.c.b16 %v1628, %v1612
        %v1709 = vpack.c.b16 %v1629, %v1613
        %v1710 = vpack.c.b16 %v1630, %v1614
        %v1711 = vpack.c.b16 %v1631, %v1615
        %v1712 = vpack.c.b16 %v1632, %v1616
        %v1713 = vpack.c.b16 %v1633, %v1617
        %v1714 = vpack.c.b16 %v1634, %v1618
        %v1715 = vpack.c.b16 %v1635, %v1619
        %v1716 = vpack.c.b16 %v1636, %v1620
        %v1717 = vpack.c.b16 %v1637, %v1621
        %v1718 = vpack.c.b16 %v1638, %v1622
        %v1719 = vpack.c.b16 %v1639, %v1623
        %v1720 = vpack.c.b16 %v1640, %v1624
        %v1721 = vpack.c.b16 %v1657, %v1641
        %v1722 = vpack.c.b16 %v1658, %v1642
        %v1723 = vpack.c.b16 %v1659, %v1643
        %v1724 = vpack.c.b16 %v1660, %v1644
        %v1725 = vpack.c.b16 %v1661, %v1645
        %v1726 = vpack.c.b16 %v1662, %v1646
        %v1727 = vpack.c.b16 %v1663, %v1647
        %v1728 = vpack.c.b16 %v1664, %v1648
        %v1729 = vpack.c.b16 %v1665, %v1649
        %v1730 = vpack.c.b16 %v1666, %v1650
        %v1731 = vpack.c.b16 %v1667, %v1651
        %v1732 = vpack.c.b16 %v1668, %v1652
        %v1733 = vpack.c.b16 %v1669, %v1653
        %v1734 = vpack.c.b16 %v1670, %v1654
        %v1735 = vpack.c.b16 %v1671, %v1655
        %v1736 = vpack.c.b16 %v1672, %v1656
        %v1737 = vpack.c.b16 %v1689, %v1673
        %v1738 = vpack.c.b16 %v1690, %v1674
        %v1739 = vpack.c.b16 %v1691, %v1675
        %v1740 = vpack.c.b16 %v1692, %v1676
        %v1741 = vpack.c.b16 %v1693, %v1677
        %v1742 = vpack.c.b16 %v1694, %v1678
        %v1743 = vpack.c.b16 %v1695, %v1679
        %v1744 = vpack.c.b16 %v1696, %v1680
        %v1745 = vpack.c.b16 %v1697, %v1681
        %v1746 = vpack.c.b16 %v1698, %v1682
        %v1747 = vpack.c.b16 %v1699, %v1683
        %v1748 = vpack.c.b16 %v1700, %v1684
        %v1749 = vpack.c.b16 %v1701, %v1685
        %v1750 = vpack.c.b16 %v1702, %v1686
        %v1751 = vpack.c.b16 %v1703, %v1687
        %v1752 = vpack.c.b16 %v1704, %v1688
        %v2825 = vunpack.c.l.b16 %v495
        %v2826 = vunpack.c.h.b16 %v495
        %v2827 = vunpack.c.l.b16 %v496
        %v2828 = vunpack.c.h.b16 %v496
        %v2829 = vunpack.c.l.b16 %v497
        %v2830 = vunpack.c.h.b16 %v497
        %v2831 = vunpack.c.l.b16 %v498
        %v2832 = vunpack.c.h.b16 %v498
        %v2833 = vunpack.c.l.b16 %v499
        %v2834 = vunpack.c.h.b16 %v499
        %v2835 = vunpack.c.l.b16 %v500
        %v2836 = vunpack.c.h.b16 %v500
        %v2837 = vunpack.c.l.b16 %v501
        %v2838 = vunpack.c.h.b16 %v501
        %v2839 = vunpack.c.l.b16 %v502
        %v2840 = vunpack.c.h.b16 %v502
        %v2841 = vunpack.c.l.b16 %v503
        %v2842 = vunpack.c.h.b16 %v503
        %v2843 = vunpack.c.l.b16 %v504
        %v2844 = vunpack.c.h.b16 %v504
        %v2845 = vunpack.c.l.b16 %v505
        %v2846 = vunpack.c.h.b16 %v505
        %v2847 = vunpack.c.l.b16 %v506
        %v2848 = vunpack.c.h.b16 %v506
        %v2849 = vunpack.c.l.b16 %v507
        %v2850 = vunpack.c.h.b16 %v507
        %v2851 = vunpack.c.l.b16 %v508
        %v2852 = vunpack.c.h.b16 %v508
        %v2853 = vunpack.c.l.b16 %v509
        %v2854 = vunpack.c.h.b16 %v509
        %v2855 = vunpack.c.l.b16 %v510
        %v2856 = vunpack.c.h.b16 %v510
        %v2857 = vunpack.c.l.b16 %v511
        %v2858 = vunpack.c.h.b16 %v511
        %v2859 = vunpack.c.l.b16 %v512
        %v2860 = vunpack.c.h.b16 %v512
        %v2861 = vunpack.c.l.b16 %v513
        %v2862 = vunpack.c.h.b16 %v513
        %v2863 = vunpack.c.l.b16 %v514
        %v2864 = vunpack.c.h.b16 %v514
        %v2865 = vunpack.c.l.b16 %v515
        %v2866 = vunpack.c.h.b16 %v515
        %v2867 = vunpack.c.l.b16 %v516
        %v2868 = vunpack.c.h.b16 %v516
        %v2869 = vunpack.c.l.b16 %v517
        %v2870 = vunpack.c.h.b16 %v517
        %v2871 = vunpack.c.l.b16 %v518
        %v2872 = vunpack.c.h.b16 %v518
        %v2873 = vunpack.c.l.b16 %v519
        %v2874 = vunpack.c.h.b16 %v519
        %v2875 = vunpack.c.l.b16 %v520
        %v2876 = vunpack.c.h.b16 %v520
        %v2877 = vunpack.c.l.b16 %v521
        %v2878 = vunpack.c.h.b16 %v521
        %v2879 = vunpack.c.l.b16 %v522
        %v2880 = vunpack.c.h.b16 %v522
        %v2881 = vunpack.c.l.b16 %v523
        %v2882 = vunpack.c.h.b16 %v523
        %v2883 = vunpack.c.l.b16 %v524
        %v2884 = vunpack.c.h.b16 %v524
        %v2885 = vunpack.c.l.b16 %v525
        %v2886 = vunpack.c.h.b16 %v525
        %v2887 = vunpack.c.l.b16 %v526
        %v2888 = vunpack.c.h.b16 %v526
        %v2889 = vunpack.c.l.b16 %v527
        %v2890 = vunpack.c.h.b16 %v527
        %v2891 = vunpack.c.l.b16 %v528
        %v2892 = vunpack.c.h.b16 %v528
        %v2893 = vunpack.c.l.b16 %v529
        %v2894 = vunpack.c.h.b16 %v529
        %v2895 = vunpack.c.l.b16 %v530
        %v2896 = vunpack.c.h.b16 %v530
        %v2897 = vunpack.c.l.b16 %v531
        %v2898 = vunpack.c.h.b16 %v531
        %v2899 = vunpack.c.l.b16 %v532
        %v2900 = vunpack.c.h.b16 %v532
        %v2901 = vunpack.c.l.b16 %v533
        %v2902 = vunpack.c.h.b16 %v533
        %v2903 = vunpack.c.l.b16 %v534
        %v2904 = vunpack.c.h.b16 %v534
        %v2905 = vunpack.c.l.b16 %v535
        %v2906 = vunpack.c.h.b16 %v535
        %v2907 = vunpack.c.l.b16 %v536
        %v2908 = vunpack.c.h.b16 %v536
        %v2909 = vunpack.c.l.b16 %v537
        %v2910 = vunpack.c.h.b16 %v537
        %v2911 = vunpack.c.l.b16 %v538
        %v2912 = vunpack.c.h.b16 %v538
        %v2913 = vunpack.c.l.b16 %v539
        %v2914 = vunpack.c.h.b16 %v539
        %v2915 = vunpack.c.l.b16 %v540
        %v2916 = vunpack.c.h.b16 %v540
        %v2917 = vunpack.c.l.b16 %v541
        %v2918 = vunpack.c.h.b16 %v541
        %v2919 = vunpack.c.l.b16 %v542
        %v2920 = vunpack.c.h.b16 %v542
        %v2921 = vunpack.c.l.b16 %v543
        %v2922 = vunpack.c.h.b16 %v543
        %v2923 = vunpack.c.l.b16 %v544
        %v2924 = vunpack.c.h.b16 %v544
        %v2925 = vunpack.c.l.b16 %v545
        %v2926 = vunpack.c.h.b16 %v545
        %v2927 = vunpack.c.l.b16 %v546
        %v2928 = vunpack.c.h.b16 %v546
        %v2929 = vunpack.c.l.b16 %v547
        %v2930 = vunpack.c.h.b16 %v547
        %v2931 = vunpack.c.l.b16 %v548
        %v2932 = vunpack.c.h.b16 %v548
        %v2933 = vunpack.c.l.b16 %v549
        %v2934 = vunpack.c.h.b16 %v549
        %v2935 = vunpack.c.l.b16 %v550
        %v2936 = vunpack.c.h.b16 %v550
        %v2937 = vunpack.c.l.b16 %v551
        %v2938 = vunpack.c.h.b16 %v551
        %v2939 = vunpack.c.l.b16 %v552
        %v2940 = vunpack.c.h.b16 %v552
        %v2941 = vunpack.c.l.b16 %v553
        %v2942 = vunpack.c.h.b16 %v553
        %v2943 = vunpack.c.l.b16 %v554
        %v2944 = vunpack.c.h.b16 %v554
        %v2945 = vunpack.c.l.b16 %v555
        %v2946 = vunpack.c.h.b16 %v555
        %v2947 = vunpack.c.l.b16 %v556
        %v2948 = vunpack.c.h.b16 %v556
        %v2949 = vunpack.c.l.b16 %v557
        %v2950 = vunpack.c.h.b16 %v557
        %v2951 = vunpack.c.l.b16 %v558
        %v2952 = vunpack.c.h.b16 %v558
        %v2953 = vunpack.c.l.b16 %v559
        %v2954 = vunpack.c.h.b16 %v559
        %v2955 = vunpack.c.l.b16 %v560
        %v2956 = vunpack.c.h.b16 %v560
        %v2957 = vunpack.c.l.b16 %v561
        %v2958 = vunpack.c.h.b16 %v561
        %v2959 = vunpack.c.l.b16 %v562
        %v2960 = vunpack.c.h.b16 %v562
        %v2961 = vunpack.c.l.b16 %v563
        %v2962 = vunpack.c.h.b16 %v563
        %v2963 = vunpack.c.l.b16 %v564
        %v2964 = vunpack.c.h.b16 %v564
        %v2965 = vunpack.c.l.b16 %v565
        %v2966 = vunpack.c.h.b16 %v565
        %v2967 = vunpack.c.l.b16 %v566
        %v2968 = vunpack.c.h.b16 %v566
        %v2969 = vunpack.c.l.b16 %v567
        %v2970 = vunpack.c.h.b16 %v567
        %v2971 = vunpack.c.l.b16 %v568
        %v2972 = vunpack.c.h.b16 %v568
        %v2973 = vunpack.c.l.b16 %v569
        %v2974 = vunpack.c.h.b16 %v569
        %v2975 = vunpack.c.l.b16 %v570
        %v2976 = vunpack.c.h.b16 %v570
        %v2977 = vunpack.c.l.b16 %v571
        %v2978 = vunpack.c.h.b16 %v571
        %v2979 = vunpack.c.l.b16 %v572
        %v2980 = vunpack.c.h.b16 %v572
        %v2981 = vunpack.c.l.b16 %v573
        %v2982 = vunpack.c.h.b16 %v573
        %v2983 = vunpack.c.l.b16 %v574
        %v2984 = vunpack.c.h.b16 %v574
        %v2985 = vunpack.c.l.b16 %v575
        %v2986 = vunpack.c.h.b16 %v575
        %v2987 = vunpack.c.l.b16 %v576
        %v2988 = vunpack.c.h.b16 %v576
        %v2989 = vunpack.c.l.b16 %v577
        %v2990 = vunpack.c.h.b16 %v577
        %v2991 = vunpack.c.l.b16 %v578
        %v2992 = vunpack.c.h.b16 %v578
        %v2993 = vunpack.c.l.b16 %v579
        %v2994 = vunpack.c.h.b16 %v579
        %v2995 = vunpack.c.l.b16 %v580
        %v2996 = vunpack.c.h.b16 %v580
        %v2997 = vunpack.c.l.b16 %v581
        %v2998 = vunpack.c.h.b16 %v581
        %v2999 = vunpack.c.l.b16 %v582
        %v3000 = vunpack.c.h.b16 %v582
        %v3001 = vunpack.c.l.b16 %v583
        %v3002 = vunpack.c.h.b16 %v583
        %v3003 = vunpack.c.l.b16 %v584
        %v3004 = vunpack.c.h.b16 %v584
        %v3005 = vunpack.c.l.b16 %v585
        %v3006 = vunpack.c.h.b16 %v585
        %v3007 = vunpack.c.l.b16 %v586
        %v3008 = vunpack.c.h.b16 %v586
        %v3009 = vunpack.c.l.b16 %v587
        %v3010 = vunpack.c.h.b16 %v587
        %v3011 = vunpack.c.l.b16 %v588
        %v3012 = vunpack.c.h.b16 %v588
        %v3013 = vunpack.c.l.b16 %v589
        %v3014 = vunpack.c.h.b16 %v589
        %v3015 = vunpack.c.l.b16 %v590
        %v3016 = vunpack.c.h.b16 %v590
        %v3017 = vunpack.c.l.b16 %v591
        %v3018 = vunpack.c.h.b16 %v591
        %v3019 = vunpack.c.l.b16 %v592
        %v3020 = vunpack.c.h.b16 %v592
        %v3021 = vunpack.c.l.b16 %v593
        %v3022 = vunpack.c.h.b16 %v593
        %v3023 = vunpack.c.l.b16 %v594
        %v3024 = vunpack.c.h.b16 %v594
        %v3025 = vunpack.c.l.b16 %v595
        %v3026 = vunpack.c.h.b16 %v595
        %v3027 = vunpack.c.l.b16 %v596
        %v3028 = vunpack.c.h.b16 %v596
        %v3029 = vunpack.c.l.b16 %v597
        %v3030 = vunpack.c.h.b16 %v597
        %v3031 = vunpack.c.l.b16 %v598
        %v3032 = vunpack.c.h.b16 %v598
        %v3033 = vunpack.c.l.b16 %v599
        %v3034 = vunpack.c.h.b16 %v599
        %v3035 = vunpack.c.l.b16 %v600
        %v3036 = vunpack.c.h.b16 %v600
        %v3037 = vunpack.c.l.b16 %v601
        %v3038 = vunpack.c.h.b16 %v601
        %v3039 = vunpack.c.l.b16 %v602
        %v3040 = vunpack.c.h.b16 %v602
        %v3041 = vunpack.c.l.b16 %v603
        %v3042 = vunpack.c.h.b16 %v603
        %v3043 = vunpack.c.l.b16 %v604
        %v3044 = vunpack.c.h.b16 %v604
        %v3045 = vunpack.c.l.b16 %v605
        %v3046 = vunpack.c.h.b16 %v605
        %v3047 = vunpack.c.l.b16 %v606
        %v3048 = vunpack.c.h.b16 %v606
        %v3049 = vunpack.c.l.b16 %v607
        %v3050 = vunpack.c.h.b16 %v607
        %v3051 = vunpack.c.l.b16 %v608
        %v3052 = vunpack.c.h.b16 %v608
        %v3053 = vunpack.c.l.b16 %v609
        %v3054 = vunpack.c.h.b16 %v609
        %v3055 = vunpack.c.l.b16 %v610
        %v3056 = vunpack.c.h.b16 %v610
        %v3057 = vunpack.c.l.b16 %v611
        %v3058 = vunpack.c.h.b16 %v611
        %v3059 = vunpack.c.l.b16 %v612
        %v3060 = vunpack.c.h.b16 %v612
        %v3061 = vunpack.c.l.b16 %v613
        %v3062 = vunpack.c.h.b16 %v613
        %v3063 = vunpack.c.l.b16 %v614
        %v3064 = vunpack.c.h.b16 %v614
        %v3065 = vunpack.c.l.b16 %v615
        %v3066 = vunpack.c.h.b16 %v615
        %v3067 = vunpack.c.l.b16 %v616
        %v3068 = vunpack.c.h.b16 %v616
        %v3069 = vunpack.c.l.b16 %v617
        %v3070 = vunpack.c.h.b16 %v617
        %v3071 = vunpack.c.l.b16 %v618
        %v3072 = vunpack.c.h.b16 %v618
        %v3073 = vunpack.c.l.b16 %v619
        %v3074 = vunpack.c.h.b16 %v619
        %v3075 = vunpack.c.l.b16 %v620
        %v3076 = vunpack.c.h.b16 %v620
        %v3077 = vunpack.c.l.b16 %v621
        %v3078 = vunpack.c.h.b16 %v621
        %v3079 = vunpack.c.l.b16 %v622
        %v3080 = vunpack.c.h.b16 %v622
        %v3081 = vunpack.c.l.b16 %v623
        %v3082 = vunpack.c.h.b16 %v623
        %v3083 = vunpack.c.l.b16 %v624
        %v3084 = vunpack.c.h.b16 %v624
        %v3085 = vunpack.c.l.b16 %v625
        %v3086 = vunpack.c.h.b16 %v625
        %v3087 = vunpack.c.l.b16 %v626
        %v3088 = vunpack.c.h.b16 %v626
        %v3089 = vunpack.c.l.b16 %v627
        %v3090 = vunpack.c.h.b16 %v627
        %v3091 = vunpack.c.l.b16 %v628
        %v3092 = vunpack.c.h.b16 %v628
        %v3093 = vunpack.c.l.b16 %v629
        %v3094 = vunpack.c.h.b16 %v629
        %v3095 = vunpack.c.l.b16 %v630
        %v3096 = vunpack.c.h.b16 %v630
        %v3097 = vunpack.c.l.b16 %v631
        %v3098 = vunpack.c.h.b16 %v631
        %v3099 = vunpack.c.l.b16 %v632
        %v3100 = vunpack.c.h.b16 %v632
        %v3101 = vunpack.c.l.b16 %v633
        %v3102 = vunpack.c.h.b16 %v633
        %v3103 = vunpack.c.l.b16 %v634
        %v3104 = vunpack.c.h.b16 %v634
        %v3105 = vunpack.c.l.b16 %v635
        %v3106 = vunpack.c.h.b16 %v635
        %v3107 = vunpack.c.l.b16 %v636
        %v3108 = vunpack.c.h.b16 %v636
        %v3109 = vunpack.c.l.b16 %v637
        %v3110 = vunpack.c.h.b16 %v637
        %v3111 = vunpack.c.l.b16 %v638
        %v3112 = vunpack.c.h.b16 %v638
        %v3113 = vunpack.c.l.b16 %v639
        %v3114 = vunpack.c.h.b16 %v639
        %v3115 = vunpack.c.l.b16 %v640
        %v3116 = vunpack.c.h.b16 %v640
        %v3117 = vunpack.c.l.b16 %v641
        %v3118 = vunpack.c.h.b16 %v641
        %v3119 = vunpack.c.l.b16 %v642
        %v3120 = vunpack.c.h.b16 %v642
        %v3121 = vunpack.c.l.b16 %v643
        %v3122 = vunpack.c.h.b16 %v643
        %v3123 = vunpack.c.l.b16 %v644
        %v3124 = vunpack.c.h.b16 %v644
        %v3125 = vunpack.c.l.b16 %v645
        %v3126 = vunpack.c.h.b16 %v645
        %v3127 = vunpack.c.l.b16 %v646
        %v3128 = vunpack.c.h.b16 %v646
        %v3129 = vunpack.c.l.b16 %v647
        %v3130 = vunpack.c.h.b16 %v647
        %v3131 = vunpack.c.l.b16 %v648
        %v3132 = vunpack.c.h.b16 %v648
        %v3133 = vunpack.c.l.b16 %v649
        %v3134 = vunpack.c.h.b16 %v649
        %v3135 = vunpack.c.l.b16 %v650
        %v3136 = vunpack.c.h.b16 %v650
        %v3137 = vunpack.c.l.b16 %v651
        %v3138 = vunpack.c.h.b16 %v651
        %v3139 = vunpack.c.l.b16 %v652
        %v3140 = vunpack.c.h.b16 %v652
        %v3141 = vunpack.c.l.b16 %v653
        %v3142 = vunpack.c.h.b16 %v653
        %v3143 = vunpack.c.l.b16 %v654
        %v3144 = vunpack.c.h.b16 %v654
        %v3145 = vunpack.c.l.b16 %v655
        %v3146 = vunpack.c.h.b16 %v655
        %v3147 = vunpack.c.l.b16 %v656
        %v3148 = vunpack.c.h.b16 %v656
        %v3149 = vunpack.c.l.b16 %v657
        %v3150 = vunpack.c.h.b16 %v657
        %v3151 = vunpack.c.l.b16 %v658
        %v3152 = vunpack.c.h.b16 %v658
        %v3153 = vunpack.c.l.b16 %v659
        %v3154 = vunpack.c.h.b16 %v659
        %v3155 = vunpack.c.l.b16 %v660
        %v3156 = vunpack.c.h.b16 %v660
        %v3157 = vunpack.c.l.b16 %v661
        %v3158 = vunpack.c.h.b16 %v661
        %v3159 = vunpack.c.l.b16 %v662
        %v3160 = vunpack.c.h.b16 %v662
        %v3161 = vunpack.c.l.b16 %v663
        %v3162 = vunpack.c.h.b16 %v663
        %v3163 = vunpack.c.l.b16 %v664
        %v3164 = vunpack.c.h.b16 %v664
        %v3165 = vunpack.c.l.b16 %v665
        %v3166 = vunpack.c.h.b16 %v665
        %v3167 = vunpack.c.l.b16 %v666
        %v3168 = vunpack.c.h.b16 %v666
        %v3169 = vunpack.c.l.b16 %v667
        %v3170 = vunpack.c.h.b16 %v667
        %v3171 = vunpack.c.l.b16 %v668
        %v3172 = vunpack.c.h.b16 %v668
        %v3173 = vunpack.c.l.b16 %v669
        %v3174 = vunpack.c.h.b16 %v669
        %v3175 = vunpack.c.l.b16 %v670
        %v3176 = vunpack.c.h.b16 %v670
        %v3177 = vunpack.c.l.b16 %v671
        %v3178 = vunpack.c.h.b16 %v671
        %v3179 = vunpack.c.l.b16 %v672
        %v3180 = vunpack.c.h.b16 %v672
        %v3181 = vunpack.c.l.b16 %v673
        %v3182 = vunpack.c.h.b16 %v673
        %v3183 = vunpack.c.l.b16 %v674
        %v3184 = vunpack.c.h.b16 %v674
        %v3185 = vunpack.c.l.b16 %v675
        %v3186 = vunpack.c.h.b16 %v675
        %v3187 = vunpack.c.l.b16 %v676
        %v3188 = vunpack.c.h.b16 %v676
        %v3189 = vunpack.c.l.b16 %v677
        %v3190 = vunpack.c.h.b16 %v677
        %v3191 = vunpack.c.l.b16 %v678
        %v3192 = vunpack.c.h.b16 %v678
        %v3193 = vunpack.c.l.b16 %v679
        %v3194 = vunpack.c.h.b16 %v679
        %v3195 = vunpack.c.l.b16 %v680
        %v3196 = vunpack.c.h.b16 %v680
        %v3197 = vunpack.c.l.b16 %v681
        %v3198 = vunpack.c.h.b16 %v681
        %v3199 = vunpack.c.l.b16 %v682
        %v3200 = vunpack.c.h.b16 %v682
        %v3201 = vunpack.c.l.b16 %v683
        %v3202 = vunpack.c.h.b16 %v683
        %v3203 = vunpack.c.l.b16 %v684
        %v3204 = vunpack.c.h.b16 %v684
        %v3205 = vunpack.c.l.b16 %v685
        %v3206 = vunpack.c.h.b16 %v685
        %v3207 = vunpack.c.l.b16 %v686
        %v3208 = vunpack.c.h.b16 %v686
        %v3209 = vunpack.c.l.b16 %v687
        %v3210 = vunpack.c.h.b16 %v687
        %v3211 = vunpack.c.l.b16 %v688
        %v3212 = vunpack.c.h.b16 %v688
        %v3213 = vunpack.c.l.b16 %v689
        %v3214 = vunpack.c.h.b16 %v689
        %v3215 = vunpack.c.l.b16 %v690
        %v3216 = vunpack.c.h.b16 %v690
        %v3217 = vunpack.c.l.b16 %v691
        %v3218 = vunpack.c.h.b16 %v691
        %v3219 = vunpack.c.l.b16 %v692
        %v3220 = vunpack.c.h.b16 %v692
        %v3221 = vunpack.c.l.b16 %v693
        %v3222 = vunpack.c.h.b16 %v693
        %v3223 = vunpack.c.l.b16 %v694
        %v3224 = vunpack.c.h.b16 %v694
        %v3225 = vunpack.c.l.b16 %v695
        %v3226 = vunpack.c.h.b16 %v695
        %v3227 = vunpack.c.l.b16 %v696
        %v3228 = vunpack.c.h.b16 %v696
        %v3229 = vunpack.c.l.b16 %v697
        %v3230 = vunpack.c.h.b16 %v697
        %v3231 = vunpack.c.l.b16 %v698
        %v3232 = vunpack.c.h.b16 %v698
        %v3233 = vunpack.c.l.b16 %v699
        %v3234 = vunpack.c.h.b16 %v699
        %v3235 = vunpack.c.l.b16 %v700
        %v3236 = vunpack.c.h.b16 %v700
        %v3237 = vunpack.c.l.b16 %v701
        %v3238 = vunpack.c.h.b16 %v701
        %v3239 = vunpack.c.l.b16 %v702
        %v3240 = vunpack.c.h.b16 %v702
        %v3241 = vunpack.c.l.b16 %v703
        %v3242 = vunpack.c.h.b16 %v703
        %v3243 = vunpack.c.l.b16 %v704
        %v3244 = vunpack.c.h.b16 %v704
        %v3245 = vunpack.c.l.b16 %v705
        %v3246 = vunpack.c.h.b16 %v705
        %v3247 = vunpack.c.l.b16 %v706
        %v3248 = vunpack.c.h.b16 %v706
        %v3249 = vunpack.c.l.b16 %v707
        %v3250 = vunpack.c.h.b16 %v707
        %v3251 = vunpack.c.l.b16 %v708
        %v3252 = vunpack.c.h.b16 %v708
        %v3253 = vunpack.c.l.b16 %v709
        %v3254 = vunpack.c.h.b16 %v709
        %v3255 = vunpack.c.l.b16 %v710
        %v3256 = vunpack.c.h.b16 %v710
        %v3257 = vunpack.c.l.b16 %v711
        %v3258 = vunpack.c.h.b16 %v711
        %v3259 = vunpack.c.l.b16 %v712
        %v3260 = vunpack.c.h.b16 %v712
        %v3261 = vunpack.c.l.b16 %v713
        %v3262 = vunpack.c.h.b16 %v713
        %v3263 = vunpack.c.l.b16 %v714
        %v3264 = vunpack.c.h.b16 %v714
        %v3265 = vunpack.c.l.b16 %v715
        %v3266 = vunpack.c.h.b16 %v715
        %v3267 = vunpack.c.l.b16 %v716
        %v3268 = vunpack.c.h.b16 %v716
        %v3269 = vunpack.c.l.b16 %v717
        %v3270 = vunpack.c.h.b16 %v717
        %v3271 = vunpack.c.l.b16 %v718
        %v3272 = vunpack.c.h.b16 %v718
        %v3273 = vunpack.c.l.b16 %v719
        %v3274 = vunpack.c.h.b16 %v719
        %v3275 = vunpack.c.l.b16 %v720
        %v3276 = vunpack.c.h.b16 %v720
        %v3277 = vunpack.c.l.b16 %v721
        %v3278 = vunpack.c.h.b16 %v721
        %v3279 = vunpack.c.l.b16 %v722
        %v3280 = vunpack.c.h.b16 %v722
        %v3281 = vunpack.c.l.b16 %v723
        %v3282 = vunpack.c.h.b16 %v723
        %v3283 = vunpack.c.l.b16 %v724
        %v3284 = vunpack.c.h.b16 %v724
        %v3285 = vunpack.c.l.b16 %v725
        %v3286 = vunpack.c.h.b16 %v725
        %v3287 = vunpack.c.l.b16 %v726
        %v3288 = vunpack.c.h.b16 %v726
        %v3289 = vunpack.c.l.b16 %v727
        %v3290 = vunpack.c.h.b16 %v727
        %v3291 = vunpack.c.l.b16 %v728
        %v3292 = vunpack.c.h.b16 %v728
        %v3293 = vunpack.c.l.b16 %v729
        %v3294 = vunpack.c.h.b16 %v729
        %v3295 = vunpack.c.l.b16 %v730
        %v3296 = vunpack.c.h.b16 %v730
        %v3297 = vunpack.c.l.b16 %v731
        %v3298 = vunpack.c.h.b16 %v731
        %v3299 = vunpack.c.l.b16 %v732
        %v3300 = vunpack.c.h.b16 %v732
        %v3301 = vunpack.c.l.b16 %v733
        %v3302 = vunpack.c.h.b16 %v733
        %v3303 = vunpack.c.l.b16 %v734
        %v3304 = vunpack.c.h.b16 %v734
        %v3305 = vunpack.c.l.b16 %v735
        %v3306 = vunpack.c.h.b16 %v735
        %v3307 = vunpack.c.l.b16 %v736
        %v3308 = vunpack.c.h.b16 %v736
        %v3309 = vunpack.c.l.b16 %v737
        %v3310 = vunpack.c.h.b16 %v737
        %v3311 = vunpack.c.l.b16 %v738
        %v3312 = vunpack.c.h.b16 %v738
        %v3313 = vunpack.c.l.b16 %v739
        %v3314 = vunpack.c.h.b16 %v739
        %v3315 = vunpack.c.l.b16 %v740
        %v3316 = vunpack.c.h.b16 %v740
        %v3317 = vunpack.c.l.b16 %v741
        %v3318 = vunpack.c.h.b16 %v741
        %v3319 = vunpack.c.l.b16 %v742
        %v3320 = vunpack.c.h.b16 %v742
        %v3321 = vunpack.c.l.b16 %v743
        %v3322 = vunpack.c.h.b16 %v743
        %v3323 = vunpack.c.l.b16 %v744
        %v3324 = vunpack.c.h.b16 %v744
        %v3325 = vunpack.c.l.b16 %v745
        %v3326 = vunpack.c.h.b16 %v745
        %v3327 = vunpack.c.l.b16 %v746
        %v3328 = vunpack.c.h.b16 %v746
        %v3329 = vunpack.c.l.b16 %v747
        %v3330 = vunpack.c.h.b16 %v747
        %v3331 = vunpack.c.l.b16 %v748
        %v3332 = vunpack.c.h.b16 %v748
        %v3333 = vunpack.c.l.b16 %v749
        %v3334 = vunpack.c.h.b16 %v749
        %v3335 = vunpack.c.l.b16 %v750
        %v3336 = vunpack.c.h.b16 %v750
        %v3337 = vunpack.c.l.b16 %v751
        %v3338 = vunpack.c.h.b16 %v751
        %v3339 = vunpack.c.l.b16 %v752
        %v3340 = vunpack.c.h.b16 %v752
        %v3341 = vunpack.c.l.b16 %v753
        %v3342 = vunpack.c.h.b16 %v753
        %v3343 = vunpack.c.l.b16 %v754
        %v3344 = vunpack.c.h.b16 %v754
        %v3345 = vunpack.c.l.b16 %v755
        %v3346 = vunpack.c.h.b16 %v755
        %v3347 = vunpack.c.l.b16 %v756
        %v3348 = vunpack.c.h.b16 %v756
        %v3349 = vunpack.c.l.b16 %v757
        %v3350 = vunpack.c.h.b16 %v757
        %v3351 = vunpack.c.l.b16 %v758
        %v3352 = vunpack.c.h.b16 %v758
        %v3353 = vunpack.c.l.b16 %v759
        %v3354 = vunpack.c.h.b16 %v759
        %v3355 = vunpack.c.l.b16 %v760
        %v3356 = vunpack.c.h.b16 %v760
        %v3357 = vunpack.c.l.b16 %v761
        %v3358 = vunpack.c.h.b16 %v761
        %v3359 = vunpack.c.l.b16 %v762
        %v3360 = vunpack.c.h.b16 %v762
        %v3361 = vunpack.c.l.b16 %v763
        %v3362 = vunpack.c.h.b16 %v763
        %v3363 = vunpack.c.l.b16 %v764
        %v3364 = vunpack.c.h.b16 %v764
        %v3365 = vunpack.c.l.b16 %v765
        %v3366 = vunpack.c.h.b16 %v765
        %v3367 = vunpack.c.l.b16 %v766
        %v3368 = vunpack.c.h.b16 %v766
        %v3369 = vunpack.c.l.b16 %v767
        %v3370 = vunpack.c.h.b16 %v767
        %v3371 = vunpack.c.l.b16 %v768
        %v3372 = vunpack.c.h.b16 %v768
        %v3373 = vunpack.c.l.b16 %v769
        %v3374 = vunpack.c.h.b16 %v769
        %v3375 = vunpack.c.l.b16 %v770
        %v3376 = vunpack.c.h.b16 %v770
        %v3377 = vunpack.c.l.b16 %v771
        %v3378 = vunpack.c.h.b16 %v771
        %v3379 = vunpack.c.l.b16 %v772
        %v3380 = vunpack.c.h.b16 %v772
        %v3381 = vunpack.c.l.b16 %v773
        %v3382 = vunpack.c.h.b16 %v773
        %v3383 = vunpack.c.l.b16 %v774
        %v3384 = vunpack.c.h.b16 %v774
        %v3385 = vunpack.c.l.b16 %v775
        %v3386 = vunpack.c.h.b16 %v775
        %v3387 = vunpack.c.l.b16 %v776
        %v3388 = vunpack.c.h.b16 %v776
        %v3389 = vunpack.c.l.b16 %v777
        %v3390 = vunpack.c.h.b16 %v777
        %v3391 = vunpack.c.l.b16 %v778
        %v3392 = vunpack.c.h.b16 %v778
        %v3393 = vunpack.c.l.b16 %v779
        %v3394 = vunpack.c.h.b16 %v779
        %v3395 = vunpack.c.l.b16 %v780
        %v3396 = vunpack.c.h.b16 %v780
        %v3397 = vunpack.c.l.b16 %v781
        %v3398 = vunpack.c.h.b16 %v781
        %v3399 = vunpack.c.l.b16 %v782
        %v3400 = vunpack.c.h.b16 %v782
        %v3401 = vunpack.c.l.b16 %v783
        %v3402 = vunpack.c.h.b16 %v783
        %v3403 = vunpack.c.l.b16 %v784
        %v3404 = vunpack.c.h.b16 %v784
        %v3405 = vunpack.c.l.b16 %v785
        %v3406 = vunpack.c.h.b16 %v785
        %v3407 = vunpack.c.l.b16 %v786
        %v3408 = vunpack.c.h.b16 %v786
        %v3409 = vunpack.c.l.b16 %v787
        %v3410 = vunpack.c.h.b16 %v787
        %v3411 = vunpack.c.l.b16 %v788
        %v3412 = vunpack.c.h.b16 %v788
        %v3413 = vunpack.c.l.b16 %v789
        %v3414 = vunpack.c.h.b16 %v789
        %v3415 = vunpack.c.l.b16 %v790
        %v3416 = vunpack.c.h.b16 %v790
        %v3417 = vunpack.c.l.b16 %v791
        %v3418 = vunpack.c.h.b16 %v791
        %v3419 = vunpack.c.l.b16 %v792
        %v3420 = vunpack.c.h.b16 %v792
        %v3421 = vunpack.c.l.b16 %v793
        %v3422 = vunpack.c.h.b16 %v793
        %v3423 = vunpack.c.l.b16 %v794
        %v3424 = vunpack.c.h.b16 %v794
        %v3425 = vunpack.c.l.b16 %v795
        %v3426 = vunpack.c.h.b16 %v795
        %v3427 = vunpack.c.l.b16 %v796
        %v3428 = vunpack.c.h.b16 %v796
        %v3429 = vunpack.c.l.b16 %v797
        %v3430 = vunpack.c.h.b16 %v797
        %v3431 = vunpack.c.l.b16 %v798
        %v3432 = vunpack.c.h.b16 %v798
        %v3433 = vunpack.c.l.b16 %v799
        %v3434 = vunpack.c.h.b16 %v799
        %v3435 = vunpack.c.l.b16 %v800
        %v3436 = vunpack.c.h.b16 %v800
        %v3437 = vunpack.c.l.b16 %v801
        %v3438 = vunpack.c.h.b16 %v801
        %v3439 = vunpack.c.l.b16 %v802
        %v3440 = vunpack.c.h.b16 %v802
        %v3441 = vunpack.c.l.b16 %v803
        %v3442 = vunpack.c.h.b16 %v803
        %v3443 = vunpack.c.l.b16 %v804
        %v3444 = vunpack.c.h.b16 %v804
        %v3445 = vunpack.c.l.b16 %v805
        %v3446 = vunpack.c.h.b16 %v805
        %v3447 = vunpack.c.l.b16 %v806
        %v3448 = vunpack.c.h.b16 %v806
        %v3449 = vunpack.c.l.b16 %v807
        %v3450 = vunpack.c.h.b16 %v807
        %v3451 = vunpack.c.l.b16 %v808
        %v3452 = vunpack.c.h.b16 %v808
        %v3453 = vunpack.c.l.b16 %v809
        %v3454 = vunpack.c.h.b16 %v809
        %v3455 = vunpack.c.l.b16 %v810
        %v3456 = vunpack.c.h.b16 %v810
        %v3457 = vunpack.c.l.b16 %v811
        %v3458 = vunpack.c.h.b16 %v811
        %v3459 = vunpack.c.l.b16 %v812
        %v3460 = vunpack.c.h.b16 %v812
        %v3461 = vunpack.c.l.b16 %v813
        %v3462 = vunpack.c.h.b16 %v813
        %v3463 = vunpack.c.l.b16 %v814
        %v3464 = vunpack.c.h.b16 %v814
        %v3465 = vunpack.c.l.b16 %v815
        %v3466 = vunpack.c.h.b16 %v815
        %v3467 = vunpack.c.l.b16 %v816
        %v3468 = vunpack.c.h.b16 %v816
        %v3469 = vunpack.c.l.b16 %v817
        %v3470 = vunpack.c.h.b16 %v817
        %v3471 = vunpack.c.l.b16 %v818
        %v3472 = vunpack.c.h.b16 %v818
        %v3473 = vunpack.c.l.b16 %v819
        %v3474 = vunpack.c.h.b16 %v819
        %v3475 = vunpack.c.l.b16 %v820
        %v3476 = vunpack.c.h.b16 %v820
        %v3477 = vunpack.c.l.b16 %v821
        %v3478 = vunpack.c.h.b16 %v821
        %v3479 = vunpack.c.l.b16 %v822
        %v3480 = vunpack.c.h.b16 %v822
        %v3481 = vunpack.c.l.b16 %v823
        %v3482 = vunpack.c.h.b16 %v823
        %v3483 = vunpack.c.l.b16 %v824
        %v3484 = vunpack.c.h.b16 %v824
        %v3485 = vunpack.c.l.b16 %v825
        %v3486 = vunpack.c.h.b16 %v825
        %v3487 = vunpack.c.l.b16 %v826
        %v3488 = vunpack.c.h.b16 %v826
        %v3489 = vunpack.c.l.b16 %v827
        %v3490 = vunpack.c.h.b16 %v827
        %v3491 = vunpack.c.l.b16 %v828
        %v3492 = vunpack.c.h.b16 %v828
        %v3493 = vunpack.c.l.b16 %v829
        %v3494 = vunpack.c.h.b16 %v829
        %v3495 = vunpack.c.l.b16 %v830
        %v3496 = vunpack.c.h.b16 %v830
        %v3497 = vunpack.c.l.b16 %v831
        %v3498 = vunpack.c.h.b16 %v831
        %v3499 = vunpack.c.l.b16 %v832
        %v3500 = vunpack.c.h.b16 %v832
        %v3501 = vunpack.c.l.b16 %v833
        %v3502 = vunpack.c.h.b16 %v833
        %v3503 = vunpack.c.l.b16 %v834
        %v3504 = vunpack.c.h.b16 %v834
        %v3505 = vunpack.c.l.b16 %v835
        %v3506 = vunpack.c.h.b16 %v835
        %v3507 = vunpack.c.l.b16 %v836
        %v3508 = vunpack.c.h.b16 %v836
        %v3509 = vunpack.c.l.b16 %v837
        %v3510 = vunpack.c.h.b16 %v837
        %v3511 = vunpack.c.l.b16 %v838
        %v3512 = vunpack.c.h.b16 %v838
        %v3513 = vunpack.c.l.b16 %v839
        %v3514 = vunpack.c.h.b16 %v839
        %v3515 = vunpack.c.l.b16 %v840
        %v3516 = vunpack.c.h.b16 %v840
        %v3517 = vunpack.c.l.b16 %v841
        %v3518 = vunpack.c.h.b16 %v841
        %v3519 = vunpack.c.l.b16 %v842
        %v3520 = vunpack.c.h.b16 %v842
        %v3521 = vunpack.c.l.b16 %v843
        %v3522 = vunpack.c.h.b16 %v843
        %v3523 = vunpack.c.l.b16 %v844
        %v3524 = vunpack.c.h.b16 %v844
        %v3525 = vunpack.c.l.b16 %v845
        %v3526 = vunpack.c.h.b16 %v845
        %v3527 = vunpack.c.l.b16 %v846
        %v3528 = vunpack.c.h.b16 %v846
        %v3529 = vunpack.c.l.b16 %v847
        %v3530 = vunpack.c.h.b16 %v847
        %v3531 = vunpack.c.l.b16 %v848
        %v3532 = vunpack.c.h.b16 %v848
        %v3533 = vunpack.c.l.b16 %v849
        %v3534 = vunpack.c.h.b16 %v849
        %v3535 = vunpack.c.l.b16 %v850
        %v3536 = vunpack.c.h.b16 %v850
        %v3537 = vunpack.c.l.b16 %v851
        %v3538 = vunpack.c.h.b16 %v851
        %v3539 = vunpack.c.l.b16 %v852
        %v3540 = vunpack.c.h.b16 %v852
        %v3541 = vunpack.c.l.b16 %v853
        %v3542 = vunpack.c.h.b16 %v853
        %v3543 = vunpack.c.l.b16 %v854
        %v3544 = vunpack.c.h.b16 %v854
        %v3545 = vunpack.c.l.b16 %v855
        %v3546 = vunpack.c.h.b16 %v855
        %v3547 = vunpack.c.l.b16 %v856
        %v3548 = vunpack.c.h.b16 %v856
        %v3549 = vunpack.c.l.b16 %v857
        %v3550 = vunpack.c.h.b16 %v857
        %v3551 = vunpack.c.l.b16 %v858
        %v3552 = vunpack.c.h.b16 %v858
        %v3553 = vunpack.c.l.b16 %v859
        %v3554 = vunpack.c.h.b16 %v859
        %v3555 = vunpack.c.l.b16 %v860
        %v3556 = vunpack.c.h.b16 %v860
        %v3557 = vunpack.c.l.b16 %v861
        %v3558 = vunpack.c.h.b16 %v861
        %v3559 = vunpack.c.l.b16 %v862
        %v3560 = vunpack.c.h.b16 %v862
        %v3561 = vunpack.c.l.b16 %v863
        %v3562 = vunpack.c.h.b16 %v863
        %v3563 = vunpack.c.l.b16 %v864
        %v3564 = vunpack.c.h.b16 %v864
        %v3565 = vunpack.c.l.b16 %v865
        %v3566 = vunpack.c.h.b16 %v865
        %v3567 = vunpack.c.l.b16 %v866
        %v3568 = vunpack.c.h.b16 %v866
        %v3569 = vunpack.c.l.b16 %v867
        %v3570 = vunpack.c.h.b16 %v867
        %v3571 = vunpack.c.l.b16 %v868
        %v3572 = vunpack.c.h.b16 %v868
        %v3573 = vunpack.c.l.b16 %v869
        %v3574 = vunpack.c.h.b16 %v869
        %v3575 = vunpack.c.l.b16 %v870
        %v3576 = vunpack.c.h.b16 %v870
        %v3577 = vunpack.c.l.b16 %v871
        %v3578 = vunpack.c.h.b16 %v871
        %v3579 = vunpack.c.l.b16 %v872
        %v3580 = vunpack.c.h.b16 %v872
        %v3581 = vunpack.c.l.b16 %v873
        %v3582 = vunpack.c.h.b16 %v873
        %v3583 = vunpack.c.l.b16 %v874
        %v3584 = vunpack.c.h.b16 %v874
        %v3585 = vunpack.c.l.b16 %v875
        %v3586 = vunpack.c.h.b16 %v875
        %v3587 = vunpack.c.l.b16 %v876
        %v3588 = vunpack.c.h.b16 %v876
        %v3589 = vunpack.c.l.b16 %v877
        %v3590 = vunpack.c.h.b16 %v877
        %v3591 = vunpack.c.l.b16 %v878
        %v3592 = vunpack.c.h.b16 %v878
        %v3593 = vunpack.c.l.b16 %v879
        %v3594 = vunpack.c.h.b16 %v879
        %v3595 = vunpack.c.l.b16 %v880
        %v3596 = vunpack.c.h.b16 %v880
        %v3597 = vunpack.c.l.b16 %v881
        %v3598 = vunpack.c.h.b16 %v881
        %v3599 = vunpack.c.l.b16 %v882
        %v3600 = vunpack.c.h.b16 %v882
        %v3601 = vunpack.c.l.b16 %v883
        %v3602 = vunpack.c.h.b16 %v883
        %v3603 = vunpack.c.l.b16 %v884
        %v3604 = vunpack.c.h.b16 %v884
        %v3605 = vunpack.c.l.b16 %v885
        %v3606 = vunpack.c.h.b16 %v885
        %v3607 = vunpack.c.l.b16 %v886
        %v3608 = vunpack.c.h.b16 %v886
        %v3609 = vunpack.c.l.b16 %v887
        %v3610 = vunpack.c.h.b16 %v887
        %v3611 = vunpack.c.l.b16 %v888
        %v3612 = vunpack.c.h.b16 %v888
        %v3613 = vunpack.c.l.b16 %v889
        %v3614 = vunpack.c.h.b16 %v889
        %v3615 = vunpack.c.l.b16 %v890
        %v3616 = vunpack.c.h.b16 %v890
        %v3617 = vunpack.c.l.b16 %v891
        %v3618 = vunpack.c.h.b16 %v891
        %v3619 = vunpack.c.l.b16 %v892
        %v3620 = vunpack.c.h.b16 %v892
        %v3621 = vunpack.c.l.b16 %v893
        %v3622 = vunpack.c.h.b16 %v893
        %v3623 = vunpack.c.l.b16 %v894
        %v3624 = vunpack.c.h.b16 %v894
        %v3625 = vunpack.c.l.b16 %v895
        %v3626 = vunpack.c.h.b16 %v895
        %v3627 = vunpack.c.l.b16 %v896
        %v3628 = vunpack.c.h.b16 %v896
        %v3629 = vunpack.c.l.b16 %v897
        %v3630 = vunpack.c.h.b16 %v897
        %v3631 = vunpack.c.l.b16 %v898
        %v3632 = vunpack.c.h.b16 %v898
        %v3633 = vunpack.c.l.b16 %v899
        %v3634 = vunpack.c.h.b16 %v899
        %v3635 = vunpack.c.l.b16 %v900
        %v3636 = vunpack.c.h.b16 %v900
        %v3637 = vunpack.c.l.b16 %v901
        %v3638 = vunpack.c.h.b16 %v901
        %v3639 = vunpack.c.l.b16 %v902
        %v3640 = vunpack.c.h.b16 %v902
        %v3641 = vunpack.c.l.b16 %v903
        %v3642 = vunpack.c.h.b16 %v903
        %v3643 = vunpack.c.l.b16 %v904
        %v3644 = vunpack.c.h.b16 %v904
        %v3645 = vunpack.c.l.b16 %v905
        %v3646 = vunpack.c.h.b16 %v905
        %v3647 = vunpack.c.l.b16 %v906
        %v3648 = vunpack.c.h.b16 %v906
        %v3649 = vunpack.c.l.b16 %v907
        %v3650 = vunpack.c.h.b16 %v907
        %v3651 = vunpack.c.l.b16 %v908
        %v3652 = vunpack.c.h.b16 %v908
        %v3653 = vunpack.c.l.b16 %v909
        %v3654 = vunpack.c.h.b16 %v909
        %v3655 = vunpack.c.l.b16 %v910
        %v3656 = vunpack.c.h.b16 %v910
        %v3657 = vunpack.c.l.b16 %v911
        %v3658 = vunpack.c.h.b16 %v911
        %v3659 = vunpack.c.l.b16 %v912
        %v3660 = vunpack.c.h.b16 %v912
        %v3661 = vunpack.c.l.b16 %v913
        %v3662 = vunpack.c.h.b16 %v913
        %v3663 = vunpack.c.l.b16 %v914
        %v3664 = vunpack.c.h.b16 %v914
        %v3665 = vunpack.c.l.b16 %v915
        %v3666 = vunpack.c.h.b16 %v915
        %v3667 = vunpack.c.l.b16 %v916
        %v3668 = vunpack.c.h.b16 %v916
        %v3669 = vunpack.c.l.b16 %v917
        %v3670 = vunpack.c.h.b16 %v917
        %v3671 = vunpack.c.l.b16 %v918
        %v3672 = vunpack.c.h.b16 %v918
        %v3673 = vunpack.c.l.b16 %v919
        %v3674 = vunpack.c.h.b16 %v919
        %v3675 = vunpack.c.l.b16 %v920
        %v3676 = vunpack.c.h.b16 %v920
        %v3677 = vunpack.c.l.b16 %v921
        %v3678 = vunpack.c.h.b16 %v921
        %v3679 = vunpack.c.l.b16 %v922
        %v3680 = vunpack.c.h.b16 %v922
        %v3681 = vunpack.c.l.b16 %v923
        %v3682 = vunpack.c.h.b16 %v923
        %v3683 = vunpack.c.l.b16 %v924
        %v3684 = vunpack.c.h.b16 %v924
        %v3685 = vunpack.c.l.b16 %v925
        %v3686 = vunpack.c.h.b16 %v925
        %v3687 = vunpack.c.l.b16 %v926
        %v3688 = vunpack.c.h.b16 %v926
        %v3689 = vunpack.c.l.b16 %v927
        %v3690 = vunpack.c.h.b16 %v927
        %v3691 = vunpack.c.l.b16 %v928
        %v3692 = vunpack.c.h.b16 %v928
        %v3693 = vunpack.c.l.b16 %v929
        %v3694 = vunpack.c.h.b16 %v929
        %v3695 = vunpack.c.l.b16 %v930
        %v3696 = vunpack.c.h.b16 %v930
        %v3697 = vunpack.c.l.b16 %v931
        %v3698 = vunpack.c.h.b16 %v931
        %v3699 = vunpack.c.l.b16 %v932
        %v3700 = vunpack.c.h.b16 %v932
        %v3701 = vunpack.c.l.b16 %v933
        %v3702 = vunpack.c.h.b16 %v933
        %v3703 = vunpack.c.l.b16 %v934
        %v3704 = vunpack.c.h.b16 %v934
        %v3705 = vunpack.c.l.b16 %v935
        %v3706 = vunpack.c.h.b16 %v935
        %v3707 = vunpack.c.l.b16 %v936
        %v3708 = vunpack.c.h.b16 %v936
        %v3709 = vunpack.c.l.b16 %v937
        %v3710 = vunpack.c.h.b16 %v937
        %v3711 = vunpack.c.l.b16 %v938
        %v3712 = vunpack.c.h.b16 %v938
        %v3713 = vunpack.c.l.b16 %v939
        %v3714 = vunpack.c.h.b16 %v939
        %v3715 = vunpack.c.l.b16 %v940
        %v3716 = vunpack.c.h.b16 %v940
        %v3717 = vunpack.c.l.b16 %v941
        %v3718 = vunpack.c.h.b16 %v941
        %v3719 = vunpack.c.l.b16 %v942
        %v3720 = vunpack.c.h.b16 %v942
        %v3721 = vunpack.c.l.b16 %v943
        %v3722 = vunpack.c.h.b16 %v943
        %v3723 = vunpack.c.l.b16 %v944
        %v3724 = vunpack.c.h.b16 %v944
        %v3725 = vunpack.c.l.b16 %v945
        %v3726 = vunpack.c.h.b16 %v945
        %v3727 = vunpack.c.l.b16 %v946
        %v3728 = vunpack.c.h.b16 %v946
        %v3729 = vunpack.c.l.b16 %v947
        %v3730 = vunpack.c.h.b16 %v947
        %v3731 = vunpack.c.l.b16 %v948
        %v3732 = vunpack.c.h.b16 %v948
        %v3733 = vunpack.c.l.b16 %v949
        %v3734 = vunpack.c.h.b16 %v949
        %v3735 = vunpack.c.l.b16 %v950
        %v3736 = vunpack.c.h.b16 %v950
        %v3737 = vunpack.c.l.b16 %v951
        %v3738 = vunpack.c.h.b16 %v951
        %v3739 = vunpack.c.l.b16 %v952
        %v3740 = vunpack.c.h.b16 %v952
        %v3741 = vunpack.c.l.b16 %v953
        %v3742 = vunpack.c.h.b16 %v953
        %v3743 = vunpack.c.l.b16 %v954
        %v3744 = vunpack.c.h.b16 %v954
        %v3745 = vunpack.c.l.b16 %v955
        %v3746 = vunpack.c.h.b16 %v955
        %v3747 = vunpack.c.l.b16 %v956
        %v3748 = vunpack.c.h.b16 %v956
        %v3749 = vunpack.c.l.b16 %v957
        %v3750 = vunpack.c.h.b16 %v957
        %v3751 = vunpack.c.l.b16 %v958
        %v3752 = vunpack.c.h.b16 %v958
        %v3753 = vunpack.c.l.b16 %v959
        %v3754 = vunpack.c.h.b16 %v959
        %v3755 = vunpack.c.l.b16 %v960
        %v3756 = vunpack.c.h.b16 %v960
        %v3757 = vunpack.c.l.b16 %v961
        %v3758 = vunpack.c.h.b16 %v961
        %v3759 = vunpack.c.l.b16 %v962
        %v3760 = vunpack.c.h.b16 %v962
        %v3761 = vunpack.c.l.b16 %v963
        %v3762 = vunpack.c.h.b16 %v963
        %v3763 = vunpack.c.l.b16 %v964
        %v3764 = vunpack.c.h.b16 %v964
        %v3765 = vunpack.c.l.b16 %v965
        %v3766 = vunpack.c.h.b16 %v965
        %v3767 = vunpack.c.l.b16 %v966
        %v3768 = vunpack.c.h.b16 %v966
        %v3769 = vunpack.c.l.b16 %v967
        %v3770 = vunpack.c.h.b16 %v967
        %v3771 = vunpack.c.l.b16 %v968
        %v3772 = vunpack.c.h.b16 %v968
        %v3773 = vunpack.c.l.b16 %v969
        %v3774 = vunpack.c.h.b16 %v969
        %v3775 = vunpack.c.l.b16 %v970
        %v3776 = vunpack.c.h.b16 %v970
        %v3777 = vunpack.c.l.b16 %v971
        %v3778 = vunpack.c.h.b16 %v971
        %v3779 = vunpack.c.l.b16 %v972
        %v3780 = vunpack.c.h.b16 %v972
        %v3781 = vunpack.c.l.b16 %v973
        %v3782 = vunpack.c.h.b16 %v973
        %v3783 = vunpack.c.l.b16 %v974
        %v3784 = vunpack.c.h.b16 %v974
        %v3785 = vunpack.c.l.b16 %v975
        %v3786 = vunpack.c.h.b16 %v975
        %v3787 = vunpack.c.l.b16 %v976
        %v3788 = vunpack.c.h.b16 %v976
        %v3789 = vunpack.c.l.b16 %v977
        %v3790 = vunpack.c.h.b16 %v977
        %v3791 = vunpack.c.l.b16 %v978
        %v3792 = vunpack.c.h.b16 %v978
        %v3793 = vunpack.c.l.b16 %v979
        %v3794 = vunpack.c.h.b16 %v979
        %v3795 = vunpack.c.l.b16 %v980
        %v3796 = vunpack.c.h.b16 %v980
        %v3797 = vunpack.c.l.b16 %v981
        %v3798 = vunpack.c.h.b16 %v981
        %v3799 = vunpack.c.l.b16 %v982
        %v3800 = vunpack.c.h.b16 %v982
        %v3801 = vunpack.c.l.b16 %v983
        %v3802 = vunpack.c.h.b16 %v983
        %v3803 = vunpack.c.l.b16 %v984
        %v3804 = vunpack.c.h.b16 %v984
        %v3805 = vunpack.c.l.b16 %v985
        %v3806 = vunpack.c.h.b16 %v985
        %v3807 = vunpack.c.l.b16 %v986
        %v3808 = vunpack.c.h.b16 %v986
        %v3809 = vunpack.c.l.b16 %v987
        %v3810 = vunpack.c.h.b16 %v987
        %v3811 = vunpack.c.l.b16 %v988
        %v3812 = vunpack.c.h.b16 %v988
        %v3813 = vunpack.c.l.b16 %v989
        %v3814 = vunpack.c.h.b16 %v989
        %v3815 = vunpack.c.l.b16 %v990
        %v3816 = vunpack.c.h.b16 %v990
        %v3817 = vunpack.c.l.b16 %v991
        %v3818 = vunpack.c.h.b16 %v991
        %v3819 = vunpack.c.l.b16 %v992
        %v3820 = vunpack.c.h.b16 %v992
        %v3821 = vunpack.c.l.b16 %v993
        %v3822 = vunpack.c.h.b16 %v993
        %v3823 = vunpack.c.l.b16 %v994
        %v3824 = vunpack.c.h.b16 %v994
        %v3825 = vunpack.c.l.b16 %v995
        %v3826 = vunpack.c.h.b16 %v995
        %v3827 = vunpack.c.l.b16 %v996
        %v3828 = vunpack.c.h.b16 %v996
        %v3829 = vunpack.c.l.b16 %v997
        %v3830 = vunpack.c.h.b16 %v997
        %v3831 = vunpack.c.l.b16 %v998
        %v3832 = vunpack.c.h.b16 %v998
        %v3833 = vunpack.c.l.b16 %v999
        %v3834 = vunpack.c.h.b16 %v999
        %v3835 = vunpack.c.l.b16 %v1000
        %v3836 = vunpack.c.h.b16 %v1000
        %v3837 = vunpack.c.l.b16 %v1001
        %v3838 = vunpack.c.h.b16 %v1001
        %v3839 = vunpack.c.l.b16 %v1002
        %v3840 = vunpack.c.h.b16 %v1002
        %v3841 = vunpack.c.l.b16 %v1003
        %v3842 = vunpack.c.h.b16 %v1003
        %v3843 = vunpack.c.l.b16 %v1004
        %v3844 = vunpack.c.h.b16 %v1004
        %v3845 = vunpack.c.l.b16 %v1005
        %v3846 = vunpack.c.h.b16 %v1005
        %v3847 = vunpack.c.l.b16 %v1006
        %v3848 = vunpack.c.h.b16 %v1006
        %v3849 = vunpack.c.l.b16 %v1007
        %v3850 = vunpack.c.h.b16 %v1007
        %v3851 = vunpack.c.l.b16 %v1008
        %v3852 = vunpack.c.h.b16 %v1008
        %v3853 = vunpack.c.l.b16 %v1009
        %v3854 = vunpack.c.h.b16 %v1009
        %v3855 = vunpack.c.l.b16 %v1010
        %v3856 = vunpack.c.h.b16 %v1010
        %v3857 = vunpack.c.l.b16 %v1011
        %v3858 = vunpack.c.h.b16 %v1011
        %v3859 = vunpack.c.l.b16 %v1012
        %v3860 = vunpack.c.h.b16 %v1012
        %v3861 = vunpack.c.l.b16 %v1013
        %v3862 = vunpack.c.h.b16 %v1013
        %v3863 = vunpack.c.l.b16 %v1014
        %v3864 = vunpack.c.h.b16 %v1014
        %v3865 = vunpack.c.l.b16 %v1015
        %v3866 = vunpack.c.h.b16 %v1015
        %v3867 = vunpack.c.l.b16 %v1016
        %v3868 = vunpack.c.h.b16 %v1016
        %v3869 = vunpack.c.l.b16 %v1017
        %v3870 = vunpack.c.h.b16 %v1017
        %v3871 = vunpack.c.l.b16 %v1018
        %v3872 = vunpack.c.h.b16 %v1018
        %v3873 = vunpack.c.l.b16 %v1019
        %v3874 = vunpack.c.h.b16 %v1019
        %v3875 = vunpack.c.l.b16 %v1020
        %v3876 = vunpack.c.h.b16 %v1020
        %v3877 = vunpack.c.l.b16 %v1021
        %v3878 = vunpack.c.h.b16 %v1021
        %v3879 = vunpack.c.l.b16 %v1022
        %v3880 = vunpack.c.h.b16 %v1022
        %v3881 = vunpack.c.l.b16 %v1023
        %v3882 = vunpack.c.h.b16 %v1023
        %v3883 = vunpack.c.l.b16 %v1024
        %v3884 = vunpack.c.h.b16 %v1024
        %v3885 = vunpack.c.l.b16 %v1025
        %v3886 = vunpack.c.h.b16 %v1025
        %v3887 = vunpack.c.l.b16 %v1026
        %v3888 = vunpack.c.h.b16 %v1026
        %v3889 = vunpack.c.l.b16 %v1027
        %v3890 = vunpack.c.h.b16 %v1027
        %v3891 = vunpack.c.l.b16 %v1028
        %v3892 = vunpack.c.h.b16 %v1028
        %v3893 = vunpack.c.l.b16 %v1029
        %v3894 = vunpack.c.h.b16 %v1029
        %v3895 = vunpack.c.l.b16 %v1030
        %v3896 = vunpack.c.h.b16 %v1030
        %v3897 = vunpack.c.l.b16 %v1031
        %v3898 = vunpack.c.h.b16 %v1031
        %v3899 = vunpack.c.l.b16 %v1032
        %v3900 = vunpack.c.h.b16 %v1032
        %v3901 = vunpack.c.l.b16 %v1033
        %v3902 = vunpack.c.h.b16 %v1033
        %v3903 = vunpack.c.l.b16 %v1034
        %v3904 = vunpack.c.h.b16 %v1034
        %v3905 = vunpack.c.l.b16 %v1035
        %v3906 = vunpack.c.h.b16 %v1035
        %v3907 = vunpack.c.l.b16 %v1036
        %v3908 = vunpack.c.h.b16 %v1036
        %v3909 = vunpack.c.l.b16 %v1037
        %v3910 = vunpack.c.h.b16 %v1037
        %v3911 = vunpack.c.l.b16 %v1038
        %v3912 = vunpack.c.h.b16 %v1038
        %v3913 = vunpack.c.l.b16 %v1039
        %v3914 = vunpack.c.h.b16 %v1039
        %v3915 = vunpack.c.l.b16 %v1040
        %v3916 = vunpack.c.h.b16 %v1040
        %v3917 = vunpack.c.l.b16 %v1041
        %v3918 = vunpack.c.h.b16 %v1041
        %v3919 = vunpack.c.l.b16 %v1042
        %v3920 = vunpack.c.h.b16 %v1042
        %v3921 = vunpack.c.l.b16 %v1043
        %v3922 = vunpack.c.h.b16 %v1043
        %v3923 = vunpack.c.l.b16 %v1044
        %v3924 = vunpack.c.h.b16 %v1044
        %v3925 = vunpack.c.l.b16 %v1045
        %v3926 = vunpack.c.h.b16 %v1045
        %v3927 = vunpack.c.l.b16 %v1046
        %v3928 = vunpack.c.h.b16 %v1046
        %v3929 = vunpack.c.l.b16 %v1047
        %v3930 = vunpack.c.h.b16 %v1047
        %v3931 = vunpack.c.l.b16 %v1048
        %v3932 = vunpack.c.h.b16 %v1048
        %v3933 = vunpack.c.l.b16 %v1049
        %v3934 = vunpack.c.h.b16 %v1049
        %v3935 = vunpack.c.l.b16 %v1050
        %v3936 = vunpack.c.h.b16 %v1050
        %v3937 = vunpack.c.l.b16 %v1051
        %v3938 = vunpack.c.h.b16 %v1051
        %v3939 = vunpack.c.l.b16 %v1052
        %v3940 = vunpack.c.h.b16 %v1052
        %v3941 = vunpack.c.l.b16 %v1053
        %v3942 = vunpack.c.h.b16 %v1053
        %v3943 = vunpack.c.l.b16 %v1054
        %v3944 = vunpack.c.h.b16 %v1054
        %v3945 = vunpack.c.l.b16 %v1055
        %v3946 = vunpack.c.h.b16 %v1055
        %v3947 = vunpack.c.l.b16 %v1056
        %v3948 = vunpack.c.h.b16 %v1056
        %v3949 = vunpack.c.l.b16 %v1057
        %v3950 = vunpack.c.h.b16 %v1057
        %v3951 = vunpack.c.l.b16 %v1058
        %v3952 = vunpack.c.h.b16 %v1058
        %v3953 = vunpack.c.l.b16 %v1059
        %v3954 = vunpack.c.h.b16 %v1059
        %v3955 = vunpack.c.l.b16 %v1060
        %v3956 = vunpack.c.h.b16 %v1060
        %v3957 = vunpack.c.l.b16 %v1061
        %v3958 = vunpack.c.h.b16 %v1061
        %v3959 = vunpack.c.l.b16 %v1062
        %v3960 = vunpack.c.h.b16 %v1062
        %v3961 = vunpack.c.l.b16 %v1063
        %v3962 = vunpack.c.h.b16 %v1063
        %v3963 = vunpack.c.l.b16 %v1064
        %v3964 = vunpack.c.h.b16 %v1064
        %v3965 = vunpack.c.l.b16 %v1065
        %v3966 = vunpack.c.h.b16 %v1065
        %v3967 = vunpack.c.l.b16 %v1066
        %v3968 = vunpack.c.h.b16 %v1066
        %v3969 = vunpack.c.l.b16 %v1067
        %v3970 = vunpack.c.h.b16 %v1067
        %v3971 = vunpack.c.l.b16 %v1068
        %v3972 = vunpack.c.h.b16 %v1068
        %v3973 = vunpack.c.l.b16 %v1069
        %v3974 = vunpack.c.h.b16 %v1069
        %v3975 = vunpack.c.l.b16 %v1070
        %v3976 = vunpack.c.h.b16 %v1070
        %v3977 = vunpack.c.l.b16 %v1071
        %v3978 = vunpack.c.h.b16 %v1071
        %v3979 = vunpack.c.l.b16 %v1072
        %v3980 = vunpack.c.h.b16 %v1072
        %v3981 = vunpack.c.l.b16 %v1073
        %v3982 = vunpack.c.h.b16 %v1073
        %v3983 = vunpack.c.l.b16 %v1074
        %v3984 = vunpack.c.h.b16 %v1074
        %v3985 = vunpack.c.l.b16 %v1075
        %v3986 = vunpack.c.h.b16 %v1075
        %v3987 = vunpack.c.l.b16 %v1076
        %v3988 = vunpack.c.h.b16 %v1076
        %v3989 = vunpack.c.l.b16 %v1077
        %v3990 = vunpack.c.h.b16 %v1077
        %v3991 = vunpack.c.l.b16 %v1078
        %v3992 = vunpack.c.h.b16 %v1078
        %v3993 = vunpack.c.l.b16 %v1079
        %v3994 = vunpack.c.h.b16 %v1079
        %v3995 = vunpack.c.l.b16 %v1080
        %v3996 = vunpack.c.h.b16 %v1080
        %v3997 = vunpack.c.l.b16 %v1081
        %v3998 = vunpack.c.h.b16 %v1081
        %v3999 = vunpack.c.l.b16 %v1082
        %v4000 = vunpack.c.h.b16 %v1082
        %v4001 = vunpack.c.l.b16 %v1083
        %v4002 = vunpack.c.h.b16 %v1083
        %v4003 = vunpack.c.l.b16 %v1084
        %v4004 = vunpack.c.h.b16 %v1084
        %v4005 = vunpack.c.l.b16 %v1085
        %v4006 = vunpack.c.h.b16 %v1085
        %v4007 = vunpack.c.l.b16 %v1086
        %v4008 = vunpack.c.h.b16 %v1086
        %v4009 = vunpack.c.l.b16 %v1087
        %v4010 = vunpack.c.h.b16 %v1087
        %v4011 = vunpack.c.l.b16 %v1088
        %v4012 = vunpack.c.h.b16 %v1088
        %v4013 = vunpack.c.l.b16 %v1089
        %v4014 = vunpack.c.h.b16 %v1089
        %v4015 = vunpack.c.l.b16 %v1090
        %v4016 = vunpack.c.h.b16 %v1090
        %v4017 = vunpack.c.l.b16 %v1091
        %v4018 = vunpack.c.h.b16 %v1091
        %v4019 = vunpack.c.l.b16 %v1092
        %v4020 = vunpack.c.h.b16 %v1092
        %v4021 = vunpack.c.l.b16 %v1093
        %v4022 = vunpack.c.h.b16 %v1093
        %v4023 = vunpack.c.l.b16 %v1094
        %v4024 = vunpack.c.h.b16 %v1094
        %v4025 = vunpack.c.l.b16 %v1095
        %v4026 = vunpack.c.h.b16 %v1095
        %v4027 = vunpack.c.l.b16 %v1096
        %v4028 = vunpack.c.h.b16 %v1096
        %v4029 = vunpack.c.l.b16 %v1097
        %v4030 = vunpack.c.h.b16 %v1097
        %v4031 = vunpack.c.l.b16 %v1098
        %v4032 = vunpack.c.h.b16 %v1098
        %v4033 = vunpack.c.l.b16 %v1099
        %v4034 = vunpack.c.h.b16 %v1099
        %v4035 = vunpack.c.l.b16 %v1100
        %v4036 = vunpack.c.h.b16 %v1100
        %v4037 = vunpack.c.l.b16 %v1101
        %v4038 = vunpack.c.h.b16 %v1101
        %v4039 = vunpack.c.l.b16 %v1102
        %v4040 = vunpack.c.h.b16 %v1102
        %v4041 = vunpack.c.l.b16 %v1103
        %v4042 = vunpack.c.h.b16 %v1103
        %v4043 = vunpack.c.l.b16 %v1104
        %v4044 = vunpack.c.h.b16 %v1104
        %v4045 = vunpack.c.l.b16 %v1105
        %v4046 = vunpack.c.h.b16 %v1105
        %v4047 = vunpack.c.l.b16 %v1106
        %v4048 = vunpack.c.h.b16 %v1106
        %v4049 = vunpack.c.l.b16 %v1107
        %v4050 = vunpack.c.h.b16 %v1107
        %v4051 = vunpack.c.l.b16 %v1108
        %v4052 = vunpack.c.h.b16 %v1108
        %v4053 = vunpack.c.l.b16 %v1109
        %v4054 = vunpack.c.h.b16 %v1109
        %v4055 = vunpack.c.l.b16 %v1110
        %v4056 = vunpack.c.h.b16 %v1110
        %v4057 = vunpack.c.l.b16 %v1111
        %v4058 = vunpack.c.h.b16 %v1111
        %v4059 = vunpack.c.l.b16 %v1112
        %v4060 = vunpack.c.h.b16 %v1112
        %v4061 = vunpack.c.l.b16 %v1113
        %v4062 = vunpack.c.h.b16 %v1113
        %v4063 = vunpack.c.l.b16 %v1114
        %v4064 = vunpack.c.h.b16 %v1114
        %v4065 = vunpack.c.l.b16 %v1115
        %v4066 = vunpack.c.h.b16 %v1115
        %v4067 = vunpack.c.l.b16 %v1116
        %v4068 = vunpack.c.h.b16 %v1116
        %v4069 = vunpack.c.l.b16 %v1117
        %v4070 = vunpack.c.h.b16 %v1117
        %v4071 = vunpack.c.l.b16 %v1118
        %v4072 = vunpack.c.h.b16 %v1118
        %v4073 = vunpack.c.l.b16 %v1119
        %v4074 = vunpack.c.h.b16 %v1119
        %v4075 = vunpack.c.l.b16 %v1120
        %v4076 = vunpack.c.h.b16 %v1120
        %v4077 = vunpack.c.l.b16 %v1121
        %v4078 = vunpack.c.h.b16 %v1121
        %v4079 = vunpack.c.l.b16 %v1122
        %v4080 = vunpack.c.h.b16 %v1122
        %v4081 = vunpack.c.l.b16 %v1123
        %v4082 = vunpack.c.h.b16 %v1123
        %v4083 = vunpack.c.l.b16 %v1124
        %v4084 = vunpack.c.h.b16 %v1124
        %v4085 = vunpack.c.l.b16 %v1125
        %v4086 = vunpack.c.h.b16 %v1125
        %v4087 = vunpack.c.l.b16 %v1126
        %v4088 = vunpack.c.h.b16 %v1126
        %v4089 = vunpack.c.l.b16 %v1127
        %v4090 = vunpack.c.h.b16 %v1127
        %v4091 = vunpack.c.l.b16 %v1128
        %v4092 = vunpack.c.h.b16 %v1128
        %v4093 = vunpack.c.l.b16 %v1129
        %v4094 = vunpack.c.h.b16 %v1129
        %v4095 = vunpack.c.l.b16 %v1130
        %v4096 = vunpack.c.h.b16 %v1130
        %v4097 = vunpack.c.l.b16 %v1131
        %v4098 = vunpack.c.h.b16 %v1131
        %v4099 = vunpack.c.l.b16 %v1132
        %v4100 = vunpack.c.h.b16 %v1132
        %v4101 = vunpack.c.l.b16 %v1133
        %v4102 = vunpack.c.h.b16 %v1133
        %v4103 = vunpack.c.l.b16 %v1134
        %v4104 = vunpack.c.h.b16 %v1134
        %v4105 = vunpack.c.l.b16 %v1135
        %v4106 = vunpack.c.h.b16 %v1135
        %v4107 = vunpack.c.l.b16 %v1136
        %v4108 = vunpack.c.h.b16 %v1136
        %v4109 = vunpack.c.l.b16 %v1137
        %v4110 = vunpack.c.h.b16 %v1137
        %v4111 = vunpack.c.l.b16 %v1138
        %v4112 = vunpack.c.h.b16 %v1138
        %v4113 = vunpack.c.l.b16 %v1139
        %v4114 = vunpack.c.h.b16 %v1139
        %v4115 = vunpack.c.l.b16 %v1140
        %v4116 = vunpack.c.h.b16 %v1140
        %v4117 = vunpack.c.l.b16 %v1141
        %v4118 = vunpack.c.h.b16 %v1141
        %v4119 = vunpack.c.l.b16 %v1142
        %v4120 = vunpack.c.h.b16 %v1142
        %v4121 = vunpack.c.l.b16 %v1143
        %v4122 = vunpack.c.h.b16 %v1143
        %v4123 = vunpack.c.l.b16 %v1144
        %v4124 = vunpack.c.h.b16 %v1144
        %v4125 = vunpack.c.l.b16 %v1145
        %v4126 = vunpack.c.h.b16 %v1145
        %v4127 = vunpack.c.l.b16 %v1146
        %v4128 = vunpack.c.h.b16 %v1146
        %v4129 = vunpack.c.l.b16 %v1147
        %v4130 = vunpack.c.h.b16 %v1147
        %v4131 = vunpack.c.l.b16 %v1148
        %v4132 = vunpack.c.h.b16 %v1148
        %v4133 = vunpack.c.l.b16 %v1149
        %v4134 = vunpack.c.h.b16 %v1149
        %v4135 = vunpack.c.l.b16 %v1150
        %v4136 = vunpack.c.h.b16 %v1150
        %v4137 = vunpack.c.l.b16 %v1151
        %v4138 = vunpack.c.h.b16 %v1151
        %v4139 = vunpack.c.l.b16 %v1152
        %v4140 = vunpack.c.h.b16 %v1152
        %v4141 = vunpack.c.l.b16 %v1153
        %v4142 = vunpack.c.h.b16 %v1153
        %v4143 = vunpack.c.l.b16 %v1154
        %v4144 = vunpack.c.h.b16 %v1154
        %v4145 = vunpack.c.l.b16 %v1155
        %v4146 = vunpack.c.h.b16 %v1155
        %v4147 = vunpack.c.l.b16 %v1156
        %v4148 = vunpack.c.h.b16 %v1156
        %v4149 = vunpack.c.l.b16 %v1157
        %v4150 = vunpack.c.h.b16 %v1157
        %v4151 = vunpack.c.l.b16 %v1158
        %v4152 = vunpack.c.h.b16 %v1158
        %v4153 = vunpack.c.l.b16 %v1159
        %v4154 = vunpack.c.h.b16 %v1159
        %v4155 = vunpack.c.l.b16 %v1160
        %v4156 = vunpack.c.h.b16 %v1160
        %v4157 = vunpack.c.l.b16 %v1161
        %v4158 = vunpack.c.h.b16 %v1161
        %v4159 = vunpack.c.l.b16 %v1162
        %v4160 = vunpack.c.h.b16 %v1162
        %v4161 = vunpack.c.l.b16 %v1163
        %v4162 = vunpack.c.h.b16 %v1163
        %v4163 = vunpack.c.l.b16 %v1164
        %v4164 = vunpack.c.h.b16 %v1164
        %v4165 = vunpack.c.l.b16 %v1165
        %v4166 = vunpack.c.h.b16 %v1165
        %v4167 = vunpack.c.l.b16 %v1166
        %v4168 = vunpack.c.h.b16 %v1166
        %v4169 = vunpack.c.l.b16 %v1167
        %v4170 = vunpack.c.h.b16 %v1167
        %v4171 = vunpack.c.l.b16 %v1168
        %v4172 = vunpack.c.h.b16 %v1168
        %v4173 = vunpack.c.l.b16 %v1169
        %v4174 = vunpack.c.h.b16 %v1169
        %v4175 = vunpack.c.l.b16 %v1170
        %v4176 = vunpack.c.h.b16 %v1170
        %v4177 = vunpack.c.l.b16 %v1171
        %v4178 = vunpack.c.h.b16 %v1171
        %v4179 = vunpack.c.l.b16 %v1172
        %v4180 = vunpack.c.h.b16 %v1172
        %v4181 = vunpack.c.l.b16 %v1173
        %v4182 = vunpack.c.h.b16 %v1173
        %v4183 = vunpack.c.l.b16 %v1174
        %v4184 = vunpack.c.h.b16 %v1174
        %v4185 = vunpack.c.l.b16 %v1175
        %v4186 = vunpack.c.h.b16 %v1175
        %v4187 = vunpack.c.l.b16 %v1176
        %v4188 = vunpack.c.h.b16 %v1176
        %v4189 = vunpack.c.l.b16 %v1177
        %v4190 = vunpack.c.h.b16 %v1177
        %v4191 = vunpack.c.l.b16 %v1178
        %v4192 = vunpack.c.h.b16 %v1178
        %v4193 = vunpack.c.l.b16 %v1179
        %v4194 = vunpack.c.h.b16 %v1179
        %v4195 = vunpack.c.l.b16 %v1180
        %v4196 = vunpack.c.h.b16 %v1180
        %v4197 = vunpack.c.l.b16 %v1181
        %v4198 = vunpack.c.h.b16 %v1181
        %v4199 = vunpack.c.l.b16 %v1182
        %v4200 = vunpack.c.h.b16 %v1182
        %v4201 = vunpack.c.l.b16 %v1183
        %v4202 = vunpack.c.h.b16 %v1183
        %v4203 = vunpack.c.l.b16 %v1184
        %v4204 = vunpack.c.h.b16 %v1184
        %v4205 = vunpack.c.l.b16 %v1185
        %v4206 = vunpack.c.h.b16 %v1185
        %v4207 = vunpack.c.l.b16 %v1186
        %v4208 = vunpack.c.h.b16 %v1186
        %v4209 = vunpack.c.l.b16 %v1187
        %v4210 = vunpack.c.h.b16 %v1187
        %v4211 = vunpack.c.l.b16 %v1188
        %v4212 = vunpack.c.h.b16 %v1188
        %v4213 = vunpack.c.l.b16 %v1189
        %v4214 = vunpack.c.h.b16 %v1189
        %v4215 = vunpack.c.l.b16 %v1190
        %v4216 = vunpack.c.h.b16 %v1190
        %v4217 = vunpack.c.l.b16 %v1191
        %v4218 = vunpack.c.h.b16 %v1191
        %v4219 = vunpack.c.l.b16 %v1192
        %v4220 = vunpack.c.h.b16 %v1192
        %v4221 = vunpack.c.l.b16 %v1193
        %v4222 = vunpack.c.h.b16 %v1193
        %v4223 = vunpack.c.l.b16 %v1194
        %v4224 = vunpack.c.h.b16 %v1194
        %v4225 = vunpack.c.l.b16 %v1195
        %v4226 = vunpack.c.h.b16 %v1195
        %v4227 = vunpack.c.l.b16 %v1196
        %v4228 = vunpack.c.h.b16 %v1196
        %v4229 = vunpack.c.l.b16 %v1197
        %v4230 = vunpack.c.h.b16 %v1197
        %v4231 = vunpack.c.l.b16 %v1198
        %v4232 = vunpack.c.h.b16 %v1198
        %v4233 = vunpack.c.l.b16 %v1199
        %v4234 = vunpack.c.h.b16 %v1199
        %v4235 = vunpack.c.l.b16 %v1200
        %v4236 = vunpack.c.h.b16 %v1200
        %v4237 = vunpack.c.l.b16 %v1201
        %v4238 = vunpack.c.h.b16 %v1201
        %v4239 = vunpack.c.l.b16 %v1202
        %v4240 = vunpack.c.h.b16 %v1202
        %v4241 = vunpack.c.l.b16 %v1203
        %v4242 = vunpack.c.h.b16 %v1203
        %v4243 = vunpack.c.l.b16 %v1204
        %v4244 = vunpack.c.h.b16 %v1204
        %v4245 = vunpack.c.l.b16 %v1205
        %v4246 = vunpack.c.h.b16 %v1205
        %v4247 = vunpack.c.l.b16 %v1206
        %v4248 = vunpack.c.h.b16 %v1206
        %v4249 = vunpack.c.l.b16 %v1207
        %v4250 = vunpack.c.h.b16 %v1207
        %v4251 = vunpack.c.l.b16 %v1208
        %v4252 = vunpack.c.h.b16 %v1208
        %v4253 = vunpack.c.l.b16 %v1209
        %v4254 = vunpack.c.h.b16 %v1209
        %v4255 = vunpack.c.l.b16 %v1210
        %v4256 = vunpack.c.h.b16 %v1210
        %v4257 = vunpack.c.l.b16 %v1211
        %v4258 = vunpack.c.h.b16 %v1211
        %v4259 = vunpack.c.l.b16 %v1212
        %v4260 = vunpack.c.h.b16 %v1212
        %v4261 = vunpack.c.l.b16 %v1213
        %v4262 = vunpack.c.h.b16 %v1213
        %v4263 = vunpack.c.l.b16 %v1214
        %v4264 = vunpack.c.h.b16 %v1214
        %v4265 = vunpack.c.l.b16 %v1215
        %v4266 = vunpack.c.h.b16 %v1215
        %v4267 = vunpack.c.l.b16 %v1216
        %v4268 = vunpack.c.h.b16 %v1216
        %v4269 = vunpack.c.l.b16 %v1217
        %v4270 = vunpack.c.h.b16 %v1217
        %v4271 = vunpack.c.l.b16 %v1218
        %v4272 = vunpack.c.h.b16 %v1218
        %v4273 = vunpack.c.l.b16 %v1219
        %v4274 = vunpack.c.h.b16 %v1219
        %v4275 = vunpack.c.l.b16 %v1220
        %v4276 = vunpack.c.h.b16 %v1220
        %v4277 = vunpack.c.l.b16 %v1221
        %v4278 = vunpack.c.h.b16 %v1221
        %v4279 = vunpack.c.l.b16 %v1222
        %v4280 = vunpack.c.h.b16 %v1222
        %v4281 = vunpack.c.l.b16 %v1223
        %v4282 = vunpack.c.h.b16 %v1223
        %v4283 = vunpack.c.l.b16 %v1224
        %v4284 = vunpack.c.h.b16 %v1224
        %v4285 = vunpack.c.l.b16 %v1225
        %v4286 = vunpack.c.h.b16 %v1225
        %v4287 = vunpack.c.l.b16 %v1226
        %v4288 = vunpack.c.h.b16 %v1226
        %v4289 = vunpack.c.l.b16 %v1227
        %v4290 = vunpack.c.h.b16 %v1227
        %v4291 = vunpack.c.l.b16 %v1228
        %v4292 = vunpack.c.h.b16 %v1228
        %v4293 = vunpack.c.l.b16 %v1229
        %v4294 = vunpack.c.h.b16 %v1229
        %v4295 = vunpack.c.l.b16 %v1230
        %v4296 = vunpack.c.h.b16 %v1230
        %v4297 = vunpack.c.l.b16 %v1231
        %v4298 = vunpack.c.h.b16 %v1231
        %v4299 = vunpack.c.l.b16 %v1232
        %v4300 = vunpack.c.h.b16 %v1232
        %v4301 = vunpack.c.l.b16 %v1233
        %v4302 = vunpack.c.h.b16 %v1233
        %v4303 = vunpack.c.l.b16 %v1234
        %v4304 = vunpack.c.h.b16 %v1234
        %v4305 = vunpack.c.l.b16 %v1235
        %v4306 = vunpack.c.h.b16 %v1235
        %v4307 = vunpack.c.l.b16 %v1236
        %v4308 = vunpack.c.h.b16 %v1236
        %v4309 = vunpack.c.l.b16 %v1237
        %v4310 = vunpack.c.h.b16 %v1237
        %v4311 = vunpack.c.l.b16 %v1238
        %v4312 = vunpack.c.h.b16 %v1238
        %v4313 = vunpack.c.l.b16 %v1239
        %v4314 = vunpack.c.h.b16 %v1239
        %v4315 = vunpack.c.l.b16 %v1240
        %v4316 = vunpack.c.h.b16 %v1240
        %v4317 = vunpack.c.l.b16 %v1241
        %v4318 = vunpack.c.h.b16 %v1241
        %v4319 = vunpack.c.l.b16 %v1242
        %v4320 = vunpack.c.h.b16 %v1242
        %v4321 = vunpack.c.l.b16 %v1243
        %v4322 = vunpack.c.h.b16 %v1243
        %v4323 = vunpack.c.l.b16 %v1244
        %v4324 = vunpack.c.h.b16 %v1244
        %v4325 = vunpack.c.l.b16 %v1245
        %v4326 = vunpack.c.h.b16 %v1245
        %v4327 = vunpack.c.l.b16 %v1246
        %v4328 = vunpack.c.h.b16 %v1246
        %v4329 = vunpack.c.l.b16 %v1247
        %v4330 = vunpack.c.h.b16 %v1247
        %v4331 = vunpack.c.l.b16 %v1248
        %v4332 = vunpack.c.h.b16 %v1248
        %v4333 = vunpack.c.l.b16 %v1249
        %v4334 = vunpack.c.h.b16 %v1249
        %v4335 = vunpack.c.l.b16 %v1250
        %v4336 = vunpack.c.h.b16 %v1250
        %v4337 = vunpack.c.l.b16 %v1251
        %v4338 = vunpack.c.h.b16 %v1251
        %v4339 = vunpack.c.l.b16 %v1252
        %v4340 = vunpack.c.h.b16 %v1252
        %v4341 = vunpack.c.l.b16 %v1253
        %v4342 = vunpack.c.h.b16 %v1253
        %v4343 = vunpack.c.l.b16 %v1254
        %v4344 = vunpack.c.h.b16 %v1254
        %v4345 = vunpack.c.l.b16 %v1255
        %v4346 = vunpack.c.h.b16 %v1255
        %v4347 = vunpack.c.l.b16 %v1256
        %v4348 = vunpack.c.h.b16 %v1256
        %v4349 = vunpack.c.l.b16 %v1257
        %v4350 = vunpack.c.h.b16 %v1257
        %v4351 = vunpack.c.l.b16 %v1258
        %v4352 = vunpack.c.h.b16 %v1258
        %v4353 = vunpack.c.l.b16 %v1259
        %v4354 = vunpack.c.h.b16 %v1259
        %v4355 = vunpack.c.l.b16 %v1260
        %v4356 = vunpack.c.h.b16 %v1260
        %v4357 = vunpack.c.l.b16 %v1261
        %v4358 = vunpack.c.h.b16 %v1261
        %v4359 = vunpack.c.l.b16 %v1262
        %v4360 = vunpack.c.h.b16 %v1262
        %v4361 = vunpack.c.l.b16 %v1263
        %v4362 = vunpack.c.h.b16 %v1263
        %v4363 = vunpack.c.l.b16 %v1264
        %v4364 = vunpack.c.h.b16 %v1264
        %v4365 = vunpack.c.l.b16 %v1265
        %v4366 = vunpack.c.h.b16 %v1265
        %v4367 = vunpack.c.l.b16 %v1266
        %v4368 = vunpack.c.h.b16 %v1266
        %v4369 = vunpack.c.l.b16 %v1267
        %v4370 = vunpack.c.h.b16 %v1267
        %v4371 = vunpack.c.l.b16 %v1268
        %v4372 = vunpack.c.h.b16 %v1268
        %v4373 = vunpack.c.l.b16 %v1269
        %v4374 = vunpack.c.h.b16 %v1269
        %v4375 = vunpack.c.l.b16 %v1270
        %v4376 = vunpack.c.h.b16 %v1270
        %v4377 = vunpack.c.l.b16 %v1271
        %v4378 = vunpack.c.h.b16 %v1271
        %v4379 = vunpack.c.l.b16 %v1272
        %v4380 = vunpack.c.h.b16 %v1272
        %v4381 = vunpack.c.l.b16 %v1273
        %v4382 = vunpack.c.h.b16 %v1273
        %v4383 = vunpack.c.l.b16 %v1274
        %v4384 = vunpack.c.h.b16 %v1274
        %v4385 = vunpack.c.l.b16 %v1275
        %v4386 = vunpack.c.h.b16 %v1275
        %v4387 = vunpack.c.l.b16 %v1276
        %v4388 = vunpack.c.h.b16 %v1276
        %v4389 = vunpack.c.l.b16 %v1277
        %v4390 = vunpack.c.h.b16 %v1277
        %v4391 = vunpack.c.l.b16 %v1278
        %v4392 = vunpack.c.h.b16 %v1278
        %v4393 = vunpack.c.l.b16 %v1279
        %v4394 = vunpack.c.h.b16 %v1279
        %v4395 = vunpack.c.l.b16 %v1280
        %v4396 = vunpack.c.h.b16 %v1280
        %v4397 = vunpack.c.l.b16 %v1281
        %v4398 = vunpack.c.h.b16 %v1281
        %v4399 = vunpack.c.l.b16 %v1282
        %v4400 = vunpack.c.h.b16 %v1282
        %v4401 = vunpack.c.l.b16 %v1283
        %v4402 = vunpack.c.h.b16 %v1283
        %v4403 = vunpack.c.l.b16 %v1284
        %v4404 = vunpack.c.h.b16 %v1284
        %v4405 = vunpack.c.l.b16 %v1285
        %v4406 = vunpack.c.h.b16 %v1285
        %v4407 = vunpack.c.l.b16 %v1286
        %v4408 = vunpack.c.h.b16 %v1286
        %v4409 = vunpack.c.l.b16 %v1287
        %v4410 = vunpack.c.h.b16 %v1287
        %v4411 = vunpack.c.l.b16 %v1288
        %v4412 = vunpack.c.h.b16 %v1288
        %v4413 = vunpack.c.l.b16 %v1289
        %v4414 = vunpack.c.h.b16 %v1289
        %v4415 = vunpack.c.l.b16 %v1290
        %v4416 = vunpack.c.h.b16 %v1290
        %v4417 = vunpack.c.l.b16 %v1291
        %v4418 = vunpack.c.h.b16 %v1291
        %v4419 = vunpack.c.l.b16 %v1292
        %v4420 = vunpack.c.h.b16 %v1292
        %v4421 = vunpack.c.l.b16 %v1293
        %v4422 = vunpack.c.h.b16 %v1293
        %v4423 = vunpack.c.l.b16 %v1294
        %v4424 = vunpack.c.h.b16 %v1294
        %v4425 = vunpack.c.l.b16 %v1295
        %v4426 = vunpack.c.h.b16 %v1295
        %v4427 = vunpack.c.l.b16 %v1296
        %v4428 = vunpack.c.h.b16 %v1296
        %v4429 = vunpack.c.l.b16 %v1297
        %v4430 = vunpack.c.h.b16 %v1297
        %v4431 = vunpack.c.l.b16 %v1298
        %v4432 = vunpack.c.h.b16 %v1298
        %v4433 = vunpack.c.l.b16 %v1299
        %v4434 = vunpack.c.h.b16 %v1299
        %v4435 = vunpack.c.l.b16 %v1300
        %v4436 = vunpack.c.h.b16 %v1300
        %v4437 = vunpack.c.l.b16 %v1301
        %v4438 = vunpack.c.h.b16 %v1301
        %v4439 = vunpack.c.l.b16 %v1302
        %v4440 = vunpack.c.h.b16 %v1302
        %v4441 = vunpack.c.l.b16 %v1303
        %v4442 = vunpack.c.h.b16 %v1303
        %v4443 = vunpack.c.l.b16 %v1304
        %v4444 = vunpack.c.h.b16 %v1304
        %v4445 = vunpack.c.l.b16 %v1305
        %v4446 = vunpack.c.h.b16 %v1305
        %v4447 = vunpack.c.l.b16 %v1306
        %v4448 = vunpack.c.h.b16 %v1306
        %v4449 = vunpack.c.l.b16 %v1307
        %v4450 = vunpack.c.h.b16 %v1307
        %v4451 = vunpack.c.l.b16 %v1308
        %v4452 = vunpack.c.h.b16 %v1308
        %v4453 = vunpack.c.l.b16 %v1309
        %v4454 = vunpack.c.h.b16 %v1309
        %v4455 = vunpack.c.l.b16 %v1310
        %v4456 = vunpack.c.h.b16 %v1310
        %v4457 = vunpack.c.l.b16 %v1311
        %v4458 = vunpack.c.h.b16 %v1311
        %v4459 = vunpack.c.l.b16 %v1312
        %v4460 = vunpack.c.h.b16 %v1312
        %v4461 = vunpack.c.l.b16 %v1313
        %v4462 = vunpack.c.h.b16 %v1313
        %v4463 = vunpack.c.l.b16 %v1314
        %v4464 = vunpack.c.h.b16 %v1314
        %v4465 = vunpack.c.l.b16 %v1315
        %v4466 = vunpack.c.h.b16 %v1315
        %v4467 = vunpack.c.l.b16 %v1316
        %v4468 = vunpack.c.h.b16 %v1316
        %v4469 = vunpack.c.l.b16 %v1317
        %v4470 = vunpack.c.h.b16 %v1317
        %v4471 = vunpack.c.l.b16 %v1318
        %v4472 = vunpack.c.h.b16 %v1318
        %v4473 = vunpack.c.l.b16 %v1319
        %v4474 = vunpack.c.h.b16 %v1319
        %v4475 = vunpack.c.l.b16 %v1320
        %v4476 = vunpack.c.h.b16 %v1320
        %v4477 = vunpack.c.l.b16 %v1321
        %v4478 = vunpack.c.h.b16 %v1321
        %v4479 = vunpack.c.l.b16 %v1322
        %v4480 = vunpack.c.h.b16 %v1322
        %v4481 = vunpack.c.l.b16 %v1323
        %v4482 = vunpack.c.h.b16 %v1323
        %v4483 = vunpack.c.l.b16 %v1324
        %v4484 = vunpack.c.h.b16 %v1324
        %v4485 = vunpack.c.l.b16 %v1325
        %v4486 = vunpack.c.h.b16 %v1325
        %v4487 = vunpack.c.l.b16 %v1326
        %v4488 = vunpack.c.h.b16 %v1326
        %v4489 = vunpack.c.l.b16 %v1327
        %v4490 = vunpack.c.h.b16 %v1327
        %v4491 = vunpack.c.l.b16 %v1328
        %v4492 = vunpack.c.h.b16 %v1328
        %v4493 = vunpack.c.l.b16 %v1329
        %v4494 = vunpack.c.h.b16 %v1329
        %v4495 = vunpack.c.l.b16 %v1330
        %v4496 = vunpack.c.h.b16 %v1330
        %v4497 = vunpack.c.l.b16 %v1331
        %v4498 = vunpack.c.h.b16 %v1331
        %v4499 = vunpack.c.l.b16 %v1332
        %v4500 = vunpack.c.h.b16 %v1332
        %v4501 = vunpack.c.l.b16 %v1333
        %v4502 = vunpack.c.h.b16 %v1333
        %v4503 = vunpack.c.l.b16 %v1334
        %v4504 = vunpack.c.h.b16 %v1334
        %v4505 = vunpack.c.l.b16 %v1335
        %v4506 = vunpack.c.h.b16 %v1335
        %v4507 = vunpack.c.l.b16 %v1336
        %v4508 = vunpack.c.h.b16 %v1336
        %v4509 = vunpack.c.l.b16 %v1337
        %v4510 = vunpack.c.h.b16 %v1337
        %v4511 = vunpack.c.l.b16 %v1338
        %v4512 = vunpack.c.h.b16 %v1338
        %v4513 = vunpack.c.l.b16 %v1339
        %v4514 = vunpack.c.h.b16 %v1339
        %v4515 = vunpack.c.l.b16 %v1340
        %v4516 = vunpack.c.h.b16 %v1340
        %v4517 = vunpack.c.l.b16 %v1341
        %v4518 = vunpack.c.h.b16 %v1341
        %v4519 = vunpack.c.l.b16 %v1342
        %v4520 = vunpack.c.h.b16 %v1342
        %v4521 = vunpack.c.l.b16 %v1343
        %v4522 = vunpack.c.h.b16 %v1343
        %v4523 = vunpack.c.l.b16 %v1344
        %v4524 = vunpack.c.h.b16 %v1344
        %v4525 = vunpack.c.l.b16 %v1345
        %v4526 = vunpack.c.h.b16 %v1345
        %v4527 = vunpack.c.l.b16 %v1346
        %v4528 = vunpack.c.h.b16 %v1346
        %v4529 = vunpack.c.l.b16 %v1347
        %v4530 = vunpack.c.h.b16 %v1347
        %v4531 = vunpack.c.l.b16 %v1348
        %v4532 = vunpack.c.h.b16 %v1348
        %v4533 = vunpack.c.l.b16 %v1349
        %v4534 = vunpack.c.h.b16 %v1349
        %v4535 = vunpack.c.l.b16 %v1350
        %v4536 = vunpack.c.h.b16 %v1350
        %v4537 = vunpack.c.l.b16 %v1351
        %v4538 = vunpack.c.h.b16 %v1351
        %v4539 = vunpack.c.l.b16 %v1352
        %v4540 = vunpack.c.h.b16 %v1352
        %v4541 = vunpack.c.l.b16 %v1353
        %v4542 = vunpack.c.h.b16 %v1353
        %v4543 = vunpack.c.l.b16 %v1354
        %v4544 = vunpack.c.h.b16 %v1354
        %v4545 = vunpack.c.l.b16 %v1355
        %v4546 = vunpack.c.h.b16 %v1355
        %v4547 = vunpack.c.l.b16 %v1356
        %v4548 = vunpack.c.h.b16 %v1356
        %v4549 = vunpack.c.l.b16 %v1357
        %v4550 = vunpack.c.h.b16 %v1357
        %v4551 = vunpack.c.l.b16 %v1358
        %v4552 = vunpack.c.h.b16 %v1358
        %v4553 = vunpack.c.l.b16 %v1359
        %v4554 = vunpack.c.h.b16 %v1359
        %v4555 = vunpack.c.l.b16 %v1360
        %v4556 = vunpack.c.h.b16 %v1360
        %v4557 = vunpack.c.l.b16 %v1361
        %v4558 = vunpack.c.h.b16 %v1361
        %v4559 = vunpack.c.l.b16 %v1362
        %v4560 = vunpack.c.h.b16 %v1362
        %v4561 = vunpack.c.l.b16 %v1363
        %v4562 = vunpack.c.h.b16 %v1363
        %v4563 = vunpack.c.l.b16 %v1364
        %v4564 = vunpack.c.h.b16 %v1364
        %v4565 = vunpack.c.l.b16 %v1365
        %v4566 = vunpack.c.h.b16 %v1365
        %v4567 = vunpack.c.l.b16 %v1366
        %v4568 = vunpack.c.h.b16 %v1366
        %v4569 = vunpack.c.l.b16 %v1367
        %v4570 = vunpack.c.h.b16 %v1367
        %v4571 = vunpack.c.l.b16 %v1368
        %v4572 = vunpack.c.h.b16 %v1368
        %v4573 = vunpack.c.l.b16 %v1369
        %v4574 = vunpack.c.h.b16 %v1369
        %v4575 = vunpack.c.l.b16 %v1370
        %v4576 = vunpack.c.h.b16 %v1370
        %v4577 = vunpack.c.l.b16 %v1371
        %v4578 = vunpack.c.h.b16 %v1371
        %v4579 = vunpack.c.l.b16 %v1372
        %v4580 = vunpack.c.h.b16 %v1372
        %v4581 = vunpack.c.l.b16 %v1373
        %v4582 = vunpack.c.h.b16 %v1373
        %v4583 = vunpack.c.l.b16 %v1374
        %v4584 = vunpack.c.h.b16 %v1374
        %v4585 = vunpack.c.l.b16 %v1375
        %v4586 = vunpack.c.h.b16 %v1375
        %v4587 = vunpack.c.l.b16 %v1376
        %v4588 = vunpack.c.h.b16 %v1376
        %v4589 = vunpack.c.l.b16 %v1377
        %v4590 = vunpack.c.h.b16 %v1377
        %v4591 = vunpack.c.l.b16 %v1378
        %v4592 = vunpack.c.h.b16 %v1378
        %v4593 = vunpack.c.l.b16 %v1379
        %v4594 = vunpack.c.h.b16 %v1379
        %v4595 = vunpack.c.l.b16 %v1380
        %v4596 = vunpack.c.h.b16 %v1380
        %v4597 = vunpack.c.l.b16 %v1381
        %v4598 = vunpack.c.h.b16 %v1381
        %v4599 = vunpack.c.l.b16 %v1382
        %v4600 = vunpack.c.h.b16 %v1382
        %v4601 = vunpack.c.l.b16 %v1383
        %v4602 = vunpack.c.h.b16 %v1383
        %v4603 = vunpack.c.l.b16 %v1384
        %v4604 = vunpack.c.h.b16 %v1384
        %v4605 = vunpack.c.l.b16 %v1385
        %v4606 = vunpack.c.h.b16 %v1385
        %v4607 = vunpack.c.l.b16 %v1386
        %v4608 = vunpack.c.h.b16 %v1386
        %v4609 = vunpack.c.l.b16 %v1387
        %v4610 = vunpack.c.h.b16 %v1387
        %v4611 = vunpack.c.l.b16 %v1388
        %v4612 = vunpack.c.h.b16 %v1388
        %v4613 = vunpack.c.l.b16 %v1389
        %v4614 = vunpack.c.h.b16 %v1389
        %v4615 = vunpack.c.l.b16 %v1390
        %v4616 = vunpack.c.h.b16 %v1390
        %v4617 = vunpack.c.l.b16 %v1391
        %v4618 = vunpack.c.h.b16 %v1391
        %v4619 = vunpack.c.l.b16 %v1392
        %v4620 = vunpack.c.h.b16 %v1392
        %v4621 = vunpack.c.l.b16 %v1393
        %v4622 = vunpack.c.h.b16 %v1393
        %v4623 = vunpack.c.l.b16 %v1394
        %v4624 = vunpack.c.h.b16 %v1394
        %v4625 = vunpack.c.l.b16 %v1395
        %v4626 = vunpack.c.h.b16 %v1395
        %v4627 = vunpack.c.l.b16 %v1396
        %v4628 = vunpack.c.h.b16 %v1396
        %v4629 = vunpack.c.l.b16 %v1397
        %v4630 = vunpack.c.h.b16 %v1397
        %v4631 = vunpack.c.l.b16 %v1398
        %v4632 = vunpack.c.h.b16 %v1398
        %v4633 = vunpack.c.l.b16 %v1399
        %v4634 = vunpack.c.h.b16 %v1399
        %v4635 = vunpack.c.l.b16 %v1400
        %v4636 = vunpack.c.h.b16 %v1400
        %v4637 = vunpack.c.l.b16 %v1401
        %v4638 = vunpack.c.h.b16 %v1401
        %v4639 = vunpack.c.l.b16 %v1402
        %v4640 = vunpack.c.h.b16 %v1402
        %v4641 = vunpack.c.l.b16 %v1403
        %v4642 = vunpack.c.h.b16 %v1403
        %v4643 = vunpack.c.l.b16 %v1404
        %v4644 = vunpack.c.h.b16 %v1404
        %v4645 = vunpack.c.l.b16 %v1405
        %v4646 = vunpack.c.h.b16 %v1405
        %v4647 = vunpack.c.l.b16 %v1406
        %v4648 = vunpack.c.h.b16 %v1406
        %v4649 = vunpack.c.l.b16 %v1407
        %v4650 = vunpack.c.h.b16 %v1407
        %v4651 = vunpack.c.l.b16 %v1408
        %v4652 = vunpack.c.h.b16 %v1408
        %v4653 = vunpack.c.l.b16 %v1409
        %v4654 = vunpack.c.h.b16 %v1409
        %v4655 = vunpack.c.l.b16 %v1410
        %v4656 = vunpack.c.h.b16 %v1410
        %v4657 = vunpack.c.l.b16 %v1411
        %v4658 = vunpack.c.h.b16 %v1411
        %v4659 = vunpack.c.l.b16 %v1412
        %v4660 = vunpack.c.h.b16 %v1412
        %v4661 = vunpack.c.l.b16 %v1413
        %v4662 = vunpack.c.h.b16 %v1413
        %v4663 = vunpack.c.l.b16 %v1414
        %v4664 = vunpack.c.h.b16 %v1414
        %v4665 = vunpack.c.l.b16 %v1415
        %v4666 = vunpack.c.h.b16 %v1415
        %v4667 = vunpack.c.l.b16 %v1416
        %v4668 = vunpack.c.h.b16 %v1416
        %v4669 = vunpack.c.l.b16 %v1417
        %v4670 = vunpack.c.h.b16 %v1417
        %v4671 = vunpack.c.l.b16 %v1418
        %v4672 = vunpack.c.h.b16 %v1418
        %v4673 = vunpack.c.l.b16 %v1419
        %v4674 = vunpack.c.h.b16 %v1419
        %v4675 = vunpack.c.l.b16 %v1420
        %v4676 = vunpack.c.h.b16 %v1420
        %v4677 = vunpack.c.l.b16 %v1421
        %v4678 = vunpack.c.h.b16 %v1421
        %v4679 = vunpack.c.l.b16 %v1422
        %v4680 = vunpack.c.h.b16 %v1422
        %v4681 = vunpack.c.l.b16 %v1423
        %v4682 = vunpack.c.h.b16 %v1423
        %v4683 = vunpack.c.l.b16 %v1424
        %v4684 = vunpack.c.h.b16 %v1424
        %v4685 = vunpack.c.l.b16 %v1425
        %v4686 = vunpack.c.h.b16 %v1425
        %v4687 = vunpack.c.l.b16 %v1426
        %v4688 = vunpack.c.h.b16 %v1426
        %v4689 = vunpack.c.l.b16 %v1427
        %v4690 = vunpack.c.h.b16 %v1427
        %v4691 = vunpack.c.l.b16 %v1428
        %v4692 = vunpack.c.h.b16 %v1428
        %v4693 = vunpack.c.l.b16 %v1429
        %v4694 = vunpack.c.h.b16 %v1429
        %v4695 = vunpack.c.l.b16 %v1430
        %v4696 = vunpack.c.h.b16 %v1430
        %v4697 = vunpack.c.l.b16 %v1431
        %v4698 = vunpack.c.h.b16 %v1431
        %v4699 = vunpack.c.l.b16 %v1432
        %v4700 = vunpack.c.h.b16 %v1432
        %v4701 = vunpack.c.l.b16 %v1433
        %v4702 = vunpack.c.h.b16 %v1433
        %v4703 = vunpack.c.l.b16 %v1434
        %v4704 = vunpack.c.h.b16 %v1434
        %v4705 = vunpack.c.l.b16 %v1435
        %v4706 = vunpack.c.h.b16 %v1435
        %v4707 = vunpack.c.l.b16 %v1436
        %v4708 = vunpack.c.h.b16 %v1436
        %v4709 = vunpack.c.l.b16 %v1437
        %v4710 = vunpack.c.h.b16 %v1437
        %v4711 = vunpack.c.l.b16 %v1438
        %v4712 = vunpack.c.h.b16 %v1438
        %v4713 = vunpack.c.l.b16 %v1439
        %v4714 = vunpack.c.h.b16 %v1439
        %v4715 = vunpack.c.l.b16 %v1440
        %v4716 = vunpack.c.h.b16 %v1440
        %v4717 = vunpack.c.l.b16 %v1441
        %v4718 = vunpack.c.h.b16 %v1441
        %v4719 = vunpack.c.l.b16 %v1442
        %v4720 = vunpack.c.h.b16 %v1442
        %v4721 = vunpack.c.l.b16 %v1443
        %v4722 = vunpack.c.h.b16 %v1443
        %v4723 = vunpack.c.l.b16 %v1444
        %v4724 = vunpack.c.h.b16 %v1444
        %v4725 = vunpack.c.l.b16 %v1445
        %v4726 = vunpack.c.h.b16 %v1445
        %v4727 = vunpack.c.l.b16 %v1446
        %v4728 = vunpack.c.h.b16 %v1446
        %v4729 = vunpack.c.l.b16 %v1447
        %v4730 = vunpack.c.h.b16 %v1447
        %v4731 = vunpack.c.l.b16 %v1448
        %v4732 = vunpack.c.h.b16 %v1448
        %v4733 = vunpack.c.l.b16 %v1449
        %v4734 = vunpack.c.h.b16 %v1449
        %v4735 = vunpack.c.l.b16 %v1450
        %v4736 = vunpack.c.h.b16 %v1450
        %v4737 = vunpack.c.l.b16 %v1451
        %v4738 = vunpack.c.h.b16 %v1451
        %v4739 = vunpack.c.l.b16 %v1452
        %v4740 = vunpack.c.h.b16 %v1452
        %v4741 = vunpack.c.l.b16 %v1453
        %v4742 = vunpack.c.h.b16 %v1453
        %v4743 = vunpack.c.l.b16 %v1454
        %v4744 = vunpack.c.h.b16 %v1454
        %v4745 = vunpack.c.l.b16 %v1455
        %v4746 = vunpack.c.h.b16 %v1455
        %v4747 = vunpack.c.l.b16 %v1456
        %v4748 = vunpack.c.h.b16 %v1456
        %v4749 = vunpack.c.l.b16 %v1457
        %v4750 = vunpack.c.h.b16 %v1457
        %v4751 = vunpack.c.l.b16 %v1458
        %v4752 = vunpack.c.h.b16 %v1458
        %v4753 = vunpack.c.l.b16 %v1459
        %v4754 = vunpack.c.h.b16 %v1459
        %v4755 = vunpack.c.l.b16 %v1460
        %v4756 = vunpack.c.h.b16 %v1460
        %v4757 = vunpack.c.l.b16 %v1461
        %v4758 = vunpack.c.h.b16 %v1461
        %v4759 = vunpack.c.l.b16 %v1462
        %v4760 = vunpack.c.h.b16 %v1462
        %v4761 = vunpack.c.l.b16 %v1463
        %v4762 = vunpack.c.h.b16 %v1463
        %v4763 = vunpack.c.l.b16 %v1464
        %v4764 = vunpack.c.h.b16 %v1464
        %v4765 = vunpack.c.l.b16 %v1465
        %v4766 = vunpack.c.h.b16 %v1465
        %v4767 = vunpack.c.l.b16 %v1466
        %v4768 = vunpack.c.h.b16 %v1466
        %v4769 = vunpack.c.l.b16 %v1467
        %v4770 = vunpack.c.h.b16 %v1467
        %v4771 = vunpack.c.l.b16 %v1468
        %v4772 = vunpack.c.h.b16 %v1468
        %v4773 = vunpack.c.l.b16 %v1469
        %v4774 = vunpack.c.h.b16 %v1469
        %v4775 = vunpack.c.l.b16 %v1470
        %v4776 = vunpack.c.h.b16 %v1470
        %v4777 = vunpack.c.l.b16 %v1471
        %v4778 = vunpack.c.h.b16 %v1471
        %v4779 = vunpack.c.l.b16 %v1472
        %v4780 = vunpack.c.h.b16 %v1472
        %v4781 = vunpack.c.l.b16 %v1473
        %v4782 = vunpack.c.h.b16 %v1473
        %v4783 = vunpack.c.l.b16 %v1474
        %v4784 = vunpack.c.h.b16 %v1474
        %v4785 = vunpack.c.l.b16 %v1475
        %v4786 = vunpack.c.h.b16 %v1475
        %v4787 = vunpack.c.l.b16 %v1476
        %v4788 = vunpack.c.h.b16 %v1476
        %v4789 = vunpack.c.l.b16 %v1477
        %v4790 = vunpack.c.h.b16 %v1477
        %v4791 = vunpack.c.l.b16 %v1478
        %v4792 = vunpack.c.h.b16 %v1478
        %v4793 = vunpack.c.l.b16 %v1479
        %v4794 = vunpack.c.h.b16 %v1479
        %v4795 = vunpack.c.l.b16 %v1480
        %v4796 = vunpack.c.h.b16 %v1480
        %v4797 = vunpack.c.l.b16 %v1481
        %v4798 = vunpack.c.h.b16 %v1481
        %v4799 = vunpack.c.l.b16 %v1482
        %v4800 = vunpack.c.h.b16 %v1482
        %v4801 = vunpack.c.l.b16 %v1483
        %v4802 = vunpack.c.h.b16 %v1483
        %v4803 = vunpack.c.l.b16 %v1484
        %v4804 = vunpack.c.h.b16 %v1484
        %v4805 = vunpack.c.l.b16 %v1485
        %v4806 = vunpack.c.h.b16 %v1485
        %v4807 = vunpack.c.l.b16 %v1486
        %v4808 = vunpack.c.h.b16 %v1486
        %v4809 = vunpack.c.l.b16 %v1487
        %v4810 = vunpack.c.h.b16 %v1487
        %v4811 = vunpack.c.l.b16 %v1488
        %v4812 = vunpack.c.h.b16 %v1488
        %v4813 = vunpack.c.l.b16 %v1489
        %v4814 = vunpack.c.h.b16 %v1489
        %v4815 = vunpack.c.l.b16 %v1490
        %v4816 = vunpack.c.h.b16 %v1490
        %v4817 = vunpack.c.l.b16 %v1491
        %v4818 = vunpack.c.h.b16 %v1491
        %v4819 = vunpack.c.l.b16 %v1492
        %v4820 = vunpack.c.h.b16 %v1492
        %v4821 = vunpack.c.l.b16 %v1493
        %v4822 = vunpack.c.h.b16 %v1493
        %v4823 = vunpack.c.l.b16 %v1494
        %v4824 = vunpack.c.h.b16 %v1494
        %v4825 = vunpack.c.l.b16 %v1495
        %v4826 = vunpack.c.h.b16 %v1495
        %v4827 = vunpack.c.l.b16 %v1496
        %v4828 = vunpack.c.h.b16 %v1496
        %v4829 = vunpack.c.l.b16 %v1497
        %v4830 = vunpack.c.h.b16 %v1497
        %v4831 = vunpack.c.l.b16 %v1498
        %v4832 = vunpack.c.h.b16 %v1498
        %v4833 = vunpack.c.l.b16 %v1499
        %v4834 = vunpack.c.h.b16 %v1499
        %v4835 = vunpack.c.l.b16 %v1500
        %v4836 = vunpack.c.h.b16 %v1500
        %v4837 = vunpack.c.l.b16 %v1501
        %v4838 = vunpack.c.h.b16 %v1501
        %v4839 = vunpack.c.l.b16 %v1502
        %v4840 = vunpack.c.h.b16 %v1502
        %v4841 = vunpack.c.l.b16 %v1503
        %v4842 = vunpack.c.h.b16 %v1503
        %v4843 = vunpack.c.l.b16 %v1504
        %v4844 = vunpack.c.h.b16 %v1504
        %v4845 = vunpack.c.l.b16 %v1505
        %v4846 = vunpack.c.h.b16 %v1505
        %v4847 = vunpack.c.l.b16 %v1506
        %v4848 = vunpack.c.h.b16 %v1506
        %v4849 = vunpack.c.l.b16 %v1507
        %v4850 = vunpack.c.h.b16 %v1507
        %v4851 = vunpack.c.l.b16 %v1508
        %v4852 = vunpack.c.h.b16 %v1508
        %v4853 = vunpack.c.l.b16 %v1509
        %v4854 = vunpack.c.h.b16 %v1509
        %v4855 = vunpack.c.l.b16 %v1510
        %v4856 = vunpack.c.h.b16 %v1510
        %v4857 = vunpack.c.l.b16 %v1511
        %v4858 = vunpack.c.h.b16 %v1511
        %v4859 = vunpack.c.l.b16 %v1512
        %v4860 = vunpack.c.h.b16 %v1512
        %v4861 = vunpack.c.l.b16 %v1513
        %v4862 = vunpack.c.h.b16 %v1513
        %v4863 = vunpack.c.l.b16 %v1514
        %v4864 = vunpack.c.h.b16 %v1514
        %v4865 = vunpack.c.l.b16 %v1515
        %v4866 = vunpack.c.h.b16 %v1515
        %v4867 = vunpack.c.l.b16 %v1516
        %v4868 = vunpack.c.h.b16 %v1516
        %v4869 = vunpack.c.l.b16 %v1517
        %v4870 = vunpack.c.h.b16 %v1517
        %v4871 = vunpack.c.l.b16 %v1518
        %v4872 = vunpack.c.h.b16 %v1518
        %v4873 = vpack.c.b16 %v2833, %v2825
        %v4874 = vpack.c.b16 %v2834, %v2826
        %v4875 = vpack.c.b16 %v2835, %v2827
        %v4876 = vpack.c.b16 %v2836, %v2828
        %v4877 = vpack.c.b16 %v2837, %v2829
        %v4878 = vpack.c.b16 %v2838, %v2830
        %v4879 = vpack.c.b16 %v2839, %v2831
        %v4880 = vpack.c.b16 %v2840, %v2832
        %v4881 = vpack.c.b16 %v2849, %v2841
        %v4882 = vpack.c.b16 %v2850, %v2842
        %v4883 = vpack.c.b16 %v2851, %v2843
        %v4884 = vpack.c.b16 %v2852, %v2844
        %v4885 = vpack.c.b16 %v2853, %v2845
        %v4886 = vpack.c.b16 %v2854, %v2846
        %v4887 = vpack.c.b16 %v2855, %v2847
        %v4888 = vpack.c.b16 %v2856, %v2848
        %v4889 = vpack.c.b16 %v2865, %v2857
        %v4890 = vpack.c.b16 %v2866, %v2858
        %v4891 = vpack.c.b16 %v2867, %v2859
        %v4892 = vpack.c.b16 %v2868, %v2860
        %v4893 = vpack.c.b16 %v2869, %v2861
        %v4894 = vpack.c.b16 %v2870, %v2862
        %v4895 = vpack.c.b16 %v2871, %v2863
        %v4896 = vpack.c.b16 %v2872, %v2864
        %v4897 = vpack.c.b16 %v2881, %v2873
        %v4898 = vpack.c.b16 %v2882, %v2874
        %v4899 = vpack.c.b16 %v2883, %v2875
        %v4900 = vpack.c.b16 %v2884, %v2876
        %v4901 = vpack.c.b16 %v2885, %v2877
        %v4902 = vpack.c.b16 %v2886, %v2878
        %v4903 = vpack.c.b16 %v2887, %v2879
        %v4904 = vpack.c.b16 %v2888, %v2880
        %v4905 = vpack.c.b16 %v2897, %v2889
        %v4906 = vpack.c.b16 %v2898, %v2890
        %v4907 = vpack.c.b16 %v2899, %v2891
        %v4908 = vpack.c.b16 %v2900, %v2892
        %v4909 = vpack.c.b16 %v2901, %v2893
        %v4910 = vpack.c.b16 %v2902, %v2894
        %v4911 = vpack.c.b16 %v2903, %v2895
        %v4912 = vpack.c.b16 %v2904, %v2896
        %v4913 = vpack.c.b16 %v2913, %v2905
        %v4914 = vpack.c.b16 %v2914, %v2906
        %v4915 = vpack.c.b16 %v2915, %v2907
        %v4916 = vpack.c.b16 %v2916, %v2908
        %v4917 = vpack.c.b16 %v2917, %v2909
        %v4918 = vpack.c.b16 %v2918, %v2910
        %v4919 = vpack.c.b16 %v2919, %v2911
        %v4920 = vpack.c.b16 %v2920, %v2912
        %v4921 = vpack.c.b16 %v2929, %v2921
        %v4922 = vpack.c.b16 %v2930, %v2922
        %v4923 = vpack.c.b16 %v2931, %v2923
        %v4924 = vpack.c.b16 %v2932, %v2924
        %v4925 = vpack.c.b16 %v2933, %v2925
        %v4926 = vpack.c.b16 %v2934, %v2926
        %v4927 = vpack.c.b16 %v2935, %v2927
        %v4928 = vpack.c.b16 %v2936, %v2928
        %v4929 = vpack.c.b16 %v2945, %v2937
        %v4930 = vpack.c.b16 %v2946, %v2938
        %v4931 = vpack.c.b16 %v2947, %v2939
        %v4932 = vpack.c.b16 %v2948, %v2940
        %v4933 = vpack.c.b16 %v2949, %v2941
        %v4934 = vpack.c.b16 %v2950, %v2942
        %v4935 = vpack.c.b16 %v2951, %v2943
        %v4936 = vpack.c.b16 %v2952, %v2944
        %v4937 = vpack.c.b16 %v2961, %v2953
        %v4938 = vpack.c.b16 %v2962, %v2954
        %v4939 = vpack.c.b16 %v2963, %v2955
        %v4940 = vpack.c.b16 %v2964, %v2956
        %v4941 = vpack.c.b16 %v2965, %v2957
        %v4942 = vpack.c.b16 %v2966, %v2958
        %v4943 = vpack.c.b16 %v2967, %v2959
        %v4944 = vpack.c.b16 %v2968, %v2960
        %v4945 = vpack.c.b16 %v2977, %v2969
        %v4946 = vpack.c.b16 %v2978, %v2970
        %v4947 = vpack.c.b16 %v2979, %v2971
        %v4948 = vpack.c.b16 %v2980, %v2972
        %v4949 = vpack.c.b16 %v2981, %v2973
        %v4950 = vpack.c.b16 %v2982, %v2974
        %v4951 = vpack.c.b16 %v2983, %v2975
        %v4952 = vpack.c.b16 %v2984, %v2976
        %v4953 = vpack.c.b16 %v2993, %v2985
        %v4954 = vpack.c.b16 %v2994, %v2986
        %v4955 = vpack.c.b16 %v2995, %v2987
        %v4956 = vpack.c.b16 %v2996, %v2988
        %v4957 = vpack.c.b16 %v2997, %v2989
        %v4958 = vpack.c.b16 %v2998, %v2990
        %v4959 = vpack.c.b16 %v2999, %v2991
        %v4960 = vpack.c.b16 %v3000, %v2992
        %v4961 = vpack.c.b16 %v3009, %v3001
        %v4962 = vpack.c.b16 %v3010, %v3002
        %v4963 = vpack.c.b16 %v3011, %v3003
        %v4964 = vpack.c.b16 %v3012, %v3004
        %v4965 = vpack.c.b16 %v3013, %v3005
        %v4966 = vpack.c.b16 %v3014, %v3006
        %v4967 = vpack.c.b16 %v3015, %v3007
        %v4968 = vpack.c.b16 %v3016, %v3008
        %v4969 = vpack.c.b16 %v3025, %v3017
        %v4970 = vpack.c.b16 %v3026, %v3018
        %v4971 = vpack.c.b16 %v3027, %v3019
        %v4972 = vpack.c.b16 %v3028, %v3020
        %v4973 = vpack.c.b16 %v3029, %v3021
        %v4974 = vpack.c.b16 %v3030, %v3022
        %v4975 = vpack.c.b16 %v3031, %v3023
        %v4976 = vpack.c.b16 %v3032, %v3024
        %v4977 = vpack.c.b16 %v3041, %v3033
        %v4978 = vpack.c.b16 %v3042, %v3034
        %v4979 = vpack.c.b16 %v3043, %v3035
        %v4980 = vpack.c.b16 %v3044, %v3036
        %v4981 = vpack.c.b16 %v3045, %v3037
        %v4982 = vpack.c.b16 %v3046, %v3038
        %v4983 = vpack.c.b16 %v3047, %v3039
        %v4984 = vpack.c.b16 %v3048, %v3040
        %v4985 = vpack.c.b16 %v3057, %v3049
        %v4986 = vpack.c.b16 %v3058, %v3050
        %v4987 = vpack.c.b16 %v3059, %v3051
        %v4988 = vpack.c.b16 %v3060, %v3052
        %v4989 = vpack.c.b16 %v3061, %v3053
        %v4990 = vpack.c.b16 %v3062, %v3054
        %v4991 = vpack.c.b16 %v3063, %v3055
        %v4992 = vpack.c.b16 %v3064, %v3056
        %v4993 = vpack.c.b16 %v3073, %v3065
        %v4994 = vpack.c.b16 %v3074, %v3066
        %v4995 = vpack.c.b16 %v3075, %v3067
        %v4996 = vpack.c.b16 %v3076, %v3068
        %v4997 = vpack.c.b16 %v3077, %v3069
        %v4998 = vpack.c.b16 %v3078, %v3070
        %v4999 = vpack.c.b16 %v3079, %v3071
        %v5000 = vpack.c.b16 %v3080, %v3072
        %v5001 = vpack.c.b16 %v3089, %v3081
        %v5002 = vpack.c.b16 %v3090, %v3082
        %v5003 = vpack.c.b16 %v3091, %v3083
        %v5004 = vpack.c.b16 %v3092, %v3084
        %v5005 = vpack.c.b16 %v3093, %v3085
        %v5006 = vpack.c.b16 %v3094, %v3086
        %v5007 = vpack.c.b16 %v3095, %v3087
        %v5008 = vpack.c.b16 %v3096, %v3088
        %v5009 = vpack.c.b16 %v3105, %v3097
        %v5010 = vpack.c.b16 %v3106, %v3098
        %v5011 = vpack.c.b16 %v3107, %v3099
        %v5012 = vpack.c.b16 %v3108, %v3100
        %v5013 = vpack.c.b16 %v3109, %v3101
        %v5014 = vpack.c.b16 %v3110, %v3102
        %v5015 = vpack.c.b16 %v3111, %v3103
        %v5016 = vpack.c.b16 %v3112, %v3104
        %v5017 = vpack.c.b16 %v3121, %v3113
        %v5018 = vpack.c.b16 %v3122, %v3114
        %v5019 = vpack.c.b16 %v3123, %v3115
        %v5020 = vpack.c.b16 %v3124, %v3116
        %v5021 = vpack.c.b16 %v3125, %v3117
        %v5022 = vpack.c.b16 %v3126, %v3118
        %v5023 = vpack.c.b16 %v3127, %v3119
        %v5024 = vpack.c.b16 %v3128, %v3120
        %v5025 = vpack.c.b16 %v3137, %v3129
        %v5026 = vpack.c.b16 %v3138, %v3130
        %v5027 = vpack.c.b16 %v3139, %v3131
        %v5028 = vpack.c.b16 %v3140, %v3132
        %v5029 = vpack.c.b16 %v3141, %v3133
        %v5030 = vpack.c.b16 %v3142, %v3134
        %v5031 = vpack.c.b16 %v3143, %v3135
        %v5032 = vpack.c.b16 %v3144, %v3136
        %v5033 = vpack.c.b16 %v3153, %v3145
        %v5034 = vpack.c.b16 %v3154, %v3146
        %v5035 = vpack.c.b16 %v3155, %v3147
        %v5036 = vpack.c.b16 %v3156, %v3148
        %v5037 = vpack.c.b16 %v3157, %v3149
        %v5038 = vpack.c.b16 %v3158, %v3150
        %v5039 = vpack.c.b16 %v3159, %v3151
        %v5040 = vpack.c.b16 %v3160, %v3152
        %v5041 = vpack.c.b16 %v3169, %v3161
        %v5042 = vpack.c.b16 %v3170, %v3162
        %v5043 = vpack.c.b16 %v3171, %v3163
        %v5044 = vpack.c.b16 %v3172, %v3164
        %v5045 = vpack.c.b16 %v3173, %v3165
        %v5046 = vpack.c.b16 %v3174, %v3166
        %v5047 = vpack.c.b16 %v3175, %v3167
        %v5048 = vpack.c.b16 %v3176, %v3168
        %v5049 = vpack.c.b16 %v3185, %v3177
        %v5050 = vpack.c.b16 %v3186, %v3178
        %v5051 = vpack.c.b16 %v3187, %v3179
        %v5052 = vpack.c.b16 %v3188, %v3180
        %v5053 = vpack.c.b16 %v3189, %v3181
        %v5054 = vpack.c.b16 %v3190, %v3182
        %v5055 = vpack.c.b16 %v3191, %v3183
        %v5056 = vpack.c.b16 %v3192, %v3184
        %v5057 = vpack.c.b16 %v3201, %v3193
        %v5058 = vpack.c.b16 %v3202, %v3194
        %v5059 = vpack.c.b16 %v3203, %v3195
        %v5060 = vpack.c.b16 %v3204, %v3196
        %v5061 = vpack.c.b16 %v3205, %v3197
        %v5062 = vpack.c.b16 %v3206, %v3198
        %v5063 = vpack.c.b16 %v3207, %v3199
        %v5064 = vpack.c.b16 %v3208, %v3200
        %v5065 = vpack.c.b16 %v3217, %v3209
        %v5066 = vpack.c.b16 %v3218, %v3210
        %v5067 = vpack.c.b16 %v3219, %v3211
        %v5068 = vpack.c.b16 %v3220, %v3212
        %v5069 = vpack.c.b16 %v3221, %v3213
        %v5070 = vpack.c.b16 %v3222, %v3214
        %v5071 = vpack.c.b16 %v3223, %v3215
        %v5072 = vpack.c.b16 %v3224, %v3216
        %v5073 = vpack.c.b16 %v3233, %v3225
        %v5074 = vpack.c.b16 %v3234, %v3226
        %v5075 = vpack.c.b16 %v3235, %v3227
        %v5076 = vpack.c.b16 %v3236, %v3228
        %v5077 = vpack.c.b16 %v3237, %v3229
        %v5078 = vpack.c.b16 %v3238, %v3230
        %v5079 = vpack.c.b16 %v3239, %v3231
        %v5080 = vpack.c.b16 %v3240, %v3232
        %v5081 = vpack.c.b16 %v3249, %v3241
        %v5082 = vpack.c.b16 %v3250, %v3242
        %v5083 = vpack.c.b16 %v3251, %v3243
        %v5084 = vpack.c.b16 %v3252, %v3244
        %v5085 = vpack.c.b16 %v3253, %v3245
        %v5086 = vpack.c.b16 %v3254, %v3246
        %v5087 = vpack.c.b16 %v3255, %v3247
        %v5088 = vpack.c.b16 %v3256, %v3248
        %v5089 = vpack.c.b16 %v3265, %v3257
        %v5090 = vpack.c.b16 %v3266, %v3258
        %v5091 = vpack.c.b16 %v3267, %v3259
        %v5092 = vpack.c.b16 %v3268, %v3260
        %v5093 = vpack.c.b16 %v3269, %v3261
        %v5094 = vpack.c.b16 %v3270, %v3262
        %v5095 = vpack.c.b16 %v3271, %v3263
        %v5096 = vpack.c.b16 %v3272, %v3264
        %v5097 = vpack.c.b16 %v3281, %v3273
        %v5098 = vpack.c.b16 %v3282, %v3274
        %v5099 = vpack.c.b16 %v3283, %v3275
        %v5100 = vpack.c.b16 %v3284, %v3276
        %v5101 = vpack.c.b16 %v3285, %v3277
        %v5102 = vpack.c.b16 %v3286, %v3278
        %v5103 = vpack.c.b16 %v3287, %v3279
        %v5104 = vpack.c.b16 %v3288, %v3280
        %v5105 = vpack.c.b16 %v3297, %v3289
        %v5106 = vpack.c.b16 %v3298, %v3290
        %v5107 = vpack.c.b16 %v3299, %v3291
        %v5108 = vpack.c.b16 %v3300, %v3292
        %v5109 = vpack.c.b16 %v3301, %v3293
        %v5110 = vpack.c.b16 %v3302, %v3294
        %v5111 = vpack.c.b16 %v3303, %v3295
        %v5112 = vpack.c.b16 %v3304, %v3296
        %v5113 = vpack.c.b16 %v3313, %v3305
        %v5114 = vpack.c.b16 %v3314, %v3306
        %v5115 = vpack.c.b16 %v3315, %v3307
        %v5116 = vpack.c.b16 %v3316, %v3308
        %v5117 = vpack.c.b16 %v3317, %v3309
        %v5118 = vpack.c.b16 %v3318, %v3310
        %v5119 = vpack.c.b16 %v3319, %v3311
        %v5120 = vpack.c.b16 %v3320, %v3312
        %v5121 = vpack.c.b16 %v3329, %v3321
        %v5122 = vpack.c.b16 %v3330, %v3322
        %v5123 = vpack.c.b16 %v3331, %v3323
        %v5124 = vpack.c.b16 %v3332, %v3324
        %v5125 = vpack.c.b16 %v3333, %v3325
        %v5126 = vpack.c.b16 %v3334, %v3326
        %v5127 = vpack.c.b16 %v3335, %v3327
        %v5128 = vpack.c.b16 %v3336, %v3328
        %v5129 = vpack.c.b16 %v3345, %v3337
        %v5130 = vpack.c.b16 %v3346, %v3338
        %v5131 = vpack.c.b16 %v3347, %v3339
        %v5132 = vpack.c.b16 %v3348, %v3340
        %v5133 = vpack.c.b16 %v3349, %v3341
        %v5134 = vpack.c.b16 %v3350, %v3342
        %v5135 = vpack.c.b16 %v3351, %v3343
        %v5136 = vpack.c.b16 %v3352, %v3344
        %v5137 = vpack.c.b16 %v3361, %v3353
        %v5138 = vpack.c.b16 %v3362, %v3354
        %v5139 = vpack.c.b16 %v3363, %v3355
        %v5140 = vpack.c.b16 %v3364, %v3356
        %v5141 = vpack.c.b16 %v3365, %v3357
        %v5142 = vpack.c.b16 %v3366, %v3358
        %v5143 = vpack.c.b16 %v3367, %v3359
        %v5144 = vpack.c.b16 %v3368, %v3360
        %v5145 = vpack.c.b16 %v3377, %v3369
        %v5146 = vpack.c.b16 %v3378, %v3370
        %v5147 = vpack.c.b16 %v3379, %v3371
        %v5148 = vpack.c.b16 %v3380, %v3372
        %v5149 = vpack.c.b16 %v3381, %v3373
        %v5150 = vpack.c.b16 %v3382, %v3374
        %v5151 = vpack.c.b16 %v3383, %v3375
        %v5152 = vpack.c.b16 %v3384, %v3376
        %v5153 = vpack.c.b16 %v3393, %v3385
        %v5154 = vpack.c.b16 %v3394, %v3386
        %v5155 = vpack.c.b16 %v3395, %v3387
        %v5156 = vpack.c.b16 %v3396, %v3388
        %v5157 = vpack.c.b16 %v3397, %v3389
        %v5158 = vpack.c.b16 %v3398, %v3390
        %v5159 = vpack.c.b16 %v3399, %v3391
        %v5160 = vpack.c.b16 %v3400, %v3392
        %v5161 = vpack.c.b16 %v3409, %v3401
        %v5162 = vpack.c.b16 %v3410, %v3402
        %v5163 = vpack.c.b16 %v3411, %v3403
        %v5164 = vpack.c.b16 %v3412, %v3404
        %v5165 = vpack.c.b16 %v3413, %v3405
        %v5166 = vpack.c.b16 %v3414, %v3406
        %v5167 = vpack.c.b16 %v3415, %v3407
        %v5168 = vpack.c.b16 %v3416, %v3408
        %v5169 = vpack.c.b16 %v3425, %v3417
        %v5170 = vpack.c.b16 %v3426, %v3418
        %v5171 = vpack.c.b16 %v3427, %v3419
        %v5172 = vpack.c.b16 %v3428, %v3420
        %v5173 = vpack.c.b16 %v3429, %v3421
        %v5174 = vpack.c.b16 %v3430, %v3422
        %v5175 = vpack.c.b16 %v3431, %v3423
        %v5176 = vpack.c.b16 %v3432, %v3424
        %v5177 = vpack.c.b16 %v3441, %v3433
        %v5178 = vpack.c.b16 %v3442, %v3434
        %v5179 = vpack.c.b16 %v3443, %v3435
        %v5180 = vpack.c.b16 %v3444, %v3436
        %v5181 = vpack.c.b16 %v3445, %v3437
        %v5182 = vpack.c.b16 %v3446, %v3438
        %v5183 = vpack.c.b16 %v3447, %v3439
        %v5184 = vpack.c.b16 %v3448, %v3440
        %v5185 = vpack.c.b16 %v3457, %v3449
        %v5186 = vpack.c.b16 %v3458, %v3450
        %v5187 = vpack.c.b16 %v3459, %v3451
        %v5188 = vpack.c.b16 %v3460, %v3452
        %v5189 = vpack.c.b16 %v3461, %v3453
        %v5190 = vpack.c.b16 %v3462, %v3454
        %v5191 = vpack.c.b16 %v3463, %v3455
        %v5192 = vpack.c.b16 %v3464, %v3456
        %v5193 = vpack.c.b16 %v3473, %v3465
        %v5194 = vpack.c.b16 %v3474, %v3466
        %v5195 = vpack.c.b16 %v3475, %v3467
        %v5196 = vpack.c.b16 %v3476, %v3468
        %v5197 = vpack.c.b16 %v3477, %v3469
        %v5198 = vpack.c.b16 %v3478, %v3470
        %v5199 = vpack.c.b16 %v3479, %v3471
        %v5200 = vpack.c.b16 %v3480, %v3472
        %v5201 = vpack.c.b16 %v3489, %v3481
        %v5202 = vpack.c.b16 %v3490, %v3482
        %v5203 = vpack.c.b16 %v3491, %v3483
        %v5204 = vpack.c.b16 %v3492, %v3484
        %v5205 = vpack.c.b16 %v3493, %v3485
        %v5206 = vpack.c.b16 %v3494, %v3486
        %v5207 = vpack.c.b16 %v3495, %v3487
        %v5208 = vpack.c.b16 %v3496, %v3488
        %v5209 = vpack.c.b16 %v3505, %v3497
        %v5210 = vpack.c.b16 %v3506, %v3498
        %v5211 = vpack.c.b16 %v3507, %v3499
        %v5212 = vpack.c.b16 %v3508, %v3500
        %v5213 = vpack.c.b16 %v3509, %v3501
        %v5214 = vpack.c.b16 %v3510, %v3502
        %v5215 = vpack.c.b16 %v3511, %v3503
        %v5216 = vpack.c.b16 %v3512, %v3504
        %v5217 = vpack.c.b16 %v3521, %v3513
        %v5218 = vpack.c.b16 %v3522, %v3514
        %v5219 = vpack.c.b16 %v3523, %v3515
        %v5220 = vpack.c.b16 %v3524, %v3516
        %v5221 = vpack.c.b16 %v3525, %v3517
        %v5222 = vpack.c.b16 %v3526, %v3518
        %v5223 = vpack.c.b16 %v3527, %v3519
        %v5224 = vpack.c.b16 %v3528, %v3520
        %v5225 = vpack.c.b16 %v3537, %v3529
        %v5226 = vpack.c.b16 %v3538, %v3530
        %v5227 = vpack.c.b16 %v3539, %v3531
        %v5228 = vpack.c.b16 %v3540, %v3532
        %v5229 = vpack.c.b16 %v3541, %v3533
        %v5230 = vpack.c.b16 %v3542, %v3534
        %v5231 = vpack.c.b16 %v3543, %v3535
        %v5232 = vpack.c.b16 %v3544, %v3536
        %v5233 = vpack.c.b16 %v3553, %v3545
        %v5234 = vpack.c.b16 %v3554, %v3546
        %v5235 = vpack.c.b16 %v3555, %v3547
        %v5236 = vpack.c.b16 %v3556, %v3548
        %v5237 = vpack.c.b16 %v3557, %v3549
        %v5238 = vpack.c.b16 %v3558, %v3550
        %v5239 = vpack.c.b16 %v3559, %v3551
        %v5240 = vpack.c.b16 %v3560, %v3552
        %v5241 = vpack.c.b16 %v3569, %v3561
        %v5242 = vpack.c.b16 %v3570, %v3562
        %v5243 = vpack.c.b16 %v3571, %v3563
        %v5244 = vpack.c.b16 %v3572, %v3564
        %v5245 = vpack.c.b16 %v3573, %v3565
        %v5246 = vpack.c.b16 %v3574, %v3566
        %v5247 = vpack.c.b16 %v3575, %v3567
        %v5248 = vpack.c.b16 %v3576, %v3568
        %v5249 = vpack.c.b16 %v3585, %v3577
        %v5250 = vpack.c.b16 %v3586, %v3578
        %v5251 = vpack.c.b16 %v3587, %v3579
        %v5252 = vpack.c.b16 %v3588, %v3580
        %v5253 = vpack.c.b16 %v3589, %v3581
        %v5254 = vpack.c.b16 %v3590, %v3582
        %v5255 = vpack.c.b16 %v3591, %v3583
        %v5256 = vpack.c.b16 %v3592, %v3584
        %v5257 = vpack.c.b16 %v3601, %v3593
        %v5258 = vpack.c.b16 %v3602, %v3594
        %v5259 = vpack.c.b16 %v3603, %v3595
        %v5260 = vpack.c.b16 %v3604, %v3596
        %v5261 = vpack.c.b16 %v3605, %v3597
        %v5262 = vpack.c.b16 %v3606, %v3598
        %v5263 = vpack.c.b16 %v3607, %v3599
        %v5264 = vpack.c.b16 %v3608, %v3600
        %v5265 = vpack.c.b16 %v3617, %v3609
        %v5266 = vpack.c.b16 %v3618, %v3610
        %v5267 = vpack.c.b16 %v3619, %v3611
        %v5268 = vpack.c.b16 %v3620, %v3612
        %v5269 = vpack.c.b16 %v3621, %v3613
        %v5270 = vpack.c.b16 %v3622, %v3614
        %v5271 = vpack.c.b16 %v3623, %v3615
        %v5272 = vpack.c.b16 %v3624, %v3616
        %v5273 = vpack.c.b16 %v3633, %v3625
        %v5274 = vpack.c.b16 %v3634, %v3626
        %v5275 = vpack.c.b16 %v3635, %v3627
        %v5276 = vpack.c.b16 %v3636, %v3628
        %v5277 = vpack.c.b16 %v3637, %v3629
        %v5278 = vpack.c.b16 %v3638, %v3630
        %v5279 = vpack.c.b16 %v3639, %v3631
        %v5280 = vpack.c.b16 %v3640, %v3632
        %v5281 = vpack.c.b16 %v3649, %v3641
        %v5282 = vpack.c.b16 %v3650, %v3642
        %v5283 = vpack.c.b16 %v3651, %v3643
        %v5284 = vpack.c.b16 %v3652, %v3644
        %v5285 = vpack.c.b16 %v3653, %v3645
        %v5286 = vpack.c.b16 %v3654, %v3646
        %v5287 = vpack.c.b16 %v3655, %v3647
        %v5288 = vpack.c.b16 %v3656, %v3648
        %v5289 = vpack.c.b16 %v3665, %v3657
        %v5290 = vpack.c.b16 %v3666, %v3658
        %v5291 = vpack.c.b16 %v3667, %v3659
        %v5292 = vpack.c.b16 %v3668, %v3660
        %v5293 = vpack.c.b16 %v3669, %v3661
        %v5294 = vpack.c.b16 %v3670, %v3662
        %v5295 = vpack.c.b16 %v3671, %v3663
        %v5296 = vpack.c.b16 %v3672, %v3664
        %v5297 = vpack.c.b16 %v3681, %v3673
        %v5298 = vpack.c.b16 %v3682, %v3674
        %v5299 = vpack.c.b16 %v3683, %v3675
        %v5300 = vpack.c.b16 %v3684, %v3676
        %v5301 = vpack.c.b16 %v3685, %v3677
        %v5302 = vpack.c.b16 %v3686, %v3678
        %v5303 = vpack.c.b16 %v3687, %v3679
        %v5304 = vpack.c.b16 %v3688, %v3680
        %v5305 = vpack.c.b16 %v3697, %v3689
        %v5306 = vpack.c.b16 %v3698, %v3690
        %v5307 = vpack.c.b16 %v3699, %v3691
        %v5308 = vpack.c.b16 %v3700, %v3692
        %v5309 = vpack.c.b16 %v3701, %v3693
        %v5310 = vpack.c.b16 %v3702, %v3694
        %v5311 = vpack.c.b16 %v3703, %v3695
        %v5312 = vpack.c.b16 %v3704, %v3696
        %v5313 = vpack.c.b16 %v3713, %v3705
        %v5314 = vpack.c.b16 %v3714, %v3706
        %v5315 = vpack.c.b16 %v3715, %v3707
        %v5316 = vpack.c.b16 %v3716, %v3708
        %v5317 = vpack.c.b16 %v3717, %v3709
        %v5318 = vpack.c.b16 %v3718, %v3710
        %v5319 = vpack.c.b16 %v3719, %v3711
        %v5320 = vpack.c.b16 %v3720, %v3712
        %v5321 = vpack.c.b16 %v3729, %v3721
        %v5322 = vpack.c.b16 %v3730, %v3722
        %v5323 = vpack.c.b16 %v3731, %v3723
        %v5324 = vpack.c.b16 %v3732, %v3724
        %v5325 = vpack.c.b16 %v3733, %v3725
        %v5326 = vpack.c.b16 %v3734, %v3726
        %v5327 = vpack.c.b16 %v3735, %v3727
        %v5328 = vpack.c.b16 %v3736, %v3728
        %v5329 = vpack.c.b16 %v3745, %v3737
        %v5330 = vpack.c.b16 %v3746, %v3738
        %v5331 = vpack.c.b16 %v3747, %v3739
        %v5332 = vpack.c.b16 %v3748, %v3740
        %v5333 = vpack.c.b16 %v3749, %v3741
        %v5334 = vpack.c.b16 %v3750, %v3742
        %v5335 = vpack.c.b16 %v3751, %v3743
        %v5336 = vpack.c.b16 %v3752, %v3744
        %v5337 = vpack.c.b16 %v3761, %v3753
        %v5338 = vpack.c.b16 %v3762, %v3754
        %v5339 = vpack.c.b16 %v3763, %v3755
        %v5340 = vpack.c.b16 %v3764, %v3756
        %v5341 = vpack.c.b16 %v3765, %v3757
        %v5342 = vpack.c.b16 %v3766, %v3758
        %v5343 = vpack.c.b16 %v3767, %v3759
        %v5344 = vpack.c.b16 %v3768, %v3760
        %v5345 = vpack.c.b16 %v3777, %v3769
        %v5346 = vpack.c.b16 %v3778, %v3770
        %v5347 = vpack.c.b16 %v3779, %v3771
        %v5348 = vpack.c.b16 %v3780, %v3772
        %v5349 = vpack.c.b16 %v3781, %v3773
        %v5350 = vpack.c.b16 %v3782, %v3774
        %v5351 = vpack.c.b16 %v3783, %v3775
        %v5352 = vpack.c.b16 %v3784, %v3776
        %v5353 = vpack.c.b16 %v3793, %v3785
        %v5354 = vpack.c.b16 %v3794, %v3786
        %v5355 = vpack.c.b16 %v3795, %v3787
        %v5356 = vpack.c.b16 %v3796, %v3788
        %v5357 = vpack.c.b16 %v3797, %v3789
        %v5358 = vpack.c.b16 %v3798, %v3790
        %v5359 = vpack.c.b16 %v3799, %v3791
        %v5360 = vpack.c.b16 %v3800, %v3792
        %v5361 = vpack.c.b16 %v3809, %v3801
        %v5362 = vpack.c.b16 %v3810, %v3802
        %v5363 = vpack.c.b16 %v3811, %v3803
        %v5364 = vpack.c.b16 %v3812, %v3804
        %v5365 = vpack.c.b16 %v3813, %v3805
        %v5366 = vpack.c.b16 %v3814, %v3806
        %v5367 = vpack.c.b16 %v3815, %v3807
        %v5368 = vpack.c.b16 %v3816, %v3808
        %v5369 = vpack.c.b16 %v3825, %v3817
        %v5370 = vpack.c.b16 %v3826, %v3818
        %v5371 = vpack.c.b16 %v3827, %v3819
        %v5372 = vpack.c.b16 %v3828, %v3820
        %v5373 = vpack.c.b16 %v3829, %v3821
        %v5374 = vpack.c.b16 %v3830, %v3822
        %v5375 = vpack.c.b16 %v3831, %v3823
        %v5376 = vpack.c.b16 %v3832, %v3824
        %v5377 = vpack.c.b16 %v3841, %v3833
        %v5378 = vpack.c.b16 %v3842, %v3834
        %v5379 = vpack.c.b16 %v3843, %v3835
        %v5380 = vpack.c.b16 %v3844, %v3836
        %v5381 = vpack.c.b16 %v3845, %v3837
        %v5382 = vpack.c.b16 %v3846, %v3838
        %v5383 = vpack.c.b16 %v3847, %v3839
        %v5384 = vpack.c.b16 %v3848, %v3840
        %v5385 = vpack.c.b16 %v3857, %v3849
        %v5386 = vpack.c.b16 %v3858, %v3850
        %v5387 = vpack.c.b16 %v3859, %v3851
        %v5388 = vpack.c.b16 %v3860, %v3852
        %v5389 = vpack.c.b16 %v3861, %v3853
        %v5390 = vpack.c.b16 %v3862, %v3854
        %v5391 = vpack.c.b16 %v3863, %v3855
        %v5392 = vpack.c.b16 %v3864, %v3856
        %v5393 = vpack.c.b16 %v3873, %v3865
        %v5394 = vpack.c.b16 %v3874, %v3866
        %v5395 = vpack.c.b16 %v3875, %v3867
        %v5396 = vpack.c.b16 %v3876, %v3868
        %v5397 = vpack.c.b16 %v3877, %v3869
        %v5398 = vpack.c.b16 %v3878, %v3870
        %v5399 = vpack.c.b16 %v3879, %v3871
        %v5400 = vpack.c.b16 %v3880, %v3872
        %v5401 = vpack.c.b16 %v3889, %v3881
        %v5402 = vpack.c.b16 %v3890, %v3882
        %v5403 = vpack.c.b16 %v3891, %v3883
        %v5404 = vpack.c.b16 %v3892, %v3884
        %v5405 = vpack.c.b16 %v3893, %v3885
        %v5406 = vpack.c.b16 %v3894, %v3886
        %v5407 = vpack.c.b16 %v3895, %v3887
        %v5408 = vpack.c.b16 %v3896, %v3888
        %v5409 = vpack.c.b16 %v3905, %v3897
        %v5410 = vpack.c.b16 %v3906, %v3898
        %v5411 = vpack.c.b16 %v3907, %v3899
        %v5412 = vpack.c.b16 %v3908, %v3900
        %v5413 = vpack.c.b16 %v3909, %v3901
        %v5414 = vpack.c.b16 %v3910, %v3902
        %v5415 = vpack.c.b16 %v3911, %v3903
        %v5416 = vpack.c.b16 %v3912, %v3904
        %v5417 = vpack.c.b16 %v3921, %v3913
        %v5418 = vpack.c.b16 %v3922, %v3914
        %v5419 = vpack.c.b16 %v3923, %v3915
        %v5420 = vpack.c.b16 %v3924, %v3916
        %v5421 = vpack.c.b16 %v3925, %v3917
        %v5422 = vpack.c.b16 %v3926, %v3918
        %v5423 = vpack.c.b16 %v3927, %v3919
        %v5424 = vpack.c.b16 %v3928, %v3920
        %v5425 = vpack.c.b16 %v3937, %v3929
        %v5426 = vpack.c.b16 %v3938, %v3930
        %v5427 = vpack.c.b16 %v3939, %v3931
        %v5428 = vpack.c.b16 %v3940, %v3932
        %v5429 = vpack.c.b16 %v3941, %v3933
        %v5430 = vpack.c.b16 %v3942, %v3934
        %v5431 = vpack.c.b16 %v3943, %v3935
        %v5432 = vpack.c.b16 %v3944, %v3936
        %v5433 = vpack.c.b16 %v3953, %v3945
        %v5434 = vpack.c.b16 %v3954, %v3946
        %v5435 = vpack.c.b16 %v3955, %v3947
        %v5436 = vpack.c.b16 %v3956, %v3948
        %v5437 = vpack.c.b16 %v3957, %v3949
        %v5438 = vpack.c.b16 %v3958, %v3950
        %v5439 = vpack.c.b16 %v3959, %v3951
        %v5440 = vpack.c.b16 %v3960, %v3952
        %v5441 = vpack.c.b16 %v3969, %v3961
        %v5442 = vpack.c.b16 %v3970, %v3962
        %v5443 = vpack.c.b16 %v3971, %v3963
        %v5444 = vpack.c.b16 %v3972, %v3964
        %v5445 = vpack.c.b16 %v3973, %v3965
        %v5446 = vpack.c.b16 %v3974, %v3966
        %v5447 = vpack.c.b16 %v3975, %v3967
        %v5448 = vpack.c.b16 %v3976, %v3968
        %v5449 = vpack.c.b16 %v3985, %v3977
        %v5450 = vpack.c.b16 %v3986, %v3978
        %v5451 = vpack.c.b16 %v3987, %v3979
        %v5452 = vpack.c.b16 %v3988, %v3980
        %v5453 = vpack.c.b16 %v3989, %v3981
        %v5454 = vpack.c.b16 %v3990, %v3982
        %v5455 = vpack.c.b16 %v3991, %v3983
        %v5456 = vpack.c.b16 %v3992, %v3984
        %v5457 = vpack.c.b16 %v4001, %v3993
        %v5458 = vpack.c.b16 %v4002, %v3994
        %v5459 = vpack.c.b16 %v4003, %v3995
        %v5460 = vpack.c.b16 %v4004, %v3996
        %v5461 = vpack.c.b16 %v4005, %v3997
        %v5462 = vpack.c.b16 %v4006, %v3998
        %v5463 = vpack.c.b16 %v4007, %v3999
        %v5464 = vpack.c.b16 %v4008, %v4000
        %v5465 = vpack.c.b16 %v4017, %v4009
        %v5466 = vpack.c.b16 %v4018, %v4010
        %v5467 = vpack.c.b16 %v4019, %v4011
        %v5468 = vpack.c.b16 %v4020, %v4012
        %v5469 = vpack.c.b16 %v4021, %v4013
        %v5470 = vpack.c.b16 %v4022, %v4014
        %v5471 = vpack.c.b16 %v4023, %v4015
        %v5472 = vpack.c.b16 %v4024, %v4016
        %v5473 = vpack.c.b16 %v4033, %v4025
        %v5474 = vpack.c.b16 %v4034, %v4026
        %v5475 = vpack.c.b16 %v4035, %v4027
        %v5476 = vpack.c.b16 %v4036, %v4028
        %v5477 = vpack.c.b16 %v4037, %v4029
        %v5478 = vpack.c.b16 %v4038, %v4030
        %v5479 = vpack.c.b16 %v4039, %v4031
        %v5480 = vpack.c.b16 %v4040, %v4032
        %v5481 = vpack.c.b16 %v4049, %v4041
        %v5482 = vpack.c.b16 %v4050, %v4042
        %v5483 = vpack.c.b16 %v4051, %v4043
        %v5484 = vpack.c.b16 %v4052, %v4044
        %v5485 = vpack.c.b16 %v4053, %v4045
        %v5486 = vpack.c.b16 %v4054, %v4046
        %v5487 = vpack.c.b16 %v4055, %v4047
        %v5488 = vpack.c.b16 %v4056, %v4048
        %v5489 = vpack.c.b16 %v4065, %v4057
        %v5490 = vpack.c.b16 %v4066, %v4058
        %v5491 = vpack.c.b16 %v4067, %v4059
        %v5492 = vpack.c.b16 %v4068, %v4060
        %v5493 = vpack.c.b16 %v4069, %v4061
        %v5494 = vpack.c.b16 %v4070, %v4062
        %v5495 = vpack.c.b16 %v4071, %v4063
        %v5496 = vpack.c.b16 %v4072, %v4064
        %v5497 = vpack.c.b16 %v4081, %v4073
        %v5498 = vpack.c.b16 %v4082, %v4074
        %v5499 = vpack.c.b16 %v4083, %v4075
        %v5500 = vpack.c.b16 %v4084, %v4076
        %v5501 = vpack.c.b16 %v4085, %v4077
        %v5502 = vpack.c.b16 %v4086, %v4078
        %v5503 = vpack.c.b16 %v4087, %v4079
        %v5504 = vpack.c.b16 %v4088, %v4080
        %v5505 = vpack.c.b16 %v4097, %v4089
        %v5506 = vpack.c.b16 %v4098, %v4090
        %v5507 = vpack.c.b16 %v4099, %v4091
        %v5508 = vpack.c.b16 %v4100, %v4092
        %v5509 = vpack.c.b16 %v4101, %v4093
        %v5510 = vpack.c.b16 %v4102, %v4094
        %v5511 = vpack.c.b16 %v4103, %v4095
        %v5512 = vpack.c.b16 %v4104, %v4096
        %v5513 = vpack.c.b16 %v4113, %v4105
        %v5514 = vpack.c.b16 %v4114, %v4106
        %v5515 = vpack.c.b16 %v4115, %v4107
        %v5516 = vpack.c.b16 %v4116, %v4108
        %v5517 = vpack.c.b16 %v4117, %v4109
        %v5518 = vpack.c.b16 %v4118, %v4110
        %v5519 = vpack.c.b16 %v4119, %v4111
        %v5520 = vpack.c.b16 %v4120, %v4112
        %v5521 = vpack.c.b16 %v4129, %v4121
        %v5522 = vpack.c.b16 %v4130, %v4122
        %v5523 = vpack.c.b16 %v4131, %v4123
        %v5524 = vpack.c.b16 %v4132, %v4124
        %v5525 = vpack.c.b16 %v4133, %v4125
        %v5526 = vpack.c.b16 %v4134, %v4126
        %v5527 = vpack.c.b16 %v4135, %v4127
        %v5528 = vpack.c.b16 %v4136, %v4128
        %v5529 = vpack.c.b16 %v4145, %v4137
        %v5530 = vpack.c.b16 %v4146, %v4138
        %v5531 = vpack.c.b16 %v4147, %v4139
        %v5532 = vpack.c.b16 %v4148, %v4140
        %v5533 = vpack.c.b16 %v4149, %v4141
        %v5534 = vpack.c.b16 %v4150, %v4142
        %v5535 = vpack.c.b16 %v4151, %v4143
        %v5536 = vpack.c.b16 %v4152, %v4144
        %v5537 = vpack.c.b16 %v4161, %v4153
        %v5538 = vpack.c.b16 %v4162, %v4154
        %v5539 = vpack.c.b16 %v4163, %v4155
        %v5540 = vpack.c.b16 %v4164, %v4156
        %v5541 = vpack.c.b16 %v4165, %v4157
        %v5542 = vpack.c.b16 %v4166, %v4158
        %v5543 = vpack.c.b16 %v4167, %v4159
        %v5544 = vpack.c.b16 %v4168, %v4160
        %v5545 = vpack.c.b16 %v4177, %v4169
        %v5546 = vpack.c.b16 %v4178, %v4170
        %v5547 = vpack.c.b16 %v4179, %v4171
        %v5548 = vpack.c.b16 %v4180, %v4172
        %v5549 = vpack.c.b16 %v4181, %v4173
        %v5550 = vpack.c.b16 %v4182, %v4174
        %v5551 = vpack.c.b16 %v4183, %v4175
        %v5552 = vpack.c.b16 %v4184, %v4176
        %v5553 = vpack.c.b16 %v4193, %v4185
        %v5554 = vpack.c.b16 %v4194, %v4186
        %v5555 = vpack.c.b16 %v4195, %v4187
        %v5556 = vpack.c.b16 %v4196, %v4188
        %v5557 = vpack.c.b16 %v4197, %v4189
        %v5558 = vpack.c.b16 %v4198, %v4190
        %v5559 = vpack.c.b16 %v4199, %v4191
        %v5560 = vpack.c.b16 %v4200, %v4192
        %v5561 = vpack.c.b16 %v4209, %v4201
        %v5562 = vpack.c.b16 %v4210, %v4202
        %v5563 = vpack.c.b16 %v4211, %v4203
        %v5564 = vpack.c.b16 %v4212, %v4204
        %v5565 = vpack.c.b16 %v4213, %v4205
        %v5566 = vpack.c.b16 %v4214, %v4206
        %v5567 = vpack.c.b16 %v4215, %v4207
        %v5568 = vpack.c.b16 %v4216, %v4208
        %v5569 = vpack.c.b16 %v4225, %v4217
        %v5570 = vpack.c.b16 %v4226, %v4218
        %v5571 = vpack.c.b16 %v4227, %v4219
        %v5572 = vpack.c.b16 %v4228, %v4220
        %v5573 = vpack.c.b16 %v4229, %v4221
        %v5574 = vpack.c.b16 %v4230, %v4222
        %v5575 = vpack.c.b16 %v4231, %v4223
        %v5576 = vpack.c.b16 %v4232, %v4224
        %v5577 = vpack.c.b16 %v4241, %v4233
        %v5578 = vpack.c.b16 %v4242, %v4234
        %v5579 = vpack.c.b16 %v4243, %v4235
        %v5580 = vpack.c.b16 %v4244, %v4236
        %v5581 = vpack.c.b16 %v4245, %v4237
        %v5582 = vpack.c.b16 %v4246, %v4238
        %v5583 = vpack.c.b16 %v4247, %v4239
        %v5584 = vpack.c.b16 %v4248, %v4240
        %v5585 = vpack.c.b16 %v4257, %v4249
        %v5586 = vpack.c.b16 %v4258, %v4250
        %v5587 = vpack.c.b16 %v4259, %v4251
        %v5588 = vpack.c.b16 %v4260, %v4252
        %v5589 = vpack.c.b16 %v4261, %v4253
        %v5590 = vpack.c.b16 %v4262, %v4254
        %v5591 = vpack.c.b16 %v4263, %v4255
        %v5592 = vpack.c.b16 %v4264, %v4256
        %v5593 = vpack.c.b16 %v4273, %v4265
        %v5594 = vpack.c.b16 %v4274, %v4266
        %v5595 = vpack.c.b16 %v4275, %v4267
        %v5596 = vpack.c.b16 %v4276, %v4268
        %v5597 = vpack.c.b16 %v4277, %v4269
        %v5598 = vpack.c.b16 %v4278, %v4270
        %v5599 = vpack.c.b16 %v4279, %v4271
        %v5600 = vpack.c.b16 %v4280, %v4272
        %v5601 = vpack.c.b16 %v4289, %v4281
        %v5602 = vpack.c.b16 %v4290, %v4282
        %v5603 = vpack.c.b16 %v4291, %v4283
        %v5604 = vpack.c.b16 %v4292, %v4284
        %v5605 = vpack.c.b16 %v4293, %v4285
        %v5606 = vpack.c.b16 %v4294, %v4286
        %v5607 = vpack.c.b16 %v4295, %v4287
        %v5608 = vpack.c.b16 %v4296, %v4288
        %v5609 = vpack.c.b16 %v4305, %v4297
        %v5610 = vpack.c.b16 %v4306, %v4298
        %v5611 = vpack.c.b16 %v4307, %v4299
        %v5612 = vpack.c.b16 %v4308, %v4300
        %v5613 = vpack.c.b16 %v4309, %v4301
        %v5614 = vpack.c.b16 %v4310, %v4302
        %v5615 = vpack.c.b16 %v4311, %v4303
        %v5616 = vpack.c.b16 %v4312, %v4304
        %v5617 = vpack.c.b16 %v4321, %v4313
        %v5618 = vpack.c.b16 %v4322, %v4314
        %v5619 = vpack.c.b16 %v4323, %v4315
        %v5620 = vpack.c.b16 %v4324, %v4316
        %v5621 = vpack.c.b16 %v4325, %v4317
        %v5622 = vpack.c.b16 %v4326, %v4318
        %v5623 = vpack.c.b16 %v4327, %v4319
        %v5624 = vpack.c.b16 %v4328, %v4320
        %v5625 = vpack.c.b16 %v4337, %v4329
        %v5626 = vpack.c.b16 %v4338, %v4330
        %v5627 = vpack.c.b16 %v4339, %v4331
        %v5628 = vpack.c.b16 %v4340, %v4332
        %v5629 = vpack.c.b16 %v4341, %v4333
        %v5630 = vpack.c.b16 %v4342, %v4334
        %v5631 = vpack.c.b16 %v4343, %v4335
        %v5632 = vpack.c.b16 %v4344, %v4336
        %v5633 = vpack.c.b16 %v4353, %v4345
        %v5634 = vpack.c.b16 %v4354, %v4346
        %v5635 = vpack.c.b16 %v4355, %v4347
        %v5636 = vpack.c.b16 %v4356, %v4348
        %v5637 = vpack.c.b16 %v4357, %v4349
        %v5638 = vpack.c.b16 %v4358, %v4350
        %v5639 = vpack.c.b16 %v4359, %v4351
        %v5640 = vpack.c.b16 %v4360, %v4352
        %v5641 = vpack.c.b16 %v4369, %v4361
        %v5642 = vpack.c.b16 %v4370, %v4362
        %v5643 = vpack.c.b16 %v4371, %v4363
        %v5644 = vpack.c.b16 %v4372, %v4364
        %v5645 = vpack.c.b16 %v4373, %v4365
        %v5646 = vpack.c.b16 %v4374, %v4366
        %v5647 = vpack.c.b16 %v4375, %v4367
        %v5648 = vpack.c.b16 %v4376, %v4368
        %v5649 = vpack.c.b16 %v4385, %v4377
        %v5650 = vpack.c.b16 %v4386, %v4378
        %v5651 = vpack.c.b16 %v4387, %v4379
        %v5652 = vpack.c.b16 %v4388, %v4380
        %v5653 = vpack.c.b16 %v4389, %v4381
        %v5654 = vpack.c.b16 %v4390, %v4382
        %v5655 = vpack.c.b16 %v4391, %v4383
        %v5656 = vpack.c.b16 %v4392, %v4384
        %v5657 = vpack.c.b16 %v4401, %v4393
        %v5658 = vpack.c.b16 %v4402, %v4394
        %v5659 = vpack.c.b16 %v4403, %v4395
        %v5660 = vpack.c.b16 %v4404, %v4396
        %v5661 = vpack.c.b16 %v4405, %v4397
        %v5662 = vpack.c.b16 %v4406, %v4398
        %v5663 = vpack.c.b16 %v4407, %v4399
        %v5664 = vpack.c.b16 %v4408, %v4400
        %v5665 = vpack.c.b16 %v4417, %v4409
        %v5666 = vpack.c.b16 %v4418, %v4410
        %v5667 = vpack.c.b16 %v4419, %v4411
        %v5668 = vpack.c.b16 %v4420, %v4412
        %v5669 = vpack.c.b16 %v4421, %v4413
        %v5670 = vpack.c.b16 %v4422, %v4414
        %v5671 = vpack.c.b16 %v4423, %v4415
        %v5672 = vpack.c.b16 %v4424, %v4416
        %v5673 = vpack.c.b16 %v4433, %v4425
        %v5674 = vpack.c.b16 %v4434, %v4426
        %v5675 = vpack.c.b16 %v4435, %v4427
        %v5676 = vpack.c.b16 %v4436, %v4428
        %v5677 = vpack.c.b16 %v4437, %v4429
        %v5678 = vpack.c.b16 %v4438, %v4430
        %v5679 = vpack.c.b16 %v4439, %v4431
        %v5680 = vpack.c.b16 %v4440, %v4432
        %v5681 = vpack.c.b16 %v4449, %v4441
        %v5682 = vpack.c.b16 %v4450, %v4442
        %v5683 = vpack.c.b16 %v4451, %v4443
        %v5684 = vpack.c.b16 %v4452, %v4444
        %v5685 = vpack.c.b16 %v4453, %v4445
        %v5686 = vpack.c.b16 %v4454, %v4446
        %v5687 = vpack.c.b16 %v4455, %v4447
        %v5688 = vpack.c.b16 %v4456, %v4448
        %v5689 = vpack.c.b16 %v4465, %v4457
        %v5690 = vpack.c.b16 %v4466, %v4458
        %v5691 = vpack.c.b16 %v4467, %v4459
        %v5692 = vpack.c.b16 %v4468, %v4460
        %v5693 = vpack.c.b16 %v4469, %v4461
        %v5694 = vpack.c.b16 %v4470, %v4462
        %v5695 = vpack.c.b16 %v4471, %v4463
        %v5696 = vpack.c.b16 %v4472, %v4464
        %v5697 = vpack.c.b16 %v4481, %v4473
        %v5698 = vpack.c.b16 %v4482, %v4474
        %v5699 = vpack.c.b16 %v4483, %v4475
        %v5700 = vpack.c.b16 %v4484, %v4476
        %v5701 = vpack.c.b16 %v4485, %v4477
        %v5702 = vpack.c.b16 %v4486, %v4478
        %v5703 = vpack.c.b16 %v4487, %v4479
        %v5704 = vpack.c.b16 %v4488, %v4480
        %v5705 = vpack.c.b16 %v4497, %v4489
        %v5706 = vpack.c.b16 %v4498, %v4490
        %v5707 = vpack.c.b16 %v4499, %v4491
        %v5708 = vpack.c.b16 %v4500, %v4492
        %v5709 = vpack.c.b16 %v4501, %v4493
        %v5710 = vpack.c.b16 %v4502, %v4494
        %v5711 = vpack.c.b16 %v4503, %v4495
        %v5712 = vpack.c.b16 %v4504, %v4496
        %v5713 = vpack.c.b16 %v4513, %v4505
        %v5714 = vpack.c.b16 %v4514, %v4506
        %v5715 = vpack.c.b16 %v4515, %v4507
        %v5716 = vpack.c.b16 %v4516, %v4508
        %v5717 = vpack.c.b16 %v4517, %v4509
        %v5718 = vpack.c.b16 %v4518, %v4510
        %v5719 = vpack.c.b16 %v4519, %v4511
        %v5720 = vpack.c.b16 %v4520, %v4512
        %v5721 = vpack.c.b16 %v4529, %v4521
        %v5722 = vpack.c.b16 %v4530, %v4522
        %v5723 = vpack.c.b16 %v4531, %v4523
        %v5724 = vpack.c.b16 %v4532, %v4524
        %v5725 = vpack.c.b16 %v4533, %v4525
        %v5726 = vpack.c.b16 %v4534, %v4526
        %v5727 = vpack.c.b16 %v4535, %v4527
        %v5728 = vpack.c.b16 %v4536, %v4528
        %v5729 = vpack.c.b16 %v4545, %v4537
        %v5730 = vpack.c.b16 %v4546, %v4538
        %v5731 = vpack.c.b16 %v4547, %v4539
        %v5732 = vpack.c.b16 %v4548, %v4540
        %v5733 = vpack.c.b16 %v4549, %v4541
        %v5734 = vpack.c.b16 %v4550, %v4542
        %v5735 = vpack.c.b16 %v4551, %v4543
        %v5736 = vpack.c.b16 %v4552, %v4544
        %v5737 = vpack.c.b16 %v4561, %v4553
        %v5738 = vpack.c.b16 %v4562, %v4554
        %v5739 = vpack.c.b16 %v4563, %v4555
        %v5740 = vpack.c.b16 %v4564, %v4556
        %v5741 = vpack.c.b16 %v4565, %v4557
        %v5742 = vpack.c.b16 %v4566, %v4558
        %v5743 = vpack.c.b16 %v4567, %v4559
        %v5744 = vpack.c.b16 %v4568, %v4560
        %v5745 = vpack.c.b16 %v4577, %v4569
        %v5746 = vpack.c.b16 %v4578, %v4570
        %v5747 = vpack.c.b16 %v4579, %v4571
        %v5748 = vpack.c.b16 %v4580, %v4572
        %v5749 = vpack.c.b16 %v4581, %v4573
        %v5750 = vpack.c.b16 %v4582, %v4574
        %v5751 = vpack.c.b16 %v4583, %v4575
        %v5752 = vpack.c.b16 %v4584, %v4576
        %v5753 = vpack.c.b16 %v4593, %v4585
        %v5754 = vpack.c.b16 %v4594, %v4586
        %v5755 = vpack.c.b16 %v4595, %v4587
        %v5756 = vpack.c.b16 %v4596, %v4588
        %v5757 = vpack.c.b16 %v4597, %v4589
        %v5758 = vpack.c.b16 %v4598, %v4590
        %v5759 = vpack.c.b16 %v4599, %v4591
        %v5760 = vpack.c.b16 %v4600, %v4592
        %v5761 = vpack.c.b16 %v4609, %v4601
        %v5762 = vpack.c.b16 %v4610, %v4602
        %v5763 = vpack.c.b16 %v4611, %v4603
        %v5764 = vpack.c.b16 %v4612, %v4604
        %v5765 = vpack.c.b16 %v4613, %v4605
        %v5766 = vpack.c.b16 %v4614, %v4606
        %v5767 = vpack.c.b16 %v4615, %v4607
        %v5768 = vpack.c.b16 %v4616, %v4608
        %v5769 = vpack.c.b16 %v4625, %v4617
        %v5770 = vpack.c.b16 %v4626, %v4618
        %v5771 = vpack.c.b16 %v4627, %v4619
        %v5772 = vpack.c.b16 %v4628, %v4620
        %v5773 = vpack.c.b16 %v4629, %v4621
        %v5774 = vpack.c.b16 %v4630, %v4622
        %v5775 = vpack.c.b16 %v4631, %v4623
        %v5776 = vpack.c.b16 %v4632, %v4624
        %v5777 = vpack.c.b16 %v4641, %v4633
        %v5778 = vpack.c.b16 %v4642, %v4634
        %v5779 = vpack.c.b16 %v4643, %v4635
        %v5780 = vpack.c.b16 %v4644, %v4636
        %v5781 = vpack.c.b16 %v4645, %v4637
        %v5782 = vpack.c.b16 %v4646, %v4638
        %v5783 = vpack.c.b16 %v4647, %v4639
        %v5784 = vpack.c.b16 %v4648, %v4640
        %v5785 = vpack.c.b16 %v4657, %v4649
        %v5786 = vpack.c.b16 %v4658, %v4650
        %v5787 = vpack.c.b16 %v4659, %v4651
        %v5788 = vpack.c.b16 %v4660, %v4652
        %v5789 = vpack.c.b16 %v4661, %v4653
        %v5790 = vpack.c.b16 %v4662, %v4654
        %v5791 = vpack.c.b16 %v4663, %v4655
        %v5792 = vpack.c.b16 %v4664, %v4656
        %v5793 = vpack.c.b16 %v4673, %v4665
        %v5794 = vpack.c.b16 %v4674, %v4666
        %v5795 = vpack.c.b16 %v4675, %v4667
        %v5796 = vpack.c.b16 %v4676, %v4668
        %v5797 = vpack.c.b16 %v4677, %v4669
        %v5798 = vpack.c.b16 %v4678, %v4670
        %v5799 = vpack.c.b16 %v4679, %v4671
        %v5800 = vpack.c.b16 %v4680, %v4672
        %v5801 = vpack.c.b16 %v4689, %v4681
        %v5802 = vpack.c.b16 %v4690, %v4682
        %v5803 = vpack.c.b16 %v4691, %v4683
        %v5804 = vpack.c.b16 %v4692, %v4684
        %v5805 = vpack.c.b16 %v4693, %v4685
        %v5806 = vpack.c.b16 %v4694, %v4686
        %v5807 = vpack.c.b16 %v4695, %v4687
        %v5808 = vpack.c.b16 %v4696, %v4688
        %v5809 = vpack.c.b16 %v4705, %v4697
        %v5810 = vpack.c.b16 %v4706, %v4698
        %v5811 = vpack.c.b16 %v4707, %v4699
        %v5812 = vpack.c.b16 %v4708, %v4700
        %v5813 = vpack.c.b16 %v4709, %v4701
        %v5814 = vpack.c.b16 %v4710, %v4702
        %v5815 = vpack.c.b16 %v4711, %v4703
        %v5816 = vpack.c.b16 %v4712, %v4704
        %v5817 = vpack.c.b16 %v4721, %v4713
        %v5818 = vpack.c.b16 %v4722, %v4714
        %v5819 = vpack.c.b16 %v4723, %v4715
        %v5820 = vpack.c.b16 %v4724, %v4716
        %v5821 = vpack.c.b16 %v4725, %v4717
        %v5822 = vpack.c.b16 %v4726, %v4718
        %v5823 = vpack.c.b16 %v4727, %v4719
        %v5824 = vpack.c.b16 %v4728, %v4720
        %v5825 = vpack.c.b16 %v4737, %v4729
        %v5826 = vpack.c.b16 %v4738, %v4730
        %v5827 = vpack.c.b16 %v4739, %v4731
        %v5828 = vpack.c.b16 %v4740, %v4732
        %v5829 = vpack.c.b16 %v4741, %v4733
        %v5830 = vpack.c.b16 %v4742, %v4734
        %v5831 = vpack.c.b16 %v4743, %v4735
        %v5832 = vpack.c.b16 %v4744, %v4736
        %v5833 = vpack.c.b16 %v4753, %v4745
        %v5834 = vpack.c.b16 %v4754, %v4746
        %v5835 = vpack.c.b16 %v4755, %v4747
        %v5836 = vpack.c.b16 %v4756, %v4748
        %v5837 = vpack.c.b16 %v4757, %v4749
        %v5838 = vpack.c.b16 %v4758, %v4750
        %v5839 = vpack.c.b16 %v4759, %v4751
        %v5840 = vpack.c.b16 %v4760, %v4752
        %v5841 = vpack.c.b16 %v4769, %v4761
        %v5842 = vpack.c.b16 %v4770, %v4762
        %v5843 = vpack.c.b16 %v4771, %v4763
        %v5844 = vpack.c.b16 %v4772, %v4764
        %v5845 = vpack.c.b16 %v4773, %v4765
        %v5846 = vpack.c.b16 %v4774, %v4766
        %v5847 = vpack.c.b16 %v4775, %v4767
        %v5848 = vpack.c.b16 %v4776, %v4768
        %v5849 = vpack.c.b16 %v4785, %v4777
        %v5850 = vpack.c.b16 %v4786, %v4778
        %v5851 = vpack.c.b16 %v4787, %v4779
        %v5852 = vpack.c.b16 %v4788, %v4780
        %v5853 = vpack.c.b16 %v4789, %v4781
        %v5854 = vpack.c.b16 %v4790, %v4782
        %v5855 = vpack.c.b16 %v4791, %v4783
        %v5856 = vpack.c.b16 %v4792, %v4784
        %v5857 = vpack.c.b16 %v4801, %v4793
        %v5858 = vpack.c.b16 %v4802, %v4794
        %v5859 = vpack.c.b16 %v4803, %v4795
        %v5860 = vpack.c.b16 %v4804, %v4796
        %v5861 = vpack.c.b16 %v4805, %v4797
        %v5862 = vpack.c.b16 %v4806, %v4798
        %v5863 = vpack.c.b16 %v4807, %v4799
        %v5864 = vpack.c.b16 %v4808, %v4800
        %v5865 = vpack.c.b16 %v4817, %v4809
        %v5866 = vpack.c.b16 %v4818, %v4810
        %v5867 = vpack.c.b16 %v4819, %v4811
        %v5868 = vpack.c.b16 %v4820, %v4812
        %v5869 = vpack.c.b16 %v4821, %v4813
        %v5870 = vpack.c.b16 %v4822, %v4814
        %v5871 = vpack.c.b16 %v4823, %v4815
        %v5872 = vpack.c.b16 %v4824, %v4816
        %v5873 = vpack.c.b16 %v4833, %v4825
        %v5874 = vpack.c.b16 %v4834, %v4826
        %v5875 = vpack.c.b16 %v4835, %v4827
        %v5876 = vpack.c.b16 %v4836, %v4828
        %v5877 = vpack.c.b16 %v4837, %v4829
        %v5878 = vpack.c.b16 %v4838, %v4830
        %v5879 = vpack.c.b16 %v4839, %v4831
        %v5880 = vpack.c.b16 %v4840, %v4832
        %v5881 = vpack.c.b16 %v4849, %v4841
        %v5882 = vpack.c.b16 %v4850, %v4842
        %v5883 = vpack.c.b16 %v4851, %v4843
        %v5884 = vpack.c.b16 %v4852, %v4844
        %v5885 = vpack.c.b16 %v4853, %v4845
        %v5886 = vpack.c.b16 %v4854, %v4846
        %v5887 = vpack.c.b16 %v4855, %v4847
        %v5888 = vpack.c.b16 %v4856, %v4848
        %v5889 = vpack.c.b16 %v4865, %v4857
        %v5890 = vpack.c.b16 %v4866, %v4858
        %v5891 = vpack.c.b16 %v4867, %v4859
        %v5892 = vpack.c.b16 %v4868, %v4860
        %v5893 = vpack.c.b16 %v4869, %v4861
        %v5894 = vpack.c.b16 %v4870, %v4862
        %v5895 = vpack.c.b16 %v4871, %v4863
        %v5896 = vpack.c.b16 %v4872, %v4864
        %6921 = vmatprep.subr.bf16.mxu0 %v4930
        %6922 = vmatpush1.bf16.msra.mxu0 %v4929
        %6923 = vmatprep.subr.bf16.mxu0 %v4922
        %6924 = vmatpush1.bf16.msra.mxu0 %v4921
        %6925 = vmatprep.subr.bf16.mxu0 %v4914
        %6926 = vmatpush1.bf16.msra.mxu0 %v4913
        %6927 = vmatprep.subr.bf16.mxu0 %v4906
        %6928 = vmatpush1.bf16.msra.mxu0 %v4905
        %6929 = vmatprep.subr.bf16.mxu0 %v4898
        %6930 = vmatpush1.bf16.msra.mxu0 %v4897
        %6931 = vmatprep.subr.bf16.mxu0 %v4890
        %6932 = vmatpush1.bf16.msra.mxu0 %v4889
        %6933 = vmatprep.subr.bf16.mxu0 %v4882
        %6934 = vmatpush1.bf16.msra.mxu0 %v4881
        %6935 = vmatprep.subr.bf16.mxu0 %v4874
        %6936 = vmatpush1.bf16.msra.mxu0 %v4873
        %6937 = vmatprep.subr.bf16.mxu0 %v4994
        %6938 = vmatpush2.bf16.msra.mxu0 %v4993
        %6939 = vmatprep.subr.bf16.mxu0 %v4986
        %6940 = vmatpush2.bf16.msra.mxu0 %v4985
        %6941 = vmatprep.subr.bf16.mxu0 %v4978
        %6942 = vmatpush2.bf16.msra.mxu0 %v4977
        %6943 = vmatprep.subr.bf16.mxu0 %v4970
        %6944 = vmatpush2.bf16.msra.mxu0 %v4969
        %6945 = vmatprep.subr.bf16.mxu0 %v4962
        %6946 = vmatpush2.bf16.msra.mxu0 %v4961
        %6947 = vmatprep.subr.bf16.mxu0 %v4954
        %6948 = vmatpush2.bf16.msra.mxu0 %v4953
        %6949 = vmatprep.subr.bf16.mxu0 %v4946
        %6950 = vmatpush2.bf16.msra.mxu0 %v4945
        %6951 = vmatprep.subr.bf16.mxu0 %v4938
        %6952 = vmatpush2.bf16.msra.mxu0 %v4937
        %6953 = vmatprep.mubr.bf16.mxu0 %v1706
        %6954 = vmatmul.mubr.bf16.gmra.mxu0 %v1705
        %v6955 = vpop.f32.mrf.mxu0
        %v6956 = vadd.f32 %v1524, %v6955
        %v6957 = vpop.f32.mrf.mxu0
        %v6958 = vadd.f32 %v1528, %v6957
        %v6959 = vpop.f32.mrf.mxu0
        %v6960 = vadd.f32 %v1524, %v6959
        %v6961 = vpop.f32.mrf.mxu0
        %v6962 = vadd.f32 %v1528, %v6961
        %6963 = vmatprep.mubr.bf16.mxu0 %v1722
        %6964 = vmatmul.mubr.bf16.gmra.mxu0 %v1721
        %v6965 = vpop.f32.mrf.mxu0
        %v6966 = vadd.f32 %v1524, %v6965
        %v6967 = vpop.f32.mrf.mxu0
        %v6968 = vadd.f32 %v1528, %v6967
        %v6969 = vpop.f32.mrf.mxu0
        %v6970 = vadd.f32 %v1524, %v6969
        %v6971 = vpop.f32.mrf.mxu0
        %v6972 = vadd.f32 %v1528, %v6971
        %6973 = vmatprep.mubr.bf16.mxu0 %v1738
        %6974 = vmatmul.mubr.bf16.gmra.mxu0 %v1737
        %v6975 = vpop.f32.mrf.mxu0
        %v6976 = vadd.f32 %v1524, %v6975
        %v6977 = vpop.f32.mrf.mxu0
        %v6978 = vadd.f32 %v1528, %v6977
        %v6979 = vpop.f32.mrf.mxu0
        %v6980 = vadd.f32 %v1524, %v6979
        %v6981 = vpop.f32.mrf.mxu0
        %v6982 = vadd.f32 %v1528, %v6981
        %6983 = vdwg.mxu0
        %6984 = vmatprep.subr.bf16.mxu0 %v5058
        %6985 = vmatpush1.bf16.msra.mxu0 %v5057
        %6986 = vmatprep.subr.bf16.mxu0 %v5050
        %6987 = vmatpush1.bf16.msra.mxu0 %v5049
        %6988 = vmatprep.subr.bf16.mxu0 %v5042
        %6989 = vmatpush1.bf16.msra.mxu0 %v5041
        %6990 = vmatprep.subr.bf16.mxu0 %v5034
        %6991 = vmatpush1.bf16.msra.mxu0 %v5033
        %6992 = vmatprep.subr.bf16.mxu0 %v5026
        %6993 = vmatpush1.bf16.msra.mxu0 %v5025
        %6994 = vmatprep.subr.bf16.mxu0 %v5018
        %6995 = vmatpush1.bf16.msra.mxu0 %v5017
        %6996 = vmatprep.subr.bf16.mxu0 %v5010
        %6997 = vmatpush1.bf16.msra.mxu0 %v5009
        %6998 = vmatprep.subr.bf16.mxu0 %v5002
        %6999 = vmatpush1.bf16.msra.mxu0 %v5001
        %7000 = vmatprep.subr.bf16.mxu0 %v5122
        %7001 = vmatpush2.bf16.msra.mxu0 %v5121
        %7002 = vmatprep.subr.bf16.mxu0 %v5114
        %7003 = vmatpush2.bf16.msra.mxu0 %v5113
        %7004 = vmatprep.subr.bf16.mxu0 %v5106
        %7005 = vmatpush2.bf16.msra.mxu0 %v5105
        %7006 = vmatprep.subr.bf16.mxu0 %v5098
        %7007 = vmatpush2.bf16.msra.mxu0 %v5097
        %7008 = vmatprep.subr.bf16.mxu0 %v5090
        %7009 = vmatpush2.bf16.msra.mxu0 %v5089
        %7010 = vmatprep.subr.bf16.mxu0 %v5082
        %7011 = vmatpush2.bf16.msra.mxu0 %v5081
        %7012 = vmatprep.subr.bf16.mxu0 %v5074
        %7013 = vmatpush2.bf16.msra.mxu0 %v5073
        %7014 = vmatprep.subr.bf16.mxu0 %v5066
        %7015 = vmatpush2.bf16.msra.mxu0 %v5065
        %7016 = vmatprep.mubr.bf16.mxu0 %v1708
        %7017 = vmatmul.mubr.bf16.gmra.mxu0 %v1707
        %v7018 = vpop.f32.mrf.mxu0
        %v7019 = vadd.f32 %v6956, %v7018
        %v7020 = vpop.f32.mrf.mxu0
        %v7021 = vadd.f32 %v6958, %v7020
        %v7022 = vpop.f32.mrf.mxu0
        %v7023 = vadd.f32 %v6960, %v7022
        %v7024 = vpop.f32.mrf.mxu0
        %v7025 = vadd.f32 %v6962, %v7024
        %7026 = vmatprep.mubr.bf16.mxu0 %v1724
        %7027 = vmatmul.mubr.bf16.gmra.mxu0 %v1723
        %v7028 = vpop.f32.mrf.mxu0
        %v7029 = vadd.f32 %v6966, %v7028
        %v7030 = vpop.f32.mrf.mxu0
        %v7031 = vadd.f32 %v6968, %v7030
        %v7032 = vpop.f32.mrf.mxu0
        %v7033 = vadd.f32 %v6970, %v7032
        %v7034 = vpop.f32.mrf.mxu0
        %v7035 = vadd.f32 %v6972, %v7034
        %7036 = vmatprep.mubr.bf16.mxu0 %v1740
        %7037 = vmatmul.mubr.bf16.gmra.mxu0 %v1739
        %v7038 = vpop.f32.mrf.mxu0
        %v7039 = vadd.f32 %v6976, %v7038
        %v7040 = vpop.f32.mrf.mxu0
        %v7041 = vadd.f32 %v6978, %v7040
        %v7042 = vpop.f32.mrf.mxu0
        %v7043 = vadd.f32 %v6980, %v7042
        %v7044 = vpop.f32.mrf.mxu0
        %v7045 = vadd.f32 %v6982, %v7044
        %7046 = vdwg.mxu0
        %7047 = vmatprep.subr.bf16.mxu0 %v5186
        %7048 = vmatpush1.bf16.msra.mxu0 %v5185
        %7049 = vmatprep.subr.bf16.mxu0 %v5178
        %7050 = vmatpush1.bf16.msra.mxu0 %v5177
        %7051 = vmatprep.subr.bf16.mxu0 %v5170
        %7052 = vmatpush1.bf16.msra.mxu0 %v5169
        %7053 = vmatprep.subr.bf16.mxu0 %v5162
        %7054 = vmatpush1.bf16.msra.mxu0 %v5161
        %7055 = vmatprep.subr.bf16.mxu0 %v5154
        %7056 = vmatpush1.bf16.msra.mxu0 %v5153
        %7057 = vmatprep.subr.bf16.mxu0 %v5146
        %7058 = vmatpush1.bf16.msra.mxu0 %v5145
        %7059 = vmatprep.subr.bf16.mxu0 %v5138
        %7060 = vmatpush1.bf16.msra.mxu0 %v5137
        %7061 = vmatprep.subr.bf16.mxu0 %v5130
        %7062 = vmatpush1.bf16.msra.mxu0 %v5129
        %7063 = vmatprep.subr.bf16.mxu0 %v5250
        %7064 = vmatpush2.bf16.msra.mxu0 %v5249
        %7065 = vmatprep.subr.bf16.mxu0 %v5242
        %7066 = vmatpush2.bf16.msra.mxu0 %v5241
        %7067 = vmatprep.subr.bf16.mxu0 %v5234
        %7068 = vmatpush2.bf16.msra.mxu0 %v5233
        %7069 = vmatprep.subr.bf16.mxu0 %v5226
        %7070 = vmatpush2.bf16.msra.mxu0 %v5225
        %7071 = vmatprep.subr.bf16.mxu0 %v5218
        %7072 = vmatpush2.bf16.msra.mxu0 %v5217
        %7073 = vmatprep.subr.bf16.mxu0 %v5210
        %7074 = vmatpush2.bf16.msra.mxu0 %v5209
        %7075 = vmatprep.subr.bf16.mxu0 %v5202
        %7076 = vmatpush2.bf16.msra.mxu0 %v5201
        %7077 = vmatprep.subr.bf16.mxu0 %v5194
        %7078 = vmatpush2.bf16.msra.mxu0 %v5193
        %7079 = vmatprep.mubr.bf16.mxu0 %v1710
        %7080 = vmatmul.mubr.bf16.gmra.mxu0 %v1709
        %v7081 = vpop.f32.mrf.mxu0
        %v7082 = vadd.f32 %v7019, %v7081
        %v7083 = vpop.f32.mrf.mxu0
        %v7084 = vadd.f32 %v7021, %v7083
        %v7085 = vpop.f32.mrf.mxu0
        %v7086 = vadd.f32 %v7023, %v7085
        %v7087 = vpop.f32.mrf.mxu0
        %v7088 = vadd.f32 %v7025, %v7087
        %7089 = vmatprep.mubr.bf16.mxu0 %v1726
        %7090 = vmatmul.mubr.bf16.gmra.mxu0 %v1725
        %v7091 = vpop.f32.mrf.mxu0
        %v7092 = vadd.f32 %v7029, %v7091
        %v7093 = vpop.f32.mrf.mxu0
        %v7094 = vadd.f32 %v7031, %v7093
        %v7095 = vpop.f32.mrf.mxu0
        %v7096 = vadd.f32 %v7033, %v7095
        %v7097 = vpop.f32.mrf.mxu0
        %v7098 = vadd.f32 %v7035, %v7097
        %7099 = vmatprep.mubr.bf16.mxu0 %v1742
        %7100 = vmatmul.mubr.bf16.gmra.mxu0 %v1741
        %v7101 = vpop.f32.mrf.mxu0
        %v7102 = vadd.f32 %v7039, %v7101
        %v7103 = vpop.f32.mrf.mxu0
        %v7104 = vadd.f32 %v7041, %v7103
        %v7105 = vpop.f32.mrf.mxu0
        %v7106 = vadd.f32 %v7043, %v7105
        %v7107 = vpop.f32.mrf.mxu0
        %v7108 = vadd.f32 %v7045, %v7107
        %7109 = vdwg.mxu0
        %7110 = vmatprep.subr.bf16.mxu0 %v5314
        %7111 = vmatpush1.bf16.msra.mxu0 %v5313
        %7112 = vmatprep.subr.bf16.mxu0 %v5306
        %7113 = vmatpush1.bf16.msra.mxu0 %v5305
        %7114 = vmatprep.subr.bf16.mxu0 %v5298
        %7115 = vmatpush1.bf16.msra.mxu0 %v5297
        %7116 = vmatprep.subr.bf16.mxu0 %v5290
        %7117 = vmatpush1.bf16.msra.mxu0 %v5289
        %7118 = vmatprep.subr.bf16.mxu0 %v5282
        %7119 = vmatpush1.bf16.msra.mxu0 %v5281
        %7120 = vmatprep.subr.bf16.mxu0 %v5274
        %7121 = vmatpush1.bf16.msra.mxu0 %v5273
        %7122 = vmatprep.subr.bf16.mxu0 %v5266
        %7123 = vmatpush1.bf16.msra.mxu0 %v5265
        %7124 = vmatprep.subr.bf16.mxu0 %v5258
        %7125 = vmatpush1.bf16.msra.mxu0 %v5257
        %7126 = vmatprep.subr.bf16.mxu0 %v5378
        %7127 = vmatpush2.bf16.msra.mxu0 %v5377
        %7128 = vmatprep.subr.bf16.mxu0 %v5370
        %7129 = vmatpush2.bf16.msra.mxu0 %v5369
        %7130 = vmatprep.subr.bf16.mxu0 %v5362
        %7131 = vmatpush2.bf16.msra.mxu0 %v5361
        %7132 = vmatprep.subr.bf16.mxu0 %v5354
        %7133 = vmatpush2.bf16.msra.mxu0 %v5353
        %7134 = vmatprep.subr.bf16.mxu0 %v5346
        %7135 = vmatpush2.bf16.msra.mxu0 %v5345
        %7136 = vmatprep.subr.bf16.mxu0 %v5338
        %7137 = vmatpush2.bf16.msra.mxu0 %v5337
        %7138 = vmatprep.subr.bf16.mxu0 %v5330
        %7139 = vmatpush2.bf16.msra.mxu0 %v5329
        %7140 = vmatprep.subr.bf16.mxu0 %v5322
        %7141 = vmatpush2.bf16.msra.mxu0 %v5321
        %7142 = vmatprep.mubr.bf16.mxu0 %v1712
        %7143 = vmatmul.mubr.bf16.gmra.mxu0 %v1711
        %v7144 = vpop.f32.mrf.mxu0
        %v7145 = vadd.f32 %v7082, %v7144
        %v7146 = vpop.f32.mrf.mxu0
        %v7147 = vadd.f32 %v7084, %v7146
        %v7148 = vpop.f32.mrf.mxu0
        %v7149 = vadd.f32 %v7086, %v7148
        %v7150 = vpop.f32.mrf.mxu0
        %v7151 = vadd.f32 %v7088, %v7150
        %7152 = vmatprep.mubr.bf16.mxu0 %v1728
        %7153 = vmatmul.mubr.bf16.gmra.mxu0 %v1727
        %v7154 = vpop.f32.mrf.mxu0
        %v7155 = vadd.f32 %v7092, %v7154
        %v7156 = vpop.f32.mrf.mxu0
        %v7157 = vadd.f32 %v7094, %v7156
        %v7158 = vpop.f32.mrf.mxu0
        %v7159 = vadd.f32 %v7096, %v7158
        %v7160 = vpop.f32.mrf.mxu0
        %v7161 = vadd.f32 %v7098, %v7160
        %7162 = vmatprep.mubr.bf16.mxu0 %v1744
        %7163 = vmatmul.mubr.bf16.gmra.mxu0 %v1743
        %v7164 = vpop.f32.mrf.mxu0
        %v7165 = vadd.f32 %v7102, %v7164
        %v7166 = vpop.f32.mrf.mxu0
        %v7167 = vadd.f32 %v7104, %v7166
        %v7168 = vpop.f32.mrf.mxu0
        %v7169 = vadd.f32 %v7106, %v7168
        %v7170 = vpop.f32.mrf.mxu0
        %v7171 = vadd.f32 %v7108, %v7170
        %7172 = vdwg.mxu0
        %7173 = vmatprep.subr.bf16.mxu0 %v5442
        %7174 = vmatpush1.bf16.msra.mxu0 %v5441
        %7175 = vmatprep.subr.bf16.mxu0 %v5434
        %7176 = vmatpush1.bf16.msra.mxu0 %v5433
        %7177 = vmatprep.subr.bf16.mxu0 %v5426
        %7178 = vmatpush1.bf16.msra.mxu0 %v5425
        %7179 = vmatprep.subr.bf16.mxu0 %v5418
        %7180 = vmatpush1.bf16.msra.mxu0 %v5417
        %7181 = vmatprep.subr.bf16.mxu0 %v5410
        %7182 = vmatpush1.bf16.msra.mxu0 %v5409
        %7183 = vmatprep.subr.bf16.mxu0 %v5402
        %7184 = vmatpush1.bf16.msra.mxu0 %v5401
        %7185 = vmatprep.subr.bf16.mxu0 %v5394
        %7186 = vmatpush1.bf16.msra.mxu0 %v5393
        %7187 = vmatprep.subr.bf16.mxu0 %v5386
        %7188 = vmatpush1.bf16.msra.mxu0 %v5385
        %7189 = vmatprep.subr.bf16.mxu0 %v5506
        %7190 = vmatpush2.bf16.msra.mxu0 %v5505
        %7191 = vmatprep.subr.bf16.mxu0 %v5498
        %7192 = vmatpush2.bf16.msra.mxu0 %v5497
        %7193 = vmatprep.subr.bf16.mxu0 %v5490
        %7194 = vmatpush2.bf16.msra.mxu0 %v5489
        %7195 = vmatprep.subr.bf16.mxu0 %v5482
        %7196 = vmatpush2.bf16.msra.mxu0 %v5481
        %7197 = vmatprep.subr.bf16.mxu0 %v5474
        %7198 = vmatpush2.bf16.msra.mxu0 %v5473
        %7199 = vmatprep.subr.bf16.mxu0 %v5466
        %7200 = vmatpush2.bf16.msra.mxu0 %v5465
        %7201 = vmatprep.subr.bf16.mxu0 %v5458
        %7202 = vmatpush2.bf16.msra.mxu0 %v5457
        %7203 = vmatprep.subr.bf16.mxu0 %v5450
        %7204 = vmatpush2.bf16.msra.mxu0 %v5449
        %7205 = vmatprep.mubr.bf16.mxu0 %v1714
        %7206 = vmatmul.mubr.bf16.gmra.mxu0 %v1713
        %v7207 = vpop.f32.mrf.mxu0
        %v7208 = vadd.f32 %v7145, %v7207
        %v7209 = vpop.f32.mrf.mxu0
        %v7210 = vadd.f32 %v7147, %v7209
        %v7211 = vpop.f32.mrf.mxu0
        %v7212 = vadd.f32 %v7149, %v7211
        %v7213 = vpop.f32.mrf.mxu0
        %v7214 = vadd.f32 %v7151, %v7213
        %7215 = vmatprep.mubr.bf16.mxu0 %v1730
        %7216 = vmatmul.mubr.bf16.gmra.mxu0 %v1729
        %v7217 = vpop.f32.mrf.mxu0
        %v7218 = vadd.f32 %v7155, %v7217
        %v7219 = vpop.f32.mrf.mxu0
        %v7220 = vadd.f32 %v7157, %v7219
        %v7221 = vpop.f32.mrf.mxu0
        %v7222 = vadd.f32 %v7159, %v7221
        %v7223 = vpop.f32.mrf.mxu0
        %v7224 = vadd.f32 %v7161, %v7223
        %7225 = vmatprep.mubr.bf16.mxu0 %v1746
        %7226 = vmatmul.mubr.bf16.gmra.mxu0 %v1745
        %v7227 = vpop.f32.mrf.mxu0
        %v7228 = vadd.f32 %v7165, %v7227
        %v7229 = vpop.f32.mrf.mxu0
        %v7230 = vadd.f32 %v7167, %v7229
        %v7231 = vpop.f32.mrf.mxu0
        %v7232 = vadd.f32 %v7169, %v7231
        %v7233 = vpop.f32.mrf.mxu0
        %v7234 = vadd.f32 %v7171, %v7233
        %7235 = vdwg.mxu0
        %7236 = vmatprep.subr.bf16.mxu0 %v5570
        %7237 = vmatpush1.bf16.msra.mxu0 %v5569
        %7238 = vmatprep.subr.bf16.mxu0 %v5562
        %7239 = vmatpush1.bf16.msra.mxu0 %v5561
        %7240 = vmatprep.subr.bf16.mxu0 %v5554
        %7241 = vmatpush1.bf16.msra.mxu0 %v5553
        %7242 = vmatprep.subr.bf16.mxu0 %v5546
        %7243 = vmatpush1.bf16.msra.mxu0 %v5545
        %7244 = vmatprep.subr.bf16.mxu0 %v5538
        %7245 = vmatpush1.bf16.msra.mxu0 %v5537
        %7246 = vmatprep.subr.bf16.mxu0 %v5530
        %7247 = vmatpush1.bf16.msra.mxu0 %v5529
        %7248 = vmatprep.subr.bf16.mxu0 %v5522
        %7249 = vmatpush1.bf16.msra.mxu0 %v5521
        %7250 = vmatprep.subr.bf16.mxu0 %v5514
        %7251 = vmatpush1.bf16.msra.mxu0 %v5513
        %7252 = vmatprep.subr.bf16.mxu0 %v5634
        %7253 = vmatpush2.bf16.msra.mxu0 %v5633
        %7254 = vmatprep.subr.bf16.mxu0 %v5626
        %7255 = vmatpush2.bf16.msra.mxu0 %v5625
        %7256 = vmatprep.subr.bf16.mxu0 %v5618
        %7257 = vmatpush2.bf16.msra.mxu0 %v5617
        %7258 = vmatprep.subr.bf16.mxu0 %v5610
        %7259 = vmatpush2.bf16.msra.mxu0 %v5609
        %7260 = vmatprep.subr.bf16.mxu0 %v5602
        %7261 = vmatpush2.bf16.msra.mxu0 %v5601
        %7262 = vmatprep.subr.bf16.mxu0 %v5594
        %7263 = vmatpush2.bf16.msra.mxu0 %v5593
        %7264 = vmatprep.subr.bf16.mxu0 %v5586
        %7265 = vmatpush2.bf16.msra.mxu0 %v5585
        %7266 = vmatprep.subr.bf16.mxu0 %v5578
        %7267 = vmatpush2.bf16.msra.mxu0 %v5577
        %7268 = vmatprep.mubr.bf16.mxu0 %v1716
        %7269 = vmatmul.mubr.bf16.gmra.mxu0 %v1715
        %v7270 = vpop.f32.mrf.mxu0
        %v7271 = vadd.f32 %v7208, %v7270
        %v7272 = vpop.f32.mrf.mxu0
        %v7273 = vadd.f32 %v7210, %v7272
        %v7274 = vpop.f32.mrf.mxu0
        %v7275 = vadd.f32 %v7212, %v7274
        %v7276 = vpop.f32.mrf.mxu0
        %v7277 = vadd.f32 %v7214, %v7276
        %7278 = vmatprep.mubr.bf16.mxu0 %v1732
        %7279 = vmatmul.mubr.bf16.gmra.mxu0 %v1731
        %v7280 = vpop.f32.mrf.mxu0
        %v7281 = vadd.f32 %v7218, %v7280
        %v7282 = vpop.f32.mrf.mxu0
        %v7283 = vadd.f32 %v7220, %v7282
        %v7284 = vpop.f32.mrf.mxu0
        %v7285 = vadd.f32 %v7222, %v7284
        %v7286 = vpop.f32.mrf.mxu0
        %v7287 = vadd.f32 %v7224, %v7286
        %7288 = vmatprep.mubr.bf16.mxu0 %v1748
        %7289 = vmatmul.mubr.bf16.gmra.mxu0 %v1747
        %v7290 = vpop.f32.mrf.mxu0
        %v7291 = vadd.f32 %v7228, %v7290
        %v7292 = vpop.f32.mrf.mxu0
        %v7293 = vadd.f32 %v7230, %v7292
        %v7294 = vpop.f32.mrf.mxu0
        %v7295 = vadd.f32 %v7232, %v7294
        %v7296 = vpop.f32.mrf.mxu0
        %v7297 = vadd.f32 %v7234, %v7296
        %7298 = vdwg.mxu0
        %7299 = vmatprep.subr.bf16.mxu0 %v5698
        %7300 = vmatpush1.bf16.msra.mxu0 %v5697
        %7301 = vmatprep.subr.bf16.mxu0 %v5690
        %7302 = vmatpush1.bf16.msra.mxu0 %v5689
        %7303 = vmatprep.subr.bf16.mxu0 %v5682
        %7304 = vmatpush1.bf16.msra.mxu0 %v5681
        %7305 = vmatprep.subr.bf16.mxu0 %v5674
        %7306 = vmatpush1.bf16.msra.mxu0 %v5673
        %7307 = vmatprep.subr.bf16.mxu0 %v5666
        %7308 = vmatpush1.bf16.msra.mxu0 %v5665
        %7309 = vmatprep.subr.bf16.mxu0 %v5658
        %7310 = vmatpush1.bf16.msra.mxu0 %v5657
        %7311 = vmatprep.subr.bf16.mxu0 %v5650
        %7312 = vmatpush1.bf16.msra.mxu0 %v5649
        %7313 = vmatprep.subr.bf16.mxu0 %v5642
        %7314 = vmatpush1.bf16.msra.mxu0 %v5641
        %7315 = vmatprep.subr.bf16.mxu0 %v5762
        %7316 = vmatpush2.bf16.msra.mxu0 %v5761
        %7317 = vmatprep.subr.bf16.mxu0 %v5754
        %7318 = vmatpush2.bf16.msra.mxu0 %v5753
        %7319 = vmatprep.subr.bf16.mxu0 %v5746
        %7320 = vmatpush2.bf16.msra.mxu0 %v5745
        %7321 = vmatprep.subr.bf16.mxu0 %v5738
        %7322 = vmatpush2.bf16.msra.mxu0 %v5737
        %7323 = vmatprep.subr.bf16.mxu0 %v5730
        %7324 = vmatpush2.bf16.msra.mxu0 %v5729
        %7325 = vmatprep.subr.bf16.mxu0 %v5722
        %7326 = vmatpush2.bf16.msra.mxu0 %v5721
        %7327 = vmatprep.subr.bf16.mxu0 %v5714
        %7328 = vmatpush2.bf16.msra.mxu0 %v5713
        %7329 = vmatprep.subr.bf16.mxu0 %v5706
        %7330 = vmatpush2.bf16.msra.mxu0 %v5705
        %7331 = vmatprep.mubr.bf16.mxu0 %v1718
        %7332 = vmatmul.mubr.bf16.gmra.mxu0 %v1717
        %v7333 = vpop.f32.mrf.mxu0
        %v7334 = vadd.f32 %v7271, %v7333
        %v7335 = vpop.f32.mrf.mxu0
        %v7336 = vadd.f32 %v7273, %v7335
        %v7337 = vpop.f32.mrf.mxu0
        %v7338 = vadd.f32 %v7275, %v7337
        %v7339 = vpop.f32.mrf.mxu0
        %v7340 = vadd.f32 %v7277, %v7339
        %7341 = vmatprep.mubr.bf16.mxu0 %v1734
        %7342 = vmatmul.mubr.bf16.gmra.mxu0 %v1733
        %v7343 = vpop.f32.mrf.mxu0
        %v7344 = vadd.f32 %v7281, %v7343
        %v7345 = vpop.f32.mrf.mxu0
        %v7346 = vadd.f32 %v7283, %v7345
        %v7347 = vpop.f32.mrf.mxu0
        %v7348 = vadd.f32 %v7285, %v7347
        %v7349 = vpop.f32.mrf.mxu0
        %v7350 = vadd.f32 %v7287, %v7349
        %7351 = vmatprep.mubr.bf16.mxu0 %v1750
        %7352 = vmatmul.mubr.bf16.gmra.mxu0 %v1749
        %v7353 = vpop.f32.mrf.mxu0
        %v7354 = vadd.f32 %v7291, %v7353
        %v7355 = vpop.f32.mrf.mxu0
        %v7356 = vadd.f32 %v7293, %v7355
        %v7357 = vpop.f32.mrf.mxu0
        %v7358 = vadd.f32 %v7295, %v7357
        %v7359 = vpop.f32.mrf.mxu0
        %v7360 = vadd.f32 %v7297, %v7359
        %7361 = vdwg.mxu0
        %7362 = vmatprep.subr.bf16.mxu0 %v5826
        %7363 = vmatpush1.bf16.msra.mxu0 %v5825
        %7364 = vmatprep.subr.bf16.mxu0 %v5818
        %7365 = vmatpush1.bf16.msra.mxu0 %v5817
        %7366 = vmatprep.subr.bf16.mxu0 %v5810
        %7367 = vmatpush1.bf16.msra.mxu0 %v5809
        %7368 = vmatprep.subr.bf16.mxu0 %v5802
        %7369 = vmatpush1.bf16.msra.mxu0 %v5801
        %7370 = vmatprep.subr.bf16.mxu0 %v5794
        %7371 = vmatpush1.bf16.msra.mxu0 %v5793
        %7372 = vmatprep.subr.bf16.mxu0 %v5786
        %7373 = vmatpush1.bf16.msra.mxu0 %v5785
        %7374 = vmatprep.subr.bf16.mxu0 %v5778
        %7375 = vmatpush1.bf16.msra.mxu0 %v5777
        %7376 = vmatprep.subr.bf16.mxu0 %v5770
        %7377 = vmatpush1.bf16.msra.mxu0 %v5769
        %7378 = vmatprep.subr.bf16.mxu0 %v5890
        %7379 = vmatpush2.bf16.msra.mxu0 %v5889
        %7380 = vmatprep.subr.bf16.mxu0 %v5882
        %7381 = vmatpush2.bf16.msra.mxu0 %v5881
        %7382 = vmatprep.subr.bf16.mxu0 %v5874
        %7383 = vmatpush2.bf16.msra.mxu0 %v5873
        %7384 = vmatprep.subr.bf16.mxu0 %v5866
        %7385 = vmatpush2.bf16.msra.mxu0 %v5865
        %7386 = vmatprep.subr.bf16.mxu0 %v5858
        %7387 = vmatpush2.bf16.msra.mxu0 %v5857
        %7388 = vmatprep.subr.bf16.mxu0 %v5850
        %7389 = vmatpush2.bf16.msra.mxu0 %v5849
        %7390 = vmatprep.subr.bf16.mxu0 %v5842
        %7391 = vmatpush2.bf16.msra.mxu0 %v5841
        %7392 = vmatprep.subr.bf16.mxu0 %v5834
        %7393 = vmatpush2.bf16.msra.mxu0 %v5833
        %7394 = vmatprep.mubr.bf16.mxu0 %v1720
        %7395 = vmatmul.mubr.bf16.gmra.mxu0 %v1719
        %v7396 = vpop.f32.mrf.mxu0
        %v7397 = vadd.f32 %v7334, %v7396
        %v7398 = vpop.f32.mrf.mxu0
        %v7399 = vadd.f32 %v7336, %v7398
        %v7400 = vpop.f32.mrf.mxu0
        %v7401 = vadd.f32 %v7338, %v7400
        %v7402 = vpop.f32.mrf.mxu0
        %v7403 = vadd.f32 %v7340, %v7402
        %7404 = vmatprep.mubr.bf16.mxu0 %v1736
        %7405 = vmatmul.mubr.bf16.gmra.mxu0 %v1735
        %v7406 = vpop.f32.mrf.mxu0
        %v7407 = vadd.f32 %v7344, %v7406
        %v7408 = vpop.f32.mrf.mxu0
        %v7409 = vadd.f32 %v7346, %v7408
        %v7410 = vpop.f32.mrf.mxu0
        %v7411 = vadd.f32 %v7348, %v7410
        %v7412 = vpop.f32.mrf.mxu0
        %v7413 = vadd.f32 %v7350, %v7412
        %7414 = vmatprep.mubr.bf16.mxu0 %v1752
        %7415 = vmatmul.mubr.bf16.gmra.mxu0 %v1751
        %v7416 = vpop.f32.mrf.mxu0
        %v7417 = vadd.f32 %v7354, %v7416
        %v7418 = vpop.f32.mrf.mxu0
        %v7419 = vadd.f32 %v7356, %v7418
        %v7420 = vpop.f32.mrf.mxu0
        %v7421 = vadd.f32 %v7358, %v7420
        %v7422 = vpop.f32.mrf.mxu0
        %v7423 = vadd.f32 %v7360, %v7422
        %7424 = vdwg.mxu0
        %7425 = vmatprep.subr.bf16.mxu0 %v4932
        %7426 = vmatpush1.bf16.msra.mxu0 %v4931
        %7427 = vmatprep.subr.bf16.mxu0 %v4924
        %7428 = vmatpush1.bf16.msra.mxu0 %v4923
        %7429 = vmatprep.subr.bf16.mxu0 %v4916
        %7430 = vmatpush1.bf16.msra.mxu0 %v4915
        %7431 = vmatprep.subr.bf16.mxu0 %v4908
        %7432 = vmatpush1.bf16.msra.mxu0 %v4907
        %7433 = vmatprep.subr.bf16.mxu0 %v4900
        %7434 = vmatpush1.bf16.msra.mxu0 %v4899
        %7435 = vmatprep.subr.bf16.mxu0 %v4892
        %7436 = vmatpush1.bf16.msra.mxu0 %v4891
        %7437 = vmatprep.subr.bf16.mxu0 %v4884
        %7438 = vmatpush1.bf16.msra.mxu0 %v4883
        %7439 = vmatprep.subr.bf16.mxu0 %v4876
        %7440 = vmatpush1.bf16.msra.mxu0 %v4875
        %7441 = vmatprep.subr.bf16.mxu0 %v4996
        %7442 = vmatpush2.bf16.msra.mxu0 %v4995
        %7443 = vmatprep.subr.bf16.mxu0 %v4988
        %7444 = vmatpush2.bf16.msra.mxu0 %v4987
        %7445 = vmatprep.subr.bf16.mxu0 %v4980
        %7446 = vmatpush2.bf16.msra.mxu0 %v4979
        %7447 = vmatprep.subr.bf16.mxu0 %v4972
        %7448 = vmatpush2.bf16.msra.mxu0 %v4971
        %7449 = vmatprep.subr.bf16.mxu0 %v4964
        %7450 = vmatpush2.bf16.msra.mxu0 %v4963
        %7451 = vmatprep.subr.bf16.mxu0 %v4956
        %7452 = vmatpush2.bf16.msra.mxu0 %v4955
        %7453 = vmatprep.subr.bf16.mxu0 %v4948
        %7454 = vmatpush2.bf16.msra.mxu0 %v4947
        %7455 = vmatprep.subr.bf16.mxu0 %v4940
        %7456 = vmatpush2.bf16.msra.mxu0 %v4939
        %7457 = vmatprep.mubr.bf16.mxu0 %v1706
        %7458 = vmatmul.mubr.bf16.gmra.mxu0 %v1705
        %v7459 = vpop.f32.mrf.mxu0
        %v7460 = vadd.f32 %v1532, %v7459
        %v7461 = vpop.f32.mrf.mxu0
        %v7462 = vadd.f32 %v1536, %v7461
        %v7463 = vpop.f32.mrf.mxu0
        %v7464 = vadd.f32 %v1532, %v7463
        %v7465 = vpop.f32.mrf.mxu0
        %v7466 = vadd.f32 %v1536, %v7465
        %7467 = vmatprep.mubr.bf16.mxu0 %v1722
        %7468 = vmatmul.mubr.bf16.gmra.mxu0 %v1721
        %v7469 = vpop.f32.mrf.mxu0
        %v7470 = vadd.f32 %v1532, %v7469
        %v7471 = vpop.f32.mrf.mxu0
        %v7472 = vadd.f32 %v1536, %v7471
        %v7473 = vpop.f32.mrf.mxu0
        %v7474 = vadd.f32 %v1532, %v7473
        %v7475 = vpop.f32.mrf.mxu0
        %v7476 = vadd.f32 %v1536, %v7475
        %7477 = vmatprep.mubr.bf16.mxu0 %v1738
        %7478 = vmatmul.mubr.bf16.gmra.mxu0 %v1737
        %v7479 = vpop.f32.mrf.mxu0
        %v7480 = vadd.f32 %v1532, %v7479
        %v7481 = vpop.f32.mrf.mxu0
        %v7482 = vadd.f32 %v1536, %v7481
        %v7483 = vpop.f32.mrf.mxu0
        %v7484 = vadd.f32 %v1532, %v7483
        %v7485 = vpop.f32.mrf.mxu0
        %v7486 = vadd.f32 %v1536, %v7485
        %7487 = vdwg.mxu0
        %7488 = vmatprep.subr.bf16.mxu0 %v5060
        %7489 = vmatpush1.bf16.msra.mxu0 %v5059
        %7490 = vmatprep.subr.bf16.mxu0 %v5052
        %7491 = vmatpush1.bf16.msra.mxu0 %v5051
        %7492 = vmatprep.subr.bf16.mxu0 %v5044
        %7493 = vmatpush1.bf16.msra.mxu0 %v5043
        %7494 = vmatprep.subr.bf16.mxu0 %v5036
        %7495 = vmatpush1.bf16.msra.mxu0 %v5035
        %7496 = vmatprep.subr.bf16.mxu0 %v5028
        %7497 = vmatpush1.bf16.msra.mxu0 %v5027
        %7498 = vmatprep.subr.bf16.mxu0 %v5020
        %7499 = vmatpush1.bf16.msra.mxu0 %v5019
        %7500 = vmatprep.subr.bf16.mxu0 %v5012
        %7501 = vmatpush1.bf16.msra.mxu0 %v5011
        %7502 = vmatprep.subr.bf16.mxu0 %v5004
        %7503 = vmatpush1.bf16.msra.mxu0 %v5003
        %7504 = vmatprep.subr.bf16.mxu0 %v5124
        %7505 = vmatpush2.bf16.msra.mxu0 %v5123
        %7506 = vmatprep.subr.bf16.mxu0 %v5116
        %7507 = vmatpush2.bf16.msra.mxu0 %v5115
        %7508 = vmatprep.subr.bf16.mxu0 %v5108
        %7509 = vmatpush2.bf16.msra.mxu0 %v5107
        %7510 = vmatprep.subr.bf16.mxu0 %v5100
        %7511 = vmatpush2.bf16.msra.mxu0 %v5099
        %7512 = vmatprep.subr.bf16.mxu0 %v5092
        %7513 = vmatpush2.bf16.msra.mxu0 %v5091
        %7514 = vmatprep.subr.bf16.mxu0 %v5084
        %7515 = vmatpush2.bf16.msra.mxu0 %v5083
        %7516 = vmatprep.subr.bf16.mxu0 %v5076
        %7517 = vmatpush2.bf16.msra.mxu0 %v5075
        %7518 = vmatprep.subr.bf16.mxu0 %v5068
        %7519 = vmatpush2.bf16.msra.mxu0 %v5067
        %7520 = vmatprep.mubr.bf16.mxu0 %v1708
        %7521 = vmatmul.mubr.bf16.gmra.mxu0 %v1707
        %v7522 = vpop.f32.mrf.mxu0
        %v7523 = vadd.f32 %v7460, %v7522
        %v7524 = vpop.f32.mrf.mxu0
        %v7525 = vadd.f32 %v7462, %v7524
        %v7526 = vpop.f32.mrf.mxu0
        %v7527 = vadd.f32 %v7464, %v7526
        %v7528 = vpop.f32.mrf.mxu0
        %v7529 = vadd.f32 %v7466, %v7528
        %7530 = vmatprep.mubr.bf16.mxu0 %v1724
        %7531 = vmatmul.mubr.bf16.gmra.mxu0 %v1723
        %v7532 = vpop.f32.mrf.mxu0
        %v7533 = vadd.f32 %v7470, %v7532
        %v7534 = vpop.f32.mrf.mxu0
        %v7535 = vadd.f32 %v7472, %v7534
        %v7536 = vpop.f32.mrf.mxu0
        %v7537 = vadd.f32 %v7474, %v7536
        %v7538 = vpop.f32.mrf.mxu0
        %v7539 = vadd.f32 %v7476, %v7538
        %7540 = vmatprep.mubr.bf16.mxu0 %v1740
        %7541 = vmatmul.mubr.bf16.gmra.mxu0 %v1739
        %v7542 = vpop.f32.mrf.mxu0
        %v7543 = vadd.f32 %v7480, %v7542
        %v7544 = vpop.f32.mrf.mxu0
        %v7545 = vadd.f32 %v7482, %v7544
        %v7546 = vpop.f32.mrf.mxu0
        %v7547 = vadd.f32 %v7484, %v7546
        %v7548 = vpop.f32.mrf.mxu0
        %v7549 = vadd.f32 %v7486, %v7548
        %7550 = vdwg.mxu0
        %7551 = vmatprep.subr.bf16.mxu0 %v5188
        %7552 = vmatpush1.bf16.msra.mxu0 %v5187
        %7553 = vmatprep.subr.bf16.mxu0 %v5180
        %7554 = vmatpush1.bf16.msra.mxu0 %v5179
        %7555 = vmatprep.subr.bf16.mxu0 %v5172
        %7556 = vmatpush1.bf16.msra.mxu0 %v5171
        %7557 = vmatprep.subr.bf16.mxu0 %v5164
        %7558 = vmatpush1.bf16.msra.mxu0 %v5163
        %7559 = vmatprep.subr.bf16.mxu0 %v5156
        %7560 = vmatpush1.bf16.msra.mxu0 %v5155
        %7561 = vmatprep.subr.bf16.mxu0 %v5148
        %7562 = vmatpush1.bf16.msra.mxu0 %v5147
        %7563 = vmatprep.subr.bf16.mxu0 %v5140
        %7564 = vmatpush1.bf16.msra.mxu0 %v5139
        %7565 = vmatprep.subr.bf16.mxu0 %v5132
        %7566 = vmatpush1.bf16.msra.mxu0 %v5131
        %7567 = vmatprep.subr.bf16.mxu0 %v5252
        %7568 = vmatpush2.bf16.msra.mxu0 %v5251
        %7569 = vmatprep.subr.bf16.mxu0 %v5244
        %7570 = vmatpush2.bf16.msra.mxu0 %v5243
        %7571 = vmatprep.subr.bf16.mxu0 %v5236
        %7572 = vmatpush2.bf16.msra.mxu0 %v5235
        %7573 = vmatprep.subr.bf16.mxu0 %v5228
        %7574 = vmatpush2.bf16.msra.mxu0 %v5227
        %7575 = vmatprep.subr.bf16.mxu0 %v5220
        %7576 = vmatpush2.bf16.msra.mxu0 %v5219
        %7577 = vmatprep.subr.bf16.mxu0 %v5212
        %7578 = vmatpush2.bf16.msra.mxu0 %v5211
        %7579 = vmatprep.subr.bf16.mxu0 %v5204
        %7580 = vmatpush2.bf16.msra.mxu0 %v5203
        %7581 = vmatprep.subr.bf16.mxu0 %v5196
        %7582 = vmatpush2.bf16.msra.mxu0 %v5195
        %7583 = vmatprep.mubr.bf16.mxu0 %v1710
        %7584 = vmatmul.mubr.bf16.gmra.mxu0 %v1709
        %v7585 = vpop.f32.mrf.mxu0
        %v7586 = vadd.f32 %v7523, %v7585
        %v7587 = vpop.f32.mrf.mxu0
        %v7588 = vadd.f32 %v7525, %v7587
        %v7589 = vpop.f32.mrf.mxu0
        %v7590 = vadd.f32 %v7527, %v7589
        %v7591 = vpop.f32.mrf.mxu0
        %v7592 = vadd.f32 %v7529, %v7591
        %7593 = vmatprep.mubr.bf16.mxu0 %v1726
        %7594 = vmatmul.mubr.bf16.gmra.mxu0 %v1725
        %v7595 = vpop.f32.mrf.mxu0
        %v7596 = vadd.f32 %v7533, %v7595
        %v7597 = vpop.f32.mrf.mxu0
        %v7598 = vadd.f32 %v7535, %v7597
        %v7599 = vpop.f32.mrf.mxu0
        %v7600 = vadd.f32 %v7537, %v7599
        %v7601 = vpop.f32.mrf.mxu0
        %v7602 = vadd.f32 %v7539, %v7601
        %7603 = vmatprep.mubr.bf16.mxu0 %v1742
        %7604 = vmatmul.mubr.bf16.gmra.mxu0 %v1741
        %v7605 = vpop.f32.mrf.mxu0
        %v7606 = vadd.f32 %v7543, %v7605
        %v7607 = vpop.f32.mrf.mxu0
        %v7608 = vadd.f32 %v7545, %v7607
        %v7609 = vpop.f32.mrf.mxu0
        %v7610 = vadd.f32 %v7547, %v7609
        %v7611 = vpop.f32.mrf.mxu0
        %v7612 = vadd.f32 %v7549, %v7611
        %7613 = vdwg.mxu0
        %7614 = vmatprep.subr.bf16.mxu0 %v5316
        %7615 = vmatpush1.bf16.msra.mxu0 %v5315
        %7616 = vmatprep.subr.bf16.mxu0 %v5308
        %7617 = vmatpush1.bf16.msra.mxu0 %v5307
        %7618 = vmatprep.subr.bf16.mxu0 %v5300
        %7619 = vmatpush1.bf16.msra.mxu0 %v5299
        %7620 = vmatprep.subr.bf16.mxu0 %v5292
        %7621 = vmatpush1.bf16.msra.mxu0 %v5291
        %7622 = vmatprep.subr.bf16.mxu0 %v5284
        %7623 = vmatpush1.bf16.msra.mxu0 %v5283
        %7624 = vmatprep.subr.bf16.mxu0 %v5276
        %7625 = vmatpush1.bf16.msra.mxu0 %v5275
        %7626 = vmatprep.subr.bf16.mxu0 %v5268
        %7627 = vmatpush1.bf16.msra.mxu0 %v5267
        %7628 = vmatprep.subr.bf16.mxu0 %v5260
        %7629 = vmatpush1.bf16.msra.mxu0 %v5259
        %7630 = vmatprep.subr.bf16.mxu0 %v5380
        %7631 = vmatpush2.bf16.msra.mxu0 %v5379
        %7632 = vmatprep.subr.bf16.mxu0 %v5372
        %7633 = vmatpush2.bf16.msra.mxu0 %v5371
        %7634 = vmatprep.subr.bf16.mxu0 %v5364
        %7635 = vmatpush2.bf16.msra.mxu0 %v5363
        %7636 = vmatprep.subr.bf16.mxu0 %v5356
        %7637 = vmatpush2.bf16.msra.mxu0 %v5355
        %7638 = vmatprep.subr.bf16.mxu0 %v5348
        %7639 = vmatpush2.bf16.msra.mxu0 %v5347
        %7640 = vmatprep.subr.bf16.mxu0 %v5340
        %7641 = vmatpush2.bf16.msra.mxu0 %v5339
        %7642 = vmatprep.subr.bf16.mxu0 %v5332
        %7643 = vmatpush2.bf16.msra.mxu0 %v5331
        %7644 = vmatprep.subr.bf16.mxu0 %v5324
        %7645 = vmatpush2.bf16.msra.mxu0 %v5323
        %7646 = vmatprep.mubr.bf16.mxu0 %v1712
        %7647 = vmatmul.mubr.bf16.gmra.mxu0 %v1711
        %v7648 = vpop.f32.mrf.mxu0
        %v7649 = vadd.f32 %v7586, %v7648
        %v7650 = vpop.f32.mrf.mxu0
        %v7651 = vadd.f32 %v7588, %v7650
        %v7652 = vpop.f32.mrf.mxu0
        %v7653 = vadd.f32 %v7590, %v7652
        %v7654 = vpop.f32.mrf.mxu0
        %v7655 = vadd.f32 %v7592, %v7654
        %7656 = vmatprep.mubr.bf16.mxu0 %v1728
        %7657 = vmatmul.mubr.bf16.gmra.mxu0 %v1727
        %v7658 = vpop.f32.mrf.mxu0
        %v7659 = vadd.f32 %v7596, %v7658
        %v7660 = vpop.f32.mrf.mxu0
        %v7661 = vadd.f32 %v7598, %v7660
        %v7662 = vpop.f32.mrf.mxu0
        %v7663 = vadd.f32 %v7600, %v7662
        %v7664 = vpop.f32.mrf.mxu0
        %v7665 = vadd.f32 %v7602, %v7664
        %7666 = vmatprep.mubr.bf16.mxu0 %v1744
        %7667 = vmatmul.mubr.bf16.gmra.mxu0 %v1743
        %v7668 = vpop.f32.mrf.mxu0
        %v7669 = vadd.f32 %v7606, %v7668
        %v7670 = vpop.f32.mrf.mxu0
        %v7671 = vadd.f32 %v7608, %v7670
        %v7672 = vpop.f32.mrf.mxu0
        %v7673 = vadd.f32 %v7610, %v7672
        %v7674 = vpop.f32.mrf.mxu0
        %v7675 = vadd.f32 %v7612, %v7674
        %7676 = vdwg.mxu0
        %7677 = vmatprep.subr.bf16.mxu0 %v5444
        %7678 = vmatpush1.bf16.msra.mxu0 %v5443
        %7679 = vmatprep.subr.bf16.mxu0 %v5436
        %7680 = vmatpush1.bf16.msra.mxu0 %v5435
        %7681 = vmatprep.subr.bf16.mxu0 %v5428
        %7682 = vmatpush1.bf16.msra.mxu0 %v5427
        %7683 = vmatprep.subr.bf16.mxu0 %v5420
        %7684 = vmatpush1.bf16.msra.mxu0 %v5419
        %7685 = vmatprep.subr.bf16.mxu0 %v5412
        %7686 = vmatpush1.bf16.msra.mxu0 %v5411
        %7687 = vmatprep.subr.bf16.mxu0 %v5404
        %7688 = vmatpush1.bf16.msra.mxu0 %v5403
        %7689 = vmatprep.subr.bf16.mxu0 %v5396
        %7690 = vmatpush1.bf16.msra.mxu0 %v5395
        %7691 = vmatprep.subr.bf16.mxu0 %v5388
        %7692 = vmatpush1.bf16.msra.mxu0 %v5387
        %7693 = vmatprep.subr.bf16.mxu0 %v5508
        %7694 = vmatpush2.bf16.msra.mxu0 %v5507
        %7695 = vmatprep.subr.bf16.mxu0 %v5500
        %7696 = vmatpush2.bf16.msra.mxu0 %v5499
        %7697 = vmatprep.subr.bf16.mxu0 %v5492
        %7698 = vmatpush2.bf16.msra.mxu0 %v5491
        %7699 = vmatprep.subr.bf16.mxu0 %v5484
        %7700 = vmatpush2.bf16.msra.mxu0 %v5483
        %7701 = vmatprep.subr.bf16.mxu0 %v5476
        %7702 = vmatpush2.bf16.msra.mxu0 %v5475
        %7703 = vmatprep.subr.bf16.mxu0 %v5468
        %7704 = vmatpush2.bf16.msra.mxu0 %v5467
        %7705 = vmatprep.subr.bf16.mxu0 %v5460
        %7706 = vmatpush2.bf16.msra.mxu0 %v5459
        %7707 = vmatprep.subr.bf16.mxu0 %v5452
        %7708 = vmatpush2.bf16.msra.mxu0 %v5451
        %7709 = vmatprep.mubr.bf16.mxu0 %v1714
        %7710 = vmatmul.mubr.bf16.gmra.mxu0 %v1713
        %v7711 = vpop.f32.mrf.mxu0
        %v7712 = vadd.f32 %v7649, %v7711
        %v7713 = vpop.f32.mrf.mxu0
        %v7714 = vadd.f32 %v7651, %v7713
        %v7715 = vpop.f32.mrf.mxu0
        %v7716 = vadd.f32 %v7653, %v7715
        %v7717 = vpop.f32.mrf.mxu0
        %v7718 = vadd.f32 %v7655, %v7717
        %7719 = vmatprep.mubr.bf16.mxu0 %v1730
        %7720 = vmatmul.mubr.bf16.gmra.mxu0 %v1729
        %v7721 = vpop.f32.mrf.mxu0
        %v7722 = vadd.f32 %v7659, %v7721
        %v7723 = vpop.f32.mrf.mxu0
        %v7724 = vadd.f32 %v7661, %v7723
        %v7725 = vpop.f32.mrf.mxu0
        %v7726 = vadd.f32 %v7663, %v7725
        %v7727 = vpop.f32.mrf.mxu0
        %v7728 = vadd.f32 %v7665, %v7727
        %7729 = vmatprep.mubr.bf16.mxu0 %v1746
        %7730 = vmatmul.mubr.bf16.gmra.mxu0 %v1745
        %v7731 = vpop.f32.mrf.mxu0
        %v7732 = vadd.f32 %v7669, %v7731
        %v7733 = vpop.f32.mrf.mxu0
        %v7734 = vadd.f32 %v7671, %v7733
        %v7735 = vpop.f32.mrf.mxu0
        %v7736 = vadd.f32 %v7673, %v7735
        %v7737 = vpop.f32.mrf.mxu0
        %v7738 = vadd.f32 %v7675, %v7737
        %7739 = vdwg.mxu0
        %7740 = vmatprep.subr.bf16.mxu0 %v5572
        %7741 = vmatpush1.bf16.msra.mxu0 %v5571
        %7742 = vmatprep.subr.bf16.mxu0 %v5564
        %7743 = vmatpush1.bf16.msra.mxu0 %v5563
        %7744 = vmatprep.subr.bf16.mxu0 %v5556
        %7745 = vmatpush1.bf16.msra.mxu0 %v5555
        %7746 = vmatprep.subr.bf16.mxu0 %v5548
        %7747 = vmatpush1.bf16.msra.mxu0 %v5547
        %7748 = vmatprep.subr.bf16.mxu0 %v5540
        %7749 = vmatpush1.bf16.msra.mxu0 %v5539
        %7750 = vmatprep.subr.bf16.mxu0 %v5532
        %7751 = vmatpush1.bf16.msra.mxu0 %v5531
        %7752 = vmatprep.subr.bf16.mxu0 %v5524
        %7753 = vmatpush1.bf16.msra.mxu0 %v5523
        %7754 = vmatprep.subr.bf16.mxu0 %v5516
        %7755 = vmatpush1.bf16.msra.mxu0 %v5515
        %7756 = vmatprep.subr.bf16.mxu0 %v5636
        %7757 = vmatpush2.bf16.msra.mxu0 %v5635
        %7758 = vmatprep.subr.bf16.mxu0 %v5628
        %7759 = vmatpush2.bf16.msra.mxu0 %v5627
        %7760 = vmatprep.subr.bf16.mxu0 %v5620
        %7761 = vmatpush2.bf16.msra.mxu0 %v5619
        %7762 = vmatprep.subr.bf16.mxu0 %v5612
        %7763 = vmatpush2.bf16.msra.mxu0 %v5611
        %7764 = vmatprep.subr.bf16.mxu0 %v5604
        %7765 = vmatpush2.bf16.msra.mxu0 %v5603
        %7766 = vmatprep.subr.bf16.mxu0 %v5596
        %7767 = vmatpush2.bf16.msra.mxu0 %v5595
        %7768 = vmatprep.subr.bf16.mxu0 %v5588
        %7769 = vmatpush2.bf16.msra.mxu0 %v5587
        %7770 = vmatprep.subr.bf16.mxu0 %v5580
        %7771 = vmatpush2.bf16.msra.mxu0 %v5579
        %7772 = vmatprep.mubr.bf16.mxu0 %v1716
        %7773 = vmatmul.mubr.bf16.gmra.mxu0 %v1715
        %v7774 = vpop.f32.mrf.mxu0
        %v7775 = vadd.f32 %v7712, %v7774
        %v7776 = vpop.f32.mrf.mxu0
        %v7777 = vadd.f32 %v7714, %v7776
        %v7778 = vpop.f32.mrf.mxu0
        %v7779 = vadd.f32 %v7716, %v7778
        %v7780 = vpop.f32.mrf.mxu0
        %v7781 = vadd.f32 %v7718, %v7780
        %7782 = vmatprep.mubr.bf16.mxu0 %v1732
        %7783 = vmatmul.mubr.bf16.gmra.mxu0 %v1731
        %v7784 = vpop.f32.mrf.mxu0
        %v7785 = vadd.f32 %v7722, %v7784
        %v7786 = vpop.f32.mrf.mxu0
        %v7787 = vadd.f32 %v7724, %v7786
        %v7788 = vpop.f32.mrf.mxu0
        %v7789 = vadd.f32 %v7726, %v7788
        %v7790 = vpop.f32.mrf.mxu0
        %v7791 = vadd.f32 %v7728, %v7790
        %7792 = vmatprep.mubr.bf16.mxu0 %v1748
        %7793 = vmatmul.mubr.bf16.gmra.mxu0 %v1747
        %v7794 = vpop.f32.mrf.mxu0
        %v7795 = vadd.f32 %v7732, %v7794
        %v7796 = vpop.f32.mrf.mxu0
        %v7797 = vadd.f32 %v7734, %v7796
        %v7798 = vpop.f32.mrf.mxu0
        %v7799 = vadd.f32 %v7736, %v7798
        %v7800 = vpop.f32.mrf.mxu0
        %v7801 = vadd.f32 %v7738, %v7800
        %7802 = vdwg.mxu0
        %7803 = vmatprep.subr.bf16.mxu0 %v5700
        %7804 = vmatpush1.bf16.msra.mxu0 %v5699
        %7805 = vmatprep.subr.bf16.mxu0 %v5692
        %7806 = vmatpush1.bf16.msra.mxu0 %v5691
        %7807 = vmatprep.subr.bf16.mxu0 %v5684
        %7808 = vmatpush1.bf16.msra.mxu0 %v5683
        %7809 = vmatprep.subr.bf16.mxu0 %v5676
        %7810 = vmatpush1.bf16.msra.mxu0 %v5675
        %7811 = vmatprep.subr.bf16.mxu0 %v5668
        %7812 = vmatpush1.bf16.msra.mxu0 %v5667
        %7813 = vmatprep.subr.bf16.mxu0 %v5660
        %7814 = vmatpush1.bf16.msra.mxu0 %v5659
        %7815 = vmatprep.subr.bf16.mxu0 %v5652
        %7816 = vmatpush1.bf16.msra.mxu0 %v5651
        %7817 = vmatprep.subr.bf16.mxu0 %v5644
        %7818 = vmatpush1.bf16.msra.mxu0 %v5643
        %7819 = vmatprep.subr.bf16.mxu0 %v5764
        %7820 = vmatpush2.bf16.msra.mxu0 %v5763
        %7821 = vmatprep.subr.bf16.mxu0 %v5756
        %7822 = vmatpush2.bf16.msra.mxu0 %v5755
        %7823 = vmatprep.subr.bf16.mxu0 %v5748
        %7824 = vmatpush2.bf16.msra.mxu0 %v5747
        %7825 = vmatprep.subr.bf16.mxu0 %v5740
        %7826 = vmatpush2.bf16.msra.mxu0 %v5739
        %7827 = vmatprep.subr.bf16.mxu0 %v5732
        %7828 = vmatpush2.bf16.msra.mxu0 %v5731
        %7829 = vmatprep.subr.bf16.mxu0 %v5724
        %7830 = vmatpush2.bf16.msra.mxu0 %v5723
        %7831 = vmatprep.subr.bf16.mxu0 %v5716
        %7832 = vmatpush2.bf16.msra.mxu0 %v5715
        %7833 = vmatprep.subr.bf16.mxu0 %v5708
        %7834 = vmatpush2.bf16.msra.mxu0 %v5707
        %7835 = vmatprep.mubr.bf16.mxu0 %v1718
        %7836 = vmatmul.mubr.bf16.gmra.mxu0 %v1717
        %v7837 = vpop.f32.mrf.mxu0
        %v7838 = vadd.f32 %v7775, %v7837
        %v7839 = vpop.f32.mrf.mxu0
        %v7840 = vadd.f32 %v7777, %v7839
        %v7841 = vpop.f32.mrf.mxu0
        %v7842 = vadd.f32 %v7779, %v7841
        %v7843 = vpop.f32.mrf.mxu0
        %v7844 = vadd.f32 %v7781, %v7843
        %7845 = vmatprep.mubr.bf16.mxu0 %v1734
        %7846 = vmatmul.mubr.bf16.gmra.mxu0 %v1733
        %v7847 = vpop.f32.mrf.mxu0
        %v7848 = vadd.f32 %v7785, %v7847
        %v7849 = vpop.f32.mrf.mxu0
        %v7850 = vadd.f32 %v7787, %v7849
        %v7851 = vpop.f32.mrf.mxu0
        %v7852 = vadd.f32 %v7789, %v7851
        %v7853 = vpop.f32.mrf.mxu0
        %v7854 = vadd.f32 %v7791, %v7853
        %7855 = vmatprep.mubr.bf16.mxu0 %v1750
        %7856 = vmatmul.mubr.bf16.gmra.mxu0 %v1749
        %v7857 = vpop.f32.mrf.mxu0
        %v7858 = vadd.f32 %v7795, %v7857
        %v7859 = vpop.f32.mrf.mxu0
        %v7860 = vadd.f32 %v7797, %v7859
        %v7861 = vpop.f32.mrf.mxu0
        %v7862 = vadd.f32 %v7799, %v7861
        %v7863 = vpop.f32.mrf.mxu0
        %v7864 = vadd.f32 %v7801, %v7863
        %7865 = vdwg.mxu0
        %7866 = vmatprep.subr.bf16.mxu0 %v5828
        %7867 = vmatpush1.bf16.msra.mxu0 %v5827
        %7868 = vmatprep.subr.bf16.mxu0 %v5820
        %7869 = vmatpush1.bf16.msra.mxu0 %v5819
        %7870 = vmatprep.subr.bf16.mxu0 %v5812
        %7871 = vmatpush1.bf16.msra.mxu0 %v5811
        %7872 = vmatprep.subr.bf16.mxu0 %v5804
        %7873 = vmatpush1.bf16.msra.mxu0 %v5803
        %7874 = vmatprep.subr.bf16.mxu0 %v5796
        %7875 = vmatpush1.bf16.msra.mxu0 %v5795
        %7876 = vmatprep.subr.bf16.mxu0 %v5788
        %7877 = vmatpush1.bf16.msra.mxu0 %v5787
        %7878 = vmatprep.subr.bf16.mxu0 %v5780
        %7879 = vmatpush1.bf16.msra.mxu0 %v5779
        %7880 = vmatprep.subr.bf16.mxu0 %v5772
        %7881 = vmatpush1.bf16.msra.mxu0 %v5771
        %7882 = vmatprep.subr.bf16.mxu0 %v5892
        %7883 = vmatpush2.bf16.msra.mxu0 %v5891
        %7884 = vmatprep.subr.bf16.mxu0 %v5884
        %7885 = vmatpush2.bf16.msra.mxu0 %v5883
        %7886 = vmatprep.subr.bf16.mxu0 %v5876
        %7887 = vmatpush2.bf16.msra.mxu0 %v5875
        %7888 = vmatprep.subr.bf16.mxu0 %v5868
        %7889 = vmatpush2.bf16.msra.mxu0 %v5867
        %7890 = vmatprep.subr.bf16.mxu0 %v5860
        %7891 = vmatpush2.bf16.msra.mxu0 %v5859
        %7892 = vmatprep.subr.bf16.mxu0 %v5852
        %7893 = vmatpush2.bf16.msra.mxu0 %v5851
        %7894 = vmatprep.subr.bf16.mxu0 %v5844
        %7895 = vmatpush2.bf16.msra.mxu0 %v5843
        %7896 = vmatprep.subr.bf16.mxu0 %v5836
        %7897 = vmatpush2.bf16.msra.mxu0 %v5835
        %7898 = vmatprep.mubr.bf16.mxu0 %v1720
        %7899 = vmatmul.mubr.bf16.gmra.mxu0 %v1719
        %v7900 = vpop.f32.mrf.mxu0
        %v7901 = vadd.f32 %v7838, %v7900
        %v7902 = vpop.f32.mrf.mxu0
        %v7903 = vadd.f32 %v7840, %v7902
        %v7904 = vpop.f32.mrf.mxu0
        %v7905 = vadd.f32 %v7842, %v7904
        %v7906 = vpop.f32.mrf.mxu0
        %v7907 = vadd.f32 %v7844, %v7906
        %7908 = vmatprep.mubr.bf16.mxu0 %v1736
        %7909 = vmatmul.mubr.bf16.gmra.mxu0 %v1735
        %v7910 = vpop.f32.mrf.mxu0
        %v7911 = vadd.f32 %v7848, %v7910
        %v7912 = vpop.f32.mrf.mxu0
        %v7913 = vadd.f32 %v7850, %v7912
        %v7914 = vpop.f32.mrf.mxu0
        %v7915 = vadd.f32 %v7852, %v7914
        %v7916 = vpop.f32.mrf.mxu0
        %v7917 = vadd.f32 %v7854, %v7916
        %7918 = vmatprep.mubr.bf16.mxu0 %v1752
        %7919 = vmatmul.mubr.bf16.gmra.mxu0 %v1751
        %v7920 = vpop.f32.mrf.mxu0
        %v7921 = vadd.f32 %v7858, %v7920
        %v7922 = vpop.f32.mrf.mxu0
        %v7923 = vadd.f32 %v7860, %v7922
        %v7924 = vpop.f32.mrf.mxu0
        %v7925 = vadd.f32 %v7862, %v7924
        %v7926 = vpop.f32.mrf.mxu0
        %v7927 = vadd.f32 %v7864, %v7926
        %7928 = vdwg.mxu0
        %7929 = vmatprep.subr.bf16.mxu0 %v4934
        %7930 = vmatpush1.bf16.msra.mxu0 %v4933
        %7931 = vmatprep.subr.bf16.mxu0 %v4926
        %7932 = vmatpush1.bf16.msra.mxu0 %v4925
        %7933 = vmatprep.subr.bf16.mxu0 %v4918
        %7934 = vmatpush1.bf16.msra.mxu0 %v4917
        %7935 = vmatprep.subr.bf16.mxu0 %v4910
        %7936 = vmatpush1.bf16.msra.mxu0 %v4909
        %7937 = vmatprep.subr.bf16.mxu0 %v4902
        %7938 = vmatpush1.bf16.msra.mxu0 %v4901
        %7939 = vmatprep.subr.bf16.mxu0 %v4894
        %7940 = vmatpush1.bf16.msra.mxu0 %v4893
        %7941 = vmatprep.subr.bf16.mxu0 %v4886
        %7942 = vmatpush1.bf16.msra.mxu0 %v4885
        %7943 = vmatprep.subr.bf16.mxu0 %v4878
        %7944 = vmatpush1.bf16.msra.mxu0 %v4877
        %7945 = vmatprep.subr.bf16.mxu0 %v4998
        %7946 = vmatpush2.bf16.msra.mxu0 %v4997
        %7947 = vmatprep.subr.bf16.mxu0 %v4990
        %7948 = vmatpush2.bf16.msra.mxu0 %v4989
        %7949 = vmatprep.subr.bf16.mxu0 %v4982
        %7950 = vmatpush2.bf16.msra.mxu0 %v4981
        %7951 = vmatprep.subr.bf16.mxu0 %v4974
        %7952 = vmatpush2.bf16.msra.mxu0 %v4973
        %7953 = vmatprep.subr.bf16.mxu0 %v4966
        %7954 = vmatpush2.bf16.msra.mxu0 %v4965
        %7955 = vmatprep.subr.bf16.mxu0 %v4958
        %7956 = vmatpush2.bf16.msra.mxu0 %v4957
        %7957 = vmatprep.subr.bf16.mxu0 %v4950
        %7958 = vmatpush2.bf16.msra.mxu0 %v4949
        %7959 = vmatprep.subr.bf16.mxu0 %v4942
        %7960 = vmatpush2.bf16.msra.mxu0 %v4941
        %7961 = vmatprep.mubr.bf16.mxu0 %v1706
        %7962 = vmatmul.mubr.bf16.gmra.mxu0 %v1705
        %v7963 = vpop.f32.mrf.mxu0
        %v7964 = vadd.f32 %v1540, %v7963
        %v7965 = vpop.f32.mrf.mxu0
        %v7966 = vadd.f32 %v1544, %v7965
        %v7967 = vpop.f32.mrf.mxu0
        %v7968 = vadd.f32 %v1540, %v7967
        %v7969 = vpop.f32.mrf.mxu0
        %v7970 = vadd.f32 %v1544, %v7969
        %7971 = vmatprep.mubr.bf16.mxu0 %v1722
        %7972 = vmatmul.mubr.bf16.gmra.mxu0 %v1721
        %v7973 = vpop.f32.mrf.mxu0
        %v7974 = vadd.f32 %v1540, %v7973
        %v7975 = vpop.f32.mrf.mxu0
        %v7976 = vadd.f32 %v1544, %v7975
        %v7977 = vpop.f32.mrf.mxu0
        %v7978 = vadd.f32 %v1540, %v7977
        %v7979 = vpop.f32.mrf.mxu0
        %v7980 = vadd.f32 %v1544, %v7979
        %7981 = vmatprep.mubr.bf16.mxu0 %v1738
        %7982 = vmatmul.mubr.bf16.gmra.mxu0 %v1737
        %v7983 = vpop.f32.mrf.mxu0
        %v7984 = vadd.f32 %v1540, %v7983
        %v7985 = vpop.f32.mrf.mxu0
        %v7986 = vadd.f32 %v1544, %v7985
        %v7987 = vpop.f32.mrf.mxu0
        %v7988 = vadd.f32 %v1540, %v7987
        %v7989 = vpop.f32.mrf.mxu0
        %v7990 = vadd.f32 %v1544, %v7989
        %7991 = vdwg.mxu0
        %7992 = vmatprep.subr.bf16.mxu0 %v5062
        %7993 = vmatpush1.bf16.msra.mxu0 %v5061
        %7994 = vmatprep.subr.bf16.mxu0 %v5054
        %7995 = vmatpush1.bf16.msra.mxu0 %v5053
        %7996 = vmatprep.subr.bf16.mxu0 %v5046
        %7997 = vmatpush1.bf16.msra.mxu0 %v5045
        %7998 = vmatprep.subr.bf16.mxu0 %v5038
        %7999 = vmatpush1.bf16.msra.mxu0 %v5037
        %8000 = vmatprep.subr.bf16.mxu0 %v5030
        %8001 = vmatpush1.bf16.msra.mxu0 %v5029
        %8002 = vmatprep.subr.bf16.mxu0 %v5022
        %8003 = vmatpush1.bf16.msra.mxu0 %v5021
        %8004 = vmatprep.subr.bf16.mxu0 %v5014
        %8005 = vmatpush1.bf16.msra.mxu0 %v5013
        %8006 = vmatprep.subr.bf16.mxu0 %v5006
        %8007 = vmatpush1.bf16.msra.mxu0 %v5005
        %8008 = vmatprep.subr.bf16.mxu0 %v5126
        %8009 = vmatpush2.bf16.msra.mxu0 %v5125
        %8010 = vmatprep.subr.bf16.mxu0 %v5118
        %8011 = vmatpush2.bf16.msra.mxu0 %v5117
        %8012 = vmatprep.subr.bf16.mxu0 %v5110
        %8013 = vmatpush2.bf16.msra.mxu0 %v5109
        %8014 = vmatprep.subr.bf16.mxu0 %v5102
        %8015 = vmatpush2.bf16.msra.mxu0 %v5101
        %8016 = vmatprep.subr.bf16.mxu0 %v5094
        %8017 = vmatpush2.bf16.msra.mxu0 %v5093
        %8018 = vmatprep.subr.bf16.mxu0 %v5086
        %8019 = vmatpush2.bf16.msra.mxu0 %v5085
        %8020 = vmatprep.subr.bf16.mxu0 %v5078
        %8021 = vmatpush2.bf16.msra.mxu0 %v5077
        %8022 = vmatprep.subr.bf16.mxu0 %v5070
        %8023 = vmatpush2.bf16.msra.mxu0 %v5069
        %8024 = vmatprep.mubr.bf16.mxu0 %v1708
        %8025 = vmatmul.mubr.bf16.gmra.mxu0 %v1707
        %v8026 = vpop.f32.mrf.mxu0
        %v8027 = vadd.f32 %v7964, %v8026
        %v8028 = vpop.f32.mrf.mxu0
        %v8029 = vadd.f32 %v7966, %v8028
        %v8030 = vpop.f32.mrf.mxu0
        %v8031 = vadd.f32 %v7968, %v8030
        %v8032 = vpop.f32.mrf.mxu0
        %v8033 = vadd.f32 %v7970, %v8032
        %8034 = vmatprep.mubr.bf16.mxu0 %v1724
        %8035 = vmatmul.mubr.bf16.gmra.mxu0 %v1723
        %v8036 = vpop.f32.mrf.mxu0
        %v8037 = vadd.f32 %v7974, %v8036
        %v8038 = vpop.f32.mrf.mxu0
        %v8039 = vadd.f32 %v7976, %v8038
        %v8040 = vpop.f32.mrf.mxu0
        %v8041 = vadd.f32 %v7978, %v8040
        %v8042 = vpop.f32.mrf.mxu0
        %v8043 = vadd.f32 %v7980, %v8042
        %8044 = vmatprep.mubr.bf16.mxu0 %v1740
        %8045 = vmatmul.mubr.bf16.gmra.mxu0 %v1739
        %v8046 = vpop.f32.mrf.mxu0
        %v8047 = vadd.f32 %v7984, %v8046
        %v8048 = vpop.f32.mrf.mxu0
        %v8049 = vadd.f32 %v7986, %v8048
        %v8050 = vpop.f32.mrf.mxu0
        %v8051 = vadd.f32 %v7988, %v8050
        %v8052 = vpop.f32.mrf.mxu0
        %v8053 = vadd.f32 %v7990, %v8052
        %8054 = vdwg.mxu0
        %8055 = vmatprep.subr.bf16.mxu0 %v5190
        %8056 = vmatpush1.bf16.msra.mxu0 %v5189
        %8057 = vmatprep.subr.bf16.mxu0 %v5182
        %8058 = vmatpush1.bf16.msra.mxu0 %v5181
        %8059 = vmatprep.subr.bf16.mxu0 %v5174
        %8060 = vmatpush1.bf16.msra.mxu0 %v5173
        %8061 = vmatprep.subr.bf16.mxu0 %v5166
        %8062 = vmatpush1.bf16.msra.mxu0 %v5165
        %8063 = vmatprep.subr.bf16.mxu0 %v5158
        %8064 = vmatpush1.bf16.msra.mxu0 %v5157
        %8065 = vmatprep.subr.bf16.mxu0 %v5150
        %8066 = vmatpush1.bf16.msra.mxu0 %v5149
        %8067 = vmatprep.subr.bf16.mxu0 %v5142
        %8068 = vmatpush1.bf16.msra.mxu0 %v5141
        %8069 = vmatprep.subr.bf16.mxu0 %v5134
        %8070 = vmatpush1.bf16.msra.mxu0 %v5133
        %8071 = vmatprep.subr.bf16.mxu0 %v5254
        %8072 = vmatpush2.bf16.msra.mxu0 %v5253
        %8073 = vmatprep.subr.bf16.mxu0 %v5246
        %8074 = vmatpush2.bf16.msra.mxu0 %v5245
        %8075 = vmatprep.subr.bf16.mxu0 %v5238
        %8076 = vmatpush2.bf16.msra.mxu0 %v5237
        %8077 = vmatprep.subr.bf16.mxu0 %v5230
        %8078 = vmatpush2.bf16.msra.mxu0 %v5229
        %8079 = vmatprep.subr.bf16.mxu0 %v5222
        %8080 = vmatpush2.bf16.msra.mxu0 %v5221
        %8081 = vmatprep.subr.bf16.mxu0 %v5214
        %8082 = vmatpush2.bf16.msra.mxu0 %v5213
        %8083 = vmatprep.subr.bf16.mxu0 %v5206
        %8084 = vmatpush2.bf16.msra.mxu0 %v5205
        %8085 = vmatprep.subr.bf16.mxu0 %v5198
        %8086 = vmatpush2.bf16.msra.mxu0 %v5197
        %8087 = vmatprep.mubr.bf16.mxu0 %v1710
        %8088 = vmatmul.mubr.bf16.gmra.mxu0 %v1709
        %v8089 = vpop.f32.mrf.mxu0
        %v8090 = vadd.f32 %v8027, %v8089
        %v8091 = vpop.f32.mrf.mxu0
        %v8092 = vadd.f32 %v8029, %v8091
        %v8093 = vpop.f32.mrf.mxu0
        %v8094 = vadd.f32 %v8031, %v8093
        %v8095 = vpop.f32.mrf.mxu0
        %v8096 = vadd.f32 %v8033, %v8095
        %8097 = vmatprep.mubr.bf16.mxu0 %v1726
        %8098 = vmatmul.mubr.bf16.gmra.mxu0 %v1725
        %v8099 = vpop.f32.mrf.mxu0
        %v8100 = vadd.f32 %v8037, %v8099
        %v8101 = vpop.f32.mrf.mxu0
        %v8102 = vadd.f32 %v8039, %v8101
        %v8103 = vpop.f32.mrf.mxu0
        %v8104 = vadd.f32 %v8041, %v8103
        %v8105 = vpop.f32.mrf.mxu0
        %v8106 = vadd.f32 %v8043, %v8105
        %8107 = vmatprep.mubr.bf16.mxu0 %v1742
        %8108 = vmatmul.mubr.bf16.gmra.mxu0 %v1741
        %v8109 = vpop.f32.mrf.mxu0
        %v8110 = vadd.f32 %v8047, %v8109
        %v8111 = vpop.f32.mrf.mxu0
        %v8112 = vadd.f32 %v8049, %v8111
        %v8113 = vpop.f32.mrf.mxu0
        %v8114 = vadd.f32 %v8051, %v8113
        %v8115 = vpop.f32.mrf.mxu0
        %v8116 = vadd.f32 %v8053, %v8115
        %8117 = vdwg.mxu0
        %8118 = vmatprep.subr.bf16.mxu0 %v5318
        %8119 = vmatpush1.bf16.msra.mxu0 %v5317
        %8120 = vmatprep.subr.bf16.mxu0 %v5310
        %8121 = vmatpush1.bf16.msra.mxu0 %v5309
        %8122 = vmatprep.subr.bf16.mxu0 %v5302
        %8123 = vmatpush1.bf16.msra.mxu0 %v5301
        %8124 = vmatprep.subr.bf16.mxu0 %v5294
        %8125 = vmatpush1.bf16.msra.mxu0 %v5293
        %8126 = vmatprep.subr.bf16.mxu0 %v5286
        %8127 = vmatpush1.bf16.msra.mxu0 %v5285
        %8128 = vmatprep.subr.bf16.mxu0 %v5278
        %8129 = vmatpush1.bf16.msra.mxu0 %v5277
        %8130 = vmatprep.subr.bf16.mxu0 %v5270
        %8131 = vmatpush1.bf16.msra.mxu0 %v5269
        %8132 = vmatprep.subr.bf16.mxu0 %v5262
        %8133 = vmatpush1.bf16.msra.mxu0 %v5261
        %8134 = vmatprep.subr.bf16.mxu0 %v5382
        %8135 = vmatpush2.bf16.msra.mxu0 %v5381
        %8136 = vmatprep.subr.bf16.mxu0 %v5374
        %8137 = vmatpush2.bf16.msra.mxu0 %v5373
        %8138 = vmatprep.subr.bf16.mxu0 %v5366
        %8139 = vmatpush2.bf16.msra.mxu0 %v5365
        %8140 = vmatprep.subr.bf16.mxu0 %v5358
        %8141 = vmatpush2.bf16.msra.mxu0 %v5357
        %8142 = vmatprep.subr.bf16.mxu0 %v5350
        %8143 = vmatpush2.bf16.msra.mxu0 %v5349
        %8144 = vmatprep.subr.bf16.mxu0 %v5342
        %8145 = vmatpush2.bf16.msra.mxu0 %v5341
        %8146 = vmatprep.subr.bf16.mxu0 %v5334
        %8147 = vmatpush2.bf16.msra.mxu0 %v5333
        %8148 = vmatprep.subr.bf16.mxu0 %v5326
        %8149 = vmatpush2.bf16.msra.mxu0 %v5325
        %8150 = vmatprep.mubr.bf16.mxu0 %v1712
        %8151 = vmatmul.mubr.bf16.gmra.mxu0 %v1711
        %v8152 = vpop.f32.mrf.mxu0
        %v8153 = vadd.f32 %v8090, %v8152
        %v8154 = vpop.f32.mrf.mxu0
        %v8155 = vadd.f32 %v8092, %v8154
        %v8156 = vpop.f32.mrf.mxu0
        %v8157 = vadd.f32 %v8094, %v8156
        %v8158 = vpop.f32.mrf.mxu0
        %v8159 = vadd.f32 %v8096, %v8158
        %8160 = vmatprep.mubr.bf16.mxu0 %v1728
        %8161 = vmatmul.mubr.bf16.gmra.mxu0 %v1727
        %v8162 = vpop.f32.mrf.mxu0
        %v8163 = vadd.f32 %v8100, %v8162
        %v8164 = vpop.f32.mrf.mxu0
        %v8165 = vadd.f32 %v8102, %v8164
        %v8166 = vpop.f32.mrf.mxu0
        %v8167 = vadd.f32 %v8104, %v8166
        %v8168 = vpop.f32.mrf.mxu0
        %v8169 = vadd.f32 %v8106, %v8168
        %8170 = vmatprep.mubr.bf16.mxu0 %v1744
        %8171 = vmatmul.mubr.bf16.gmra.mxu0 %v1743
        %v8172 = vpop.f32.mrf.mxu0
        %v8173 = vadd.f32 %v8110, %v8172
        %v8174 = vpop.f32.mrf.mxu0
        %v8175 = vadd.f32 %v8112, %v8174
        %v8176 = vpop.f32.mrf.mxu0
        %v8177 = vadd.f32 %v8114, %v8176
        %v8178 = vpop.f32.mrf.mxu0
        %v8179 = vadd.f32 %v8116, %v8178
        %8180 = vdwg.mxu0
        %8181 = vmatprep.subr.bf16.mxu0 %v5446
        %8182 = vmatpush1.bf16.msra.mxu0 %v5445
        %8183 = vmatprep.subr.bf16.mxu0 %v5438
        %8184 = vmatpush1.bf16.msra.mxu0 %v5437
        %8185 = vmatprep.subr.bf16.mxu0 %v5430
        %8186 = vmatpush1.bf16.msra.mxu0 %v5429
        %8187 = vmatprep.subr.bf16.mxu0 %v5422
        %8188 = vmatpush1.bf16.msra.mxu0 %v5421
        %8189 = vmatprep.subr.bf16.mxu0 %v5414
        %8190 = vmatpush1.bf16.msra.mxu0 %v5413
        %8191 = vmatprep.subr.bf16.mxu0 %v5406
        %8192 = vmatpush1.bf16.msra.mxu0 %v5405
        %8193 = vmatprep.subr.bf16.mxu0 %v5398
        %8194 = vmatpush1.bf16.msra.mxu0 %v5397
        %8195 = vmatprep.subr.bf16.mxu0 %v5390
        %8196 = vmatpush1.bf16.msra.mxu0 %v5389
        %8197 = vmatprep.subr.bf16.mxu0 %v5510
        %8198 = vmatpush2.bf16.msra.mxu0 %v5509
        %8199 = vmatprep.subr.bf16.mxu0 %v5502
        %8200 = vmatpush2.bf16.msra.mxu0 %v5501
        %8201 = vmatprep.subr.bf16.mxu0 %v5494
        %8202 = vmatpush2.bf16.msra.mxu0 %v5493
        %8203 = vmatprep.subr.bf16.mxu0 %v5486
        %8204 = vmatpush2.bf16.msra.mxu0 %v5485
        %8205 = vmatprep.subr.bf16.mxu0 %v5478
        %8206 = vmatpush2.bf16.msra.mxu0 %v5477
        %8207 = vmatprep.subr.bf16.mxu0 %v5470
        %8208 = vmatpush2.bf16.msra.mxu0 %v5469
        %8209 = vmatprep.subr.bf16.mxu0 %v5462
        %8210 = vmatpush2.bf16.msra.mxu0 %v5461
        %8211 = vmatprep.subr.bf16.mxu0 %v5454
        %8212 = vmatpush2.bf16.msra.mxu0 %v5453
        %8213 = vmatprep.mubr.bf16.mxu0 %v1714
        %8214 = vmatmul.mubr.bf16.gmra.mxu0 %v1713
        %v8215 = vpop.f32.mrf.mxu0
        %v8216 = vadd.f32 %v8153, %v8215
        %v8217 = vpop.f32.mrf.mxu0
        %v8218 = vadd.f32 %v8155, %v8217
        %v8219 = vpop.f32.mrf.mxu0
        %v8220 = vadd.f32 %v8157, %v8219
        %v8221 = vpop.f32.mrf.mxu0
        %v8222 = vadd.f32 %v8159, %v8221
        %8223 = vmatprep.mubr.bf16.mxu0 %v1730
        %8224 = vmatmul.mubr.bf16.gmra.mxu0 %v1729
        %v8225 = vpop.f32.mrf.mxu0
        %v8226 = vadd.f32 %v8163, %v8225
        %v8227 = vpop.f32.mrf.mxu0
        %v8228 = vadd.f32 %v8165, %v8227
        %v8229 = vpop.f32.mrf.mxu0
        %v8230 = vadd.f32 %v8167, %v8229
        %v8231 = vpop.f32.mrf.mxu0
        %v8232 = vadd.f32 %v8169, %v8231
        %8233 = vmatprep.mubr.bf16.mxu0 %v1746
        %8234 = vmatmul.mubr.bf16.gmra.mxu0 %v1745
        %v8235 = vpop.f32.mrf.mxu0
        %v8236 = vadd.f32 %v8173, %v8235
        %v8237 = vpop.f32.mrf.mxu0
        %v8238 = vadd.f32 %v8175, %v8237
        %v8239 = vpop.f32.mrf.mxu0
        %v8240 = vadd.f32 %v8177, %v8239
        %v8241 = vpop.f32.mrf.mxu0
        %v8242 = vadd.f32 %v8179, %v8241
        %8243 = vdwg.mxu0
        %8244 = vmatprep.subr.bf16.mxu0 %v5574
        %8245 = vmatpush1.bf16.msra.mxu0 %v5573
        %8246 = vmatprep.subr.bf16.mxu0 %v5566
        %8247 = vmatpush1.bf16.msra.mxu0 %v5565
        %8248 = vmatprep.subr.bf16.mxu0 %v5558
        %8249 = vmatpush1.bf16.msra.mxu0 %v5557
        %8250 = vmatprep.subr.bf16.mxu0 %v5550
        %8251 = vmatpush1.bf16.msra.mxu0 %v5549
        %8252 = vmatprep.subr.bf16.mxu0 %v5542
        %8253 = vmatpush1.bf16.msra.mxu0 %v5541
        %8254 = vmatprep.subr.bf16.mxu0 %v5534
        %8255 = vmatpush1.bf16.msra.mxu0 %v5533
        %8256 = vmatprep.subr.bf16.mxu0 %v5526
        %8257 = vmatpush1.bf16.msra.mxu0 %v5525
        %8258 = vmatprep.subr.bf16.mxu0 %v5518
        %8259 = vmatpush1.bf16.msra.mxu0 %v5517
        %8260 = vmatprep.subr.bf16.mxu0 %v5638
        %8261 = vmatpush2.bf16.msra.mxu0 %v5637
        %8262 = vmatprep.subr.bf16.mxu0 %v5630
        %8263 = vmatpush2.bf16.msra.mxu0 %v5629
        %8264 = vmatprep.subr.bf16.mxu0 %v5622
        %8265 = vmatpush2.bf16.msra.mxu0 %v5621
        %8266 = vmatprep.subr.bf16.mxu0 %v5614
        %8267 = vmatpush2.bf16.msra.mxu0 %v5613
        %8268 = vmatprep.subr.bf16.mxu0 %v5606
        %8269 = vmatpush2.bf16.msra.mxu0 %v5605
        %8270 = vmatprep.subr.bf16.mxu0 %v5598
        %8271 = vmatpush2.bf16.msra.mxu0 %v5597
        %8272 = vmatprep.subr.bf16.mxu0 %v5590
        %8273 = vmatpush2.bf16.msra.mxu0 %v5589
        %8274 = vmatprep.subr.bf16.mxu0 %v5582
        %8275 = vmatpush2.bf16.msra.mxu0 %v5581
        %8276 = vmatprep.mubr.bf16.mxu0 %v1716
        %8277 = vmatmul.mubr.bf16.gmra.mxu0 %v1715
        %v8278 = vpop.f32.mrf.mxu0
        %v8279 = vadd.f32 %v8216, %v8278
        %v8280 = vpop.f32.mrf.mxu0
        %v8281 = vadd.f32 %v8218, %v8280
        %v8282 = vpop.f32.mrf.mxu0
        %v8283 = vadd.f32 %v8220, %v8282
        %v8284 = vpop.f32.mrf.mxu0
        %v8285 = vadd.f32 %v8222, %v8284
        %8286 = vmatprep.mubr.bf16.mxu0 %v1732
        %8287 = vmatmul.mubr.bf16.gmra.mxu0 %v1731
        %v8288 = vpop.f32.mrf.mxu0
        %v8289 = vadd.f32 %v8226, %v8288
        %v8290 = vpop.f32.mrf.mxu0
        %v8291 = vadd.f32 %v8228, %v8290
        %v8292 = vpop.f32.mrf.mxu0
        %v8293 = vadd.f32 %v8230, %v8292
        %v8294 = vpop.f32.mrf.mxu0
        %v8295 = vadd.f32 %v8232, %v8294
        %8296 = vmatprep.mubr.bf16.mxu0 %v1748
        %8297 = vmatmul.mubr.bf16.gmra.mxu0 %v1747
        %v8298 = vpop.f32.mrf.mxu0
        %v8299 = vadd.f32 %v8236, %v8298
        %v8300 = vpop.f32.mrf.mxu0
        %v8301 = vadd.f32 %v8238, %v8300
        %v8302 = vpop.f32.mrf.mxu0
        %v8303 = vadd.f32 %v8240, %v8302
        %v8304 = vpop.f32.mrf.mxu0
        %v8305 = vadd.f32 %v8242, %v8304
        %8306 = vdwg.mxu0
        %8307 = vmatprep.subr.bf16.mxu0 %v5702
        %8308 = vmatpush1.bf16.msra.mxu0 %v5701
        %8309 = vmatprep.subr.bf16.mxu0 %v5694
        %8310 = vmatpush1.bf16.msra.mxu0 %v5693
        %8311 = vmatprep.subr.bf16.mxu0 %v5686
        %8312 = vmatpush1.bf16.msra.mxu0 %v5685
        %8313 = vmatprep.subr.bf16.mxu0 %v5678
        %8314 = vmatpush1.bf16.msra.mxu0 %v5677
        %8315 = vmatprep.subr.bf16.mxu0 %v5670
        %8316 = vmatpush1.bf16.msra.mxu0 %v5669
        %8317 = vmatprep.subr.bf16.mxu0 %v5662
        %8318 = vmatpush1.bf16.msra.mxu0 %v5661
        %8319 = vmatprep.subr.bf16.mxu0 %v5654
        %8320 = vmatpush1.bf16.msra.mxu0 %v5653
        %8321 = vmatprep.subr.bf16.mxu0 %v5646
        %8322 = vmatpush1.bf16.msra.mxu0 %v5645
        %8323 = vmatprep.subr.bf16.mxu0 %v5766
        %8324 = vmatpush2.bf16.msra.mxu0 %v5765
        %8325 = vmatprep.subr.bf16.mxu0 %v5758
        %8326 = vmatpush2.bf16.msra.mxu0 %v5757
        %8327 = vmatprep.subr.bf16.mxu0 %v5750
        %8328 = vmatpush2.bf16.msra.mxu0 %v5749
        %8329 = vmatprep.subr.bf16.mxu0 %v5742
        %8330 = vmatpush2.bf16.msra.mxu0 %v5741
        %8331 = vmatprep.subr.bf16.mxu0 %v5734
        %8332 = vmatpush2.bf16.msra.mxu0 %v5733
        %8333 = vmatprep.subr.bf16.mxu0 %v5726
        %8334 = vmatpush2.bf16.msra.mxu0 %v5725
        %8335 = vmatprep.subr.bf16.mxu0 %v5718
        %8336 = vmatpush2.bf16.msra.mxu0 %v5717
        %8337 = vmatprep.subr.bf16.mxu0 %v5710
        %8338 = vmatpush2.bf16.msra.mxu0 %v5709
        %8339 = vmatprep.mubr.bf16.mxu0 %v1718
        %8340 = vmatmul.mubr.bf16.gmra.mxu0 %v1717
        %v8341 = vpop.f32.mrf.mxu0
        %v8342 = vadd.f32 %v8279, %v8341
        %v8343 = vpop.f32.mrf.mxu0
        %v8344 = vadd.f32 %v8281, %v8343
        %v8345 = vpop.f32.mrf.mxu0
        %v8346 = vadd.f32 %v8283, %v8345
        %v8347 = vpop.f32.mrf.mxu0
        %v8348 = vadd.f32 %v8285, %v8347
        %8349 = vmatprep.mubr.bf16.mxu0 %v1734
        %8350 = vmatmul.mubr.bf16.gmra.mxu0 %v1733
        %v8351 = vpop.f32.mrf.mxu0
        %v8352 = vadd.f32 %v8289, %v8351
        %v8353 = vpop.f32.mrf.mxu0
        %v8354 = vadd.f32 %v8291, %v8353
        %v8355 = vpop.f32.mrf.mxu0
        %v8356 = vadd.f32 %v8293, %v8355
        %v8357 = vpop.f32.mrf.mxu0
        %v8358 = vadd.f32 %v8295, %v8357
        %8359 = vmatprep.mubr.bf16.mxu0 %v1750
        %8360 = vmatmul.mubr.bf16.gmra.mxu0 %v1749
        %v8361 = vpop.f32.mrf.mxu0
        %v8362 = vadd.f32 %v8299, %v8361
        %v8363 = vpop.f32.mrf.mxu0
        %v8364 = vadd.f32 %v8301, %v8363
        %v8365 = vpop.f32.mrf.mxu0
        %v8366 = vadd.f32 %v8303, %v8365
        %v8367 = vpop.f32.mrf.mxu0
        %v8368 = vadd.f32 %v8305, %v8367
        %8369 = vdwg.mxu0
        %8370 = vmatprep.subr.bf16.mxu0 %v5830
        %8371 = vmatpush1.bf16.msra.mxu0 %v5829
        %8372 = vmatprep.subr.bf16.mxu0 %v5822
        %8373 = vmatpush1.bf16.msra.mxu0 %v5821
        %8374 = vmatprep.subr.bf16.mxu0 %v5814
        %8375 = vmatpush1.bf16.msra.mxu0 %v5813
        %8376 = vmatprep.subr.bf16.mxu0 %v5806
        %8377 = vmatpush1.bf16.msra.mxu0 %v5805
        %8378 = vmatprep.subr.bf16.mxu0 %v5798
        %8379 = vmatpush1.bf16.msra.mxu0 %v5797
        %8380 = vmatprep.subr.bf16.mxu0 %v5790
        %8381 = vmatpush1.bf16.msra.mxu0 %v5789
        %8382 = vmatprep.subr.bf16.mxu0 %v5782
        %8383 = vmatpush1.bf16.msra.mxu0 %v5781
        %8384 = vmatprep.subr.bf16.mxu0 %v5774
        %8385 = vmatpush1.bf16.msra.mxu0 %v5773
        %8386 = vmatprep.subr.bf16.mxu0 %v5894
        %8387 = vmatpush2.bf16.msra.mxu0 %v5893
        %8388 = vmatprep.subr.bf16.mxu0 %v5886
        %8389 = vmatpush2.bf16.msra.mxu0 %v5885
        %8390 = vmatprep.subr.bf16.mxu0 %v5878
        %8391 = vmatpush2.bf16.msra.mxu0 %v5877
        %8392 = vmatprep.subr.bf16.mxu0 %v5870
        %8393 = vmatpush2.bf16.msra.mxu0 %v5869
        %8394 = vmatprep.subr.bf16.mxu0 %v5862
        %8395 = vmatpush2.bf16.msra.mxu0 %v5861
        %8396 = vmatprep.subr.bf16.mxu0 %v5854
        %8397 = vmatpush2.bf16.msra.mxu0 %v5853
        %8398 = vmatprep.subr.bf16.mxu0 %v5846
        %8399 = vmatpush2.bf16.msra.mxu0 %v5845
        %8400 = vmatprep.subr.bf16.mxu0 %v5838
        %8401 = vmatpush2.bf16.msra.mxu0 %v5837
        %8402 = vmatprep.mubr.bf16.mxu0 %v1720
        %8403 = vmatmul.mubr.bf16.gmra.mxu0 %v1719
        %v8404 = vpop.f32.mrf.mxu0
        %v8405 = vadd.f32 %v8342, %v8404
        %v8406 = vpop.f32.mrf.mxu0
        %v8407 = vadd.f32 %v8344, %v8406
        %v8408 = vpop.f32.mrf.mxu0
        %v8409 = vadd.f32 %v8346, %v8408
        %v8410 = vpop.f32.mrf.mxu0
        %v8411 = vadd.f32 %v8348, %v8410
        %8412 = vmatprep.mubr.bf16.mxu0 %v1736
        %8413 = vmatmul.mubr.bf16.gmra.mxu0 %v1735
        %v8414 = vpop.f32.mrf.mxu0
        %v8415 = vadd.f32 %v8352, %v8414
        %v8416 = vpop.f32.mrf.mxu0
        %v8417 = vadd.f32 %v8354, %v8416
        %v8418 = vpop.f32.mrf.mxu0
        %v8419 = vadd.f32 %v8356, %v8418
        %v8420 = vpop.f32.mrf.mxu0
        %v8421 = vadd.f32 %v8358, %v8420
        %8422 = vmatprep.mubr.bf16.mxu0 %v1752
        %8423 = vmatmul.mubr.bf16.gmra.mxu0 %v1751
        %v8424 = vpop.f32.mrf.mxu0
        %v8425 = vadd.f32 %v8362, %v8424
        %v8426 = vpop.f32.mrf.mxu0
        %v8427 = vadd.f32 %v8364, %v8426
        %v8428 = vpop.f32.mrf.mxu0
        %v8429 = vadd.f32 %v8366, %v8428
        %v8430 = vpop.f32.mrf.mxu0
        %v8431 = vadd.f32 %v8368, %v8430
        %8432 = vdwg.mxu0
        %8433 = vmatprep.subr.bf16.mxu0 %v4936
        %8434 = vmatpush1.bf16.msra.mxu0 %v4935
        %8435 = vmatprep.subr.bf16.mxu0 %v4928
        %8436 = vmatpush1.bf16.msra.mxu0 %v4927
        %8437 = vmatprep.subr.bf16.mxu0 %v4920
        %8438 = vmatpush1.bf16.msra.mxu0 %v4919
        %8439 = vmatprep.subr.bf16.mxu0 %v4912
        %8440 = vmatpush1.bf16.msra.mxu0 %v4911
        %8441 = vmatprep.subr.bf16.mxu0 %v4904
        %8442 = vmatpush1.bf16.msra.mxu0 %v4903
        %8443 = vmatprep.subr.bf16.mxu0 %v4896
        %8444 = vmatpush1.bf16.msra.mxu0 %v4895
        %8445 = vmatprep.subr.bf16.mxu0 %v4888
        %8446 = vmatpush1.bf16.msra.mxu0 %v4887
        %8447 = vmatprep.subr.bf16.mxu0 %v4880
        %8448 = vmatpush1.bf16.msra.mxu0 %v4879
        %8449 = vmatprep.subr.bf16.mxu0 %v5000
        %8450 = vmatpush2.bf16.msra.mxu0 %v4999
        %8451 = vmatprep.subr.bf16.mxu0 %v4992
        %8452 = vmatpush2.bf16.msra.mxu0 %v4991
        %8453 = vmatprep.subr.bf16.mxu0 %v4984
        %8454 = vmatpush2.bf16.msra.mxu0 %v4983
        %8455 = vmatprep.subr.bf16.mxu0 %v4976
        %8456 = vmatpush2.bf16.msra.mxu0 %v4975
        %8457 = vmatprep.subr.bf16.mxu0 %v4968
        %8458 = vmatpush2.bf16.msra.mxu0 %v4967
        %8459 = vmatprep.subr.bf16.mxu0 %v4960
        %8460 = vmatpush2.bf16.msra.mxu0 %v4959
        %8461 = vmatprep.subr.bf16.mxu0 %v4952
        %8462 = vmatpush2.bf16.msra.mxu0 %v4951
        %8463 = vmatprep.subr.bf16.mxu0 %v4944
        %8464 = vmatpush2.bf16.msra.mxu0 %v4943
        %8465 = vmatprep.mubr.bf16.mxu0 %v1706
        %8466 = vmatmul.mubr.bf16.gmra.mxu0 %v1705
        %v8467 = vpop.f32.mrf.mxu0
        %v8468 = vadd.f32 %v1548, %v8467
        %v8469 = vpop.f32.mrf.mxu0
        %v8470 = vadd.f32 %v1552, %v8469
        %v8471 = vpop.f32.mrf.mxu0
        %v8472 = vadd.f32 %v1548, %v8471
        %v8473 = vpop.f32.mrf.mxu0
        %v8474 = vadd.f32 %v1552, %v8473
        %8475 = vmatprep.mubr.bf16.mxu0 %v1722
        %8476 = vmatmul.mubr.bf16.gmra.mxu0 %v1721
        %v8477 = vpop.f32.mrf.mxu0
        %v8478 = vadd.f32 %v1548, %v8477
        %v8479 = vpop.f32.mrf.mxu0
        %v8480 = vadd.f32 %v1552, %v8479
        %v8481 = vpop.f32.mrf.mxu0
        %v8482 = vadd.f32 %v1548, %v8481
        %v8483 = vpop.f32.mrf.mxu0
        %v8484 = vadd.f32 %v1552, %v8483
        %8485 = vmatprep.mubr.bf16.mxu0 %v1738
        %8486 = vmatmul.mubr.bf16.gmra.mxu0 %v1737
        %v8487 = vpop.f32.mrf.mxu0
        %v8488 = vadd.f32 %v1548, %v8487
        %v8489 = vpop.f32.mrf.mxu0
        %v8490 = vadd.f32 %v1552, %v8489
        %v8491 = vpop.f32.mrf.mxu0
        %v8492 = vadd.f32 %v1548, %v8491
        %v8493 = vpop.f32.mrf.mxu0
        %v8494 = vadd.f32 %v1552, %v8493
        %8495 = vdwg.mxu0
        %8496 = vmatprep.subr.bf16.mxu0 %v5064
        %8497 = vmatpush1.bf16.msra.mxu0 %v5063
        %8498 = vmatprep.subr.bf16.mxu0 %v5056
        %8499 = vmatpush1.bf16.msra.mxu0 %v5055
        %8500 = vmatprep.subr.bf16.mxu0 %v5048
        %8501 = vmatpush1.bf16.msra.mxu0 %v5047
        %8502 = vmatprep.subr.bf16.mxu0 %v5040
        %8503 = vmatpush1.bf16.msra.mxu0 %v5039
        %8504 = vmatprep.subr.bf16.mxu0 %v5032
        %8505 = vmatpush1.bf16.msra.mxu0 %v5031
        %8506 = vmatprep.subr.bf16.mxu0 %v5024
        %8507 = vmatpush1.bf16.msra.mxu0 %v5023
        %8508 = vmatprep.subr.bf16.mxu0 %v5016
        %8509 = vmatpush1.bf16.msra.mxu0 %v5015
        %8510 = vmatprep.subr.bf16.mxu0 %v5008
        %8511 = vmatpush1.bf16.msra.mxu0 %v5007
        %8512 = vmatprep.subr.bf16.mxu0 %v5128
        %8513 = vmatpush2.bf16.msra.mxu0 %v5127
        %8514 = vmatprep.subr.bf16.mxu0 %v5120
        %8515 = vmatpush2.bf16.msra.mxu0 %v5119
        %8516 = vmatprep.subr.bf16.mxu0 %v5112
        %8517 = vmatpush2.bf16.msra.mxu0 %v5111
        %8518 = vmatprep.subr.bf16.mxu0 %v5104
        %8519 = vmatpush2.bf16.msra.mxu0 %v5103
        %8520 = vmatprep.subr.bf16.mxu0 %v5096
        %8521 = vmatpush2.bf16.msra.mxu0 %v5095
        %8522 = vmatprep.subr.bf16.mxu0 %v5088
        %8523 = vmatpush2.bf16.msra.mxu0 %v5087
        %8524 = vmatprep.subr.bf16.mxu0 %v5080
        %8525 = vmatpush2.bf16.msra.mxu0 %v5079
        %8526 = vmatprep.subr.bf16.mxu0 %v5072
        %8527 = vmatpush2.bf16.msra.mxu0 %v5071
        %8528 = vmatprep.mubr.bf16.mxu0 %v1708
        %8529 = vmatmul.mubr.bf16.gmra.mxu0 %v1707
        %v8530 = vpop.f32.mrf.mxu0
        %v8531 = vadd.f32 %v8468, %v8530
        %v8532 = vpop.f32.mrf.mxu0
        %v8533 = vadd.f32 %v8470, %v8532
        %v8534 = vpop.f32.mrf.mxu0
        %v8535 = vadd.f32 %v8472, %v8534
        %v8536 = vpop.f32.mrf.mxu0
        %v8537 = vadd.f32 %v8474, %v8536
        %8538 = vmatprep.mubr.bf16.mxu0 %v1724
        %8539 = vmatmul.mubr.bf16.gmra.mxu0 %v1723
        %v8540 = vpop.f32.mrf.mxu0
        %v8541 = vadd.f32 %v8478, %v8540
        %v8542 = vpop.f32.mrf.mxu0
        %v8543 = vadd.f32 %v8480, %v8542
        %v8544 = vpop.f32.mrf.mxu0
        %v8545 = vadd.f32 %v8482, %v8544
        %v8546 = vpop.f32.mrf.mxu0
        %v8547 = vadd.f32 %v8484, %v8546
        %8548 = vmatprep.mubr.bf16.mxu0 %v1740
        %8549 = vmatmul.mubr.bf16.gmra.mxu0 %v1739
        %v8550 = vpop.f32.mrf.mxu0
        %v8551 = vadd.f32 %v8488, %v8550
        %v8552 = vpop.f32.mrf.mxu0
        %v8553 = vadd.f32 %v8490, %v8552
        %v8554 = vpop.f32.mrf.mxu0
        %v8555 = vadd.f32 %v8492, %v8554
        %v8556 = vpop.f32.mrf.mxu0
        %v8557 = vadd.f32 %v8494, %v8556
        %8558 = vdwg.mxu0
        %8559 = vmatprep.subr.bf16.mxu0 %v5192
        %8560 = vmatpush1.bf16.msra.mxu0 %v5191
        %8561 = vmatprep.subr.bf16.mxu0 %v5184
        %8562 = vmatpush1.bf16.msra.mxu0 %v5183
        %8563 = vmatprep.subr.bf16.mxu0 %v5176
        %8564 = vmatpush1.bf16.msra.mxu0 %v5175
        %8565 = vmatprep.subr.bf16.mxu0 %v5168
        %8566 = vmatpush1.bf16.msra.mxu0 %v5167
        %8567 = vmatprep.subr.bf16.mxu0 %v5160
        %8568 = vmatpush1.bf16.msra.mxu0 %v5159
        %8569 = vmatprep.subr.bf16.mxu0 %v5152
        %8570 = vmatpush1.bf16.msra.mxu0 %v5151
        %8571 = vmatprep.subr.bf16.mxu0 %v5144
        %8572 = vmatpush1.bf16.msra.mxu0 %v5143
        %8573 = vmatprep.subr.bf16.mxu0 %v5136
        %8574 = vmatpush1.bf16.msra.mxu0 %v5135
        %8575 = vmatprep.subr.bf16.mxu0 %v5256
        %8576 = vmatpush2.bf16.msra.mxu0 %v5255
        %8577 = vmatprep.subr.bf16.mxu0 %v5248
        %8578 = vmatpush2.bf16.msra.mxu0 %v5247
        %8579 = vmatprep.subr.bf16.mxu0 %v5240
        %8580 = vmatpush2.bf16.msra.mxu0 %v5239
        %8581 = vmatprep.subr.bf16.mxu0 %v5232
        %8582 = vmatpush2.bf16.msra.mxu0 %v5231
        %8583 = vmatprep.subr.bf16.mxu0 %v5224
        %8584 = vmatpush2.bf16.msra.mxu0 %v5223
        %8585 = vmatprep.subr.bf16.mxu0 %v5216
        %8586 = vmatpush2.bf16.msra.mxu0 %v5215
        %8587 = vmatprep.subr.bf16.mxu0 %v5208
        %8588 = vmatpush2.bf16.msra.mxu0 %v5207
        %8589 = vmatprep.subr.bf16.mxu0 %v5200
        %8590 = vmatpush2.bf16.msra.mxu0 %v5199
        %8591 = vmatprep.mubr.bf16.mxu0 %v1710
        %8592 = vmatmul.mubr.bf16.gmra.mxu0 %v1709
        %v8593 = vpop.f32.mrf.mxu0
        %v8594 = vadd.f32 %v8531, %v8593
        %v8595 = vpop.f32.mrf.mxu0
        %v8596 = vadd.f32 %v8533, %v8595
        %v8597 = vpop.f32.mrf.mxu0
        %v8598 = vadd.f32 %v8535, %v8597
        %v8599 = vpop.f32.mrf.mxu0
        %v8600 = vadd.f32 %v8537, %v8599
        %8601 = vmatprep.mubr.bf16.mxu0 %v1726
        %8602 = vmatmul.mubr.bf16.gmra.mxu0 %v1725
        %v8603 = vpop.f32.mrf.mxu0
        %v8604 = vadd.f32 %v8541, %v8603
        %v8605 = vpop.f32.mrf.mxu0
        %v8606 = vadd.f32 %v8543, %v8605
        %v8607 = vpop.f32.mrf.mxu0
        %v8608 = vadd.f32 %v8545, %v8607
        %v8609 = vpop.f32.mrf.mxu0
        %v8610 = vadd.f32 %v8547, %v8609
        %8611 = vmatprep.mubr.bf16.mxu0 %v1742
        %8612 = vmatmul.mubr.bf16.gmra.mxu0 %v1741
        %v8613 = vpop.f32.mrf.mxu0
        %v8614 = vadd.f32 %v8551, %v8613
        %v8615 = vpop.f32.mrf.mxu0
        %v8616 = vadd.f32 %v8553, %v8615
        %v8617 = vpop.f32.mrf.mxu0
        %v8618 = vadd.f32 %v8555, %v8617
        %v8619 = vpop.f32.mrf.mxu0
        %v8620 = vadd.f32 %v8557, %v8619
        %8621 = vdwg.mxu0
        %8622 = vmatprep.subr.bf16.mxu0 %v5320
        %8623 = vmatpush1.bf16.msra.mxu0 %v5319
        %8624 = vmatprep.subr.bf16.mxu0 %v5312
        %8625 = vmatpush1.bf16.msra.mxu0 %v5311
        %8626 = vmatprep.subr.bf16.mxu0 %v5304
        %8627 = vmatpush1.bf16.msra.mxu0 %v5303
        %8628 = vmatprep.subr.bf16.mxu0 %v5296
        %8629 = vmatpush1.bf16.msra.mxu0 %v5295
        %8630 = vmatprep.subr.bf16.mxu0 %v5288
        %8631 = vmatpush1.bf16.msra.mxu0 %v5287
        %8632 = vmatprep.subr.bf16.mxu0 %v5280
        %8633 = vmatpush1.bf16.msra.mxu0 %v5279
        %8634 = vmatprep.subr.bf16.mxu0 %v5272
        %8635 = vmatpush1.bf16.msra.mxu0 %v5271
        %8636 = vmatprep.subr.bf16.mxu0 %v5264
        %8637 = vmatpush1.bf16.msra.mxu0 %v5263
        %8638 = vmatprep.subr.bf16.mxu0 %v5384
        %8639 = vmatpush2.bf16.msra.mxu0 %v5383
        %8640 = vmatprep.subr.bf16.mxu0 %v5376
        %8641 = vmatpush2.bf16.msra.mxu0 %v5375
        %8642 = vmatprep.subr.bf16.mxu0 %v5368
        %8643 = vmatpush2.bf16.msra.mxu0 %v5367
        %8644 = vmatprep.subr.bf16.mxu0 %v5360
        %8645 = vmatpush2.bf16.msra.mxu0 %v5359
        %8646 = vmatprep.subr.bf16.mxu0 %v5352
        %8647 = vmatpush2.bf16.msra.mxu0 %v5351
        %8648 = vmatprep.subr.bf16.mxu0 %v5344
        %8649 = vmatpush2.bf16.msra.mxu0 %v5343
        %8650 = vmatprep.subr.bf16.mxu0 %v5336
        %8651 = vmatpush2.bf16.msra.mxu0 %v5335
        %8652 = vmatprep.subr.bf16.mxu0 %v5328
        %8653 = vmatpush2.bf16.msra.mxu0 %v5327
        %8654 = vmatprep.mubr.bf16.mxu0 %v1712
        %8655 = vmatmul.mubr.bf16.gmra.mxu0 %v1711
        %v8656 = vpop.f32.mrf.mxu0
        %v8657 = vadd.f32 %v8594, %v8656
        %v8658 = vpop.f32.mrf.mxu0
        %v8659 = vadd.f32 %v8596, %v8658
        %v8660 = vpop.f32.mrf.mxu0
        %v8661 = vadd.f32 %v8598, %v8660
        %v8662 = vpop.f32.mrf.mxu0
        %v8663 = vadd.f32 %v8600, %v8662
        %8664 = vmatprep.mubr.bf16.mxu0 %v1728
        %8665 = vmatmul.mubr.bf16.gmra.mxu0 %v1727
        %v8666 = vpop.f32.mrf.mxu0
        %v8667 = vadd.f32 %v8604, %v8666
        %v8668 = vpop.f32.mrf.mxu0
        %v8669 = vadd.f32 %v8606, %v8668
        %v8670 = vpop.f32.mrf.mxu0
        %v8671 = vadd.f32 %v8608, %v8670
        %v8672 = vpop.f32.mrf.mxu0
        %v8673 = vadd.f32 %v8610, %v8672
        %8674 = vmatprep.mubr.bf16.mxu0 %v1744
        %8675 = vmatmul.mubr.bf16.gmra.mxu0 %v1743
        %v8676 = vpop.f32.mrf.mxu0
        %v8677 = vadd.f32 %v8614, %v8676
        %v8678 = vpop.f32.mrf.mxu0
        %v8679 = vadd.f32 %v8616, %v8678
        %v8680 = vpop.f32.mrf.mxu0
        %v8681 = vadd.f32 %v8618, %v8680
        %v8682 = vpop.f32.mrf.mxu0
        %v8683 = vadd.f32 %v8620, %v8682
        %8684 = vdwg.mxu0
        %8685 = vmatprep.subr.bf16.mxu0 %v5448
        %8686 = vmatpush1.bf16.msra.mxu0 %v5447
        %8687 = vmatprep.subr.bf16.mxu0 %v5440
        %8688 = vmatpush1.bf16.msra.mxu0 %v5439
        %8689 = vmatprep.subr.bf16.mxu0 %v5432
        %8690 = vmatpush1.bf16.msra.mxu0 %v5431
        %8691 = vmatprep.subr.bf16.mxu0 %v5424
        %8692 = vmatpush1.bf16.msra.mxu0 %v5423
        %8693 = vmatprep.subr.bf16.mxu0 %v5416
        %8694 = vmatpush1.bf16.msra.mxu0 %v5415
        %8695 = vmatprep.subr.bf16.mxu0 %v5408
        %8696 = vmatpush1.bf16.msra.mxu0 %v5407
        %8697 = vmatprep.subr.bf16.mxu0 %v5400
        %8698 = vmatpush1.bf16.msra.mxu0 %v5399
        %8699 = vmatprep.subr.bf16.mxu0 %v5392
        %8700 = vmatpush1.bf16.msra.mxu0 %v5391
        %8701 = vmatprep.subr.bf16.mxu0 %v5512
        %8702 = vmatpush2.bf16.msra.mxu0 %v5511
        %8703 = vmatprep.subr.bf16.mxu0 %v5504
        %8704 = vmatpush2.bf16.msra.mxu0 %v5503
        %8705 = vmatprep.subr.bf16.mxu0 %v5496
        %8706 = vmatpush2.bf16.msra.mxu0 %v5495
        %8707 = vmatprep.subr.bf16.mxu0 %v5488
        %8708 = vmatpush2.bf16.msra.mxu0 %v5487
        %8709 = vmatprep.subr.bf16.mxu0 %v5480
        %8710 = vmatpush2.bf16.msra.mxu0 %v5479
        %8711 = vmatprep.subr.bf16.mxu0 %v5472
        %8712 = vmatpush2.bf16.msra.mxu0 %v5471
        %8713 = vmatprep.subr.bf16.mxu0 %v5464
        %8714 = vmatpush2.bf16.msra.mxu0 %v5463
        %8715 = vmatprep.subr.bf16.mxu0 %v5456
        %8716 = vmatpush2.bf16.msra.mxu0 %v5455
        %8717 = vmatprep.mubr.bf16.mxu0 %v1714
        %8718 = vmatmul.mubr.bf16.gmra.mxu0 %v1713
        %v8719 = vpop.f32.mrf.mxu0
        %v8720 = vadd.f32 %v8657, %v8719
        %v8721 = vpop.f32.mrf.mxu0
        %v8722 = vadd.f32 %v8659, %v8721
        %v8723 = vpop.f32.mrf.mxu0
        %v8724 = vadd.f32 %v8661, %v8723
        %v8725 = vpop.f32.mrf.mxu0
        %v8726 = vadd.f32 %v8663, %v8725
        %8727 = vmatprep.mubr.bf16.mxu0 %v1730
        %8728 = vmatmul.mubr.bf16.gmra.mxu0 %v1729
        %v8729 = vpop.f32.mrf.mxu0
        %v8730 = vadd.f32 %v8667, %v8729
        %v8731 = vpop.f32.mrf.mxu0
        %v8732 = vadd.f32 %v8669, %v8731
        %v8733 = vpop.f32.mrf.mxu0
        %v8734 = vadd.f32 %v8671, %v8733
        %v8735 = vpop.f32.mrf.mxu0
        %v8736 = vadd.f32 %v8673, %v8735
        %8737 = vmatprep.mubr.bf16.mxu0 %v1746
        %8738 = vmatmul.mubr.bf16.gmra.mxu0 %v1745
        %v8739 = vpop.f32.mrf.mxu0
        %v8740 = vadd.f32 %v8677, %v8739
        %v8741 = vpop.f32.mrf.mxu0
        %v8742 = vadd.f32 %v8679, %v8741
        %v8743 = vpop.f32.mrf.mxu0
        %v8744 = vadd.f32 %v8681, %v8743
        %v8745 = vpop.f32.mrf.mxu0
        %v8746 = vadd.f32 %v8683, %v8745
        %8747 = vdwg.mxu0
        %8748 = vmatprep.subr.bf16.mxu0 %v5576
        %8749 = vmatpush1.bf16.msra.mxu0 %v5575
        %8750 = vmatprep.subr.bf16.mxu0 %v5568
        %8751 = vmatpush1.bf16.msra.mxu0 %v5567
        %8752 = vmatprep.subr.bf16.mxu0 %v5560
        %8753 = vmatpush1.bf16.msra.mxu0 %v5559
        %8754 = vmatprep.subr.bf16.mxu0 %v5552
        %8755 = vmatpush1.bf16.msra.mxu0 %v5551
        %8756 = vmatprep.subr.bf16.mxu0 %v5544
        %8757 = vmatpush1.bf16.msra.mxu0 %v5543
        %8758 = vmatprep.subr.bf16.mxu0 %v5536
        %8759 = vmatpush1.bf16.msra.mxu0 %v5535
        %8760 = vmatprep.subr.bf16.mxu0 %v5528
        %8761 = vmatpush1.bf16.msra.mxu0 %v5527
        %8762 = vmatprep.subr.bf16.mxu0 %v5520
        %8763 = vmatpush1.bf16.msra.mxu0 %v5519
        %8764 = vmatprep.subr.bf16.mxu0 %v5640
        %8765 = vmatpush2.bf16.msra.mxu0 %v5639
        %8766 = vmatprep.subr.bf16.mxu0 %v5632
        %8767 = vmatpush2.bf16.msra.mxu0 %v5631
        %8768 = vmatprep.subr.bf16.mxu0 %v5624
        %8769 = vmatpush2.bf16.msra.mxu0 %v5623
        %8770 = vmatprep.subr.bf16.mxu0 %v5616
        %8771 = vmatpush2.bf16.msra.mxu0 %v5615
        %8772 = vmatprep.subr.bf16.mxu0 %v5608
        %8773 = vmatpush2.bf16.msra.mxu0 %v5607
        %8774 = vmatprep.subr.bf16.mxu0 %v5600
        %8775 = vmatpush2.bf16.msra.mxu0 %v5599
        %8776 = vmatprep.subr.bf16.mxu0 %v5592
        %8777 = vmatpush2.bf16.msra.mxu0 %v5591
        %8778 = vmatprep.subr.bf16.mxu0 %v5584
        %8779 = vmatpush2.bf16.msra.mxu0 %v5583
        %8780 = vmatprep.mubr.bf16.mxu0 %v1716
        %8781 = vmatmul.mubr.bf16.gmra.mxu0 %v1715
        %v8782 = vpop.f32.mrf.mxu0
        %v8783 = vadd.f32 %v8720, %v8782
        %v8784 = vpop.f32.mrf.mxu0
        %v8785 = vadd.f32 %v8722, %v8784
        %v8786 = vpop.f32.mrf.mxu0
        %v8787 = vadd.f32 %v8724, %v8786
        %v8788 = vpop.f32.mrf.mxu0
        %v8789 = vadd.f32 %v8726, %v8788
        %8790 = vmatprep.mubr.bf16.mxu0 %v1732
        %8791 = vmatmul.mubr.bf16.gmra.mxu0 %v1731
        %v8792 = vpop.f32.mrf.mxu0
        %v8793 = vadd.f32 %v8730, %v8792
        %v8794 = vpop.f32.mrf.mxu0
        %v8795 = vadd.f32 %v8732, %v8794
        %v8796 = vpop.f32.mrf.mxu0
        %v8797 = vadd.f32 %v8734, %v8796
        %v8798 = vpop.f32.mrf.mxu0
        %v8799 = vadd.f32 %v8736, %v8798
        %8800 = vmatprep.mubr.bf16.mxu0 %v1748
        %8801 = vmatmul.mubr.bf16.gmra.mxu0 %v1747
        %v8802 = vpop.f32.mrf.mxu0
        %v8803 = vadd.f32 %v8740, %v8802
        %v8804 = vpop.f32.mrf.mxu0
        %v8805 = vadd.f32 %v8742, %v8804
        %v8806 = vpop.f32.mrf.mxu0
        %v8807 = vadd.f32 %v8744, %v8806
        %v8808 = vpop.f32.mrf.mxu0
        %v8809 = vadd.f32 %v8746, %v8808
        %8810 = vdwg.mxu0
        %8811 = vmatprep.subr.bf16.mxu0 %v5704
        %8812 = vmatpush1.bf16.msra.mxu0 %v5703
        %8813 = vmatprep.subr.bf16.mxu0 %v5696
        %8814 = vmatpush1.bf16.msra.mxu0 %v5695
        %8815 = vmatprep.subr.bf16.mxu0 %v5688
        %8816 = vmatpush1.bf16.msra.mxu0 %v5687
        %8817 = vmatprep.subr.bf16.mxu0 %v5680
        %8818 = vmatpush1.bf16.msra.mxu0 %v5679
        %8819 = vmatprep.subr.bf16.mxu0 %v5672
        %8820 = vmatpush1.bf16.msra.mxu0 %v5671
        %8821 = vmatprep.subr.bf16.mxu0 %v5664
        %8822 = vmatpush1.bf16.msra.mxu0 %v5663
        %8823 = vmatprep.subr.bf16.mxu0 %v5656
        %8824 = vmatpush1.bf16.msra.mxu0 %v5655
        %8825 = vmatprep.subr.bf16.mxu0 %v5648
        %8826 = vmatpush1.bf16.msra.mxu0 %v5647
        %8827 = vmatprep.subr.bf16.mxu0 %v5768
        %8828 = vmatpush2.bf16.msra.mxu0 %v5767
        %8829 = vmatprep.subr.bf16.mxu0 %v5760
        %8830 = vmatpush2.bf16.msra.mxu0 %v5759
        %8831 = vmatprep.subr.bf16.mxu0 %v5752
        %8832 = vmatpush2.bf16.msra.mxu0 %v5751
        %8833 = vmatprep.subr.bf16.mxu0 %v5744
        %8834 = vmatpush2.bf16.msra.mxu0 %v5743
        %8835 = vmatprep.subr.bf16.mxu0 %v5736
        %8836 = vmatpush2.bf16.msra.mxu0 %v5735
        %8837 = vmatprep.subr.bf16.mxu0 %v5728
        %8838 = vmatpush2.bf16.msra.mxu0 %v5727
        %8839 = vmatprep.subr.bf16.mxu0 %v5720
        %8840 = vmatpush2.bf16.msra.mxu0 %v5719
        %8841 = vmatprep.subr.bf16.mxu0 %v5712
        %8842 = vmatpush2.bf16.msra.mxu0 %v5711
        %8843 = vmatprep.mubr.bf16.mxu0 %v1718
        %8844 = vmatmul.mubr.bf16.gmra.mxu0 %v1717
        %v8845 = vpop.f32.mrf.mxu0
        %v8846 = vadd.f32 %v8783, %v8845
        %v8847 = vpop.f32.mrf.mxu0
        %v8848 = vadd.f32 %v8785, %v8847
        %v8849 = vpop.f32.mrf.mxu0
        %v8850 = vadd.f32 %v8787, %v8849
        %v8851 = vpop.f32.mrf.mxu0
        %v8852 = vadd.f32 %v8789, %v8851
        %8853 = vmatprep.mubr.bf16.mxu0 %v1734
        %8854 = vmatmul.mubr.bf16.gmra.mxu0 %v1733
        %v8855 = vpop.f32.mrf.mxu0
        %v8856 = vadd.f32 %v8793, %v8855
        %v8857 = vpop.f32.mrf.mxu0
        %v8858 = vadd.f32 %v8795, %v8857
        %v8859 = vpop.f32.mrf.mxu0
        %v8860 = vadd.f32 %v8797, %v8859
        %v8861 = vpop.f32.mrf.mxu0
        %v8862 = vadd.f32 %v8799, %v8861
        %8863 = vmatprep.mubr.bf16.mxu0 %v1750
        %8864 = vmatmul.mubr.bf16.gmra.mxu0 %v1749
        %v8865 = vpop.f32.mrf.mxu0
        %v8866 = vadd.f32 %v8803, %v8865
        %v8867 = vpop.f32.mrf.mxu0
        %v8868 = vadd.f32 %v8805, %v8867
        %v8869 = vpop.f32.mrf.mxu0
        %v8870 = vadd.f32 %v8807, %v8869
        %v8871 = vpop.f32.mrf.mxu0
        %v8872 = vadd.f32 %v8809, %v8871
        %8873 = vdwg.mxu0
        %8874 = vmatprep.subr.bf16.mxu0 %v5832
        %8875 = vmatpush1.bf16.msra.mxu0 %v5831
        %8876 = vmatprep.subr.bf16.mxu0 %v5824
        %8877 = vmatpush1.bf16.msra.mxu0 %v5823
        %8878 = vmatprep.subr.bf16.mxu0 %v5816
        %8879 = vmatpush1.bf16.msra.mxu0 %v5815
        %8880 = vmatprep.subr.bf16.mxu0 %v5808
        %8881 = vmatpush1.bf16.msra.mxu0 %v5807
        %8882 = vmatprep.subr.bf16.mxu0 %v5800
        %8883 = vmatpush1.bf16.msra.mxu0 %v5799
        %8884 = vmatprep.subr.bf16.mxu0 %v5792
        %8885 = vmatpush1.bf16.msra.mxu0 %v5791
        %8886 = vmatprep.subr.bf16.mxu0 %v5784
        %8887 = vmatpush1.bf16.msra.mxu0 %v5783
        %8888 = vmatprep.subr.bf16.mxu0 %v5776
        %8889 = vmatpush1.bf16.msra.mxu0 %v5775
        %8890 = vmatprep.subr.bf16.mxu0 %v5896
        %8891 = vmatpush2.bf16.msra.mxu0 %v5895
        %8892 = vmatprep.subr.bf16.mxu0 %v5888
        %8893 = vmatpush2.bf16.msra.mxu0 %v5887
        %8894 = vmatprep.subr.bf16.mxu0 %v5880
        %8895 = vmatpush2.bf16.msra.mxu0 %v5879
        %8896 = vmatprep.subr.bf16.mxu0 %v5872
        %8897 = vmatpush2.bf16.msra.mxu0 %v5871
        %8898 = vmatprep.subr.bf16.mxu0 %v5864
        %8899 = vmatpush2.bf16.msra.mxu0 %v5863
        %8900 = vmatprep.subr.bf16.mxu0 %v5856
        %8901 = vmatpush2.bf16.msra.mxu0 %v5855
        %8902 = vmatprep.subr.bf16.mxu0 %v5848
        %8903 = vmatpush2.bf16.msra.mxu0 %v5847
        %8904 = vmatprep.subr.bf16.mxu0 %v5840
        %8905 = vmatpush2.bf16.msra.mxu0 %v5839
        %8906 = vmatprep.mubr.bf16.mxu0 %v1720
        %8907 = vmatmul.mubr.bf16.gmra.mxu0 %v1719
        %v8908 = vpop.f32.mrf.mxu0
        %v8909 = vadd.f32 %v8846, %v8908
        %v8910 = vpop.f32.mrf.mxu0
        %v8911 = vadd.f32 %v8848, %v8910
        %v8912 = vpop.f32.mrf.mxu0
        %v8913 = vadd.f32 %v8850, %v8912
        %v8914 = vpop.f32.mrf.mxu0
        %v8915 = vadd.f32 %v8852, %v8914
        %8916 = vmatprep.mubr.bf16.mxu0 %v1736
        %8917 = vmatmul.mubr.bf16.gmra.mxu0 %v1735
        %v8918 = vpop.f32.mrf.mxu0
        %v8919 = vadd.f32 %v8856, %v8918
        %v8920 = vpop.f32.mrf.mxu0
        %v8921 = vadd.f32 %v8858, %v8920
        %v8922 = vpop.f32.mrf.mxu0
        %v8923 = vadd.f32 %v8860, %v8922
        %v8924 = vpop.f32.mrf.mxu0
        %v8925 = vadd.f32 %v8862, %v8924
        %8926 = vmatprep.mubr.bf16.mxu0 %v1752
        %8927 = vmatmul.mubr.bf16.gmra.mxu0 %v1751
        %v8928 = vpop.f32.mrf.mxu0
        %v8929 = vadd.f32 %v8866, %v8928
        %v8930 = vpop.f32.mrf.mxu0
        %v8931 = vadd.f32 %v8868, %v8930
        %v8932 = vpop.f32.mrf.mxu0
        %v8933 = vadd.f32 %v8870, %v8932
        %v8934 = vpop.f32.mrf.mxu0
        %v8935 = vadd.f32 %v8872, %v8934
        %8936 = vdwg.mxu0
        %v8937 = vmax.f32 %v7397, 0.0
        %v8938 = vmax.f32 %v7399, 0.0
        %v8939 = vmax.f32 %v7901, 0.0
        %v8940 = vmax.f32 %v7903, 0.0
        %v8941 = vmax.f32 %v8405, 0.0
        %v8942 = vmax.f32 %v8407, 0.0
        %v8943 = vmax.f32 %v8909, 0.0
        %v8944 = vmax.f32 %v8911, 0.0
        %v8945 = vmax.f32 %v7401, 0.0
        %v8946 = vmax.f32 %v7403, 0.0
        %v8947 = vmax.f32 %v7905, 0.0
        %v8948 = vmax.f32 %v7907, 0.0
        %v8949 = vmax.f32 %v8409, 0.0
        %v8950 = vmax.f32 %v8411, 0.0
        %v8951 = vmax.f32 %v8913, 0.0
        %v8952 = vmax.f32 %v8915, 0.0
        %v8953 = vmax.f32 %v7407, 0.0
        %v8954 = vmax.f32 %v7409, 0.0
        %v8955 = vmax.f32 %v7911, 0.0
        %v8956 = vmax.f32 %v7913, 0.0
        %v8957 = vmax.f32 %v8415, 0.0
        %v8958 = vmax.f32 %v8417, 0.0
        %v8959 = vmax.f32 %v8919, 0.0
        %v8960 = vmax.f32 %v8921, 0.0
        %v8961 = vmax.f32 %v7411, 0.0
        %v8962 = vmax.f32 %v7413, 0.0
        %v8963 = vmax.f32 %v7915, 0.0
        %v8964 = vmax.f32 %v7917, 0.0
        %v8965 = vmax.f32 %v8419, 0.0
        %v8966 = vmax.f32 %v8421, 0.0
        %v8967 = vmax.f32 %v8923, 0.0
        %v8968 = vmax.f32 %v8925, 0.0
        %v8969 = vmax.f32 %v7417, 0.0
        %v8970 = vmax.f32 %v7419, 0.0
        %v8971 = vmax.f32 %v7921, 0.0
        %v8972 = vmax.f32 %v7923, 0.0
        %v8973 = vmax.f32 %v8425, 0.0
        %v8974 = vmax.f32 %v8427, 0.0
        %v8975 = vmax.f32 %v8929, 0.0
        %v8976 = vmax.f32 %v8931, 0.0
        %v8977 = vmax.f32 %v7421, 0.0
        %v8978 = vmax.f32 %v7423, 0.0
        %v8979 = vmax.f32 %v7925, 0.0
        %v8980 = vmax.f32 %v7927, 0.0
        %v8981 = vmax.f32 %v8429, 0.0
        %v8982 = vmax.f32 %v8431, 0.0
        %v8983 = vmax.f32 %v8933, 0.0
        %v8984 = vmax.f32 %v8935, 0.0
        %v8985 = vpack.c.bf16 %v8945, %v8937
        %v8986 = vpack.c.bf16 %v8946, %v8938
        %v8987 = vpack.c.bf16 %v8947, %v8939
        %v8988 = vpack.c.bf16 %v8948, %v8940
        %v8989 = vpack.c.bf16 %v8949, %v8941
        %v8990 = vpack.c.bf16 %v8950, %v8942
        %v8991 = vpack.c.bf16 %v8951, %v8943
        %v8992 = vpack.c.bf16 %v8952, %v8944
        %v8993 = vpack.c.bf16 %v8961, %v8953
        %v8994 = vpack.c.bf16 %v8962, %v8954
        %v8995 = vpack.c.bf16 %v8963, %v8955
        %v8996 = vpack.c.bf16 %v8964, %v8956
        %v8997 = vpack.c.bf16 %v8965, %v8957
        %v8998 = vpack.c.bf16 %v8966, %v8958
        %v8999 = vpack.c.bf16 %v8967, %v8959
        %v9000 = vpack.c.bf16 %v8968, %v8960
        %v9001 = vpack.c.bf16 %v8977, %v8969
        %v9002 = vpack.c.bf16 %v8978, %v8970
        %v9003 = vpack.c.bf16 %v8979, %v8971
        %v9004 = vpack.c.bf16 %v8980, %v8972
        %v9005 = vpack.c.bf16 %v8981, %v8973
        %v9006 = vpack.c.bf16 %v8982, %v8974
        %v9007 = vpack.c.bf16 %v8983, %v8975
        %v9008 = vpack.c.bf16 %v8984, %v8976
        %v9009 = vld [vmem:[#allocation7] sm:$0xff]
        %v9010 = vld [vmem:[#allocation7 + $0x8] sm:$0xff]
        %v9011 = vld [vmem:[#allocation7 + $0x10] sm:$0xff]
        %v9012 = vld [vmem:[#allocation7 + $0x18] sm:$0xff]
        %v9013 = vld [vmem:[#allocation7 + $0x20] sm:$0xff]
        %v9014 = vld [vmem:[#allocation7 + $0x28] sm:$0xff]
        %v9015 = vld [vmem:[#allocation7 + $0x30] sm:$0xff]
        %v9016 = vld [vmem:[#allocation7 + $0x38] sm:$0xff]
        %v9017 = vld [vmem:[#allocation7 + $0x40] sm:$0xff]
        %v9018 = vld [vmem:[#allocation7 + $0x48] sm:$0xff]
        %v9019 = vld [vmem:[#allocation7 + $0x50] sm:$0xff]
        %v9020 = vld [vmem:[#allocation7 + $0x58] sm:$0xff]
        %v9021 = vld [vmem:[#allocation7 + $0x60] sm:$0xff]
        %v9022 = vld [vmem:[#allocation7 + $0x68] sm:$0xff]
        %v9023 = vld [vmem:[#allocation7 + $0x70] sm:$0xff]
        %v9024 = vld [vmem:[#allocation7 + $0x78] sm:$0xff]
        %v9025 = vld [vmem:[#allocation7 + $0x80] sm:$0xff]
        %v9026 = vld [vmem:[#allocation7 + $0x88] sm:$0xff]
        %v9027 = vld [vmem:[#allocation7 + $0x90] sm:$0xff]
        %v9028 = vld [vmem:[#allocation7 + $0x98] sm:$0xff]
        %v9029 = vld [vmem:[#allocation7 + $0xa0] sm:$0xff]
        %v9030 = vld [vmem:[#allocation7 + $0xa8] sm:$0xff]
        %v9031 = vld [vmem:[#allocation7 + $0xb0] sm:$0xff]
        %v9032 = vld [vmem:[#allocation7 + $0xb8] sm:$0xff]
        %v9033 = vld [vmem:[#allocation7 + $0xc0] sm:$0xff]
        %v9034 = vld [vmem:[#allocation7 + $0xc8] sm:$0xff]
        %v9035 = vld [vmem:[#allocation7 + $0xd0] sm:$0xff]
        %v9036 = vld [vmem:[#allocation7 + $0xd8] sm:$0xff]
        %v9037 = vld [vmem:[#allocation7 + $0xe0] sm:$0xff]
        %v9038 = vld [vmem:[#allocation7 + $0xe8] sm:$0xff]
        %v9039 = vld [vmem:[#allocation7 + $0xf0] sm:$0xff]
        %v9040 = vld [vmem:[#allocation7 + $0xf8] sm:$0xff]
        %v9041 = vld [vmem:[#allocation7 + $0x100] sm:$0xff]
        %v9042 = vld [vmem:[#allocation7 + $0x108] sm:$0xff]
        %v9043 = vld [vmem:[#allocation7 + $0x110] sm:$0xff]
        %v9044 = vld [vmem:[#allocation7 + $0x118] sm:$0xff]
        %v9045 = vld [vmem:[#allocation7 + $0x120] sm:$0xff]
        %v9046 = vld [vmem:[#allocation7 + $0x128] sm:$0xff]
        %v9047 = vld [vmem:[#allocation7 + $0x130] sm:$0xff]
        %v9048 = vld [vmem:[#allocation7 + $0x138] sm:$0xff]
        %v9049 = vld [vmem:[#allocation7 + $0x140] sm:$0xff]
        %v9050 = vld [vmem:[#allocation7 + $0x148] sm:$0xff]
        %v9051 = vld [vmem:[#allocation7 + $0x150] sm:$0xff]
        %v9052 = vld [vmem:[#allocation7 + $0x158] sm:$0xff]
        %v9053 = vld [vmem:[#allocation7 + $0x160] sm:$0xff]
        %v9054 = vld [vmem:[#allocation7 + $0x168] sm:$0xff]
        %v9055 = vld [vmem:[#allocation7 + $0x170] sm:$0xff]
        %v9056 = vld [vmem:[#allocation7 + $0x178] sm:$0xff]
        %v9057 = vld [vmem:[#allocation7 + $0x180] sm:$0xff]
        %v9058 = vld [vmem:[#allocation7 + $0x188] sm:$0xff]
        %v9059 = vld [vmem:[#allocation7 + $0x190] sm:$0xff]
        %v9060 = vld [vmem:[#allocation7 + $0x198] sm:$0xff]
        %v9061 = vld [vmem:[#allocation7 + $0x1a0] sm:$0xff]
        %v9062 = vld [vmem:[#allocation7 + $0x1a8] sm:$0xff]
        %v9063 = vld [vmem:[#allocation7 + $0x1b0] sm:$0xff]
        %v9064 = vld [vmem:[#allocation7 + $0x1b8] sm:$0xff]
        %v9065 = vld [vmem:[#allocation7 + $0x1c0] sm:$0xff]
        %v9066 = vld [vmem:[#allocation7 + $0x1c8] sm:$0xff]
        %v9067 = vld [vmem:[#allocation7 + $0x1d0] sm:$0xff]
        %v9068 = vld [vmem:[#allocation7 + $0x1d8] sm:$0xff]
        %v9069 = vld [vmem:[#allocation7 + $0x1e0] sm:$0xff]
        %v9070 = vld [vmem:[#allocation7 + $0x1e8] sm:$0xff]
        %v9071 = vld [vmem:[#allocation7 + $0x1f0] sm:$0xff]
        %v9072 = vld [vmem:[#allocation7 + $0x1f8] sm:$0xff]
        %v9073 = vld [vmem:[#allocation7 + $0x200] sm:$0xff]
        %v9074 = vld [vmem:[#allocation7 + $0x208] sm:$0xff]
        %v9075 = vld [vmem:[#allocation7 + $0x210] sm:$0xff]
        %v9076 = vld [vmem:[#allocation7 + $0x218] sm:$0xff]
        %v9077 = vld [vmem:[#allocation7 + $0x220] sm:$0xff]
        %v9078 = vld [vmem:[#allocation7 + $0x228] sm:$0xff]
        %v9079 = vld [vmem:[#allocation7 + $0x230] sm:$0xff]
        %v9080 = vld [vmem:[#allocation7 + $0x238] sm:$0xff]
        %v9081 = vld [vmem:[#allocation7 + $0x240] sm:$0xff]
        %v9082 = vld [vmem:[#allocation7 + $0x248] sm:$0xff]
        %v9083 = vld [vmem:[#allocation7 + $0x250] sm:$0xff]
        %v9084 = vld [vmem:[#allocation7 + $0x258] sm:$0xff]
        %v9085 = vld [vmem:[#allocation7 + $0x260] sm:$0xff]
        %v9086 = vld [vmem:[#allocation7 + $0x268] sm:$0xff]
        %v9087 = vld [vmem:[#allocation7 + $0x270] sm:$0xff]
        %v9088 = vld [vmem:[#allocation7 + $0x278] sm:$0xff]
        %v9089 = vld [vmem:[#allocation7 + $0x280] sm:$0xff]
        %v9090 = vld [vmem:[#allocation7 + $0x288] sm:$0xff]
        %v9091 = vld [vmem:[#allocation7 + $0x290] sm:$0xff]
        %v9092 = vld [vmem:[#allocation7 + $0x298] sm:$0xff]
        %v9093 = vld [vmem:[#allocation7 + $0x2a0] sm:$0xff]
        %v9094 = vld [vmem:[#allocation7 + $0x2a8] sm:$0xff]
        %v9095 = vld [vmem:[#allocation7 + $0x2b0] sm:$0xff]
        %v9096 = vld [vmem:[#allocation7 + $0x2b8] sm:$0xff]
        %v9097 = vld [vmem:[#allocation7 + $0x2c0] sm:$0xff]
        %v9098 = vld [vmem:[#allocation7 + $0x2c8] sm:$0xff]
        %v9099 = vld [vmem:[#allocation7 + $0x2d0] sm:$0xff]
        %v9100 = vld [vmem:[#allocation7 + $0x2d8] sm:$0xff]
        %v9101 = vld [vmem:[#allocation7 + $0x2e0] sm:$0xff]
        %v9102 = vld [vmem:[#allocation7 + $0x2e8] sm:$0xff]
        %v9103 = vld [vmem:[#allocation7 + $0x2f0] sm:$0xff]
        %v9104 = vld [vmem:[#allocation7 + $0x2f8] sm:$0xff]
        %v9105 = vld [vmem:[#allocation7 + $0x300] sm:$0xff]
        %v9106 = vld [vmem:[#allocation7 + $0x308] sm:$0xff]
        %v9107 = vld [vmem:[#allocation7 + $0x310] sm:$0xff]
        %v9108 = vld [vmem:[#allocation7 + $0x318] sm:$0xff]
        %v9109 = vld [vmem:[#allocation7 + $0x320] sm:$0xff]
        %v9110 = vld [vmem:[#allocation7 + $0x328] sm:$0xff]
        %v9111 = vld [vmem:[#allocation7 + $0x330] sm:$0xff]
        %v9112 = vld [vmem:[#allocation7 + $0x338] sm:$0xff]
        %v9113 = vld [vmem:[#allocation7 + $0x340] sm:$0xff]
        %v9114 = vld [vmem:[#allocation7 + $0x348] sm:$0xff]
        %v9115 = vld [vmem:[#allocation7 + $0x350] sm:$0xff]
        %v9116 = vld [vmem:[#allocation7 + $0x358] sm:$0xff]
        %v9117 = vld [vmem:[#allocation7 + $0x360] sm:$0xff]
        %v9118 = vld [vmem:[#allocation7 + $0x368] sm:$0xff]
        %v9119 = vld [vmem:[#allocation7 + $0x370] sm:$0xff]
        %v9120 = vld [vmem:[#allocation7 + $0x378] sm:$0xff]
        %v9121 = vld [vmem:[#allocation7 + $0x380] sm:$0xff]
        %v9122 = vld [vmem:[#allocation7 + $0x388] sm:$0xff]
        %v9123 = vld [vmem:[#allocation7 + $0x390] sm:$0xff]
        %v9124 = vld [vmem:[#allocation7 + $0x398] sm:$0xff]
        %v9125 = vld [vmem:[#allocation7 + $0x3a0] sm:$0xff]
        %v9126 = vld [vmem:[#allocation7 + $0x3a8] sm:$0xff]
        %v9127 = vld [vmem:[#allocation7 + $0x3b0] sm:$0xff]
        %v9128 = vld [vmem:[#allocation7 + $0x3b8] sm:$0xff]
        %v9129 = vld [vmem:[#allocation7 + $0x3c0] sm:$0xff]
        %v9130 = vld [vmem:[#allocation7 + $0x3c8] sm:$0xff]
        %v9131 = vld [vmem:[#allocation7 + $0x3d0] sm:$0xff]
        %v9132 = vld [vmem:[#allocation7 + $0x3d8] sm:$0xff]
        %v9133 = vld [vmem:[#allocation7 + $0x3e0] sm:$0xff]
        %v9134 = vld [vmem:[#allocation7 + $0x3e8] sm:$0xff]
        %v9135 = vld [vmem:[#allocation7 + $0x3f0] sm:$0xff]
        %v9136 = vld [vmem:[#allocation7 + $0x3f8] sm:$0xff]
        %v9137 = vld [vmem:[#allocation7 + $0x400] sm:$0xff]
        %v9138 = vld [vmem:[#allocation7 + $0x408] sm:$0xff]
        %v9139 = vld [vmem:[#allocation7 + $0x410] sm:$0xff]
        %v9140 = vld [vmem:[#allocation7 + $0x418] sm:$0xff]
        %v9141 = vld [vmem:[#allocation7 + $0x420] sm:$0xff]
        %v9142 = vld [vmem:[#allocation7 + $0x428] sm:$0xff]
        %v9143 = vld [vmem:[#allocation7 + $0x430] sm:$0xff]
        %v9144 = vld [vmem:[#allocation7 + $0x438] sm:$0xff]
        %v9145 = vld [vmem:[#allocation7 + $0x440] sm:$0xff]
        %v9146 = vld [vmem:[#allocation7 + $0x448] sm:$0xff]
        %v9147 = vld [vmem:[#allocation7 + $0x450] sm:$0xff]
        %v9148 = vld [vmem:[#allocation7 + $0x458] sm:$0xff]
        %v9149 = vld [vmem:[#allocation7 + $0x460] sm:$0xff]
        %v9150 = vld [vmem:[#allocation7 + $0x468] sm:$0xff]
        %v9151 = vld [vmem:[#allocation7 + $0x470] sm:$0xff]
        %v9152 = vld [vmem:[#allocation7 + $0x478] sm:$0xff]
        %v9153 = vld [vmem:[#allocation7 + $0x480] sm:$0xff]
        %v9154 = vld [vmem:[#allocation7 + $0x488] sm:$0xff]
        %v9155 = vld [vmem:[#allocation7 + $0x490] sm:$0xff]
        %v9156 = vld [vmem:[#allocation7 + $0x498] sm:$0xff]
        %v9157 = vld [vmem:[#allocation7 + $0x4a0] sm:$0xff]
        %v9158 = vld [vmem:[#allocation7 + $0x4a8] sm:$0xff]
        %v9159 = vld [vmem:[#allocation7 + $0x4b0] sm:$0xff]
        %v9160 = vld [vmem:[#allocation7 + $0x4b8] sm:$0xff]
        %v9161 = vld [vmem:[#allocation7 + $0x4c0] sm:$0xff]
        %v9162 = vld [vmem:[#allocation7 + $0x4c8] sm:$0xff]
        %v9163 = vld [vmem:[#allocation7 + $0x4d0] sm:$0xff]
        %v9164 = vld [vmem:[#allocation7 + $0x4d8] sm:$0xff]
        %v9165 = vld [vmem:[#allocation7 + $0x4e0] sm:$0xff]
        %v9166 = vld [vmem:[#allocation7 + $0x4e8] sm:$0xff]
        %v9167 = vld [vmem:[#allocation7 + $0x4f0] sm:$0xff]
        %v9168 = vld [vmem:[#allocation7 + $0x4f8] sm:$0xff]
        %v9169 = vld [vmem:[#allocation7 + $0x500] sm:$0xff]
        %v9170 = vld [vmem:[#allocation7 + $0x508] sm:$0xff]
        %v9171 = vld [vmem:[#allocation7 + $0x510] sm:$0xff]
        %v9172 = vld [vmem:[#allocation7 + $0x518] sm:$0xff]
        %v9173 = vld [vmem:[#allocation7 + $0x520] sm:$0xff]
        %v9174 = vld [vmem:[#allocation7 + $0x528] sm:$0xff]
        %v9175 = vld [vmem:[#allocation7 + $0x530] sm:$0xff]
        %v9176 = vld [vmem:[#allocation7 + $0x538] sm:$0xff]
        %v9177 = vld [vmem:[#allocation7 + $0x540] sm:$0xff]
        %v9178 = vld [vmem:[#allocation7 + $0x548] sm:$0xff]
        %v9179 = vld [vmem:[#allocation7 + $0x550] sm:$0xff]
        %v9180 = vld [vmem:[#allocation7 + $0x558] sm:$0xff]
        %v9181 = vld [vmem:[#allocation7 + $0x560] sm:$0xff]
        %v9182 = vld [vmem:[#allocation7 + $0x568] sm:$0xff]
        %v9183 = vld [vmem:[#allocation7 + $0x570] sm:$0xff]
        %v9184 = vld [vmem:[#allocation7 + $0x578] sm:$0xff]
        %v9185 = vld [vmem:[#allocation7 + $0x580] sm:$0xff]
        %v9186 = vld [vmem:[#allocation7 + $0x588] sm:$0xff]
        %v9187 = vld [vmem:[#allocation7 + $0x590] sm:$0xff]
        %v9188 = vld [vmem:[#allocation7 + $0x598] sm:$0xff]
        %v9189 = vld [vmem:[#allocation7 + $0x5a0] sm:$0xff]
        %v9190 = vld [vmem:[#allocation7 + $0x5a8] sm:$0xff]
        %v9191 = vld [vmem:[#allocation7 + $0x5b0] sm:$0xff]
        %v9192 = vld [vmem:[#allocation7 + $0x5b8] sm:$0xff]
        %v9193 = vld [vmem:[#allocation7 + $0x5c0] sm:$0xff]
        %v9194 = vld [vmem:[#allocation7 + $0x5c8] sm:$0xff]
        %v9195 = vld [vmem:[#allocation7 + $0x5d0] sm:$0xff]
        %v9196 = vld [vmem:[#allocation7 + $0x5d8] sm:$0xff]
        %v9197 = vld [vmem:[#allocation7 + $0x5e0] sm:$0xff]
        %v9198 = vld [vmem:[#allocation7 + $0x5e8] sm:$0xff]
        %v9199 = vld [vmem:[#allocation7 + $0x5f0] sm:$0xff]
        %v9200 = vld [vmem:[#allocation7 + $0x5f8] sm:$0xff]
        %v9201 = vld [vmem:[#allocation7 + $0x600] sm:$0xff]
        %v9202 = vld [vmem:[#allocation7 + $0x608] sm:$0xff]
        %v9203 = vld [vmem:[#allocation7 + $0x610] sm:$0xff]
        %v9204 = vld [vmem:[#allocation7 + $0x618] sm:$0xff]
        %v9205 = vld [vmem:[#allocation7 + $0x620] sm:$0xff]
        %v9206 = vld [vmem:[#allocation7 + $0x628] sm:$0xff]
        %v9207 = vld [vmem:[#allocation7 + $0x630] sm:$0xff]
        %v9208 = vld [vmem:[#allocation7 + $0x638] sm:$0xff]
        %v9209 = vld [vmem:[#allocation7 + $0x640] sm:$0xff]
        %v9210 = vld [vmem:[#allocation7 + $0x648] sm:$0xff]
        %v9211 = vld [vmem:[#allocation7 + $0x650] sm:$0xff]
        %v9212 = vld [vmem:[#allocation7 + $0x658] sm:$0xff]
        %v9213 = vld [vmem:[#allocation7 + $0x660] sm:$0xff]
        %v9214 = vld [vmem:[#allocation7 + $0x668] sm:$0xff]
        %v9215 = vld [vmem:[#allocation7 + $0x670] sm:$0xff]
        %v9216 = vld [vmem:[#allocation7 + $0x678] sm:$0xff]
        %v9217 = vld [vmem:[#allocation7 + $0x680] sm:$0xff]
        %v9218 = vld [vmem:[#allocation7 + $0x688] sm:$0xff]
        %v9219 = vld [vmem:[#allocation7 + $0x690] sm:$0xff]
        %v9220 = vld [vmem:[#allocation7 + $0x698] sm:$0xff]
        %v9221 = vld [vmem:[#allocation7 + $0x6a0] sm:$0xff]
        %v9222 = vld [vmem:[#allocation7 + $0x6a8] sm:$0xff]
        %v9223 = vld [vmem:[#allocation7 + $0x6b0] sm:$0xff]
        %v9224 = vld [vmem:[#allocation7 + $0x6b8] sm:$0xff]
        %v9225 = vld [vmem:[#allocation7 + $0x6c0] sm:$0xff]
        %v9226 = vld [vmem:[#allocation7 + $0x6c8] sm:$0xff]
        %v9227 = vld [vmem:[#allocation7 + $0x6d0] sm:$0xff]
        %v9228 = vld [vmem:[#allocation7 + $0x6d8] sm:$0xff]
        %v9229 = vld [vmem:[#allocation7 + $0x6e0] sm:$0xff]
        %v9230 = vld [vmem:[#allocation7 + $0x6e8] sm:$0xff]
        %v9231 = vld [vmem:[#allocation7 + $0x6f0] sm:$0xff]
        %v9232 = vld [vmem:[#allocation7 + $0x6f8] sm:$0xff]
        %v9233 = vld [vmem:[#allocation7 + $0x700] sm:$0xff]
        %v9234 = vld [vmem:[#allocation7 + $0x708] sm:$0xff]
        %v9235 = vld [vmem:[#allocation7 + $0x710] sm:$0xff]
        %v9236 = vld [vmem:[#allocation7 + $0x718] sm:$0xff]
        %v9237 = vld [vmem:[#allocation7 + $0x720] sm:$0xff]
        %v9238 = vld [vmem:[#allocation7 + $0x728] sm:$0xff]
        %v9239 = vld [vmem:[#allocation7 + $0x730] sm:$0xff]
        %v9240 = vld [vmem:[#allocation7 + $0x738] sm:$0xff]
        %v9241 = vld [vmem:[#allocation7 + $0x740] sm:$0xff]
        %v9242 = vld [vmem:[#allocation7 + $0x748] sm:$0xff]
        %v9243 = vld [vmem:[#allocation7 + $0x750] sm:$0xff]
        %v9244 = vld [vmem:[#allocation7 + $0x758] sm:$0xff]
        %v9245 = vld [vmem:[#allocation7 + $0x760] sm:$0xff]
        %v9246 = vld [vmem:[#allocation7 + $0x768] sm:$0xff]
        %v9247 = vld [vmem:[#allocation7 + $0x770] sm:$0xff]
        %v9248 = vld [vmem:[#allocation7 + $0x778] sm:$0xff]
        %v9249 = vld [vmem:[#allocation7 + $0x780] sm:$0xff]
        %v9250 = vld [vmem:[#allocation7 + $0x788] sm:$0xff]
        %v9251 = vld [vmem:[#allocation7 + $0x790] sm:$0xff]
        %v9252 = vld [vmem:[#allocation7 + $0x798] sm:$0xff]
        %v9253 = vld [vmem:[#allocation7 + $0x7a0] sm:$0xff]
        %v9254 = vld [vmem:[#allocation7 + $0x7a8] sm:$0xff]
        %v9255 = vld [vmem:[#allocation7 + $0x7b0] sm:$0xff]
        %v9256 = vld [vmem:[#allocation7 + $0x7b8] sm:$0xff]
        %v9257 = vld [vmem:[#allocation7 + $0x7c0] sm:$0xff]
        %v9258 = vld [vmem:[#allocation7 + $0x7c8] sm:$0xff]
        %v9259 = vld [vmem:[#allocation7 + $0x7d0] sm:$0xff]
        %v9260 = vld [vmem:[#allocation7 + $0x7d8] sm:$0xff]
        %v9261 = vld [vmem:[#allocation7 + $0x7e0] sm:$0xff]
        %v9262 = vld [vmem:[#allocation7 + $0x7e8] sm:$0xff]
        %v9263 = vld [vmem:[#allocation7 + $0x7f0] sm:$0xff]
        %v9264 = vld [vmem:[#allocation7 + $0x7f8] sm:$0xff]
        %v9265 = vld [vmem:[#allocation9] sm:$0xf]
        %v9267 = vlaneseq
        %v9268 = vshrl.u32 %v9267, 7
        %v9269 = vsub.s32 0, %v9268
        %v9270 = vrot.slane %v9265, %v9269
        %v9271 = vlaneseq
        %v9272 = vshrl.u32 %v9271, 7
        %v9273 = vsub.s32 1, %v9272
        %v9274 = vrot.slane %v9265, %v9273
        %v9275 = vlaneseq
        %v9276 = vshrl.u32 %v9275, 7
        %v9277 = vsub.s32 2, %v9276
        %v9278 = vrot.slane %v9265, %v9277
        %v9279 = vlaneseq
        %v9280 = vshrl.u32 %v9279, 7
        %v9281 = vsub.s32 3, %v9280
        %v9282 = vrot.slane %v9265, %v9281
        %v9543 = vunpack.c.l.b16 %v9009
        %v9544 = vunpack.c.h.b16 %v9009
        %v9545 = vunpack.c.l.b16 %v9010
        %v9546 = vunpack.c.h.b16 %v9010
        %v9547 = vunpack.c.l.b16 %v9011
        %v9548 = vunpack.c.h.b16 %v9011
        %v9549 = vunpack.c.l.b16 %v9012
        %v9550 = vunpack.c.h.b16 %v9012
        %v9551 = vunpack.c.l.b16 %v9013
        %v9552 = vunpack.c.h.b16 %v9013
        %v9553 = vunpack.c.l.b16 %v9014
        %v9554 = vunpack.c.h.b16 %v9014
        %v9555 = vunpack.c.l.b16 %v9015
        %v9556 = vunpack.c.h.b16 %v9015
        %v9557 = vunpack.c.l.b16 %v9016
        %v9558 = vunpack.c.h.b16 %v9016
        %v9559 = vunpack.c.l.b16 %v9017
        %v9560 = vunpack.c.h.b16 %v9017
        %v9561 = vunpack.c.l.b16 %v9018
        %v9562 = vunpack.c.h.b16 %v9018
        %v9563 = vunpack.c.l.b16 %v9019
        %v9564 = vunpack.c.h.b16 %v9019
        %v9565 = vunpack.c.l.b16 %v9020
        %v9566 = vunpack.c.h.b16 %v9020
        %v9567 = vunpack.c.l.b16 %v9021
        %v9568 = vunpack.c.h.b16 %v9021
        %v9569 = vunpack.c.l.b16 %v9022
        %v9570 = vunpack.c.h.b16 %v9022
        %v9571 = vunpack.c.l.b16 %v9023
        %v9572 = vunpack.c.h.b16 %v9023
        %v9573 = vunpack.c.l.b16 %v9024
        %v9574 = vunpack.c.h.b16 %v9024
        %v9575 = vunpack.c.l.b16 %v9025
        %v9576 = vunpack.c.h.b16 %v9025
        %v9577 = vunpack.c.l.b16 %v9026
        %v9578 = vunpack.c.h.b16 %v9026
        %v9579 = vunpack.c.l.b16 %v9027
        %v9580 = vunpack.c.h.b16 %v9027
        %v9581 = vunpack.c.l.b16 %v9028
        %v9582 = vunpack.c.h.b16 %v9028
        %v9583 = vunpack.c.l.b16 %v9029
        %v9584 = vunpack.c.h.b16 %v9029
        %v9585 = vunpack.c.l.b16 %v9030
        %v9586 = vunpack.c.h.b16 %v9030
        %v9587 = vunpack.c.l.b16 %v9031
        %v9588 = vunpack.c.h.b16 %v9031
        %v9589 = vunpack.c.l.b16 %v9032
        %v9590 = vunpack.c.h.b16 %v9032
        %v9591 = vunpack.c.l.b16 %v9033
        %v9592 = vunpack.c.h.b16 %v9033
        %v9593 = vunpack.c.l.b16 %v9034
        %v9594 = vunpack.c.h.b16 %v9034
        %v9595 = vunpack.c.l.b16 %v9035
        %v9596 = vunpack.c.h.b16 %v9035
        %v9597 = vunpack.c.l.b16 %v9036
        %v9598 = vunpack.c.h.b16 %v9036
        %v9599 = vunpack.c.l.b16 %v9037
        %v9600 = vunpack.c.h.b16 %v9037
        %v9601 = vunpack.c.l.b16 %v9038
        %v9602 = vunpack.c.h.b16 %v9038
        %v9603 = vunpack.c.l.b16 %v9039
        %v9604 = vunpack.c.h.b16 %v9039
        %v9605 = vunpack.c.l.b16 %v9040
        %v9606 = vunpack.c.h.b16 %v9040
        %v9607 = vunpack.c.l.b16 %v9041
        %v9608 = vunpack.c.h.b16 %v9041
        %v9609 = vunpack.c.l.b16 %v9042
        %v9610 = vunpack.c.h.b16 %v9042
        %v9611 = vunpack.c.l.b16 %v9043
        %v9612 = vunpack.c.h.b16 %v9043
        %v9613 = vunpack.c.l.b16 %v9044
        %v9614 = vunpack.c.h.b16 %v9044
        %v9615 = vunpack.c.l.b16 %v9045
        %v9616 = vunpack.c.h.b16 %v9045
        %v9617 = vunpack.c.l.b16 %v9046
        %v9618 = vunpack.c.h.b16 %v9046
        %v9619 = vunpack.c.l.b16 %v9047
        %v9620 = vunpack.c.h.b16 %v9047
        %v9621 = vunpack.c.l.b16 %v9048
        %v9622 = vunpack.c.h.b16 %v9048
        %v9623 = vunpack.c.l.b16 %v9049
        %v9624 = vunpack.c.h.b16 %v9049
        %v9625 = vunpack.c.l.b16 %v9050
        %v9626 = vunpack.c.h.b16 %v9050
        %v9627 = vunpack.c.l.b16 %v9051
        %v9628 = vunpack.c.h.b16 %v9051
        %v9629 = vunpack.c.l.b16 %v9052
        %v9630 = vunpack.c.h.b16 %v9052
        %v9631 = vunpack.c.l.b16 %v9053
        %v9632 = vunpack.c.h.b16 %v9053
        %v9633 = vunpack.c.l.b16 %v9054
        %v9634 = vunpack.c.h.b16 %v9054
        %v9635 = vunpack.c.l.b16 %v9055
        %v9636 = vunpack.c.h.b16 %v9055
        %v9637 = vunpack.c.l.b16 %v9056
        %v9638 = vunpack.c.h.b16 %v9056
        %v9639 = vunpack.c.l.b16 %v9057
        %v9640 = vunpack.c.h.b16 %v9057
        %v9641 = vunpack.c.l.b16 %v9058
        %v9642 = vunpack.c.h.b16 %v9058
        %v9643 = vunpack.c.l.b16 %v9059
        %v9644 = vunpack.c.h.b16 %v9059
        %v9645 = vunpack.c.l.b16 %v9060
        %v9646 = vunpack.c.h.b16 %v9060
        %v9647 = vunpack.c.l.b16 %v9061
        %v9648 = vunpack.c.h.b16 %v9061
        %v9649 = vunpack.c.l.b16 %v9062
        %v9650 = vunpack.c.h.b16 %v9062
        %v9651 = vunpack.c.l.b16 %v9063
        %v9652 = vunpack.c.h.b16 %v9063
        %v9653 = vunpack.c.l.b16 %v9064
        %v9654 = vunpack.c.h.b16 %v9064
        %v9655 = vunpack.c.l.b16 %v9065
        %v9656 = vunpack.c.h.b16 %v9065
        %v9657 = vunpack.c.l.b16 %v9066
        %v9658 = vunpack.c.h.b16 %v9066
        %v9659 = vunpack.c.l.b16 %v9067
        %v9660 = vunpack.c.h.b16 %v9067
        %v9661 = vunpack.c.l.b16 %v9068
        %v9662 = vunpack.c.h.b16 %v9068
        %v9663 = vunpack.c.l.b16 %v9069
        %v9664 = vunpack.c.h.b16 %v9069
        %v9665 = vunpack.c.l.b16 %v9070
        %v9666 = vunpack.c.h.b16 %v9070
        %v9667 = vunpack.c.l.b16 %v9071
        %v9668 = vunpack.c.h.b16 %v9071
        %v9669 = vunpack.c.l.b16 %v9072
        %v9670 = vunpack.c.h.b16 %v9072
        %v9671 = vunpack.c.l.b16 %v9073
        %v9672 = vunpack.c.h.b16 %v9073
        %v9673 = vunpack.c.l.b16 %v9074
        %v9674 = vunpack.c.h.b16 %v9074
        %v9675 = vunpack.c.l.b16 %v9075
        %v9676 = vunpack.c.h.b16 %v9075
        %v9677 = vunpack.c.l.b16 %v9076
        %v9678 = vunpack.c.h.b16 %v9076
        %v9679 = vunpack.c.l.b16 %v9077
        %v9680 = vunpack.c.h.b16 %v9077
        %v9681 = vunpack.c.l.b16 %v9078
        %v9682 = vunpack.c.h.b16 %v9078
        %v9683 = vunpack.c.l.b16 %v9079
        %v9684 = vunpack.c.h.b16 %v9079
        %v9685 = vunpack.c.l.b16 %v9080
        %v9686 = vunpack.c.h.b16 %v9080
        %v9687 = vunpack.c.l.b16 %v9081
        %v9688 = vunpack.c.h.b16 %v9081
        %v9689 = vunpack.c.l.b16 %v9082
        %v9690 = vunpack.c.h.b16 %v9082
        %v9691 = vunpack.c.l.b16 %v9083
        %v9692 = vunpack.c.h.b16 %v9083
        %v9693 = vunpack.c.l.b16 %v9084
        %v9694 = vunpack.c.h.b16 %v9084
        %v9695 = vunpack.c.l.b16 %v9085
        %v9696 = vunpack.c.h.b16 %v9085
        %v9697 = vunpack.c.l.b16 %v9086
        %v9698 = vunpack.c.h.b16 %v9086
        %v9699 = vunpack.c.l.b16 %v9087
        %v9700 = vunpack.c.h.b16 %v9087
        %v9701 = vunpack.c.l.b16 %v9088
        %v9702 = vunpack.c.h.b16 %v9088
        %v9703 = vunpack.c.l.b16 %v9089
        %v9704 = vunpack.c.h.b16 %v9089
        %v9705 = vunpack.c.l.b16 %v9090
        %v9706 = vunpack.c.h.b16 %v9090
        %v9707 = vunpack.c.l.b16 %v9091
        %v9708 = vunpack.c.h.b16 %v9091
        %v9709 = vunpack.c.l.b16 %v9092
        %v9710 = vunpack.c.h.b16 %v9092
        %v9711 = vunpack.c.l.b16 %v9093
        %v9712 = vunpack.c.h.b16 %v9093
        %v9713 = vunpack.c.l.b16 %v9094
        %v9714 = vunpack.c.h.b16 %v9094
        %v9715 = vunpack.c.l.b16 %v9095
        %v9716 = vunpack.c.h.b16 %v9095
        %v9717 = vunpack.c.l.b16 %v9096
        %v9718 = vunpack.c.h.b16 %v9096
        %v9719 = vunpack.c.l.b16 %v9097
        %v9720 = vunpack.c.h.b16 %v9097
        %v9721 = vunpack.c.l.b16 %v9098
        %v9722 = vunpack.c.h.b16 %v9098
        %v9723 = vunpack.c.l.b16 %v9099
        %v9724 = vunpack.c.h.b16 %v9099
        %v9725 = vunpack.c.l.b16 %v9100
        %v9726 = vunpack.c.h.b16 %v9100
        %v9727 = vunpack.c.l.b16 %v9101
        %v9728 = vunpack.c.h.b16 %v9101
        %v9729 = vunpack.c.l.b16 %v9102
        %v9730 = vunpack.c.h.b16 %v9102
        %v9731 = vunpack.c.l.b16 %v9103
        %v9732 = vunpack.c.h.b16 %v9103
        %v9733 = vunpack.c.l.b16 %v9104
        %v9734 = vunpack.c.h.b16 %v9104
        %v9735 = vunpack.c.l.b16 %v9105
        %v9736 = vunpack.c.h.b16 %v9105
        %v9737 = vunpack.c.l.b16 %v9106
        %v9738 = vunpack.c.h.b16 %v9106
        %v9739 = vunpack.c.l.b16 %v9107
        %v9740 = vunpack.c.h.b16 %v9107
        %v9741 = vunpack.c.l.b16 %v9108
        %v9742 = vunpack.c.h.b16 %v9108
        %v9743 = vunpack.c.l.b16 %v9109
        %v9744 = vunpack.c.h.b16 %v9109
        %v9745 = vunpack.c.l.b16 %v9110
        %v9746 = vunpack.c.h.b16 %v9110
        %v9747 = vunpack.c.l.b16 %v9111
        %v9748 = vunpack.c.h.b16 %v9111
        %v9749 = vunpack.c.l.b16 %v9112
        %v9750 = vunpack.c.h.b16 %v9112
        %v9751 = vunpack.c.l.b16 %v9113
        %v9752 = vunpack.c.h.b16 %v9113
        %v9753 = vunpack.c.l.b16 %v9114
        %v9754 = vunpack.c.h.b16 %v9114
        %v9755 = vunpack.c.l.b16 %v9115
        %v9756 = vunpack.c.h.b16 %v9115
        %v9757 = vunpack.c.l.b16 %v9116
        %v9758 = vunpack.c.h.b16 %v9116
        %v9759 = vunpack.c.l.b16 %v9117
        %v9760 = vunpack.c.h.b16 %v9117
        %v9761 = vunpack.c.l.b16 %v9118
        %v9762 = vunpack.c.h.b16 %v9118
        %v9763 = vunpack.c.l.b16 %v9119
        %v9764 = vunpack.c.h.b16 %v9119
        %v9765 = vunpack.c.l.b16 %v9120
        %v9766 = vunpack.c.h.b16 %v9120
        %v9767 = vunpack.c.l.b16 %v9121
        %v9768 = vunpack.c.h.b16 %v9121
        %v9769 = vunpack.c.l.b16 %v9122
        %v9770 = vunpack.c.h.b16 %v9122
        %v9771 = vunpack.c.l.b16 %v9123
        %v9772 = vunpack.c.h.b16 %v9123
        %v9773 = vunpack.c.l.b16 %v9124
        %v9774 = vunpack.c.h.b16 %v9124
        %v9775 = vunpack.c.l.b16 %v9125
        %v9776 = vunpack.c.h.b16 %v9125
        %v9777 = vunpack.c.l.b16 %v9126
        %v9778 = vunpack.c.h.b16 %v9126
        %v9779 = vunpack.c.l.b16 %v9127
        %v9780 = vunpack.c.h.b16 %v9127
        %v9781 = vunpack.c.l.b16 %v9128
        %v9782 = vunpack.c.h.b16 %v9128
        %v9783 = vunpack.c.l.b16 %v9129
        %v9784 = vunpack.c.h.b16 %v9129
        %v9785 = vunpack.c.l.b16 %v9130
        %v9786 = vunpack.c.h.b16 %v9130
        %v9787 = vunpack.c.l.b16 %v9131
        %v9788 = vunpack.c.h.b16 %v9131
        %v9789 = vunpack.c.l.b16 %v9132
        %v9790 = vunpack.c.h.b16 %v9132
        %v9791 = vunpack.c.l.b16 %v9133
        %v9792 = vunpack.c.h.b16 %v9133
        %v9793 = vunpack.c.l.b16 %v9134
        %v9794 = vunpack.c.h.b16 %v9134
        %v9795 = vunpack.c.l.b16 %v9135
        %v9796 = vunpack.c.h.b16 %v9135
        %v9797 = vunpack.c.l.b16 %v9136
        %v9798 = vunpack.c.h.b16 %v9136
        %v9799 = vunpack.c.l.b16 %v9137
        %v9800 = vunpack.c.h.b16 %v9137
        %v9801 = vunpack.c.l.b16 %v9138
        %v9802 = vunpack.c.h.b16 %v9138
        %v9803 = vunpack.c.l.b16 %v9139
        %v9804 = vunpack.c.h.b16 %v9139
        %v9805 = vunpack.c.l.b16 %v9140
        %v9806 = vunpack.c.h.b16 %v9140
        %v9807 = vunpack.c.l.b16 %v9141
        %v9808 = vunpack.c.h.b16 %v9141
        %v9809 = vunpack.c.l.b16 %v9142
        %v9810 = vunpack.c.h.b16 %v9142
        %v9811 = vunpack.c.l.b16 %v9143
        %v9812 = vunpack.c.h.b16 %v9143
        %v9813 = vunpack.c.l.b16 %v9144
        %v9814 = vunpack.c.h.b16 %v9144
        %v9815 = vunpack.c.l.b16 %v9145
        %v9816 = vunpack.c.h.b16 %v9145
        %v9817 = vunpack.c.l.b16 %v9146
        %v9818 = vunpack.c.h.b16 %v9146
        %v9819 = vunpack.c.l.b16 %v9147
        %v9820 = vunpack.c.h.b16 %v9147
        %v9821 = vunpack.c.l.b16 %v9148
        %v9822 = vunpack.c.h.b16 %v9148
        %v9823 = vunpack.c.l.b16 %v9149
        %v9824 = vunpack.c.h.b16 %v9149
        %v9825 = vunpack.c.l.b16 %v9150
        %v9826 = vunpack.c.h.b16 %v9150
        %v9827 = vunpack.c.l.b16 %v9151
        %v9828 = vunpack.c.h.b16 %v9151
        %v9829 = vunpack.c.l.b16 %v9152
        %v9830 = vunpack.c.h.b16 %v9152
        %v9831 = vunpack.c.l.b16 %v9153
        %v9832 = vunpack.c.h.b16 %v9153
        %v9833 = vunpack.c.l.b16 %v9154
        %v9834 = vunpack.c.h.b16 %v9154
        %v9835 = vunpack.c.l.b16 %v9155
        %v9836 = vunpack.c.h.b16 %v9155
        %v9837 = vunpack.c.l.b16 %v9156
        %v9838 = vunpack.c.h.b16 %v9156
        %v9839 = vunpack.c.l.b16 %v9157
        %v9840 = vunpack.c.h.b16 %v9157
        %v9841 = vunpack.c.l.b16 %v9158
        %v9842 = vunpack.c.h.b16 %v9158
        %v9843 = vunpack.c.l.b16 %v9159
        %v9844 = vunpack.c.h.b16 %v9159
        %v9845 = vunpack.c.l.b16 %v9160
        %v9846 = vunpack.c.h.b16 %v9160
        %v9847 = vunpack.c.l.b16 %v9161
        %v9848 = vunpack.c.h.b16 %v9161
        %v9849 = vunpack.c.l.b16 %v9162
        %v9850 = vunpack.c.h.b16 %v9162
        %v9851 = vunpack.c.l.b16 %v9163
        %v9852 = vunpack.c.h.b16 %v9163
        %v9853 = vunpack.c.l.b16 %v9164
        %v9854 = vunpack.c.h.b16 %v9164
        %v9855 = vunpack.c.l.b16 %v9165
        %v9856 = vunpack.c.h.b16 %v9165
        %v9857 = vunpack.c.l.b16 %v9166
        %v9858 = vunpack.c.h.b16 %v9166
        %v9859 = vunpack.c.l.b16 %v9167
        %v9860 = vunpack.c.h.b16 %v9167
        %v9861 = vunpack.c.l.b16 %v9168
        %v9862 = vunpack.c.h.b16 %v9168
        %v9863 = vunpack.c.l.b16 %v9169
        %v9864 = vunpack.c.h.b16 %v9169
        %v9865 = vunpack.c.l.b16 %v9170
        %v9866 = vunpack.c.h.b16 %v9170
        %v9867 = vunpack.c.l.b16 %v9171
        %v9868 = vunpack.c.h.b16 %v9171
        %v9869 = vunpack.c.l.b16 %v9172
        %v9870 = vunpack.c.h.b16 %v9172
        %v9871 = vunpack.c.l.b16 %v9173
        %v9872 = vunpack.c.h.b16 %v9173
        %v9873 = vunpack.c.l.b16 %v9174
        %v9874 = vunpack.c.h.b16 %v9174
        %v9875 = vunpack.c.l.b16 %v9175
        %v9876 = vunpack.c.h.b16 %v9175
        %v9877 = vunpack.c.l.b16 %v9176
        %v9878 = vunpack.c.h.b16 %v9176
        %v9879 = vunpack.c.l.b16 %v9177
        %v9880 = vunpack.c.h.b16 %v9177
        %v9881 = vunpack.c.l.b16 %v9178
        %v9882 = vunpack.c.h.b16 %v9178
        %v9883 = vunpack.c.l.b16 %v9179
        %v9884 = vunpack.c.h.b16 %v9179
        %v9885 = vunpack.c.l.b16 %v9180
        %v9886 = vunpack.c.h.b16 %v9180
        %v9887 = vunpack.c.l.b16 %v9181
        %v9888 = vunpack.c.h.b16 %v9181
        %v9889 = vunpack.c.l.b16 %v9182
        %v9890 = vunpack.c.h.b16 %v9182
        %v9891 = vunpack.c.l.b16 %v9183
        %v9892 = vunpack.c.h.b16 %v9183
        %v9893 = vunpack.c.l.b16 %v9184
        %v9894 = vunpack.c.h.b16 %v9184
        %v9895 = vunpack.c.l.b16 %v9185
        %v9896 = vunpack.c.h.b16 %v9185
        %v9897 = vunpack.c.l.b16 %v9186
        %v9898 = vunpack.c.h.b16 %v9186
        %v9899 = vunpack.c.l.b16 %v9187
        %v9900 = vunpack.c.h.b16 %v9187
        %v9901 = vunpack.c.l.b16 %v9188
        %v9902 = vunpack.c.h.b16 %v9188
        %v9903 = vunpack.c.l.b16 %v9189
        %v9904 = vunpack.c.h.b16 %v9189
        %v9905 = vunpack.c.l.b16 %v9190
        %v9906 = vunpack.c.h.b16 %v9190
        %v9907 = vunpack.c.l.b16 %v9191
        %v9908 = vunpack.c.h.b16 %v9191
        %v9909 = vunpack.c.l.b16 %v9192
        %v9910 = vunpack.c.h.b16 %v9192
        %v9911 = vunpack.c.l.b16 %v9193
        %v9912 = vunpack.c.h.b16 %v9193
        %v9913 = vunpack.c.l.b16 %v9194
        %v9914 = vunpack.c.h.b16 %v9194
        %v9915 = vunpack.c.l.b16 %v9195
        %v9916 = vunpack.c.h.b16 %v9195
        %v9917 = vunpack.c.l.b16 %v9196
        %v9918 = vunpack.c.h.b16 %v9196
        %v9919 = vunpack.c.l.b16 %v9197
        %v9920 = vunpack.c.h.b16 %v9197
        %v9921 = vunpack.c.l.b16 %v9198
        %v9922 = vunpack.c.h.b16 %v9198
        %v9923 = vunpack.c.l.b16 %v9199
        %v9924 = vunpack.c.h.b16 %v9199
        %v9925 = vunpack.c.l.b16 %v9200
        %v9926 = vunpack.c.h.b16 %v9200
        %v9927 = vunpack.c.l.b16 %v9201
        %v9928 = vunpack.c.h.b16 %v9201
        %v9929 = vunpack.c.l.b16 %v9202
        %v9930 = vunpack.c.h.b16 %v9202
        %v9931 = vunpack.c.l.b16 %v9203
        %v9932 = vunpack.c.h.b16 %v9203
        %v9933 = vunpack.c.l.b16 %v9204
        %v9934 = vunpack.c.h.b16 %v9204
        %v9935 = vunpack.c.l.b16 %v9205
        %v9936 = vunpack.c.h.b16 %v9205
        %v9937 = vunpack.c.l.b16 %v9206
        %v9938 = vunpack.c.h.b16 %v9206
        %v9939 = vunpack.c.l.b16 %v9207
        %v9940 = vunpack.c.h.b16 %v9207
        %v9941 = vunpack.c.l.b16 %v9208
        %v9942 = vunpack.c.h.b16 %v9208
        %v9943 = vunpack.c.l.b16 %v9209
        %v9944 = vunpack.c.h.b16 %v9209
        %v9945 = vunpack.c.l.b16 %v9210
        %v9946 = vunpack.c.h.b16 %v9210
        %v9947 = vunpack.c.l.b16 %v9211
        %v9948 = vunpack.c.h.b16 %v9211
        %v9949 = vunpack.c.l.b16 %v9212
        %v9950 = vunpack.c.h.b16 %v9212
        %v9951 = vunpack.c.l.b16 %v9213
        %v9952 = vunpack.c.h.b16 %v9213
        %v9953 = vunpack.c.l.b16 %v9214
        %v9954 = vunpack.c.h.b16 %v9214
        %v9955 = vunpack.c.l.b16 %v9215
        %v9956 = vunpack.c.h.b16 %v9215
        %v9957 = vunpack.c.l.b16 %v9216
        %v9958 = vunpack.c.h.b16 %v9216
        %v9959 = vunpack.c.l.b16 %v9217
        %v9960 = vunpack.c.h.b16 %v9217
        %v9961 = vunpack.c.l.b16 %v9218
        %v9962 = vunpack.c.h.b16 %v9218
        %v9963 = vunpack.c.l.b16 %v9219
        %v9964 = vunpack.c.h.b16 %v9219
        %v9965 = vunpack.c.l.b16 %v9220
        %v9966 = vunpack.c.h.b16 %v9220
        %v9967 = vunpack.c.l.b16 %v9221
        %v9968 = vunpack.c.h.b16 %v9221
        %v9969 = vunpack.c.l.b16 %v9222
        %v9970 = vunpack.c.h.b16 %v9222
        %v9971 = vunpack.c.l.b16 %v9223
        %v9972 = vunpack.c.h.b16 %v9223
        %v9973 = vunpack.c.l.b16 %v9224
        %v9974 = vunpack.c.h.b16 %v9224
        %v9975 = vunpack.c.l.b16 %v9225
        %v9976 = vunpack.c.h.b16 %v9225
        %v9977 = vunpack.c.l.b16 %v9226
        %v9978 = vunpack.c.h.b16 %v9226
        %v9979 = vunpack.c.l.b16 %v9227
        %v9980 = vunpack.c.h.b16 %v9227
        %v9981 = vunpack.c.l.b16 %v9228
        %v9982 = vunpack.c.h.b16 %v9228
        %v9983 = vunpack.c.l.b16 %v9229
        %v9984 = vunpack.c.h.b16 %v9229
        %v9985 = vunpack.c.l.b16 %v9230
        %v9986 = vunpack.c.h.b16 %v9230
        %v9987 = vunpack.c.l.b16 %v9231
        %v9988 = vunpack.c.h.b16 %v9231
        %v9989 = vunpack.c.l.b16 %v9232
        %v9990 = vunpack.c.h.b16 %v9232
        %v9991 = vunpack.c.l.b16 %v9233
        %v9992 = vunpack.c.h.b16 %v9233
        %v9993 = vunpack.c.l.b16 %v9234
        %v9994 = vunpack.c.h.b16 %v9234
        %v9995 = vunpack.c.l.b16 %v9235
        %v9996 = vunpack.c.h.b16 %v9235
        %v9997 = vunpack.c.l.b16 %v9236
        %v9998 = vunpack.c.h.b16 %v9236
        %v9999 = vunpack.c.l.b16 %v9237
        %v10000 = vunpack.c.h.b16 %v9237
        %v10001 = vunpack.c.l.b16 %v9238
        %v10002 = vunpack.c.h.b16 %v9238
        %v10003 = vunpack.c.l.b16 %v9239
        %v10004 = vunpack.c.h.b16 %v9239
        %v10005 = vunpack.c.l.b16 %v9240
        %v10006 = vunpack.c.h.b16 %v9240
        %v10007 = vunpack.c.l.b16 %v9241
        %v10008 = vunpack.c.h.b16 %v9241
        %v10009 = vunpack.c.l.b16 %v9242
        %v10010 = vunpack.c.h.b16 %v9242
        %v10011 = vunpack.c.l.b16 %v9243
        %v10012 = vunpack.c.h.b16 %v9243
        %v10013 = vunpack.c.l.b16 %v9244
        %v10014 = vunpack.c.h.b16 %v9244
        %v10015 = vunpack.c.l.b16 %v9245
        %v10016 = vunpack.c.h.b16 %v9245
        %v10017 = vunpack.c.l.b16 %v9246
        %v10018 = vunpack.c.h.b16 %v9246
        %v10019 = vunpack.c.l.b16 %v9247
        %v10020 = vunpack.c.h.b16 %v9247
        %v10021 = vunpack.c.l.b16 %v9248
        %v10022 = vunpack.c.h.b16 %v9248
        %v10023 = vunpack.c.l.b16 %v9249
        %v10024 = vunpack.c.h.b16 %v9249
        %v10025 = vunpack.c.l.b16 %v9250
        %v10026 = vunpack.c.h.b16 %v9250
        %v10027 = vunpack.c.l.b16 %v9251
        %v10028 = vunpack.c.h.b16 %v9251
        %v10029 = vunpack.c.l.b16 %v9252
        %v10030 = vunpack.c.h.b16 %v9252
        %v10031 = vunpack.c.l.b16 %v9253
        %v10032 = vunpack.c.h.b16 %v9253
        %v10033 = vunpack.c.l.b16 %v9254
        %v10034 = vunpack.c.h.b16 %v9254
        %v10035 = vunpack.c.l.b16 %v9255
        %v10036 = vunpack.c.h.b16 %v9255
        %v10037 = vunpack.c.l.b16 %v9256
        %v10038 = vunpack.c.h.b16 %v9256
        %v10039 = vunpack.c.l.b16 %v9257
        %v10040 = vunpack.c.h.b16 %v9257
        %v10041 = vunpack.c.l.b16 %v9258
        %v10042 = vunpack.c.h.b16 %v9258
        %v10043 = vunpack.c.l.b16 %v9259
        %v10044 = vunpack.c.h.b16 %v9259
        %v10045 = vunpack.c.l.b16 %v9260
        %v10046 = vunpack.c.h.b16 %v9260
        %v10047 = vunpack.c.l.b16 %v9261
        %v10048 = vunpack.c.h.b16 %v9261
        %v10049 = vunpack.c.l.b16 %v9262
        %v10050 = vunpack.c.h.b16 %v9262
        %v10051 = vunpack.c.l.b16 %v9263
        %v10052 = vunpack.c.h.b16 %v9263
        %v10053 = vunpack.c.l.b16 %v9264
        %v10054 = vunpack.c.h.b16 %v9264
        %v10055 = vpack.c.b16 %v9547, %v9543
        %v10056 = vpack.c.b16 %v9548, %v9544
        %v10057 = vpack.c.b16 %v9549, %v9545
        %v10058 = vpack.c.b16 %v9550, %v9546
        %v10059 = vpack.c.b16 %v9555, %v9551
        %v10060 = vpack.c.b16 %v9556, %v9552
        %v10061 = vpack.c.b16 %v9557, %v9553
        %v10062 = vpack.c.b16 %v9558, %v9554
        %v10063 = vpack.c.b16 %v9563, %v9559
        %v10064 = vpack.c.b16 %v9564, %v9560
        %v10065 = vpack.c.b16 %v9565, %v9561
        %v10066 = vpack.c.b16 %v9566, %v9562
        %v10067 = vpack.c.b16 %v9571, %v9567
        %v10068 = vpack.c.b16 %v9572, %v9568
        %v10069 = vpack.c.b16 %v9573, %v9569
        %v10070 = vpack.c.b16 %v9574, %v9570
        %v10071 = vpack.c.b16 %v9579, %v9575
        %v10072 = vpack.c.b16 %v9580, %v9576
        %v10073 = vpack.c.b16 %v9581, %v9577
        %v10074 = vpack.c.b16 %v9582, %v9578
        %v10075 = vpack.c.b16 %v9587, %v9583
        %v10076 = vpack.c.b16 %v9588, %v9584
        %v10077 = vpack.c.b16 %v9589, %v9585
        %v10078 = vpack.c.b16 %v9590, %v9586
        %v10079 = vpack.c.b16 %v9595, %v9591
        %v10080 = vpack.c.b16 %v9596, %v9592
        %v10081 = vpack.c.b16 %v9597, %v9593
        %v10082 = vpack.c.b16 %v9598, %v9594
        %v10083 = vpack.c.b16 %v9603, %v9599
        %v10084 = vpack.c.b16 %v9604, %v9600
        %v10085 = vpack.c.b16 %v9605, %v9601
        %v10086 = vpack.c.b16 %v9606, %v9602
        %v10087 = vpack.c.b16 %v9611, %v9607
        %v10088 = vpack.c.b16 %v9612, %v9608
        %v10089 = vpack.c.b16 %v9613, %v9609
        %v10090 = vpack.c.b16 %v9614, %v9610
        %v10091 = vpack.c.b16 %v9619, %v9615
        %v10092 = vpack.c.b16 %v9620, %v9616
        %v10093 = vpack.c.b16 %v9621, %v9617
        %v10094 = vpack.c.b16 %v9622, %v9618
        %v10095 = vpack.c.b16 %v9627, %v9623
        %v10096 = vpack.c.b16 %v9628, %v9624
        %v10097 = vpack.c.b16 %v9629, %v9625
        %v10098 = vpack.c.b16 %v9630, %v9626
        %v10099 = vpack.c.b16 %v9635, %v9631
        %v10100 = vpack.c.b16 %v9636, %v9632
        %v10101 = vpack.c.b16 %v9637, %v9633
        %v10102 = vpack.c.b16 %v9638, %v9634
        %v10103 = vpack.c.b16 %v9643, %v9639
        %v10104 = vpack.c.b16 %v9644, %v9640
        %v10105 = vpack.c.b16 %v9645, %v9641
        %v10106 = vpack.c.b16 %v9646, %v9642
        %v10107 = vpack.c.b16 %v9651, %v9647
        %v10108 = vpack.c.b16 %v9652, %v9648
        %v10109 = vpack.c.b16 %v9653, %v9649
        %v10110 = vpack.c.b16 %v9654, %v9650
        %v10111 = vpack.c.b16 %v9659, %v9655
        %v10112 = vpack.c.b16 %v9660, %v9656
        %v10113 = vpack.c.b16 %v9661, %v9657
        %v10114 = vpack.c.b16 %v9662, %v9658
        %v10115 = vpack.c.b16 %v9667, %v9663
        %v10116 = vpack.c.b16 %v9668, %v9664
        %v10117 = vpack.c.b16 %v9669, %v9665
        %v10118 = vpack.c.b16 %v9670, %v9666
        %v10119 = vpack.c.b16 %v9675, %v9671
        %v10120 = vpack.c.b16 %v9676, %v9672
        %v10121 = vpack.c.b16 %v9677, %v9673
        %v10122 = vpack.c.b16 %v9678, %v9674
        %v10123 = vpack.c.b16 %v9683, %v9679
        %v10124 = vpack.c.b16 %v9684, %v9680
        %v10125 = vpack.c.b16 %v9685, %v9681
        %v10126 = vpack.c.b16 %v9686, %v9682
        %v10127 = vpack.c.b16 %v9691, %v9687
        %v10128 = vpack.c.b16 %v9692, %v9688
        %v10129 = vpack.c.b16 %v9693, %v9689
        %v10130 = vpack.c.b16 %v9694, %v9690
        %v10131 = vpack.c.b16 %v9699, %v9695
        %v10132 = vpack.c.b16 %v9700, %v9696
        %v10133 = vpack.c.b16 %v9701, %v9697
        %v10134 = vpack.c.b16 %v9702, %v9698
        %v10135 = vpack.c.b16 %v9707, %v9703
        %v10136 = vpack.c.b16 %v9708, %v9704
        %v10137 = vpack.c.b16 %v9709, %v9705
        %v10138 = vpack.c.b16 %v9710, %v9706
        %v10139 = vpack.c.b16 %v9715, %v9711
        %v10140 = vpack.c.b16 %v9716, %v9712
        %v10141 = vpack.c.b16 %v9717, %v9713
        %v10142 = vpack.c.b16 %v9718, %v9714
        %v10143 = vpack.c.b16 %v9723, %v9719
        %v10144 = vpack.c.b16 %v9724, %v9720
        %v10145 = vpack.c.b16 %v9725, %v9721
        %v10146 = vpack.c.b16 %v9726, %v9722
        %v10147 = vpack.c.b16 %v9731, %v9727
        %v10148 = vpack.c.b16 %v9732, %v9728
        %v10149 = vpack.c.b16 %v9733, %v9729
        %v10150 = vpack.c.b16 %v9734, %v9730
        %v10151 = vpack.c.b16 %v9739, %v9735
        %v10152 = vpack.c.b16 %v9740, %v9736
        %v10153 = vpack.c.b16 %v9741, %v9737
        %v10154 = vpack.c.b16 %v9742, %v9738
        %v10155 = vpack.c.b16 %v9747, %v9743
        %v10156 = vpack.c.b16 %v9748, %v9744
        %v10157 = vpack.c.b16 %v9749, %v9745
        %v10158 = vpack.c.b16 %v9750, %v9746
        %v10159 = vpack.c.b16 %v9755, %v9751
        %v10160 = vpack.c.b16 %v9756, %v9752
        %v10161 = vpack.c.b16 %v9757, %v9753
        %v10162 = vpack.c.b16 %v9758, %v9754
        %v10163 = vpack.c.b16 %v9763, %v9759
        %v10164 = vpack.c.b16 %v9764, %v9760
        %v10165 = vpack.c.b16 %v9765, %v9761
        %v10166 = vpack.c.b16 %v9766, %v9762
        %v10167 = vpack.c.b16 %v9771, %v9767
        %v10168 = vpack.c.b16 %v9772, %v9768
        %v10169 = vpack.c.b16 %v9773, %v9769
        %v10170 = vpack.c.b16 %v9774, %v9770
        %v10171 = vpack.c.b16 %v9779, %v9775
        %v10172 = vpack.c.b16 %v9780, %v9776
        %v10173 = vpack.c.b16 %v9781, %v9777
        %v10174 = vpack.c.b16 %v9782, %v9778
        %v10175 = vpack.c.b16 %v9787, %v9783
        %v10176 = vpack.c.b16 %v9788, %v9784
        %v10177 = vpack.c.b16 %v9789, %v9785
        %v10178 = vpack.c.b16 %v9790, %v9786
        %v10179 = vpack.c.b16 %v9795, %v9791
        %v10180 = vpack.c.b16 %v9796, %v9792
        %v10181 = vpack.c.b16 %v9797, %v9793
        %v10182 = vpack.c.b16 %v9798, %v9794
        %v10183 = vpack.c.b16 %v9803, %v9799
        %v10184 = vpack.c.b16 %v9804, %v9800
        %v10185 = vpack.c.b16 %v9805, %v9801
        %v10186 = vpack.c.b16 %v9806, %v9802
        %v10187 = vpack.c.b16 %v9811, %v9807
        %v10188 = vpack.c.b16 %v9812, %v9808
        %v10189 = vpack.c.b16 %v9813, %v9809
        %v10190 = vpack.c.b16 %v9814, %v9810
        %v10191 = vpack.c.b16 %v9819, %v9815
        %v10192 = vpack.c.b16 %v9820, %v9816
        %v10193 = vpack.c.b16 %v9821, %v9817
        %v10194 = vpack.c.b16 %v9822, %v9818
        %v10195 = vpack.c.b16 %v9827, %v9823
        %v10196 = vpack.c.b16 %v9828, %v9824
        %v10197 = vpack.c.b16 %v9829, %v9825
        %v10198 = vpack.c.b16 %v9830, %v9826
        %v10199 = vpack.c.b16 %v9835, %v9831
        %v10200 = vpack.c.b16 %v9836, %v9832
        %v10201 = vpack.c.b16 %v9837, %v9833
        %v10202 = vpack.c.b16 %v9838, %v9834
        %v10203 = vpack.c.b16 %v9843, %v9839
        %v10204 = vpack.c.b16 %v9844, %v9840
        %v10205 = vpack.c.b16 %v9845, %v9841
        %v10206 = vpack.c.b16 %v9846, %v9842
        %v10207 = vpack.c.b16 %v9851, %v9847
        %v10208 = vpack.c.b16 %v9852, %v9848
        %v10209 = vpack.c.b16 %v9853, %v9849
        %v10210 = vpack.c.b16 %v9854, %v9850
        %v10211 = vpack.c.b16 %v9859, %v9855
        %v10212 = vpack.c.b16 %v9860, %v9856
        %v10213 = vpack.c.b16 %v9861, %v9857
        %v10214 = vpack.c.b16 %v9862, %v9858
        %v10215 = vpack.c.b16 %v9867, %v9863
        %v10216 = vpack.c.b16 %v9868, %v9864
        %v10217 = vpack.c.b16 %v9869, %v9865
        %v10218 = vpack.c.b16 %v9870, %v9866
        %v10219 = vpack.c.b16 %v9875, %v9871
        %v10220 = vpack.c.b16 %v9876, %v9872
        %v10221 = vpack.c.b16 %v9877, %v9873
        %v10222 = vpack.c.b16 %v9878, %v9874
        %v10223 = vpack.c.b16 %v9883, %v9879
        %v10224 = vpack.c.b16 %v9884, %v9880
        %v10225 = vpack.c.b16 %v9885, %v9881
        %v10226 = vpack.c.b16 %v9886, %v9882
        %v10227 = vpack.c.b16 %v9891, %v9887
        %v10228 = vpack.c.b16 %v9892, %v9888
        %v10229 = vpack.c.b16 %v9893, %v9889
        %v10230 = vpack.c.b16 %v9894, %v9890
        %v10231 = vpack.c.b16 %v9899, %v9895
        %v10232 = vpack.c.b16 %v9900, %v9896
        %v10233 = vpack.c.b16 %v9901, %v9897
        %v10234 = vpack.c.b16 %v9902, %v9898
        %v10235 = vpack.c.b16 %v9907, %v9903
        %v10236 = vpack.c.b16 %v9908, %v9904
        %v10237 = vpack.c.b16 %v9909, %v9905
        %v10238 = vpack.c.b16 %v9910, %v9906
        %v10239 = vpack.c.b16 %v9915, %v9911
        %v10240 = vpack.c.b16 %v9916, %v9912
        %v10241 = vpack.c.b16 %v9917, %v9913
        %v10242 = vpack.c.b16 %v9918, %v9914
        %v10243 = vpack.c.b16 %v9923, %v9919
        %v10244 = vpack.c.b16 %v9924, %v9920
        %v10245 = vpack.c.b16 %v9925, %v9921
        %v10246 = vpack.c.b16 %v9926, %v9922
        %v10247 = vpack.c.b16 %v9931, %v9927
        %v10248 = vpack.c.b16 %v9932, %v9928
        %v10249 = vpack.c.b16 %v9933, %v9929
        %v10250 = vpack.c.b16 %v9934, %v9930
        %v10251 = vpack.c.b16 %v9939, %v9935
        %v10252 = vpack.c.b16 %v9940, %v9936
        %v10253 = vpack.c.b16 %v9941, %v9937
        %v10254 = vpack.c.b16 %v9942, %v9938
        %v10255 = vpack.c.b16 %v9947, %v9943
        %v10256 = vpack.c.b16 %v9948, %v9944
        %v10257 = vpack.c.b16 %v9949, %v9945
        %v10258 = vpack.c.b16 %v9950, %v9946
        %v10259 = vpack.c.b16 %v9955, %v9951
        %v10260 = vpack.c.b16 %v9956, %v9952
        %v10261 = vpack.c.b16 %v9957, %v9953
        %v10262 = vpack.c.b16 %v9958, %v9954
        %v10263 = vpack.c.b16 %v9963, %v9959
        %v10264 = vpack.c.b16 %v9964, %v9960
        %v10265 = vpack.c.b16 %v9965, %v9961
        %v10266 = vpack.c.b16 %v9966, %v9962
        %v10267 = vpack.c.b16 %v9971, %v9967
        %v10268 = vpack.c.b16 %v9972, %v9968
        %v10269 = vpack.c.b16 %v9973, %v9969
        %v10270 = vpack.c.b16 %v9974, %v9970
        %v10271 = vpack.c.b16 %v9979, %v9975
        %v10272 = vpack.c.b16 %v9980, %v9976
        %v10273 = vpack.c.b16 %v9981, %v9977
        %v10274 = vpack.c.b16 %v9982, %v9978
        %v10275 = vpack.c.b16 %v9987, %v9983
        %v10276 = vpack.c.b16 %v9988, %v9984
        %v10277 = vpack.c.b16 %v9989, %v9985
        %v10278 = vpack.c.b16 %v9990, %v9986
        %v10279 = vpack.c.b16 %v9995, %v9991
        %v10280 = vpack.c.b16 %v9996, %v9992
        %v10281 = vpack.c.b16 %v9997, %v9993
        %v10282 = vpack.c.b16 %v9998, %v9994
        %v10283 = vpack.c.b16 %v10003, %v9999
        %v10284 = vpack.c.b16 %v10004, %v10000
        %v10285 = vpack.c.b16 %v10005, %v10001
        %v10286 = vpack.c.b16 %v10006, %v10002
        %v10287 = vpack.c.b16 %v10011, %v10007
        %v10288 = vpack.c.b16 %v10012, %v10008
        %v10289 = vpack.c.b16 %v10013, %v10009
        %v10290 = vpack.c.b16 %v10014, %v10010
        %v10291 = vpack.c.b16 %v10019, %v10015
        %v10292 = vpack.c.b16 %v10020, %v10016
        %v10293 = vpack.c.b16 %v10021, %v10017
        %v10294 = vpack.c.b16 %v10022, %v10018
        %v10295 = vpack.c.b16 %v10027, %v10023
        %v10296 = vpack.c.b16 %v10028, %v10024
        %v10297 = vpack.c.b16 %v10029, %v10025
        %v10298 = vpack.c.b16 %v10030, %v10026
        %v10299 = vpack.c.b16 %v10035, %v10031
        %v10300 = vpack.c.b16 %v10036, %v10032
        %v10301 = vpack.c.b16 %v10037, %v10033
        %v10302 = vpack.c.b16 %v10038, %v10034
        %v10303 = vpack.c.b16 %v10043, %v10039
        %v10304 = vpack.c.b16 %v10044, %v10040
        %v10305 = vpack.c.b16 %v10045, %v10041
        %v10306 = vpack.c.b16 %v10046, %v10042
        %v10307 = vpack.c.b16 %v10051, %v10047
        %v10308 = vpack.c.b16 %v10052, %v10048
        %v10309 = vpack.c.b16 %v10053, %v10049
        %v10310 = vpack.c.b16 %v10054, %v10050
        %10567 = vmatprep.subr.bf16.mxu0 %v10084
        %10568 = vmatpush1.bf16.msra.mxu0 %v10083
        %10569 = vmatprep.subr.bf16.mxu0 %v10080
        %10570 = vmatpush1.bf16.msra.mxu0 %v10079
        %10571 = vmatprep.subr.bf16.mxu0 %v10076
        %10572 = vmatpush1.bf16.msra.mxu0 %v10075
        %10573 = vmatprep.subr.bf16.mxu0 %v10072
        %10574 = vmatpush1.bf16.msra.mxu0 %v10071
        %10575 = vmatprep.subr.bf16.mxu0 %v10068
        %10576 = vmatpush1.bf16.msra.mxu0 %v10067
        %10577 = vmatprep.subr.bf16.mxu0 %v10064
        %10578 = vmatpush1.bf16.msra.mxu0 %v10063
        %10579 = vmatprep.subr.bf16.mxu0 %v10060
        %10580 = vmatpush1.bf16.msra.mxu0 %v10059
        %10581 = vmatprep.subr.bf16.mxu0 %v10056
        %10582 = vmatpush1.bf16.msra.mxu0 %v10055
        %10583 = vmatprep.subr.bf16.mxu0 %v10116
        %10584 = vmatpush2.bf16.msra.mxu0 %v10115
        %10585 = vmatprep.subr.bf16.mxu0 %v10112
        %10586 = vmatpush2.bf16.msra.mxu0 %v10111
        %10587 = vmatprep.subr.bf16.mxu0 %v10108
        %10588 = vmatpush2.bf16.msra.mxu0 %v10107
        %10589 = vmatprep.subr.bf16.mxu0 %v10104
        %10590 = vmatpush2.bf16.msra.mxu0 %v10103
        %10591 = vmatprep.subr.bf16.mxu0 %v10100
        %10592 = vmatpush2.bf16.msra.mxu0 %v10099
        %10593 = vmatprep.subr.bf16.mxu0 %v10096
        %10594 = vmatpush2.bf16.msra.mxu0 %v10095
        %10595 = vmatprep.subr.bf16.mxu0 %v10092
        %10596 = vmatpush2.bf16.msra.mxu0 %v10091
        %10597 = vmatprep.subr.bf16.mxu0 %v10088
        %10598 = vmatpush2.bf16.msra.mxu0 %v10087
        %10599 = vmatprep.mubr.bf16.mxu0 %v8986
        %10600 = vmatmul.mubr.bf16.gmra.mxu0 %v8985
        %v10601 = vpop.f32.mrf.mxu0
        %v10602 = vadd.f32 %v9270, %v10601
        %v10603 = vpop.f32.mrf.mxu0
        %v10604 = vadd.f32 %v9274, %v10603
        %v10605 = vpop.f32.mrf.mxu0
        %v10606 = vadd.f32 %v9270, %v10605
        %v10607 = vpop.f32.mrf.mxu0
        %v10608 = vadd.f32 %v9274, %v10607
        %10609 = vmatprep.mubr.bf16.mxu0 %v8994
        %10610 = vmatmul.mubr.bf16.gmra.mxu0 %v8993
        %v10611 = vpop.f32.mrf.mxu0
        %v10612 = vadd.f32 %v9270, %v10611
        %v10613 = vpop.f32.mrf.mxu0
        %v10614 = vadd.f32 %v9274, %v10613
        %v10615 = vpop.f32.mrf.mxu0
        %v10616 = vadd.f32 %v9270, %v10615
        %v10617 = vpop.f32.mrf.mxu0
        %v10618 = vadd.f32 %v9274, %v10617
        %10619 = vmatprep.mubr.bf16.mxu0 %v9002
        %10620 = vmatmul.mubr.bf16.gmra.mxu0 %v9001
        %v10621 = vpop.f32.mrf.mxu0
        %v10622 = vadd.f32 %v9270, %v10621
        %v10623 = vpop.f32.mrf.mxu0
        %v10624 = vadd.f32 %v9274, %v10623
        %v10625 = vpop.f32.mrf.mxu0
        %v10626 = vadd.f32 %v9270, %v10625
        %v10627 = vpop.f32.mrf.mxu0
        %v10628 = vadd.f32 %v9274, %v10627
        %10629 = vdwg.mxu0
        %10630 = vmatprep.subr.bf16.mxu0 %v10148
        %10631 = vmatpush1.bf16.msra.mxu0 %v10147
        %10632 = vmatprep.subr.bf16.mxu0 %v10144
        %10633 = vmatpush1.bf16.msra.mxu0 %v10143
        %10634 = vmatprep.subr.bf16.mxu0 %v10140
        %10635 = vmatpush1.bf16.msra.mxu0 %v10139
        %10636 = vmatprep.subr.bf16.mxu0 %v10136
        %10637 = vmatpush1.bf16.msra.mxu0 %v10135
        %10638 = vmatprep.subr.bf16.mxu0 %v10132
        %10639 = vmatpush1.bf16.msra.mxu0 %v10131
        %10640 = vmatprep.subr.bf16.mxu0 %v10128
        %10641 = vmatpush1.bf16.msra.mxu0 %v10127
        %10642 = vmatprep.subr.bf16.mxu0 %v10124
        %10643 = vmatpush1.bf16.msra.mxu0 %v10123
        %10644 = vmatprep.subr.bf16.mxu0 %v10120
        %10645 = vmatpush1.bf16.msra.mxu0 %v10119
        %10646 = vmatprep.subr.bf16.mxu0 %v10180
        %10647 = vmatpush2.bf16.msra.mxu0 %v10179
        %10648 = vmatprep.subr.bf16.mxu0 %v10176
        %10649 = vmatpush2.bf16.msra.mxu0 %v10175
        %10650 = vmatprep.subr.bf16.mxu0 %v10172
        %10651 = vmatpush2.bf16.msra.mxu0 %v10171
        %10652 = vmatprep.subr.bf16.mxu0 %v10168
        %10653 = vmatpush2.bf16.msra.mxu0 %v10167
        %10654 = vmatprep.subr.bf16.mxu0 %v10164
        %10655 = vmatpush2.bf16.msra.mxu0 %v10163
        %10656 = vmatprep.subr.bf16.mxu0 %v10160
        %10657 = vmatpush2.bf16.msra.mxu0 %v10159
        %10658 = vmatprep.subr.bf16.mxu0 %v10156
        %10659 = vmatpush2.bf16.msra.mxu0 %v10155
        %10660 = vmatprep.subr.bf16.mxu0 %v10152
        %10661 = vmatpush2.bf16.msra.mxu0 %v10151
        %10662 = vmatprep.mubr.bf16.mxu0 %v8988
        %10663 = vmatmul.mubr.bf16.gmra.mxu0 %v8987
        %v10664 = vpop.f32.mrf.mxu0
        %v10665 = vadd.f32 %v10602, %v10664
        %v10666 = vpop.f32.mrf.mxu0
        %v10667 = vadd.f32 %v10604, %v10666
        %v10668 = vpop.f32.mrf.mxu0
        %v10669 = vadd.f32 %v10606, %v10668
        %v10670 = vpop.f32.mrf.mxu0
        %v10671 = vadd.f32 %v10608, %v10670
        %10672 = vmatprep.mubr.bf16.mxu0 %v8996
        %10673 = vmatmul.mubr.bf16.gmra.mxu0 %v8995
        %v10674 = vpop.f32.mrf.mxu0
        %v10675 = vadd.f32 %v10612, %v10674
        %v10676 = vpop.f32.mrf.mxu0
        %v10677 = vadd.f32 %v10614, %v10676
        %v10678 = vpop.f32.mrf.mxu0
        %v10679 = vadd.f32 %v10616, %v10678
        %v10680 = vpop.f32.mrf.mxu0
        %v10681 = vadd.f32 %v10618, %v10680
        %10682 = vmatprep.mubr.bf16.mxu0 %v9004
        %10683 = vmatmul.mubr.bf16.gmra.mxu0 %v9003
        %v10684 = vpop.f32.mrf.mxu0
        %v10685 = vadd.f32 %v10622, %v10684
        %v10686 = vpop.f32.mrf.mxu0
        %v10687 = vadd.f32 %v10624, %v10686
        %v10688 = vpop.f32.mrf.mxu0
        %v10689 = vadd.f32 %v10626, %v10688
        %v10690 = vpop.f32.mrf.mxu0
        %v10691 = vadd.f32 %v10628, %v10690
        %10692 = vdwg.mxu0
        %10693 = vmatprep.subr.bf16.mxu0 %v10212
        %10694 = vmatpush1.bf16.msra.mxu0 %v10211
        %10695 = vmatprep.subr.bf16.mxu0 %v10208
        %10696 = vmatpush1.bf16.msra.mxu0 %v10207
        %10697 = vmatprep.subr.bf16.mxu0 %v10204
        %10698 = vmatpush1.bf16.msra.mxu0 %v10203
        %10699 = vmatprep.subr.bf16.mxu0 %v10200
        %10700 = vmatpush1.bf16.msra.mxu0 %v10199
        %10701 = vmatprep.subr.bf16.mxu0 %v10196
        %10702 = vmatpush1.bf16.msra.mxu0 %v10195
        %10703 = vmatprep.subr.bf16.mxu0 %v10192
        %10704 = vmatpush1.bf16.msra.mxu0 %v10191
        %10705 = vmatprep.subr.bf16.mxu0 %v10188
        %10706 = vmatpush1.bf16.msra.mxu0 %v10187
        %10707 = vmatprep.subr.bf16.mxu0 %v10184
        %10708 = vmatpush1.bf16.msra.mxu0 %v10183
        %10709 = vmatprep.subr.bf16.mxu0 %v10244
        %10710 = vmatpush2.bf16.msra.mxu0 %v10243
        %10711 = vmatprep.subr.bf16.mxu0 %v10240
        %10712 = vmatpush2.bf16.msra.mxu0 %v10239
        %10713 = vmatprep.subr.bf16.mxu0 %v10236
        %10714 = vmatpush2.bf16.msra.mxu0 %v10235
        %10715 = vmatprep.subr.bf16.mxu0 %v10232
        %10716 = vmatpush2.bf16.msra.mxu0 %v10231
        %10717 = vmatprep.subr.bf16.mxu0 %v10228
        %10718 = vmatpush2.bf16.msra.mxu0 %v10227
        %10719 = vmatprep.subr.bf16.mxu0 %v10224
        %10720 = vmatpush2.bf16.msra.mxu0 %v10223
        %10721 = vmatprep.subr.bf16.mxu0 %v10220
        %10722 = vmatpush2.bf16.msra.mxu0 %v10219
        %10723 = vmatprep.subr.bf16.mxu0 %v10216
        %10724 = vmatpush2.bf16.msra.mxu0 %v10215
        %10725 = vmatprep.mubr.bf16.mxu0 %v8990
        %10726 = vmatmul.mubr.bf16.gmra.mxu0 %v8989
        %v10727 = vpop.f32.mrf.mxu0
        %v10728 = vadd.f32 %v10665, %v10727
        %v10729 = vpop.f32.mrf.mxu0
        %v10730 = vadd.f32 %v10667, %v10729
        %v10731 = vpop.f32.mrf.mxu0
        %v10732 = vadd.f32 %v10669, %v10731
        %v10733 = vpop.f32.mrf.mxu0
        %v10734 = vadd.f32 %v10671, %v10733
        %10735 = vmatprep.mubr.bf16.mxu0 %v8998
        %10736 = vmatmul.mubr.bf16.gmra.mxu0 %v8997
        %v10737 = vpop.f32.mrf.mxu0
        %v10738 = vadd.f32 %v10675, %v10737
        %v10739 = vpop.f32.mrf.mxu0
        %v10740 = vadd.f32 %v10677, %v10739
        %v10741 = vpop.f32.mrf.mxu0
        %v10742 = vadd.f32 %v10679, %v10741
        %v10743 = vpop.f32.mrf.mxu0
        %v10744 = vadd.f32 %v10681, %v10743
        %10745 = vmatprep.mubr.bf16.mxu0 %v9006
        %10746 = vmatmul.mubr.bf16.gmra.mxu0 %v9005
        %v10747 = vpop.f32.mrf.mxu0
        %v10748 = vadd.f32 %v10685, %v10747
        %v10749 = vpop.f32.mrf.mxu0
        %v10750 = vadd.f32 %v10687, %v10749
        %v10751 = vpop.f32.mrf.mxu0
        %v10752 = vadd.f32 %v10689, %v10751
        %v10753 = vpop.f32.mrf.mxu0
        %v10754 = vadd.f32 %v10691, %v10753
        %10755 = vdwg.mxu0
        %10756 = vmatprep.subr.bf16.mxu0 %v10276
        %10757 = vmatpush1.bf16.msra.mxu0 %v10275
        %10758 = vmatprep.subr.bf16.mxu0 %v10272
        %10759 = vmatpush1.bf16.msra.mxu0 %v10271
        %10760 = vmatprep.subr.bf16.mxu0 %v10268
        %10761 = vmatpush1.bf16.msra.mxu0 %v10267
        %10762 = vmatprep.subr.bf16.mxu0 %v10264
        %10763 = vmatpush1.bf16.msra.mxu0 %v10263
        %10764 = vmatprep.subr.bf16.mxu0 %v10260
        %10765 = vmatpush1.bf16.msra.mxu0 %v10259
        %10766 = vmatprep.subr.bf16.mxu0 %v10256
        %10767 = vmatpush1.bf16.msra.mxu0 %v10255
        %10768 = vmatprep.subr.bf16.mxu0 %v10252
        %10769 = vmatpush1.bf16.msra.mxu0 %v10251
        %10770 = vmatprep.subr.bf16.mxu0 %v10248
        %10771 = vmatpush1.bf16.msra.mxu0 %v10247
        %10772 = vmatprep.subr.bf16.mxu0 %v10308
        %10773 = vmatpush2.bf16.msra.mxu0 %v10307
        %10774 = vmatprep.subr.bf16.mxu0 %v10304
        %10775 = vmatpush2.bf16.msra.mxu0 %v10303
        %10776 = vmatprep.subr.bf16.mxu0 %v10300
        %10777 = vmatpush2.bf16.msra.mxu0 %v10299
        %10778 = vmatprep.subr.bf16.mxu0 %v10296
        %10779 = vmatpush2.bf16.msra.mxu0 %v10295
        %10780 = vmatprep.subr.bf16.mxu0 %v10292
        %10781 = vmatpush2.bf16.msra.mxu0 %v10291
        %10782 = vmatprep.subr.bf16.mxu0 %v10288
        %10783 = vmatpush2.bf16.msra.mxu0 %v10287
        %10784 = vmatprep.subr.bf16.mxu0 %v10284
        %10785 = vmatpush2.bf16.msra.mxu0 %v10283
        %10786 = vmatprep.subr.bf16.mxu0 %v10280
        %10787 = vmatpush2.bf16.msra.mxu0 %v10279
        %10788 = vmatprep.mubr.bf16.mxu0 %v8992
        %10789 = vmatmul.mubr.bf16.gmra.mxu0 %v8991
        %v10790 = vpop.f32.mrf.mxu0
        %v10791 = vadd.f32 %v10728, %v10790
        %v10792 = vpop.f32.mrf.mxu0
        %v10793 = vadd.f32 %v10730, %v10792
        %v10794 = vpop.f32.mrf.mxu0
        %v10795 = vadd.f32 %v10732, %v10794
        %v10796 = vpop.f32.mrf.mxu0
        %v10797 = vadd.f32 %v10734, %v10796
        %10798 = vmatprep.mubr.bf16.mxu0 %v9000
        %10799 = vmatmul.mubr.bf16.gmra.mxu0 %v8999
        %v10800 = vpop.f32.mrf.mxu0
        %v10801 = vadd.f32 %v10738, %v10800
        %v10802 = vpop.f32.mrf.mxu0
        %v10803 = vadd.f32 %v10740, %v10802
        %v10804 = vpop.f32.mrf.mxu0
        %v10805 = vadd.f32 %v10742, %v10804
        %v10806 = vpop.f32.mrf.mxu0
        %v10807 = vadd.f32 %v10744, %v10806
        %10808 = vmatprep.mubr.bf16.mxu0 %v9008
        %10809 = vmatmul.mubr.bf16.gmra.mxu0 %v9007
        %v10810 = vpop.f32.mrf.mxu0
        %v10811 = vadd.f32 %v10748, %v10810
        %v10812 = vpop.f32.mrf.mxu0
        %v10813 = vadd.f32 %v10750, %v10812
        %v10814 = vpop.f32.mrf.mxu0
        %v10815 = vadd.f32 %v10752, %v10814
        %v10816 = vpop.f32.mrf.mxu0
        %v10817 = vadd.f32 %v10754, %v10816
        %10818 = vdwg.mxu0
        %10819 = vmatprep.subr.bf16.mxu0 %v10086
        %10820 = vmatpush1.bf16.msra.mxu0 %v10085
        %10821 = vmatprep.subr.bf16.mxu0 %v10082
        %10822 = vmatpush1.bf16.msra.mxu0 %v10081
        %10823 = vmatprep.subr.bf16.mxu0 %v10078
        %10824 = vmatpush1.bf16.msra.mxu0 %v10077
        %10825 = vmatprep.subr.bf16.mxu0 %v10074
        %10826 = vmatpush1.bf16.msra.mxu0 %v10073
        %10827 = vmatprep.subr.bf16.mxu0 %v10070
        %10828 = vmatpush1.bf16.msra.mxu0 %v10069
        %10829 = vmatprep.subr.bf16.mxu0 %v10066
        %10830 = vmatpush1.bf16.msra.mxu0 %v10065
        %10831 = vmatprep.subr.bf16.mxu0 %v10062
        %10832 = vmatpush1.bf16.msra.mxu0 %v10061
        %10833 = vmatprep.subr.bf16.mxu0 %v10058
        %10834 = vmatpush1.bf16.msra.mxu0 %v10057
        %10835 = vmatprep.subr.bf16.mxu0 %v10118
        %10836 = vmatpush2.bf16.msra.mxu0 %v10117
        %10837 = vmatprep.subr.bf16.mxu0 %v10114
        %10838 = vmatpush2.bf16.msra.mxu0 %v10113
        %10839 = vmatprep.subr.bf16.mxu0 %v10110
        %10840 = vmatpush2.bf16.msra.mxu0 %v10109
        %10841 = vmatprep.subr.bf16.mxu0 %v10106
        %10842 = vmatpush2.bf16.msra.mxu0 %v10105
        %10843 = vmatprep.subr.bf16.mxu0 %v10102
        %10844 = vmatpush2.bf16.msra.mxu0 %v10101
        %10845 = vmatprep.subr.bf16.mxu0 %v10098
        %10846 = vmatpush2.bf16.msra.mxu0 %v10097
        %10847 = vmatprep.subr.bf16.mxu0 %v10094
        %10848 = vmatpush2.bf16.msra.mxu0 %v10093
        %10849 = vmatprep.subr.bf16.mxu0 %v10090
        %10850 = vmatpush2.bf16.msra.mxu0 %v10089
        %10851 = vmatprep.mubr.bf16.mxu0 %v8986
        %10852 = vmatmul.mubr.bf16.gmra.mxu0 %v8985
        %v10853 = vpop.f32.mrf.mxu0
        %v10854 = vadd.f32 %v9278, %v10853
        %v10855 = vpop.f32.mrf.mxu0
        %v10856 = vadd.f32 %v9282, %v10855
        %v10857 = vpop.f32.mrf.mxu0
        %v10858 = vadd.f32 %v9278, %v10857
        %v10859 = vpop.f32.mrf.mxu0
        %v10860 = vadd.f32 %v9282, %v10859
        %10861 = vmatprep.mubr.bf16.mxu0 %v8994
        %10862 = vmatmul.mubr.bf16.gmra.mxu0 %v8993
        %v10863 = vpop.f32.mrf.mxu0
        %v10864 = vadd.f32 %v9278, %v10863
        %v10865 = vpop.f32.mrf.mxu0
        %v10866 = vadd.f32 %v9282, %v10865
        %v10867 = vpop.f32.mrf.mxu0
        %v10868 = vadd.f32 %v9278, %v10867
        %v10869 = vpop.f32.mrf.mxu0
        %v10870 = vadd.f32 %v9282, %v10869
        %10871 = vmatprep.mubr.bf16.mxu0 %v9002
        %10872 = vmatmul.mubr.bf16.gmra.mxu0 %v9001
        %v10873 = vpop.f32.mrf.mxu0
        %v10874 = vadd.f32 %v9278, %v10873
        %v10875 = vpop.f32.mrf.mxu0
        %v10876 = vadd.f32 %v9282, %v10875
        %v10877 = vpop.f32.mrf.mxu0
        %v10878 = vadd.f32 %v9278, %v10877
        %v10879 = vpop.f32.mrf.mxu0
        %v10880 = vadd.f32 %v9282, %v10879
        %10881 = vdwg.mxu0
        %10882 = vmatprep.subr.bf16.mxu0 %v10150
        %10883 = vmatpush1.bf16.msra.mxu0 %v10149
        %10884 = vmatprep.subr.bf16.mxu0 %v10146
        %10885 = vmatpush1.bf16.msra.mxu0 %v10145
        %10886 = vmatprep.subr.bf16.mxu0 %v10142
        %10887 = vmatpush1.bf16.msra.mxu0 %v10141
        %10888 = vmatprep.subr.bf16.mxu0 %v10138
        %10889 = vmatpush1.bf16.msra.mxu0 %v10137
        %10890 = vmatprep.subr.bf16.mxu0 %v10134
        %10891 = vmatpush1.bf16.msra.mxu0 %v10133
        %10892 = vmatprep.subr.bf16.mxu0 %v10130
        %10893 = vmatpush1.bf16.msra.mxu0 %v10129
        %10894 = vmatprep.subr.bf16.mxu0 %v10126
        %10895 = vmatpush1.bf16.msra.mxu0 %v10125
        %10896 = vmatprep.subr.bf16.mxu0 %v10122
        %10897 = vmatpush1.bf16.msra.mxu0 %v10121
        %10898 = vmatprep.subr.bf16.mxu0 %v10182
        %10899 = vmatpush2.bf16.msra.mxu0 %v10181
        %10900 = vmatprep.subr.bf16.mxu0 %v10178
        %10901 = vmatpush2.bf16.msra.mxu0 %v10177
        %10902 = vmatprep.subr.bf16.mxu0 %v10174
        %10903 = vmatpush2.bf16.msra.mxu0 %v10173
        %10904 = vmatprep.subr.bf16.mxu0 %v10170
        %10905 = vmatpush2.bf16.msra.mxu0 %v10169
        %10906 = vmatprep.subr.bf16.mxu0 %v10166
        %10907 = vmatpush2.bf16.msra.mxu0 %v10165
        %10908 = vmatprep.subr.bf16.mxu0 %v10162
        %10909 = vmatpush2.bf16.msra.mxu0 %v10161
        %10910 = vmatprep.subr.bf16.mxu0 %v10158
        %10911 = vmatpush2.bf16.msra.mxu0 %v10157
        %10912 = vmatprep.subr.bf16.mxu0 %v10154
        %10913 = vmatpush2.bf16.msra.mxu0 %v10153
        %10914 = vmatprep.mubr.bf16.mxu0 %v8988
        %10915 = vmatmul.mubr.bf16.gmra.mxu0 %v8987
        %v10916 = vpop.f32.mrf.mxu0
        %v10917 = vadd.f32 %v10854, %v10916
        %v10918 = vpop.f32.mrf.mxu0
        %v10919 = vadd.f32 %v10856, %v10918
        %v10920 = vpop.f32.mrf.mxu0
        %v10921 = vadd.f32 %v10858, %v10920
        %v10922 = vpop.f32.mrf.mxu0
        %v10923 = vadd.f32 %v10860, %v10922
        %10924 = vmatprep.mubr.bf16.mxu0 %v8996
        %10925 = vmatmul.mubr.bf16.gmra.mxu0 %v8995
        %v10926 = vpop.f32.mrf.mxu0
        %v10927 = vadd.f32 %v10864, %v10926
        %v10928 = vpop.f32.mrf.mxu0
        %v10929 = vadd.f32 %v10866, %v10928
        %v10930 = vpop.f32.mrf.mxu0
        %v10931 = vadd.f32 %v10868, %v10930
        %v10932 = vpop.f32.mrf.mxu0
        %v10933 = vadd.f32 %v10870, %v10932
        %10934 = vmatprep.mubr.bf16.mxu0 %v9004
        %10935 = vmatmul.mubr.bf16.gmra.mxu0 %v9003
        %v10936 = vpop.f32.mrf.mxu0
        %v10937 = vadd.f32 %v10874, %v10936
        %v10938 = vpop.f32.mrf.mxu0
        %v10939 = vadd.f32 %v10876, %v10938
        %v10940 = vpop.f32.mrf.mxu0
        %v10941 = vadd.f32 %v10878, %v10940
        %v10942 = vpop.f32.mrf.mxu0
        %v10943 = vadd.f32 %v10880, %v10942
        %10944 = vdwg.mxu0
        %10945 = vmatprep.subr.bf16.mxu0 %v10214
        %10946 = vmatpush1.bf16.msra.mxu0 %v10213
        %10947 = vmatprep.subr.bf16.mxu0 %v10210
        %10948 = vmatpush1.bf16.msra.mxu0 %v10209
        %10949 = vmatprep.subr.bf16.mxu0 %v10206
        %10950 = vmatpush1.bf16.msra.mxu0 %v10205
        %10951 = vmatprep.subr.bf16.mxu0 %v10202
        %10952 = vmatpush1.bf16.msra.mxu0 %v10201
        %10953 = vmatprep.subr.bf16.mxu0 %v10198
        %10954 = vmatpush1.bf16.msra.mxu0 %v10197
        %10955 = vmatprep.subr.bf16.mxu0 %v10194
        %10956 = vmatpush1.bf16.msra.mxu0 %v10193
        %10957 = vmatprep.subr.bf16.mxu0 %v10190
        %10958 = vmatpush1.bf16.msra.mxu0 %v10189
        %10959 = vmatprep.subr.bf16.mxu0 %v10186
        %10960 = vmatpush1.bf16.msra.mxu0 %v10185
        %10961 = vmatprep.subr.bf16.mxu0 %v10246
        %10962 = vmatpush2.bf16.msra.mxu0 %v10245
        %10963 = vmatprep.subr.bf16.mxu0 %v10242
        %10964 = vmatpush2.bf16.msra.mxu0 %v10241
        %10965 = vmatprep.subr.bf16.mxu0 %v10238
        %10966 = vmatpush2.bf16.msra.mxu0 %v10237
        %10967 = vmatprep.subr.bf16.mxu0 %v10234
        %10968 = vmatpush2.bf16.msra.mxu0 %v10233
        %10969 = vmatprep.subr.bf16.mxu0 %v10230
        %10970 = vmatpush2.bf16.msra.mxu0 %v10229
        %10971 = vmatprep.subr.bf16.mxu0 %v10226
        %10972 = vmatpush2.bf16.msra.mxu0 %v10225
        %10973 = vmatprep.subr.bf16.mxu0 %v10222
        %10974 = vmatpush2.bf16.msra.mxu0 %v10221
        %10975 = vmatprep.subr.bf16.mxu0 %v10218
        %10976 = vmatpush2.bf16.msra.mxu0 %v10217
        %10977 = vmatprep.mubr.bf16.mxu0 %v8990
        %10978 = vmatmul.mubr.bf16.gmra.mxu0 %v8989
        %v10979 = vpop.f32.mrf.mxu0
        %v10980 = vadd.f32 %v10917, %v10979
        %v10981 = vpop.f32.mrf.mxu0
        %v10982 = vadd.f32 %v10919, %v10981
        %v10983 = vpop.f32.mrf.mxu0
        %v10984 = vadd.f32 %v10921, %v10983
        %v10985 = vpop.f32.mrf.mxu0
        %v10986 = vadd.f32 %v10923, %v10985
        %10987 = vmatprep.mubr.bf16.mxu0 %v8998
        %10988 = vmatmul.mubr.bf16.gmra.mxu0 %v8997
        %v10989 = vpop.f32.mrf.mxu0
        %v10990 = vadd.f32 %v10927, %v10989
        %v10991 = vpop.f32.mrf.mxu0
        %v10992 = vadd.f32 %v10929, %v10991
        %v10993 = vpop.f32.mrf.mxu0
        %v10994 = vadd.f32 %v10931, %v10993
        %v10995 = vpop.f32.mrf.mxu0
        %v10996 = vadd.f32 %v10933, %v10995
        %10997 = vmatprep.mubr.bf16.mxu0 %v9006
        %10998 = vmatmul.mubr.bf16.gmra.mxu0 %v9005
        %v10999 = vpop.f32.mrf.mxu0
        %v11000 = vadd.f32 %v10937, %v10999
        %v11001 = vpop.f32.mrf.mxu0
        %v11002 = vadd.f32 %v10939, %v11001
        %v11003 = vpop.f32.mrf.mxu0
        %v11004 = vadd.f32 %v10941, %v11003
        %v11005 = vpop.f32.mrf.mxu0
        %v11006 = vadd.f32 %v10943, %v11005
        %11007 = vdwg.mxu0
        %11008 = vmatprep.subr.bf16.mxu0 %v10278
        %11009 = vmatpush1.bf16.msra.mxu0 %v10277
        %11010 = vmatprep.subr.bf16.mxu0 %v10274
        %11011 = vmatpush1.bf16.msra.mxu0 %v10273
        %11012 = vmatprep.subr.bf16.mxu0 %v10270
        %11013 = vmatpush1.bf16.msra.mxu0 %v10269
        %11014 = vmatprep.subr.bf16.mxu0 %v10266
        %11015 = vmatpush1.bf16.msra.mxu0 %v10265
        %11016 = vmatprep.subr.bf16.mxu0 %v10262
        %11017 = vmatpush1.bf16.msra.mxu0 %v10261
        %11018 = vmatprep.subr.bf16.mxu0 %v10258
        %11019 = vmatpush1.bf16.msra.mxu0 %v10257
        %11020 = vmatprep.subr.bf16.mxu0 %v10254
        %11021 = vmatpush1.bf16.msra.mxu0 %v10253
        %11022 = vmatprep.subr.bf16.mxu0 %v10250
        %11023 = vmatpush1.bf16.msra.mxu0 %v10249
        %11024 = vmatprep.subr.bf16.mxu0 %v10310
        %11025 = vmatpush2.bf16.msra.mxu0 %v10309
        %11026 = vmatprep.subr.bf16.mxu0 %v10306
        %11027 = vmatpush2.bf16.msra.mxu0 %v10305
        %11028 = vmatprep.subr.bf16.mxu0 %v10302
        %11029 = vmatpush2.bf16.msra.mxu0 %v10301
        %11030 = vmatprep.subr.bf16.mxu0 %v10298
        %11031 = vmatpush2.bf16.msra.mxu0 %v10297
        %11032 = vmatprep.subr.bf16.mxu0 %v10294
        %11033 = vmatpush2.bf16.msra.mxu0 %v10293
        %11034 = vmatprep.subr.bf16.mxu0 %v10290
        %11035 = vmatpush2.bf16.msra.mxu0 %v10289
        %11036 = vmatprep.subr.bf16.mxu0 %v10286
        %11037 = vmatpush2.bf16.msra.mxu0 %v10285
        %11038 = vmatprep.subr.bf16.mxu0 %v10282
        %11039 = vmatpush2.bf16.msra.mxu0 %v10281
        %11040 = vmatprep.mubr.bf16.mxu0 %v8992
        %11041 = vmatmul.mubr.bf16.gmra.mxu0 %v8991
        %v11042 = vpop.f32.mrf.mxu0
        %v11043 = vadd.f32 %v10980, %v11042
        %v11044 = vpop.f32.mrf.mxu0
        %v11045 = vadd.f32 %v10982, %v11044
        %v11046 = vpop.f32.mrf.mxu0
        %v11047 = vadd.f32 %v10984, %v11046
        %v11048 = vpop.f32.mrf.mxu0
        %v11049 = vadd.f32 %v10986, %v11048
        %11050 = vmatprep.mubr.bf16.mxu0 %v9000
        %11051 = vmatmul.mubr.bf16.gmra.mxu0 %v8999
        %v11052 = vpop.f32.mrf.mxu0
        %v11053 = vadd.f32 %v10990, %v11052
        %v11054 = vpop.f32.mrf.mxu0
        %v11055 = vadd.f32 %v10992, %v11054
        %v11056 = vpop.f32.mrf.mxu0
        %v11057 = vadd.f32 %v10994, %v11056
        %v11058 = vpop.f32.mrf.mxu0
        %v11059 = vadd.f32 %v10996, %v11058
        %11060 = vmatprep.mubr.bf16.mxu0 %v9008
        %11061 = vmatmul.mubr.bf16.gmra.mxu0 %v9007
        %v11062 = vpop.f32.mrf.mxu0
        %v11063 = vadd.f32 %v11000, %v11062
        %v11064 = vpop.f32.mrf.mxu0
        %v11065 = vadd.f32 %v11002, %v11064
        %v11066 = vpop.f32.mrf.mxu0
        %v11067 = vadd.f32 %v11004, %v11066
        %v11068 = vpop.f32.mrf.mxu0
        %v11069 = vadd.f32 %v11006, %v11068
        %11070 = vdwg.mxu0
        %v11071 = vmax.f32 %v10791, 0.0
        %v11072 = vmax.f32 %v10793, 0.0
        %v11073 = vmax.f32 %v11043, 0.0
        %v11074 = vmax.f32 %v11045, 0.0
        %v11075 = vmax.f32 %v10795, 0.0
        %v11076 = vmax.f32 %v10797, 0.0
        %v11077 = vmax.f32 %v11047, 0.0
        %v11078 = vmax.f32 %v11049, 0.0
        %v11079 = vmax.f32 %v10801, 0.0
        %v11080 = vmax.f32 %v10803, 0.0
        %v11081 = vmax.f32 %v11053, 0.0
        %v11082 = vmax.f32 %v11055, 0.0
        %v11083 = vmax.f32 %v10805, 0.0
        %v11084 = vmax.f32 %v10807, 0.0
        %v11085 = vmax.f32 %v11057, 0.0
        %v11086 = vmax.f32 %v11059, 0.0
        %v11087 = vmax.f32 %v10811, 0.0
        %v11088 = vmax.f32 %v10813, 0.0
        %v11089 = vmax.f32 %v11063, 0.0
        %v11090 = vmax.f32 %v11065, 0.0
        %v11091 = vmax.f32 %v10815, 0.0
        %v11092 = vmax.f32 %v10817, 0.0
        %v11093 = vmax.f32 %v11067, 0.0
        %v11094 = vmax.f32 %v11069, 0.0
        %v11095 = vpack.c.bf16 %v11075, %v11071
        %v11096 = vpack.c.bf16 %v11076, %v11072
        %v11097 = vpack.c.bf16 %v11077, %v11073
        %v11098 = vpack.c.bf16 %v11078, %v11074
        %v11099 = vpack.c.bf16 %v11083, %v11079
        %v11100 = vpack.c.bf16 %v11084, %v11080
        %v11101 = vpack.c.bf16 %v11085, %v11081
        %v11102 = vpack.c.bf16 %v11086, %v11082
        %v11103 = vpack.c.bf16 %v11091, %v11087
        %v11104 = vpack.c.bf16 %v11092, %v11088
        %v11105 = vpack.c.bf16 %v11093, %v11089
        %v11106 = vpack.c.bf16 %v11094, %v11090
        %v11107 = vld [vmem:[#allocation10] sm:$0xff]
        %v11108 = vld [vmem:[#allocation10 + $0x8] sm:$0xff]
        %v11109 = vld [vmem:[#allocation10 + $0x10] sm:$0xff]
        %v11110 = vld [vmem:[#allocation10 + $0x18] sm:$0xff]
        %v11111 = vld [vmem:[#allocation10 + $0x20] sm:$0xff]
        %v11112 = vld [vmem:[#allocation10 + $0x28] sm:$0xff]
        %v11113 = vld [vmem:[#allocation10 + $0x30] sm:$0xff]
        %v11114 = vld [vmem:[#allocation10 + $0x38] sm:$0xff]
        %v11115 = vld [vmem:[#allocation10 + $0x40] sm:$0xff]
        %v11116 = vld [vmem:[#allocation10 + $0x48] sm:$0xff]
        %v11117 = vld [vmem:[#allocation10 + $0x50] sm:$0xff]
        %v11118 = vld [vmem:[#allocation10 + $0x58] sm:$0xff]
        %v11119 = vld [vmem:[#allocation10 + $0x60] sm:$0xff]
        %v11120 = vld [vmem:[#allocation10 + $0x68] sm:$0xff]
        %v11121 = vld [vmem:[#allocation10 + $0x70] sm:$0xff]
        %v11122 = vld [vmem:[#allocation10 + $0x78] sm:$0xff]
        %v11123 = vld [vmem:[#allocation10 + $0x80] sm:$0xff]
        %v11124 = vld [vmem:[#allocation10 + $0x88] sm:$0xff]
        %v11125 = vld [vmem:[#allocation10 + $0x90] sm:$0xff]
        %v11126 = vld [vmem:[#allocation10 + $0x98] sm:$0xff]
        %v11127 = vld [vmem:[#allocation10 + $0xa0] sm:$0xff]
        %v11128 = vld [vmem:[#allocation10 + $0xa8] sm:$0xff]
        %v11129 = vld [vmem:[#allocation10 + $0xb0] sm:$0xff]
        %v11130 = vld [vmem:[#allocation10 + $0xb8] sm:$0xff]
        %v11131 = vld [vmem:[#allocation10 + $0xc0] sm:$0xff]
        %v11132 = vld [vmem:[#allocation10 + $0xc8] sm:$0xff]
        %v11133 = vld [vmem:[#allocation10 + $0xd0] sm:$0xff]
        %v11134 = vld [vmem:[#allocation10 + $0xd8] sm:$0xff]
        %v11135 = vld [vmem:[#allocation10 + $0xe0] sm:$0xff]
        %v11136 = vld [vmem:[#allocation10 + $0xe8] sm:$0xff]
        %v11137 = vld [vmem:[#allocation10 + $0xf0] sm:$0xff]
        %v11138 = vld [vmem:[#allocation10 + $0xf8] sm:$0xff]
        %v11139 = vld [vmem:[#allocation10 + $0x100] sm:$0xff]
        %v11140 = vld [vmem:[#allocation10 + $0x108] sm:$0xff]
        %v11141 = vld [vmem:[#allocation10 + $0x110] sm:$0xff]
        %v11142 = vld [vmem:[#allocation10 + $0x118] sm:$0xff]
        %v11143 = vld [vmem:[#allocation10 + $0x120] sm:$0xff]
        %v11144 = vld [vmem:[#allocation10 + $0x128] sm:$0xff]
        %v11145 = vld [vmem:[#allocation10 + $0x130] sm:$0xff]
        %v11146 = vld [vmem:[#allocation10 + $0x138] sm:$0xff]
        %v11147 = vld [vmem:[#allocation10 + $0x140] sm:$0xff]
        %v11148 = vld [vmem:[#allocation10 + $0x148] sm:$0xff]
        %v11149 = vld [vmem:[#allocation10 + $0x150] sm:$0xff]
        %v11150 = vld [vmem:[#allocation10 + $0x158] sm:$0xff]
        %v11151 = vld [vmem:[#allocation10 + $0x160] sm:$0xff]
        %v11152 = vld [vmem:[#allocation10 + $0x168] sm:$0xff]
        %v11153 = vld [vmem:[#allocation10 + $0x170] sm:$0xff]
        %v11154 = vld [vmem:[#allocation10 + $0x178] sm:$0xff]
        %v11155 = vld [vmem:[#allocation10 + $0x180] sm:$0xff]
        %v11156 = vld [vmem:[#allocation10 + $0x188] sm:$0xff]
        %v11157 = vld [vmem:[#allocation10 + $0x190] sm:$0xff]
        %v11158 = vld [vmem:[#allocation10 + $0x198] sm:$0xff]
        %v11159 = vld [vmem:[#allocation10 + $0x1a0] sm:$0xff]
        %v11160 = vld [vmem:[#allocation10 + $0x1a8] sm:$0xff]
        %v11161 = vld [vmem:[#allocation10 + $0x1b0] sm:$0xff]
        %v11162 = vld [vmem:[#allocation10 + $0x1b8] sm:$0xff]
        %v11163 = vld [vmem:[#allocation10 + $0x1c0] sm:$0xff]
        %v11164 = vld [vmem:[#allocation10 + $0x1c8] sm:$0xff]
        %v11165 = vld [vmem:[#allocation10 + $0x1d0] sm:$0xff]
        %v11166 = vld [vmem:[#allocation10 + $0x1d8] sm:$0xff]
        %v11167 = vld [vmem:[#allocation10 + $0x1e0] sm:$0xff]
        %v11168 = vld [vmem:[#allocation10 + $0x1e8] sm:$0xff]
        %v11169 = vld [vmem:[#allocation10 + $0x1f0] sm:$0xff]
        %v11170 = vld [vmem:[#allocation10 + $0x1f8] sm:$0xff]
        %v11171 = vld [vmem:[#allocation12] sm:$0x3]
        %v11173 = vlaneseq
        %v11174 = vshrl.u32 %v11173, 7
        %v11175 = vsub.s32 0, %v11174
        %v11176 = vrot.slane %v11171, %v11175
        %v11177 = vlaneseq
        %v11178 = vshrl.u32 %v11177, 7
        %v11179 = vsub.s32 1, %v11178
        %v11180 = vrot.slane %v11171, %v11179
        %v11247 = vunpack.c.l.b16 %v11107
        %v11248 = vunpack.c.h.b16 %v11107
        %v11249 = vunpack.c.l.b16 %v11108
        %v11250 = vunpack.c.h.b16 %v11108
        %v11251 = vunpack.c.l.b16 %v11109
        %v11252 = vunpack.c.h.b16 %v11109
        %v11253 = vunpack.c.l.b16 %v11110
        %v11254 = vunpack.c.h.b16 %v11110
        %v11255 = vunpack.c.l.b16 %v11111
        %v11256 = vunpack.c.h.b16 %v11111
        %v11257 = vunpack.c.l.b16 %v11112
        %v11258 = vunpack.c.h.b16 %v11112
        %v11259 = vunpack.c.l.b16 %v11113
        %v11260 = vunpack.c.h.b16 %v11113
        %v11261 = vunpack.c.l.b16 %v11114
        %v11262 = vunpack.c.h.b16 %v11114
        %v11263 = vunpack.c.l.b16 %v11115
        %v11264 = vunpack.c.h.b16 %v11115
        %v11265 = vunpack.c.l.b16 %v11116
        %v11266 = vunpack.c.h.b16 %v11116
        %v11267 = vunpack.c.l.b16 %v11117
        %v11268 = vunpack.c.h.b16 %v11117
        %v11269 = vunpack.c.l.b16 %v11118
        %v11270 = vunpack.c.h.b16 %v11118
        %v11271 = vunpack.c.l.b16 %v11119
        %v11272 = vunpack.c.h.b16 %v11119
        %v11273 = vunpack.c.l.b16 %v11120
        %v11274 = vunpack.c.h.b16 %v11120
        %v11275 = vunpack.c.l.b16 %v11121
        %v11276 = vunpack.c.h.b16 %v11121
        %v11277 = vunpack.c.l.b16 %v11122
        %v11278 = vunpack.c.h.b16 %v11122
        %v11279 = vunpack.c.l.b16 %v11123
        %v11280 = vunpack.c.h.b16 %v11123
        %v11281 = vunpack.c.l.b16 %v11124
        %v11282 = vunpack.c.h.b16 %v11124
        %v11283 = vunpack.c.l.b16 %v11125
        %v11284 = vunpack.c.h.b16 %v11125
        %v11285 = vunpack.c.l.b16 %v11126
        %v11286 = vunpack.c.h.b16 %v11126
        %v11287 = vunpack.c.l.b16 %v11127
        %v11288 = vunpack.c.h.b16 %v11127
        %v11289 = vunpack.c.l.b16 %v11128
        %v11290 = vunpack.c.h.b16 %v11128
        %v11291 = vunpack.c.l.b16 %v11129
        %v11292 = vunpack.c.h.b16 %v11129
        %v11293 = vunpack.c.l.b16 %v11130
        %v11294 = vunpack.c.h.b16 %v11130
        %v11295 = vunpack.c.l.b16 %v11131
        %v11296 = vunpack.c.h.b16 %v11131
        %v11297 = vunpack.c.l.b16 %v11132
        %v11298 = vunpack.c.h.b16 %v11132
        %v11299 = vunpack.c.l.b16 %v11133
        %v11300 = vunpack.c.h.b16 %v11133
        %v11301 = vunpack.c.l.b16 %v11134
        %v11302 = vunpack.c.h.b16 %v11134
        %v11303 = vunpack.c.l.b16 %v11135
        %v11304 = vunpack.c.h.b16 %v11135
        %v11305 = vunpack.c.l.b16 %v11136
        %v11306 = vunpack.c.h.b16 %v11136
        %v11307 = vunpack.c.l.b16 %v11137
        %v11308 = vunpack.c.h.b16 %v11137
        %v11309 = vunpack.c.l.b16 %v11138
        %v11310 = vunpack.c.h.b16 %v11138
        %v11311 = vunpack.c.l.b16 %v11139
        %v11312 = vunpack.c.h.b16 %v11139
        %v11313 = vunpack.c.l.b16 %v11140
        %v11314 = vunpack.c.h.b16 %v11140
        %v11315 = vunpack.c.l.b16 %v11141
        %v11316 = vunpack.c.h.b16 %v11141
        %v11317 = vunpack.c.l.b16 %v11142
        %v11318 = vunpack.c.h.b16 %v11142
        %v11319 = vunpack.c.l.b16 %v11143
        %v11320 = vunpack.c.h.b16 %v11143
        %v11321 = vunpack.c.l.b16 %v11144
        %v11322 = vunpack.c.h.b16 %v11144
        %v11323 = vunpack.c.l.b16 %v11145
        %v11324 = vunpack.c.h.b16 %v11145
        %v11325 = vunpack.c.l.b16 %v11146
        %v11326 = vunpack.c.h.b16 %v11146
        %v11327 = vunpack.c.l.b16 %v11147
        %v11328 = vunpack.c.h.b16 %v11147
        %v11329 = vunpack.c.l.b16 %v11148
        %v11330 = vunpack.c.h.b16 %v11148
        %v11331 = vunpack.c.l.b16 %v11149
        %v11332 = vunpack.c.h.b16 %v11149
        %v11333 = vunpack.c.l.b16 %v11150
        %v11334 = vunpack.c.h.b16 %v11150
        %v11335 = vunpack.c.l.b16 %v11151
        %v11336 = vunpack.c.h.b16 %v11151
        %v11337 = vunpack.c.l.b16 %v11152
        %v11338 = vunpack.c.h.b16 %v11152
        %v11339 = vunpack.c.l.b16 %v11153
        %v11340 = vunpack.c.h.b16 %v11153
        %v11341 = vunpack.c.l.b16 %v11154
        %v11342 = vunpack.c.h.b16 %v11154
        %v11343 = vunpack.c.l.b16 %v11155
        %v11344 = vunpack.c.h.b16 %v11155
        %v11345 = vunpack.c.l.b16 %v11156
        %v11346 = vunpack.c.h.b16 %v11156
        %v11347 = vunpack.c.l.b16 %v11157
        %v11348 = vunpack.c.h.b16 %v11157
        %v11349 = vunpack.c.l.b16 %v11158
        %v11350 = vunpack.c.h.b16 %v11158
        %v11351 = vunpack.c.l.b16 %v11159
        %v11352 = vunpack.c.h.b16 %v11159
        %v11353 = vunpack.c.l.b16 %v11160
        %v11354 = vunpack.c.h.b16 %v11160
        %v11355 = vunpack.c.l.b16 %v11161
        %v11356 = vunpack.c.h.b16 %v11161
        %v11357 = vunpack.c.l.b16 %v11162
        %v11358 = vunpack.c.h.b16 %v11162
        %v11359 = vunpack.c.l.b16 %v11163
        %v11360 = vunpack.c.h.b16 %v11163
        %v11361 = vunpack.c.l.b16 %v11164
        %v11362 = vunpack.c.h.b16 %v11164
        %v11363 = vunpack.c.l.b16 %v11165
        %v11364 = vunpack.c.h.b16 %v11165
        %v11365 = vunpack.c.l.b16 %v11166
        %v11366 = vunpack.c.h.b16 %v11166
        %v11367 = vunpack.c.l.b16 %v11167
        %v11368 = vunpack.c.h.b16 %v11167
        %v11369 = vunpack.c.l.b16 %v11168
        %v11370 = vunpack.c.h.b16 %v11168
        %v11371 = vunpack.c.l.b16 %v11169
        %v11372 = vunpack.c.h.b16 %v11169
        %v11373 = vunpack.c.l.b16 %v11170
        %v11374 = vunpack.c.h.b16 %v11170
        %v11375 = vpack.c.b16 %v11249, %v11247
        %v11376 = vpack.c.b16 %v11250, %v11248
        %v11377 = vpack.c.b16 %v11253, %v11251
        %v11378 = vpack.c.b16 %v11254, %v11252
        %v11379 = vpack.c.b16 %v11257, %v11255
        %v11380 = vpack.c.b16 %v11258, %v11256
        %v11381 = vpack.c.b16 %v11261, %v11259
        %v11382 = vpack.c.b16 %v11262, %v11260
        %v11383 = vpack.c.b16 %v11265, %v11263
        %v11384 = vpack.c.b16 %v11266, %v11264
        %v11385 = vpack.c.b16 %v11269, %v11267
        %v11386 = vpack.c.b16 %v11270, %v11268
        %v11387 = vpack.c.b16 %v11273, %v11271
        %v11388 = vpack.c.b16 %v11274, %v11272
        %v11389 = vpack.c.b16 %v11277, %v11275
        %v11390 = vpack.c.b16 %v11278, %v11276
        %v11391 = vpack.c.b16 %v11281, %v11279
        %v11392 = vpack.c.b16 %v11282, %v11280
        %v11393 = vpack.c.b16 %v11285, %v11283
        %v11394 = vpack.c.b16 %v11286, %v11284
        %v11395 = vpack.c.b16 %v11289, %v11287
        %v11396 = vpack.c.b16 %v11290, %v11288
        %v11397 = vpack.c.b16 %v11293, %v11291
        %v11398 = vpack.c.b16 %v11294, %v11292
        %v11399 = vpack.c.b16 %v11297, %v11295
        %v11400 = vpack.c.b16 %v11298, %v11296
        %v11401 = vpack.c.b16 %v11301, %v11299
        %v11402 = vpack.c.b16 %v11302, %v11300
        %v11403 = vpack.c.b16 %v11305, %v11303
        %v11404 = vpack.c.b16 %v11306, %v11304
        %v11405 = vpack.c.b16 %v11309, %v11307
        %v11406 = vpack.c.b16 %v11310, %v11308
        %v11407 = vpack.c.b16 %v11313, %v11311
        %v11408 = vpack.c.b16 %v11314, %v11312
        %v11409 = vpack.c.b16 %v11317, %v11315
        %v11410 = vpack.c.b16 %v11318, %v11316
        %v11411 = vpack.c.b16 %v11321, %v11319
        %v11412 = vpack.c.b16 %v11322, %v11320
        %v11413 = vpack.c.b16 %v11325, %v11323
        %v11414 = vpack.c.b16 %v11326, %v11324
        %v11415 = vpack.c.b16 %v11329, %v11327
        %v11416 = vpack.c.b16 %v11330, %v11328
        %v11417 = vpack.c.b16 %v11333, %v11331
        %v11418 = vpack.c.b16 %v11334, %v11332
        %v11419 = vpack.c.b16 %v11337, %v11335
        %v11420 = vpack.c.b16 %v11338, %v11336
        %v11421 = vpack.c.b16 %v11341, %v11339
        %v11422 = vpack.c.b16 %v11342, %v11340
        %v11423 = vpack.c.b16 %v11345, %v11343
        %v11424 = vpack.c.b16 %v11346, %v11344
        %v11425 = vpack.c.b16 %v11349, %v11347
        %v11426 = vpack.c.b16 %v11350, %v11348
        %v11427 = vpack.c.b16 %v11353, %v11351
        %v11428 = vpack.c.b16 %v11354, %v11352
        %v11429 = vpack.c.b16 %v11357, %v11355
        %v11430 = vpack.c.b16 %v11358, %v11356
        %v11431 = vpack.c.b16 %v11361, %v11359
        %v11432 = vpack.c.b16 %v11362, %v11360
        %v11433 = vpack.c.b16 %v11365, %v11363
        %v11434 = vpack.c.b16 %v11366, %v11364
        %v11435 = vpack.c.b16 %v11369, %v11367
        %v11436 = vpack.c.b16 %v11370, %v11368
        %v11437 = vpack.c.b16 %v11373, %v11371
        %v11438 = vpack.c.b16 %v11374, %v11372
        %11503 = vmatprep.subr.bf16.mxu0 %v11390
        %11504 = vmatpush1.bf16.msra.mxu0 %v11389
        %11505 = vmatprep.subr.bf16.mxu0 %v11388
        %11506 = vmatpush1.bf16.msra.mxu0 %v11387
        %11507 = vmatprep.subr.bf16.mxu0 %v11386
        %11508 = vmatpush1.bf16.msra.mxu0 %v11385
        %11509 = vmatprep.subr.bf16.mxu0 %v11384
        %11510 = vmatpush1.bf16.msra.mxu0 %v11383
        %11511 = vmatprep.subr.bf16.mxu0 %v11382
        %11512 = vmatpush1.bf16.msra.mxu0 %v11381
        %11513 = vmatprep.subr.bf16.mxu0 %v11380
        %11514 = vmatpush1.bf16.msra.mxu0 %v11379
        %11515 = vmatprep.subr.bf16.mxu0 %v11378
        %11516 = vmatpush1.bf16.msra.mxu0 %v11377
        %11517 = vmatprep.subr.bf16.mxu0 %v11376
        %11518 = vmatpush1.bf16.msra.mxu0 %v11375
        %11519 = vmatprep.subr.bf16.mxu0 %v11406
        %11520 = vmatpush2.bf16.msra.mxu0 %v11405
        %11521 = vmatprep.subr.bf16.mxu0 %v11404
        %11522 = vmatpush2.bf16.msra.mxu0 %v11403
        %11523 = vmatprep.subr.bf16.mxu0 %v11402
        %11524 = vmatpush2.bf16.msra.mxu0 %v11401
        %11525 = vmatprep.subr.bf16.mxu0 %v11400
        %11526 = vmatpush2.bf16.msra.mxu0 %v11399
        %11527 = vmatprep.subr.bf16.mxu0 %v11398
        %11528 = vmatpush2.bf16.msra.mxu0 %v11397
        %11529 = vmatprep.subr.bf16.mxu0 %v11396
        %11530 = vmatpush2.bf16.msra.mxu0 %v11395
        %11531 = vmatprep.subr.bf16.mxu0 %v11394
        %11532 = vmatpush2.bf16.msra.mxu0 %v11393
        %11533 = vmatprep.subr.bf16.mxu0 %v11392
        %11534 = vmatpush2.bf16.msra.mxu0 %v11391
        %11535 = vmatprep.mubr.bf16.mxu0 %v11096
        %11536 = vmatmul.mubr.bf16.gmra.mxu0 %v11095
        %v11537 = vpop.f32.mrf.mxu0
        %v11538 = vadd.f32 %v11176, %v11537
        %v11539 = vpop.f32.mrf.mxu0
        %v11540 = vadd.f32 %v11180, %v11539
        %v11541 = vpop.f32.mrf.mxu0
        %v11542 = vadd.f32 %v11176, %v11541
        %v11543 = vpop.f32.mrf.mxu0
        %v11544 = vadd.f32 %v11180, %v11543
        %11545 = vmatprep.mubr.bf16.mxu0 %v11100
        %11546 = vmatmul.mubr.bf16.gmra.mxu0 %v11099
        %v11547 = vpop.f32.mrf.mxu0
        %v11548 = vadd.f32 %v11176, %v11547
        %v11549 = vpop.f32.mrf.mxu0
        %v11550 = vadd.f32 %v11180, %v11549
        %v11551 = vpop.f32.mrf.mxu0
        %v11552 = vadd.f32 %v11176, %v11551
        %v11553 = vpop.f32.mrf.mxu0
        %v11554 = vadd.f32 %v11180, %v11553
        %11555 = vmatprep.mubr.bf16.mxu0 %v11104
        %11556 = vmatmul.mubr.bf16.gmra.mxu0 %v11103
        %v11557 = vpop.f32.mrf.mxu0
        %v11558 = vadd.f32 %v11176, %v11557
        %v11559 = vpop.f32.mrf.mxu0
        %v11560 = vadd.f32 %v11180, %v11559
        %v11561 = vpop.f32.mrf.mxu0
        %v11562 = vadd.f32 %v11176, %v11561
        %v11563 = vpop.f32.mrf.mxu0
        %v11564 = vadd.f32 %v11180, %v11563
        %11565 = vdwg.mxu0
        %11566 = vmatprep.subr.bf16.mxu0 %v11422
        %11567 = vmatpush1.bf16.msra.mxu0 %v11421
        %11568 = vmatprep.subr.bf16.mxu0 %v11420
        %11569 = vmatpush1.bf16.msra.mxu0 %v11419
        %11570 = vmatprep.subr.bf16.mxu0 %v11418
        %11571 = vmatpush1.bf16.msra.mxu0 %v11417
        %11572 = vmatprep.subr.bf16.mxu0 %v11416
        %11573 = vmatpush1.bf16.msra.mxu0 %v11415
        %11574 = vmatprep.subr.bf16.mxu0 %v11414
        %11575 = vmatpush1.bf16.msra.mxu0 %v11413
        %11576 = vmatprep.subr.bf16.mxu0 %v11412
        %11577 = vmatpush1.bf16.msra.mxu0 %v11411
        %11578 = vmatprep.subr.bf16.mxu0 %v11410
        %11579 = vmatpush1.bf16.msra.mxu0 %v11409
        %11580 = vmatprep.subr.bf16.mxu0 %v11408
        %11581 = vmatpush1.bf16.msra.mxu0 %v11407
        %11582 = vmatprep.subr.bf16.mxu0 %v11438
        %11583 = vmatpush2.bf16.msra.mxu0 %v11437
        %11584 = vmatprep.subr.bf16.mxu0 %v11436
        %11585 = vmatpush2.bf16.msra.mxu0 %v11435
        %11586 = vmatprep.subr.bf16.mxu0 %v11434
        %11587 = vmatpush2.bf16.msra.mxu0 %v11433
        %11588 = vmatprep.subr.bf16.mxu0 %v11432
        %11589 = vmatpush2.bf16.msra.mxu0 %v11431
        %11590 = vmatprep.subr.bf16.mxu0 %v11430
        %11591 = vmatpush2.bf16.msra.mxu0 %v11429
        %11592 = vmatprep.subr.bf16.mxu0 %v11428
        %11593 = vmatpush2.bf16.msra.mxu0 %v11427
        %11594 = vmatprep.subr.bf16.mxu0 %v11426
        %11595 = vmatpush2.bf16.msra.mxu0 %v11425
        %11596 = vmatprep.subr.bf16.mxu0 %v11424
        %11597 = vmatpush2.bf16.msra.mxu0 %v11423
        %11598 = vmatprep.mubr.bf16.mxu0 %v11098
        %11599 = vmatmul.mubr.bf16.gmra.mxu0 %v11097
        %v11600 = vpop.f32.mrf.mxu0
        %v11601 = vadd.f32 %v11538, %v11600
        %v11602 = vpop.f32.mrf.mxu0
        %v11603 = vadd.f32 %v11540, %v11602
        %v11604 = vpop.f32.mrf.mxu0
        %v11605 = vadd.f32 %v11542, %v11604
        %v11606 = vpop.f32.mrf.mxu0
        %v11607 = vadd.f32 %v11544, %v11606
        %11608 = vmatprep.mubr.bf16.mxu0 %v11102
        %11609 = vmatmul.mubr.bf16.gmra.mxu0 %v11101
        %v11610 = vpop.f32.mrf.mxu0
        %v11611 = vadd.f32 %v11548, %v11610
        %v11612 = vpop.f32.mrf.mxu0
        %v11613 = vadd.f32 %v11550, %v11612
        %v11614 = vpop.f32.mrf.mxu0
        %v11615 = vadd.f32 %v11552, %v11614
        %v11616 = vpop.f32.mrf.mxu0
        %v11617 = vadd.f32 %v11554, %v11616
        %11618 = vmatprep.mubr.bf16.mxu0 %v11106
        %11619 = vmatmul.mubr.bf16.gmra.mxu0 %v11105
        %v11620 = vpop.f32.mrf.mxu0
        %v11621 = vadd.f32 %v11558, %v11620
        %v11622 = vpop.f32.mrf.mxu0
        %v11623 = vadd.f32 %v11560, %v11622
        %v11624 = vpop.f32.mrf.mxu0
        %v11625 = vadd.f32 %v11562, %v11624
        %v11626 = vpop.f32.mrf.mxu0
        %v11627 = vadd.f32 %v11564, %v11626
        %11628 = vdwg.mxu0
        %v11629 = vmax.f32 %v11601, 0.0
        %v11630 = vmax.f32 %v11603, 0.0
        %v11631 = vmax.f32 %v11605, 0.0
        %v11632 = vmax.f32 %v11607, 0.0
        %v11633 = vmax.f32 %v11611, 0.0
        %v11634 = vmax.f32 %v11613, 0.0
        %v11635 = vmax.f32 %v11615, 0.0
        %v11636 = vmax.f32 %v11617, 0.0
        %v11637 = vmax.f32 %v11621, 0.0
        %v11638 = vmax.f32 %v11623, 0.0
        %v11639 = vmax.f32 %v11625, 0.0
        %v11640 = vmax.f32 %v11627, 0.0
        %v11641 = vadd.f32 %v11629, %v11631
        %v11642 = vrot.slane %v11641, 4
        %v11643 = vadd.f32 %v11641, %v11642
        %v11644 = vrot.slane %v11643, 2
        %v11645 = vadd.f32 %v11643, %v11644
        %v11646 = vrot.slane %v11645, 1
        %v11647 = vadd.f32 %v11645, %v11646
        %v11648 = vadd.f32 %v11630, %v11632
        %v11649 = vrot.slane %v11648, 4
        %v11650 = vadd.f32 %v11648, %v11649
        %v11651 = vrot.slane %v11650, 2
        %v11652 = vadd.f32 %v11650, %v11651
        %v11653 = vrot.slane %v11652, 1
        %v11654 = vadd.f32 %v11652, %v11653
        %v11655 = vadd.f32 %v11633, %v11635
        %v11656 = vrot.slane %v11655, 4
        %v11657 = vadd.f32 %v11655, %v11656
        %v11658 = vrot.slane %v11657, 2
        %v11659 = vadd.f32 %v11657, %v11658
        %v11660 = vrot.slane %v11659, 1
        %v11661 = vadd.f32 %v11659, %v11660
        %v11662 = vadd.f32 %v11634, %v11636
        %v11663 = vrot.slane %v11662, 4
        %v11664 = vadd.f32 %v11662, %v11663
        %v11665 = vrot.slane %v11664, 2
        %v11666 = vadd.f32 %v11664, %v11665
        %v11667 = vrot.slane %v11666, 1
        %v11668 = vadd.f32 %v11666, %v11667
        %v11669 = vadd.f32 %v11637, %v11639
        %v11670 = vrot.slane %v11669, 4
        %v11671 = vadd.f32 %v11669, %v11670
        %v11672 = vrot.slane %v11671, 2
        %v11673 = vadd.f32 %v11671, %v11672
        %v11674 = vrot.slane %v11673, 1
        %v11675 = vadd.f32 %v11673, %v11674
        %v11676 = vadd.f32 %v11638, %v11640
        %v11677 = vrot.slane %v11676, 4
        %v11678 = vadd.f32 %v11676, %v11677
        %v11679 = vrot.slane %v11678, 2
        %v11680 = vadd.f32 %v11678, %v11679
        %v11681 = vrot.slane %v11680, 1
        %v11682 = vadd.f32 %v11680, %v11681
        %p11683 = scmp.eq.s32.totalorder %s29, 0
        // Predicated region
        $region77: #{tpu_custom_call.1} parent=47 // pred_check
          %p11684 = pneg %p11683
        $region78: #{tpu_custom_call.1} parent=47 // pred_check_branch
          %11686 = sbr.rel (%p11684) target = $region80
        $region79: #{tpu_custom_call.1} parent=47 // pred_region
          %11687 = vst [vmem:[%s397] sm:$0x77] 0.0
        $region80: #{tpu_custom_call.1} parent=47 // pred_fallthru
          _
        %v11688 = vld [vmem:[%s397] sm:$0x77]
        %v11695 = vcombine.low %v11647, %v11654
        %v11696 = vcombine.low %v11661, %v11668
        %v11697 = vcombine.low %v11675, %v11682
        %v11698 = vrot.slane %v11696, 7
        %vm11699 = vcmask 1041409
        %v11700 = vsel %vm11699, %v11698, %v11695
        %vm11701 = vcmask 1045509
        %v11702 = vsel %vm11701, %v11698, %v11700
        %v11703 = vrot.slane %v11697, 6
        %vm11704 = vcmask 1042434
        %v11705 = vsel %vm11704, %v11703, %v11702
        %vm11706 = vcmask 1046534
        %v11707 = vsel %vm11706, %v11703, %v11705
        %v11709 = vadd.f32 %v11688, %v11707
        %11710 = vst [vmem:[%s397] sm:$0x77] %v11709
        %p11711 = scmp.lt.s32.totalorder %s28, 1
        %s11712 = scalar_select %p11711, %s28, 1
        %s11713 = smul.addr %s11712, 2
        %s11714 = smul.addr %s11713, 4
        %s11715 = scalar_lea.vmem %s7, %s11714
        // Predicated region
        $region81: #{tpu_custom_call.1} parent=47 // pred_check
          %p11716 = pneg %p208
        $region82: #{tpu_custom_call.1} parent=47 // pred_check_branch
          %11718 = sbr.rel (%p11716) target = $region84
        $region83: #{tpu_custom_call.1} parent=47 // pred_region
          _
        $region84: #{tpu_custom_call.1} parent=47 // pred_fallthru
          _
      $region48: #{tpu_custom_call.1} parent=5 // pred_fallthru
        _
      %p11719 = scmp.le.s32.totalorder 2, %s19
      // Predicated region
      $region85: #{tpu_custom_call.1} parent=5 // pred_check
        %p11720 = pneg %p11719
      $region86: #{tpu_custom_call.1} parent=5 // pred_check_branch
        %11722 = sbr.rel (%p11720) target = $region88
      $region87: #{tpu_custom_call.1} parent=5 // pred_region
        %s11723 = ssub.s32 %s19, 2
        // Predicated region
        $region89: #{tpu_custom_call.1} parent=87 // pred_check
          %p11724 = pneg %p214
        $region90: #{tpu_custom_call.1} parent=87 // pred_check_branch
          %11726 = sbr.rel (%p11724) target = $region92
        $region91: #{tpu_custom_call.1} parent=87 // pred_region
          %p11727 = scmp.lt.s32.totalorder %s30, 1
          %s11728 = scalar_select %p11727, %s30, 1
          %s11729 = smul.addr %s11728, 2
          %s11730 = smul.addr %s11729, 4
          %s11731 = scalar_lea.vmem %s7, %s11730
        $region92: #{tpu_custom_call.1} parent=87 // pred_fallthru
          _
      $region88: #{tpu_custom_call.1} parent=5 // pred_fallthru
        _
    $region6: #{tpu_custom_call.1} parent=1 // loop_footer
      %s23 = sadd.s32 1, %s19
    $region7: #{tpu_custom_call.1} parent=1 // loop_footer_branch
      %18 = sbr.rel target = $region3
    $region8: #{tpu_custom_call.1} parent=1 // loop_exit
      _
    %11732 = vsyncpa [#allocation3], 1
    %s11733 = scalar_lea.sflag [#allocation3], 1
    %11734 = vsyncpa %s11733, 1
    %11735 = vsyncpa [#allocation5], 1
    %11736 = vsyncpa [#allocation8], 1
    %11737 = vsyncpa [#allocation11], 1

</llo_original>
